<compile_context>
chip_gen: v6e
topology: v6e:2x2x1
jax: 0.10.0
libtpu: 0.0.40
codegen_flags: <defaults>
</compile_context>

<pallas_src>
import jax
import jax.numpy as jnp
from jax import lax
from jax.experimental import pallas as pl
from jax.experimental.pallas import tpu as pltpu


def _round_up(x, m):
    return (x + m - 1) // m * m


def _pick_block_b(batch, requested):
    """Large tiles to amortize ~0.35us/step overhead, but keep >=4 grid steps
    (>=2 per TensorCore on v7x) when the batch allows; never below 128 rows."""
    bb = max(128, min(requested, 512))
    while bb > 128 and pl.cdiv(batch, bb) < 4:
        bb //= 2
    # Tiny batches: a single tile covering the (16-row padded) batch.
    return min(bb, _round_up(batch, 16))


def cbow_kernel(idx_ref, w1e_ref, b1_ref, w2_ref, b2_ref, o_ref):
    # idx_ref: (TB, n_tok) int32 token ids, pre-offset by t*V in the wrapper
    # w1e_ref: (n_tok*V, H) bf16  folded  emb @ w1   (VMEM-resident)
    # b1_ref : (1, H) f32
    # w2_ref : (H, V) bf16 (VMEM-resident);  b2_ref: (1, V) f32
    # o_ref  : (TB, V) f32 log-probabilities
    tb, n_tok = idx_ref.shape
    ntv, _ = w1e_ref.shape

    idx = idx_ref[...]                                          # (TB, n_tok)
    iota = lax.broadcasted_iota(jnp.int32, (tb, ntv), 1)        # (TB, n_tok*V)

    # Combined one-hot over the folded operand: row b has a 1 at column
    # idx[b, t] (already offset by t*V) for each context slot t.
    onehot = (iota == idx[:, 0:1]).astype(jnp.bfloat16)
    for t in range(1, n_tok):                                   # small static unroll
        onehot = onehot + (iota == idx[:, t:t + 1]).astype(jnp.bfloat16)

    # Fused gather + linear1: one full-shape MXU matmul (K = n_tok*V, N = H).
    h = jnp.dot(onehot, w1e_ref[...], preferred_element_type=jnp.float32)
    h = jnp.maximum(h + b1_ref[...], 0.0)                       # bias + ReLU in f32

    # linear2 (bf16 MXU inputs, f32 accumulate) + bias
    logits = jnp.dot(h.astype(jnp.bfloat16), w2_ref[...],
                     preferred_element_type=jnp.float32) + b2_ref[...]

    # Numerically-stable log_softmax; use o_ref as scratch for the shifted
    # logits so the epilogue keeps only one full-size live array in vregs.
    m = jnp.max(logits, axis=-1, keepdims=True)
    o_ref[...] = logits - m
    lse = jnp.log(jnp.sum(jnp.exp(o_ref[...]), axis=-1, keepdims=True))
    o_ref[...] = o_ref[...] - lse


def prepare_cbow_params(emb_table, w1, b1, w2, b2):
    """One-time parameter prep: fold emb into linear1 and cast MXU operands to bf16.

    emb_table: (V, E) f32
    w1: (n_tok*E, H) f32   b1: (1, H) f32
    w2: (H, V) f32         b2: (1, V) f32
    returns (w1eff bf16 (n_tok*V, H), b1 f32 (1, H), w2 bf16 (H, V), b2 f32 (1, V))
    """
    V, E = emb_table.shape
    F, H = w1.shape
    assert F % E == 0, "w1 in_features must be a multiple of embedding_dim"
    n_tok = F // E
    assert w2.shape == (H, V)

    # W1eff[t*V + v, :] = emb[v, :] @ w1[t*E:(t+1)*E, :]   (folded in f32)
    w1r = w1.reshape(n_tok, E, H)
    w1eff = jnp.einsum("ve,teh->tvh", emb_table, w1r,
                       precision=lax.Precision.HIGHEST)
    w1eff = w1eff.reshape(n_tok * V, H).astype(jnp.bfloat16)
    return (w1eff,
            b1.reshape(1, H).astype(jnp.float32),
            w2.astype(jnp.bfloat16),
            b2.reshape(1, V).astype(jnp.float32))


def cbow_forward(inputs, w1eff, b1, w2, b2, *, block_b=256):
    """CBOW forward pass.

    inputs: (B, 2*context_size) int32 token indices
    w1eff/b1/w2/b2: from prepare_cbow_params
    returns (B, V) f32 log-probabilities.
    """
    B, n_tok = inputs.shape
    NTV, H = w1eff.shape
    V = w2.shape[1]
    assert NTV == n_tok * V, "w1eff rows must equal n_tok * vocab"
    assert w2.shape == (H, V)

    bb = _pick_block_b(B, block_b)
    Bp = _round_up(B, bb)

    idx = inputs.astype(jnp.int32)
    if Bp != B:
        idx = jnp.pad(idx, ((0, Bp - B), (0, 0)))   # pad rows sliced off below
    # Pre-offset token ids so slot t selects rows [t*V, (t+1)*V) of w1eff.
    idx = idx + jnp.arange(n_tok, dtype=jnp.int32)[None, :] * V

    grid = (Bp // bb,)
    flops = 2 * Bp * NTV * H + 2 * Bp * H * V
    bytes_accessed = (Bp * n_tok * 4 + NTV * H * 2 + H * V * 2
                      + H * 4 + V * 4 + Bp * V * 4)
    cost = pl.CostEstimate(flops=flops, transcendentals=Bp * V,
                           bytes_accessed=bytes_accessed)

    out = pl.pallas_call(
        cbow_kernel,
        out_shape=jax.ShapeDtypeStruct((Bp, V), jnp.float32),
        grid_spec=pltpu.PrefetchScalarGridSpec(
            num_scalar_prefetch=0,
            grid=grid,
            in_specs=[
                pl.BlockSpec((bb, n_tok), lambda b: (b, 0)),   # token ids (pipelined)
                pl.BlockSpec((NTV, H), lambda b: (0, 0)),      # folded emb@w1 (resident)
                pl.BlockSpec((1, H), lambda b: (0, 0)),        # b1
                pl.BlockSpec((H, V), lambda b: (0, 0)),        # w2 (resident)
                pl.BlockSpec((1, V), lambda b: (0, 0)),        # b2
            ],
            out_specs=pl.BlockSpec((bb, V), lambda b: (b, 0)),
        ),
        compiler_params=pltpu.CompilerParams(
            dimension_semantics=("parallel",)),   # shard batch tiles across TCs (v7x)
        cost_estimate=cost,
    )(idx, w1eff, b1, w2, b2)

    return out[:B]


if __name__ == "__main__":
    vocab_size = 256
    embedding_dim = 32
    context_size = 2                 # 2*context_size tokens per example
    n_tok = 2 * context_size
    hidden = 128
    feat = n_tok * embedding_dim     # 128
    batch_size = 1024                # 4 grid steps of 256-row tiles (>=2 per TC on v7x)

    key = jax.random.PRNGKey(0)
    k_emb, k_w1, k_b1, k_w2, k_b2, k_in = jax.random.split(key, 6)

    emb_table = jax.random.normal(k_emb, (vocab_size, embedding_dim), jnp.float32)
    w1 = jax.random.normal(k_w1, (feat, hidden), jnp.float32) * 0.05
    b1 = jax.random.normal(k_b1, (1, hidden), jnp.float32) * 0.05
    w2 = jax.random.normal(k_w2, (hidden, vocab_size), jnp.float32) * 0.05
    b2 = jax.random.normal(k_b2, (1, vocab_size), jnp.float32) * 0.05

    inputs = jax.random.randint(
        k_in, (batch_size, n_tok), 0, vocab_size, dtype=jnp.int32)

    # One-time prep (fold + bf16 cast) — NOT repeated per forward call.
    w1eff, b1p, w2p, b2p = prepare_cbow_params(emb_table, w1, b1, w2, b2)

    fwd = jax.jit(cbow_forward)
    log_probs = jax.block_until_ready(fwd(inputs, w1eff, b1p, w2p, b2p))
    assert log_probs.shape == (batch_size, vocab_size)
    assert bool(jnp.all(jnp.isfinite(log_probs)))

    # Matched-precision reference: same fold (bf16 W1eff rows summed in f32),
    # bf16 MXU inputs for linear2, f32 everything else.
    w1eff_f32 = w1eff.astype(jnp.float32).reshape(n_tok, vocab_size, hidden)
    h_ref = jnp.zeros((batch_size, hidden), jnp.float32)
    for t in range(n_tok):
        h_ref = h_ref + w1eff_f32[t, inputs[:, t], :]
    h_ref = jnp.maximum(h_ref + b1p, 0.0)
    logits_ref = jnp.dot(h_ref.astype(jnp.bfloat16), w2p,
                         preferred_element_type=jnp.float32) + b2p
    ref_matched = jax.nn.log_softmax(logits_ref, axis=1)

    # Full-f32 reference (original module semantics); loose tolerance covers
    # the bf16 fold + bf16 matmul inputs.
    x32 = jnp.take(emb_table, inputs, axis=0).reshape(batch_size, -1)
    h32 = jnp.maximum(x32 @ w1 + b1, 0.0)
    ref_f32 = jax.nn.log_softmax(h32 @ w2 + b2, axis=1)

    assert bool(jnp.allclose(log_probs, ref_matched, atol=2e-3)), \
        "mismatch vs matched-precision reference"
    assert float(jnp.max(jnp.abs(log_probs - ref_f32))) < 1e-1, \
        "mismatch vs f32 reference"

    print("KERNEL_OK")
</pallas_src>

<mosaic_0001>
module attributes {stable_mosaic.version = 11 : i64} {
  func.func @cbow_kernel(%arg0: i32, %arg1: memref<256x4xi32, #tpu.memory_space<vmem>>, %arg2: memref<1024x128xbf16, #tpu.memory_space<vmem>>, %arg3: memref<1x128xf32, #tpu.memory_space<vmem>>, %arg4: memref<128x256xbf16, #tpu.memory_space<vmem>>, %arg5: memref<1x256xf32, #tpu.memory_space<vmem>>, %arg6: memref<256x256xf32, #tpu.memory_space<vmem>>) attributes {dimension_semantics = [#tpu.dimension_semantics<parallel>], iteration_bounds = array<i64: 4>, scalar_prefetch = 0 : i64, scratch_operands = 0 : i64, tpu.core_type = #tpu.core_type<tc>, window_params = [{transform_indices = @transform_0, window_bounds = array<i64: 256, 4>}, {pipeline_mode = #tpu.pipeline_mode<synchronous>, transform_indices = @transform_1, window_bounds = array<i64: 1024, 128>}, {pipeline_mode = #tpu.pipeline_mode<synchronous>, transform_indices = @transform_2, window_bounds = array<i64: 1, 128>}, {pipeline_mode = #tpu.pipeline_mode<synchronous>, transform_indices = @transform_3, window_bounds = array<i64: 128, 256>}, {pipeline_mode = #tpu.pipeline_mode<synchronous>, transform_indices = @transform_4, window_bounds = array<i64: 1, 256>}, {transform_indices = @transform_5, window_bounds = array<i64: 256, 256>}]} {
    %c0 = arith.constant 0 : index
    %c0_0 = arith.constant 0 : index
    %0 = vector.load %arg1[%c0, %c0_0] : memref<256x4xi32, #tpu.memory_space<vmem>>, vector<256x4xi32>
    %1 = tpu.iota {dimensions = array<i32: 1>} : vector<256x1024xi32>
    %2 = vector.extract_strided_slice %0 {offsets = [0, 0], sizes = [256, 1], strides = [1, 1]} : vector<256x4xi32> to vector<256x1xi32>
    %3 = vector.broadcast %2 : vector<256x1xi32> to vector<256x1024xi32>
    %4 = arith.cmpi eq, %1, %3 : vector<256x1024xi32>
    %5 = arith.extui %4 : vector<256x1024xi1> to vector<256x1024xi32>
    %6 = arith.sitofp %5 : vector<256x1024xi32> to vector<256x1024xf32>
    %7 = arith.truncf %6 : vector<256x1024xf32> to vector<256x1024xbf16>
    %8 = vector.extract_strided_slice %0 {offsets = [0, 1], sizes = [256, 1], strides = [1, 1]} : vector<256x4xi32> to vector<256x1xi32>
    %9 = vector.broadcast %8 : vector<256x1xi32> to vector<256x1024xi32>
    %10 = arith.cmpi eq, %1, %9 : vector<256x1024xi32>
    %11 = arith.extui %10 : vector<256x1024xi1> to vector<256x1024xi32>
    %12 = arith.sitofp %11 : vector<256x1024xi32> to vector<256x1024xf32>
    %13 = arith.truncf %12 : vector<256x1024xf32> to vector<256x1024xbf16>
    %14 = arith.addf %7, %13 : vector<256x1024xbf16>
    %15 = vector.extract_strided_slice %0 {offsets = [0, 2], sizes = [256, 1], strides = [1, 1]} : vector<256x4xi32> to vector<256x1xi32>
    %16 = vector.broadcast %15 : vector<256x1xi32> to vector<256x1024xi32>
    %17 = arith.cmpi eq, %1, %16 : vector<256x1024xi32>
    %18 = arith.extui %17 : vector<256x1024xi1> to vector<256x1024xi32>
    %19 = arith.sitofp %18 : vector<256x1024xi32> to vector<256x1024xf32>
    %20 = arith.truncf %19 : vector<256x1024xf32> to vector<256x1024xbf16>
    %21 = arith.addf %14, %20 : vector<256x1024xbf16>
    %22 = vector.extract_strided_slice %0 {offsets = [0, 3], sizes = [256, 1], strides = [1, 1]} : vector<256x4xi32> to vector<256x1xi32>
    %23 = vector.broadcast %22 : vector<256x1xi32> to vector<256x1024xi32>
    %24 = arith.cmpi eq, %1, %23 : vector<256x1024xi32>
    %25 = arith.extui %24 : vector<256x1024xi1> to vector<256x1024xi32>
    %26 = arith.sitofp %25 : vector<256x1024xi32> to vector<256x1024xf32>
    %27 = arith.truncf %26 : vector<256x1024xf32> to vector<256x1024xbf16>
    %28 = arith.addf %21, %27 : vector<256x1024xbf16>
    %c0_1 = arith.constant 0 : index
    %c0_2 = arith.constant 0 : index
    %29 = vector.load %arg2[%c0_1, %c0_2] : memref<1024x128xbf16, #tpu.memory_space<vmem>>, vector<1024x128xbf16>
    %cst = arith.constant dense<0.000000e+00> : vector<256x128xf32>
    %30 = tpu.matmul %28, %29, %cst {dimension_numbers = #tpu.dot_dimension_numbers<[1], [0], [0], [1], [0, 0, 1, 1], [], []>} : vector<256x1024xbf16>, vector<1024x128xbf16>, vector<256x128xf32> -> vector<256x128xf32>
    %c0_3 = arith.constant 0 : index
    %c0_4 = arith.constant 0 : index
    %31 = vector.load %arg3[%c0_3, %c0_4] : memref<1x128xf32, #tpu.memory_space<vmem>>, vector<1x128xf32>
    %32 = vector.broadcast %31 : vector<1x128xf32> to vector<256x128xf32>
    %33 = arith.addf %30, %32 : vector<256x128xf32>
    %cst_5 = arith.constant 0.000000e+00 : f32
    %34 = vector.broadcast %cst_5 : f32 to vector<256x128xf32>
    %35 = arith.maximumf %33, %34 : vector<256x128xf32>
    %36 = arith.truncf %35 : vector<256x128xf32> to vector<256x128xbf16>
    %c0_6 = arith.constant 0 : index
    %c0_7 = arith.constant 0 : index
    %37 = vector.load %arg4[%c0_6, %c0_7] : memref<128x256xbf16, #tpu.memory_space<vmem>>, vector<128x256xbf16>
    %cst_8 = arith.constant dense<0.000000e+00> : vector<256x256xf32>
    %38 = tpu.matmul %36, %37, %cst_8 {dimension_numbers = #tpu.dot_dimension_numbers<[1], [0], [0], [1], [0, 0, 1, 1], [], []>} : vector<256x128xbf16>, vector<128x256xbf16>, vector<256x256xf32> -> vector<256x256xf32>
    %c0_9 = arith.constant 0 : index
    %c0_10 = arith.constant 0 : index
    %39 = vector.load %arg5[%c0_9, %c0_10] : memref<1x256xf32, #tpu.memory_space<vmem>>, vector<1x256xf32>
    %40 = vector.broadcast %39 : vector<1x256xf32> to vector<256x256xf32>
    %41 = arith.addf %38, %40 : vector<256x256xf32>
    %cst_11 = arith.constant dense<0xFF800000> : vector<256xf32>
    %42 = vector.multi_reduction <maximumf>, %41, %cst_11 [1] : vector<256x256xf32> to vector<256xf32>
    %43 = vector.shape_cast %42 : vector<256xf32> to vector<256x1xf32>
    %44 = vector.broadcast %43 : vector<256x1xf32> to vector<256x256xf32>
    %45 = arith.subf %41, %44 : vector<256x256xf32>
    %c0_12 = arith.constant 0 : index
    %c0_13 = arith.constant 0 : index
    %46 = vector.load %arg6[%c0_12, %c0_13] : memref<256x256xf32, #tpu.memory_space<vmem>>, vector<256x256xf32>
    tpu.vector_store %arg6[%c0_12, %c0_13], %45 {strides = array<i32>} : memref<256x256xf32, #tpu.memory_space<vmem>>, vector<256x256xf32>,
    %c0_14 = arith.constant 0 : index
    %c0_15 = arith.constant 0 : index
    %47 = vector.load %arg6[%c0_14, %c0_15] : memref<256x256xf32, #tpu.memory_space<vmem>>, vector<256x256xf32>
    %48 = math.exp %47 : vector<256x256xf32>
    %cst_16 = arith.constant dense<0.000000e+00> : vector<256xf32>
    %49 = vector.multi_reduction <add>, %48, %cst_16 [1] : vector<256x256xf32> to vector<256xf32>
    %50 = vector.shape_cast %49 : vector<256xf32> to vector<256x1xf32>
    %51 = math.log %50 : vector<256x1xf32>
    %c0_17 = arith.constant 0 : index
    %c0_18 = arith.constant 0 : index
    %52 = vector.load %arg6[%c0_17, %c0_18] : memref<256x256xf32, #tpu.memory_space<vmem>>, vector<256x256xf32>
    %53 = vector.broadcast %51 : vector<256x1xf32> to vector<256x256xf32>
    %54 = arith.subf %52, %53 : vector<256x256xf32>
    %c0_19 = arith.constant 0 : index
    %c0_20 = arith.constant 0 : index
    %55 = vector.load %arg6[%c0_19, %c0_20] : memref<256x256xf32, #tpu.memory_space<vmem>>, vector<256x256xf32>
    tpu.vector_store %arg6[%c0_19, %c0_20], %54 {strides = array<i32>} : memref<256x256xf32, #tpu.memory_space<vmem>>, vector<256x256xf32>,
    return
  }
  func.func @transform_0(%arg0: i32) -> (i32, i32) {
    %c0_i32 = arith.constant 0 : i32
    %c0_i32_0 = arith.constant 0 : i32
    return %arg0, %c0_i32 : i32, i32
  }
  func.func @transform_1(%arg0: i32) -> (i32, i32) {
    %c0_i32 = arith.constant 0 : i32
    %c0_i32_0 = arith.constant 0 : i32
    %c0_i32_1 = arith.constant 0 : i32
    return %c0_i32, %c0_i32_0 : i32, i32
  }
  func.func @transform_2(%arg0: i32) -> (i32, i32) {
    %c0_i32 = arith.constant 0 : i32
    %c0_i32_0 = arith.constant 0 : i32
    %c0_i32_1 = arith.constant 0 : i32
    return %c0_i32, %c0_i32_0 : i32, i32
  }
  func.func @transform_3(%arg0: i32) -> (i32, i32) {
    %c0_i32 = arith.constant 0 : i32
    %c0_i32_0 = arith.constant 0 : i32
    %c0_i32_1 = arith.constant 0 : i32
    return %c0_i32, %c0_i32_0 : i32, i32
  }
  func.func @transform_4(%arg0: i32) -> (i32, i32) {
    %c0_i32 = arith.constant 0 : i32
    %c0_i32_0 = arith.constant 0 : i32
    %c0_i32_1 = arith.constant 0 : i32
    return %c0_i32, %c0_i32_0 : i32, i32
  }
  func.func @transform_5(%arg0: i32) -> (i32, i32) {
    %c0_i32 = arith.constant 0 : i32
    %c0_i32_0 = arith.constant 0 : i32
    return %arg0, %c0_i32 : i32, i32
  }
}

</mosaic_0001>

<llo_original>
// kernel: cbow_forward.1
$region0: #{cbow_forward.1}
  #allocation0 [shape = 'u32[]', space=smem, size = 0x4, offset = 0x4, fixed_abs, tag = 'smem constant byte address 0x4 - core index']
  #allocation1 [shape = 'u32[144,128]{1,0:T(1,128)}', space=vmem, size = 0x12000, scoped, tag = 'internal scratch']
  %s0 = inlined_call_operand.vmem [shape: s32[1024,4], index: 0, kind: input, shape index: {}]
  %s1 = inlined_call_operand.vmem [shape: bf16[1024,128], index: 1, kind: input, shape index: {}]
  %s2 = inlined_call_operand.vmem [shape: f32[1,128], index: 2, kind: input, shape index: {}]
  %s3 = inlined_call_operand.vmem [shape: bf16[128,256], index: 3, kind: input, shape index: {}]
  %s4 = inlined_call_operand.vmem [shape: f32[1,256], index: 4, kind: input, shape index: {}]
  %s5 = inlined_call_operand.hbm [shape: f32[1024,256], index: 5, kind: output, shape index: {}]
  %s6 = sld [smem:[#allocation0]]
  $region53: #{cbow_forward.1} parent=0
    _
  %s8 = ssub.s32 1, %s6
  %s9 = scalar_select 0, %s8, %s6
  $region1: #{cbow_forward.1} parent=0
    #allocation2 [shape = 'u8[524288]{0}', space=vmem, size = 0x80000, scoped, tag = 'output window, operand 0']
    #allocation3 [shape = 's32[2]{0}', space=sflag, size = 0x8, scoped, tag = 'scoped memory for cbow_forward.1']
    %10 = vsyncpa [#allocation3], 0
    %s11 = scalar_lea.sflag [#allocation3], 1
    %12 = vsyncpa %s11, 0
    loop: start=0, step=1, limit=6
    $region2: #{cbow_forward.1} parent=1 // loop_pre_header
      _
    $region3: #{cbow_forward.1} parent=1 // loop_header
      %s14 = sphi 0, %s18
      %p15 = scmp.ge.s32.totalorder %s14, 6
      %s24 = sphi 0, %s26
      %s27 = sphi 0, %s24
      %s28 = sphi 0, %s27
      %s44 = sphi 0, %s28
      %s48 = sphi 0, %s48
      %s50 = sphi 0, %s48
      %s51 = sphi 0, %s50
      %s65 = sphi 0, %s51
      %s69 = sphi 0, %s69
      %s71 = sphi 0, %s69
      %s72 = sphi 0, %s71
      %s86 = sphi 0, %s72
      %s90 = sphi 0, %s90
      %s92 = sphi 0, %s90
      %s93 = sphi 0, %s92
      %s107 = sphi 0, %s93
      %s111 = sphi 0, %s111
      %s113 = sphi 0, %s111
      %s114 = sphi 0, %s113
      %s128 = sphi 0, %s114
      %s134 = sphi 0, %s136
      %s137 = sphi 0, %s134
      %s138 = sphi 0, %s137
      %s154 = sphi 0, %s138
    $region4: #{cbow_forward.1} parent=1 // loop_header_branch
      %17 = sbr.rel (%p15) target = $region8
    $region5: #{cbow_forward.1} parent=1 // loop_body
      %s19 = ssub.s32 %s14, 1
      %s20 = ssub.s32 %s14, 2
      %s21 = sadd.s32 %s14, 1
      %s22 = ssub.s32 %s14, %s21
      %p23 = scmp.eq.s32.totalorder %s22, 0
      %s25 = sadd.s32 %s24, 1
      %s26 = scalar_select %p23, %s24, %s25
      %p29 = pneg %p23
      %p30 = scmp.eq.s32.totalorder %s14, 3
      %p31 = por %p29, %p30
      %p32 = scmp.ne.s32.totalorder %s24, %s27
      %p33 = scmp.eq.s32.totalorder %s14, 0
      %p34 = por %p32, %p33
      %p35 = scmp.ne.s32.totalorder %s24, %s27
      %p36 = scmp.eq.s32.totalorder %s19, 3
      %p37 = por %p35, %p36
      %p38 = scmp.ne.s32.totalorder %s27, %s28
      %p39 = scmp.eq.s32.totalorder %s19, 0
      %p40 = por %p38, %p39
      %p41 = scmp.ne.s32.totalorder %s27, %s28
      %p42 = scmp.eq.s32.totalorder %s20, 3
      %p43 = por %p41, %p42
      %p45 = scmp.ne.s32.totalorder %s28, %s44
      %p46 = scmp.eq.s32.totalorder %s20, 0
      %p47 = por %p45, %p46
      %s49 = sadd.s32 %s48, 1
      %p52 = scmp.eq.s32.totalorder %s14, 3
      %p53 = scmp.ne.s32.totalorder %s48, %s50
      %p54 = scmp.eq.s32.totalorder %s14, 0
      %p55 = por %p53, %p54
      %p56 = scmp.ne.s32.totalorder %s48, %s50
      %p57 = scmp.eq.s32.totalorder %s19, 3
      %p58 = por %p56, %p57
      %p59 = scmp.ne.s32.totalorder %s50, %s51
      %p60 = scmp.eq.s32.totalorder %s19, 0
      %p61 = por %p59, %p60
      %p62 = scmp.ne.s32.totalorder %s50, %s51
      %p63 = scmp.eq.s32.totalorder %s20, 3
      %p64 = por %p62, %p63
      %p66 = scmp.ne.s32.totalorder %s51, %s65
      %p67 = scmp.eq.s32.totalorder %s20, 0
      %p68 = por %p66, %p67
      %s70 = sadd.s32 %s69, 1
      %p73 = scmp.eq.s32.totalorder %s14, 3
      %p74 = scmp.ne.s32.totalorder %s69, %s71
      %p75 = scmp.eq.s32.totalorder %s14, 0
      %p76 = por %p74, %p75
      %p77 = scmp.ne.s32.totalorder %s69, %s71
      %p78 = scmp.eq.s32.totalorder %s19, 3
      %p79 = por %p77, %p78
      %p80 = scmp.ne.s32.totalorder %s71, %s72
      %p81 = scmp.eq.s32.totalorder %s19, 0
      %p82 = por %p80, %p81
      %p83 = scmp.ne.s32.totalorder %s71, %s72
      %p84 = scmp.eq.s32.totalorder %s20, 3
      %p85 = por %p83, %p84
      %p87 = scmp.ne.s32.totalorder %s72, %s86
      %p88 = scmp.eq.s32.totalorder %s20, 0
      %p89 = por %p87, %p88
      %s91 = sadd.s32 %s90, 1
      %p94 = scmp.eq.s32.totalorder %s14, 3
      %p95 = scmp.ne.s32.totalorder %s90, %s92
      %p96 = scmp.eq.s32.totalorder %s14, 0
      %p97 = por %p95, %p96
      %p98 = scmp.ne.s32.totalorder %s90, %s92
      %p99 = scmp.eq.s32.totalorder %s19, 3
      %p100 = por %p98, %p99
      %p101 = scmp.ne.s32.totalorder %s92, %s93
      %p102 = scmp.eq.s32.totalorder %s19, 0
      %p103 = por %p101, %p102
      %p104 = scmp.ne.s32.totalorder %s92, %s93
      %p105 = scmp.eq.s32.totalorder %s20, 3
      %p106 = por %p104, %p105
      %p108 = scmp.ne.s32.totalorder %s93, %s107
      %p109 = scmp.eq.s32.totalorder %s20, 0
      %p110 = por %p108, %p109
      %s112 = sadd.s32 %s111, 1
      %p115 = scmp.eq.s32.totalorder %s14, 3
      %p116 = scmp.ne.s32.totalorder %s111, %s113
      %p117 = scmp.eq.s32.totalorder %s14, 0
      %p118 = por %p116, %p117
      %p119 = scmp.ne.s32.totalorder %s111, %s113
      %p120 = scmp.eq.s32.totalorder %s19, 3
      %p121 = por %p119, %p120
      %p122 = scmp.ne.s32.totalorder %s113, %s114
      %p123 = scmp.eq.s32.totalorder %s19, 0
      %p124 = por %p122, %p123
      %p125 = scmp.ne.s32.totalorder %s113, %s114
      %p126 = scmp.eq.s32.totalorder %s20, 3
      %p127 = por %p125, %p126
      %p129 = scmp.ne.s32.totalorder %s114, %s128
      %p130 = scmp.eq.s32.totalorder %s20, 0
      %p131 = por %p129, %p130
      %s132 = ssub.s32 %s14, %s21
      %p133 = scmp.eq.s32.totalorder %s132, 0
      %s135 = sadd.s32 %s134, 1
      %s136 = scalar_select %p133, %s134, %s135
      %p139 = pneg %p133
      %p140 = scmp.eq.s32.totalorder %s14, 3
      %p141 = por %p139, %p140
      %p142 = scmp.ne.s32.totalorder %s134, %s137
      %p143 = scmp.eq.s32.totalorder %s14, 0
      %p144 = por %p142, %p143
      %p145 = scmp.ne.s32.totalorder %s134, %s137
      %p146 = scmp.eq.s32.totalorder %s19, 3
      %p147 = por %p145, %p146
      %p148 = scmp.ne.s32.totalorder %s137, %s138
      %p149 = scmp.eq.s32.totalorder %s19, 0
      %p150 = por %p148, %p149
      %p151 = scmp.ne.s32.totalorder %s137, %s138
      %p152 = scmp.eq.s32.totalorder %s20, 3
      %p153 = por %p151, %p152
      %p155 = scmp.ne.s32.totalorder %s138, %s154
      %p156 = scmp.eq.s32.totalorder %s20, 0
      %p157 = por %p155, %p156
      %p158 = scmp.le.s32.totalorder 1, %s14
      %p159 = scmp.lt.s32.totalorder %s14, 5
      %p160 = pnand %p158, %p159
      %p161 = pneg %p160
      // Predicated region
      $region9: #{cbow_forward.1} parent=5 // pred_check
        _
      $region10: #{cbow_forward.1} parent=5 // pred_check_branch
        %163 = sbr.rel (%p160) target = $region12
      $region11: #{cbow_forward.1} parent=5 // pred_region
        %s164 = ssub.s32 %s14, 1
        // Predicated region
        $region13: #{cbow_forward.1} parent=11 // pred_check
          %p165 = pneg %p61
        $region14: #{cbow_forward.1} parent=11 // pred_check_branch
          %167 = sbr.rel (%p165) target = $region16
        $region15: #{cbow_forward.1} parent=11 // pred_region
          _
        $region16: #{cbow_forward.1} parent=11 // pred_fallthru
          _
        // Predicated region
        $region17: #{cbow_forward.1} parent=11 // pred_check
          %p168 = pneg %p82
        $region18: #{cbow_forward.1} parent=11 // pred_check_branch
          %170 = sbr.rel (%p168) target = $region20
        $region19: #{cbow_forward.1} parent=11 // pred_region
          _
        $region20: #{cbow_forward.1} parent=11 // pred_fallthru
          _
        // Predicated region
        $region21: #{cbow_forward.1} parent=11 // pred_check
          %p171 = pneg %p103
        $region22: #{cbow_forward.1} parent=11 // pred_check_branch
          %173 = sbr.rel (%p171) target = $region24
        $region23: #{cbow_forward.1} parent=11 // pred_region
          _
        $region24: #{cbow_forward.1} parent=11 // pred_fallthru
          _
        // Predicated region
        $region25: #{cbow_forward.1} parent=11 // pred_check
          %p174 = pneg %p124
        $region26: #{cbow_forward.1} parent=11 // pred_check_branch
          %176 = sbr.rel (%p174) target = $region28
        $region27: #{cbow_forward.1} parent=11 // pred_region
          _
        $region28: #{cbow_forward.1} parent=11 // pred_fallthru
          _
      $region12: #{cbow_forward.1} parent=5 // pred_fallthru
        _
      %p177 = scmp.lt.s32.totalorder %s14, 4
      // Predicated region
      $region29: #{cbow_forward.1} parent=5 // pred_check
        %p178 = pneg %p177
      $region30: #{cbow_forward.1} parent=5 // pred_check_branch
        %180 = sbr.rel (%p178) target = $region32
      $region31: #{cbow_forward.1} parent=5 // pred_region
        // Predicated region
        $region33: #{cbow_forward.1} parent=31 // pred_check
          %p181 = pneg %p34
        $region34: #{cbow_forward.1} parent=31 // pred_check_branch
          %183 = sbr.rel (%p181) target = $region36
        $region35: #{cbow_forward.1} parent=31 // pred_region
          %s184 = smul.u32 32, %s14
          %p185 = scmp.lt.s32.totalorder %s184, 127
          %s186 = scalar_select %p185, %s184, 127
          %s187 = smul.addr %s186, 8
          %s188 = scalar_lea.vmem %s0, %s187
          %s189 = smul.u32 32, %s14
        $region36: #{cbow_forward.1} parent=31 // pred_fallthru
          _
      $region32: #{cbow_forward.1} parent=5 // pred_fallthru
        _
      %p190 = scmp.le.s32.totalorder 1, %s14
      %p191 = scmp.lt.s32.totalorder %s14, 5
      %p192 = pnand %p190, %p191
      %p193 = pneg %p192
      // Predicated region
      $region37: #{cbow_forward.1} parent=5 // pred_check
        _
      $region38: #{cbow_forward.1} parent=5 // pred_check_branch
        %195 = sbr.rel (%p192) target = $region40
      $region39: #{cbow_forward.1} parent=5 // pred_region
        %s196 = ssub.s32 %s14, 1
        %s197 = smul.u32 32, %s19
        %p198 = scmp.lt.s32.totalorder %s197, 127
        %s199 = scalar_select %p198, %s197, 127
        %s200 = smul.addr %s199, 8
        %s201 = scalar_lea.vmem %s0, %s200
        %p202 = pneg %p40
        %p203 = pneg %p37
        %p204 = pneg %p61
        %p205 = pneg %p58
        %p206 = pneg %p82
        %p207 = pneg %p79
        %p208 = pneg %p103
        %p209 = pneg %p100
        %p210 = pneg %p124
        %p211 = pneg %p121
        %p212 = pneg %p150
        %p213 = pneg %p147
        %s214 = sand.u32 %s137, 1
        %s215 = scalar_lea.sflag [#allocation3], %s214
        %s216 = sand.u32 %s137, 1
        %s217 = smul.addr %s216, 512
        %s218 = scalar_lea.vmem [#allocation2], %s217
        %s219 = smul.u32 32, %s19
        %p220 = scmp.lt.s32.totalorder %s219, 127
        %s221 = scalar_select %p220, %s219, 127
        %s222 = smul.addr %s221, 8
        %s223 = scalar_lea.vmem %s0, %s222
        %s224 = smul.u32 32, %s19
        %s225 = smul.u32 32, %s19
        %v227 = vld [vmem:[%s223] sm:$0xff]
        %v228 = vld [vmem:[%s223 + $0x8] sm:$0xff]
        %v229 = vld [vmem:[%s223 + $0x10] sm:$0xff]
        %v230 = vld [vmem:[%s223 + $0x18] sm:$0xff]
        %v231 = vld [vmem:[%s223 + $0x20] sm:$0xff]
        %v232 = vld [vmem:[%s223 + $0x28] sm:$0xff]
        %v233 = vld [vmem:[%s223 + $0x30] sm:$0xff]
        %v234 = vld [vmem:[%s223 + $0x38] sm:$0xff]
        %v235 = vld [vmem:[%s223 + $0x40] sm:$0xff]
        %v236 = vld [vmem:[%s223 + $0x48] sm:$0xff]
        %v237 = vld [vmem:[%s223 + $0x50] sm:$0xff]
        %v238 = vld [vmem:[%s223 + $0x58] sm:$0xff]
        %v239 = vld [vmem:[%s223 + $0x60] sm:$0xff]
        %v240 = vld [vmem:[%s223 + $0x68] sm:$0xff]
        %v241 = vld [vmem:[%s223 + $0x70] sm:$0xff]
        %v242 = vld [vmem:[%s223 + $0x78] sm:$0xff]
        %v243 = vld [vmem:[%s223 + $0x80] sm:$0xff]
        %v244 = vld [vmem:[%s223 + $0x88] sm:$0xff]
        %v245 = vld [vmem:[%s223 + $0x90] sm:$0xff]
        %v246 = vld [vmem:[%s223 + $0x98] sm:$0xff]
        %v247 = vld [vmem:[%s223 + $0xa0] sm:$0xff]
        %v248 = vld [vmem:[%s223 + $0xa8] sm:$0xff]
        %v249 = vld [vmem:[%s223 + $0xb0] sm:$0xff]
        %v250 = vld [vmem:[%s223 + $0xb8] sm:$0xff]
        %v251 = vld [vmem:[%s223 + $0xc0] sm:$0xff]
        %v252 = vld [vmem:[%s223 + $0xc8] sm:$0xff]
        %v253 = vld [vmem:[%s223 + $0xd0] sm:$0xff]
        %v254 = vld [vmem:[%s223 + $0xd8] sm:$0xff]
        %v255 = vld [vmem:[%s223 + $0xe0] sm:$0xff]
        %v256 = vld [vmem:[%s223 + $0xe8] sm:$0xff]
        %v257 = vld [vmem:[%s223 + $0xf0] sm:$0xff]
        %v258 = vld [vmem:[%s223 + $0xf8] sm:$0xff]
        %v259 = vlaneseq
        %v260 = vand.u32 %v259, 127
        %v261 = vadd.s32 %v260, 128
        %v262 = vadd.s32 %v260, 256
        %v263 = vadd.s32 %v260, 384
        %v264 = vadd.s32 %v260, 512
        %v265 = vadd.s32 %v260, 640
        %v266 = vadd.s32 %v260, 768
        %v267 = vadd.s32 %v260, 896
        %268 = vset.pattern.permute.xlu0 0
        %269 = vperm.xlu0 %268, %v227
        %v270 = vpop.permute.xlu0 %269
        %271 = vset.pattern.permute.xlu0 0
        %272 = vperm.xlu0 %271, %v228
        %v273 = vpop.permute.xlu0 %272
        %274 = vset.pattern.permute.xlu0 0
        %275 = vperm.xlu0 %274, %v229
        %v276 = vpop.permute.xlu0 %275
        %277 = vset.pattern.permute.xlu0 0
        %278 = vperm.xlu0 %277, %v230
        %v279 = vpop.permute.xlu0 %278
        %280 = vset.pattern.permute.xlu0 0
        %281 = vperm.xlu0 %280, %v231
        %v282 = vpop.permute.xlu0 %281
        %283 = vset.pattern.permute.xlu0 0
        %284 = vperm.xlu0 %283, %v232
        %v285 = vpop.permute.xlu0 %284
        %286 = vset.pattern.permute.xlu0 0
        %287 = vperm.xlu0 %286, %v233
        %v288 = vpop.permute.xlu0 %287
        %289 = vset.pattern.permute.xlu0 0
        %290 = vperm.xlu0 %289, %v234
        %v291 = vpop.permute.xlu0 %290
        %292 = vset.pattern.permute.xlu0 0
        %293 = vperm.xlu0 %292, %v235
        %v294 = vpop.permute.xlu0 %293
        %295 = vset.pattern.permute.xlu0 0
        %296 = vperm.xlu0 %295, %v236
        %v297 = vpop.permute.xlu0 %296
        %298 = vset.pattern.permute.xlu0 0
        %299 = vperm.xlu0 %298, %v237
        %v300 = vpop.permute.xlu0 %299
        %301 = vset.pattern.permute.xlu0 0
        %302 = vperm.xlu0 %301, %v238
        %v303 = vpop.permute.xlu0 %302
        %304 = vset.pattern.permute.xlu0 0
        %305 = vperm.xlu0 %304, %v239
        %v306 = vpop.permute.xlu0 %305
        %307 = vset.pattern.permute.xlu0 0
        %308 = vperm.xlu0 %307, %v240
        %v309 = vpop.permute.xlu0 %308
        %310 = vset.pattern.permute.xlu0 0
        %311 = vperm.xlu0 %310, %v241
        %v312 = vpop.permute.xlu0 %311
        %313 = vset.pattern.permute.xlu0 0
        %314 = vperm.xlu0 %313, %v242
        %v315 = vpop.permute.xlu0 %314
        %316 = vset.pattern.permute.xlu0 0
        %317 = vperm.xlu0 %316, %v243
        %v318 = vpop.permute.xlu0 %317
        %319 = vset.pattern.permute.xlu0 0
        %320 = vperm.xlu0 %319, %v244
        %v321 = vpop.permute.xlu0 %320
        %322 = vset.pattern.permute.xlu0 0
        %323 = vperm.xlu0 %322, %v245
        %v324 = vpop.permute.xlu0 %323
        %325 = vset.pattern.permute.xlu0 0
        %326 = vperm.xlu0 %325, %v246
        %v327 = vpop.permute.xlu0 %326
        %328 = vset.pattern.permute.xlu0 0
        %329 = vperm.xlu0 %328, %v247
        %v330 = vpop.permute.xlu0 %329
        %331 = vset.pattern.permute.xlu0 0
        %332 = vperm.xlu0 %331, %v248
        %v333 = vpop.permute.xlu0 %332
        %334 = vset.pattern.permute.xlu0 0
        %335 = vperm.xlu0 %334, %v249
        %v336 = vpop.permute.xlu0 %335
        %337 = vset.pattern.permute.xlu0 0
        %338 = vperm.xlu0 %337, %v250
        %v339 = vpop.permute.xlu0 %338
        %340 = vset.pattern.permute.xlu0 0
        %341 = vperm.xlu0 %340, %v251
        %v342 = vpop.permute.xlu0 %341
        %343 = vset.pattern.permute.xlu0 0
        %344 = vperm.xlu0 %343, %v252
        %v345 = vpop.permute.xlu0 %344
        %346 = vset.pattern.permute.xlu0 0
        %347 = vperm.xlu0 %346, %v253
        %v348 = vpop.permute.xlu0 %347
        %349 = vset.pattern.permute.xlu0 0
        %350 = vperm.xlu0 %349, %v254
        %v351 = vpop.permute.xlu0 %350
        %352 = vset.pattern.permute.xlu0 0
        %353 = vperm.xlu0 %352, %v255
        %v354 = vpop.permute.xlu0 %353
        %355 = vset.pattern.permute.xlu0 0
        %356 = vperm.xlu0 %355, %v256
        %v357 = vpop.permute.xlu0 %356
        %358 = vset.pattern.permute.xlu0 0
        %359 = vperm.xlu0 %358, %v257
        %v360 = vpop.permute.xlu0 %359
        %361 = vset.pattern.permute.xlu0 0
        %362 = vperm.xlu0 %361, %v258
        %v363 = vpop.permute.xlu0 %362
        %vm364 = vcmp.eq.s32.totalorder %v260, %v270
        %vm365 = vcmp.eq.s32.totalorder %v261, %v270
        %vm366 = vcmp.eq.s32.totalorder %v262, %v270
        %vm367 = vcmp.eq.s32.totalorder %v263, %v270
        %vm368 = vcmp.eq.s32.totalorder %v264, %v270
        %vm369 = vcmp.eq.s32.totalorder %v265, %v270
        %vm370 = vcmp.eq.s32.totalorder %v266, %v270
        %vm371 = vcmp.eq.s32.totalorder %v267, %v270
        %vm372 = vcmp.eq.s32.totalorder %v260, %v273
        %vm373 = vcmp.eq.s32.totalorder %v261, %v273
        %vm374 = vcmp.eq.s32.totalorder %v262, %v273
        %vm375 = vcmp.eq.s32.totalorder %v263, %v273
        %vm376 = vcmp.eq.s32.totalorder %v264, %v273
        %vm377 = vcmp.eq.s32.totalorder %v265, %v273
        %vm378 = vcmp.eq.s32.totalorder %v266, %v273
        %vm379 = vcmp.eq.s32.totalorder %v267, %v273
        %vm380 = vcmp.eq.s32.totalorder %v260, %v276
        %vm381 = vcmp.eq.s32.totalorder %v261, %v276
        %vm382 = vcmp.eq.s32.totalorder %v262, %v276
        %vm383 = vcmp.eq.s32.totalorder %v263, %v276
        %vm384 = vcmp.eq.s32.totalorder %v264, %v276
        %vm385 = vcmp.eq.s32.totalorder %v265, %v276
        %vm386 = vcmp.eq.s32.totalorder %v266, %v276
        %vm387 = vcmp.eq.s32.totalorder %v267, %v276
        %vm388 = vcmp.eq.s32.totalorder %v260, %v279
        %vm389 = vcmp.eq.s32.totalorder %v261, %v279
        %vm390 = vcmp.eq.s32.totalorder %v262, %v279
        %vm391 = vcmp.eq.s32.totalorder %v263, %v279
        %vm392 = vcmp.eq.s32.totalorder %v264, %v279
        %vm393 = vcmp.eq.s32.totalorder %v265, %v279
        %vm394 = vcmp.eq.s32.totalorder %v266, %v279
        %vm395 = vcmp.eq.s32.totalorder %v267, %v279
        %vm396 = vcmp.eq.s32.totalorder %v260, %v282
        %vm397 = vcmp.eq.s32.totalorder %v261, %v282
        %vm398 = vcmp.eq.s32.totalorder %v262, %v282
        %vm399 = vcmp.eq.s32.totalorder %v263, %v282
        %vm400 = vcmp.eq.s32.totalorder %v264, %v282
        %vm401 = vcmp.eq.s32.totalorder %v265, %v282
        %vm402 = vcmp.eq.s32.totalorder %v266, %v282
        %vm403 = vcmp.eq.s32.totalorder %v267, %v282
        %vm404 = vcmp.eq.s32.totalorder %v260, %v285
        %vm405 = vcmp.eq.s32.totalorder %v261, %v285
        %vm406 = vcmp.eq.s32.totalorder %v262, %v285
        %vm407 = vcmp.eq.s32.totalorder %v263, %v285
        %vm408 = vcmp.eq.s32.totalorder %v264, %v285
        %vm409 = vcmp.eq.s32.totalorder %v265, %v285
        %vm410 = vcmp.eq.s32.totalorder %v266, %v285
        %vm411 = vcmp.eq.s32.totalorder %v267, %v285
        %vm412 = vcmp.eq.s32.totalorder %v260, %v288
        %vm413 = vcmp.eq.s32.totalorder %v261, %v288
        %vm414 = vcmp.eq.s32.totalorder %v262, %v288
        %vm415 = vcmp.eq.s32.totalorder %v263, %v288
        %vm416 = vcmp.eq.s32.totalorder %v264, %v288
        %vm417 = vcmp.eq.s32.totalorder %v265, %v288
        %vm418 = vcmp.eq.s32.totalorder %v266, %v288
        %vm419 = vcmp.eq.s32.totalorder %v267, %v288
        %vm420 = vcmp.eq.s32.totalorder %v260, %v291
        %vm421 = vcmp.eq.s32.totalorder %v261, %v291
        %vm422 = vcmp.eq.s32.totalorder %v262, %v291
        %vm423 = vcmp.eq.s32.totalorder %v263, %v291
        %vm424 = vcmp.eq.s32.totalorder %v264, %v291
        %vm425 = vcmp.eq.s32.totalorder %v265, %v291
        %vm426 = vcmp.eq.s32.totalorder %v266, %v291
        %vm427 = vcmp.eq.s32.totalorder %v267, %v291
        %vm428 = vcmp.eq.s32.totalorder %v260, %v294
        %vm429 = vcmp.eq.s32.totalorder %v261, %v294
        %vm430 = vcmp.eq.s32.totalorder %v262, %v294
        %vm431 = vcmp.eq.s32.totalorder %v263, %v294
        %vm432 = vcmp.eq.s32.totalorder %v264, %v294
        %vm433 = vcmp.eq.s32.totalorder %v265, %v294
        %vm434 = vcmp.eq.s32.totalorder %v266, %v294
        %vm435 = vcmp.eq.s32.totalorder %v267, %v294
        %vm436 = vcmp.eq.s32.totalorder %v260, %v297
        %vm437 = vcmp.eq.s32.totalorder %v261, %v297
        %vm438 = vcmp.eq.s32.totalorder %v262, %v297
        %vm439 = vcmp.eq.s32.totalorder %v263, %v297
        %vm440 = vcmp.eq.s32.totalorder %v264, %v297
        %vm441 = vcmp.eq.s32.totalorder %v265, %v297
        %vm442 = vcmp.eq.s32.totalorder %v266, %v297
        %vm443 = vcmp.eq.s32.totalorder %v267, %v297
        %vm444 = vcmp.eq.s32.totalorder %v260, %v300
        %vm445 = vcmp.eq.s32.totalorder %v261, %v300
        %vm446 = vcmp.eq.s32.totalorder %v262, %v300
        %vm447 = vcmp.eq.s32.totalorder %v263, %v300
        %vm448 = vcmp.eq.s32.totalorder %v264, %v300
        %vm449 = vcmp.eq.s32.totalorder %v265, %v300
        %vm450 = vcmp.eq.s32.totalorder %v266, %v300
        %vm451 = vcmp.eq.s32.totalorder %v267, %v300
        %vm452 = vcmp.eq.s32.totalorder %v260, %v303
        %vm453 = vcmp.eq.s32.totalorder %v261, %v303
        %vm454 = vcmp.eq.s32.totalorder %v262, %v303
        %vm455 = vcmp.eq.s32.totalorder %v263, %v303
        %vm456 = vcmp.eq.s32.totalorder %v264, %v303
        %vm457 = vcmp.eq.s32.totalorder %v265, %v303
        %vm458 = vcmp.eq.s32.totalorder %v266, %v303
        %vm459 = vcmp.eq.s32.totalorder %v267, %v303
        %vm460 = vcmp.eq.s32.totalorder %v260, %v306
        %vm461 = vcmp.eq.s32.totalorder %v261, %v306
        %vm462 = vcmp.eq.s32.totalorder %v262, %v306
        %vm463 = vcmp.eq.s32.totalorder %v263, %v306
        %vm464 = vcmp.eq.s32.totalorder %v264, %v306
        %vm465 = vcmp.eq.s32.totalorder %v265, %v306
        %vm466 = vcmp.eq.s32.totalorder %v266, %v306
        %vm467 = vcmp.eq.s32.totalorder %v267, %v306
        %vm468 = vcmp.eq.s32.totalorder %v260, %v309
        %vm469 = vcmp.eq.s32.totalorder %v261, %v309
        %vm470 = vcmp.eq.s32.totalorder %v262, %v309
        %vm471 = vcmp.eq.s32.totalorder %v263, %v309
        %vm472 = vcmp.eq.s32.totalorder %v264, %v309
        %vm473 = vcmp.eq.s32.totalorder %v265, %v309
        %vm474 = vcmp.eq.s32.totalorder %v266, %v309
        %vm475 = vcmp.eq.s32.totalorder %v267, %v309
        %vm476 = vcmp.eq.s32.totalorder %v260, %v312
        %vm477 = vcmp.eq.s32.totalorder %v261, %v312
        %vm478 = vcmp.eq.s32.totalorder %v262, %v312
        %vm479 = vcmp.eq.s32.totalorder %v263, %v312
        %vm480 = vcmp.eq.s32.totalorder %v264, %v312
        %vm481 = vcmp.eq.s32.totalorder %v265, %v312
        %vm482 = vcmp.eq.s32.totalorder %v266, %v312
        %vm483 = vcmp.eq.s32.totalorder %v267, %v312
        %vm484 = vcmp.eq.s32.totalorder %v260, %v315
        %vm485 = vcmp.eq.s32.totalorder %v261, %v315
        %vm486 = vcmp.eq.s32.totalorder %v262, %v315
        %vm487 = vcmp.eq.s32.totalorder %v263, %v315
        %vm488 = vcmp.eq.s32.totalorder %v264, %v315
        %vm489 = vcmp.eq.s32.totalorder %v265, %v315
        %vm490 = vcmp.eq.s32.totalorder %v266, %v315
        %vm491 = vcmp.eq.s32.totalorder %v267, %v315
        %vm492 = vcmp.eq.s32.totalorder %v260, %v318
        %vm493 = vcmp.eq.s32.totalorder %v261, %v318
        %vm494 = vcmp.eq.s32.totalorder %v262, %v318
        %vm495 = vcmp.eq.s32.totalorder %v263, %v318
        %vm496 = vcmp.eq.s32.totalorder %v264, %v318
        %vm497 = vcmp.eq.s32.totalorder %v265, %v318
        %vm498 = vcmp.eq.s32.totalorder %v266, %v318
        %vm499 = vcmp.eq.s32.totalorder %v267, %v318
        %vm500 = vcmp.eq.s32.totalorder %v260, %v321
        %vm501 = vcmp.eq.s32.totalorder %v261, %v321
        %vm502 = vcmp.eq.s32.totalorder %v262, %v321
        %vm503 = vcmp.eq.s32.totalorder %v263, %v321
        %vm504 = vcmp.eq.s32.totalorder %v264, %v321
        %vm505 = vcmp.eq.s32.totalorder %v265, %v321
        %vm506 = vcmp.eq.s32.totalorder %v266, %v321
        %vm507 = vcmp.eq.s32.totalorder %v267, %v321
        %vm508 = vcmp.eq.s32.totalorder %v260, %v324
        %vm509 = vcmp.eq.s32.totalorder %v261, %v324
        %vm510 = vcmp.eq.s32.totalorder %v262, %v324
        %vm511 = vcmp.eq.s32.totalorder %v263, %v324
        %vm512 = vcmp.eq.s32.totalorder %v264, %v324
        %vm513 = vcmp.eq.s32.totalorder %v265, %v324
        %vm514 = vcmp.eq.s32.totalorder %v266, %v324
        %vm515 = vcmp.eq.s32.totalorder %v267, %v324
        %vm516 = vcmp.eq.s32.totalorder %v260, %v327
        %vm517 = vcmp.eq.s32.totalorder %v261, %v327
        %vm518 = vcmp.eq.s32.totalorder %v262, %v327
        %vm519 = vcmp.eq.s32.totalorder %v263, %v327
        %vm520 = vcmp.eq.s32.totalorder %v264, %v327
        %vm521 = vcmp.eq.s32.totalorder %v265, %v327
        %vm522 = vcmp.eq.s32.totalorder %v266, %v327
        %vm523 = vcmp.eq.s32.totalorder %v267, %v327
        %vm524 = vcmp.eq.s32.totalorder %v260, %v330
        %vm525 = vcmp.eq.s32.totalorder %v261, %v330
        %vm526 = vcmp.eq.s32.totalorder %v262, %v330
        %vm527 = vcmp.eq.s32.totalorder %v263, %v330
        %vm528 = vcmp.eq.s32.totalorder %v264, %v330
        %vm529 = vcmp.eq.s32.totalorder %v265, %v330
        %vm530 = vcmp.eq.s32.totalorder %v266, %v330
        %vm531 = vcmp.eq.s32.totalorder %v267, %v330
        %vm532 = vcmp.eq.s32.totalorder %v260, %v333
        %vm533 = vcmp.eq.s32.totalorder %v261, %v333
        %vm534 = vcmp.eq.s32.totalorder %v262, %v333
        %vm535 = vcmp.eq.s32.totalorder %v263, %v333
        %vm536 = vcmp.eq.s32.totalorder %v264, %v333
        %vm537 = vcmp.eq.s32.totalorder %v265, %v333
        %vm538 = vcmp.eq.s32.totalorder %v266, %v333
        %vm539 = vcmp.eq.s32.totalorder %v267, %v333
        %vm540 = vcmp.eq.s32.totalorder %v260, %v336
        %vm541 = vcmp.eq.s32.totalorder %v261, %v336
        %vm542 = vcmp.eq.s32.totalorder %v262, %v336
        %vm543 = vcmp.eq.s32.totalorder %v263, %v336
        %vm544 = vcmp.eq.s32.totalorder %v264, %v336
        %vm545 = vcmp.eq.s32.totalorder %v265, %v336
        %vm546 = vcmp.eq.s32.totalorder %v266, %v336
        %vm547 = vcmp.eq.s32.totalorder %v267, %v336
        %vm548 = vcmp.eq.s32.totalorder %v260, %v339
        %vm549 = vcmp.eq.s32.totalorder %v261, %v339
        %vm550 = vcmp.eq.s32.totalorder %v262, %v339
        %vm551 = vcmp.eq.s32.totalorder %v263, %v339
        %vm552 = vcmp.eq.s32.totalorder %v264, %v339
        %vm553 = vcmp.eq.s32.totalorder %v265, %v339
        %vm554 = vcmp.eq.s32.totalorder %v266, %v339
        %vm555 = vcmp.eq.s32.totalorder %v267, %v339
        %vm556 = vcmp.eq.s32.totalorder %v260, %v342
        %vm557 = vcmp.eq.s32.totalorder %v261, %v342
        %vm558 = vcmp.eq.s32.totalorder %v262, %v342
        %vm559 = vcmp.eq.s32.totalorder %v263, %v342
        %vm560 = vcmp.eq.s32.totalorder %v264, %v342
        %vm561 = vcmp.eq.s32.totalorder %v265, %v342
        %vm562 = vcmp.eq.s32.totalorder %v266, %v342
        %vm563 = vcmp.eq.s32.totalorder %v267, %v342
        %vm564 = vcmp.eq.s32.totalorder %v260, %v345
        %vm565 = vcmp.eq.s32.totalorder %v261, %v345
        %vm566 = vcmp.eq.s32.totalorder %v262, %v345
        %vm567 = vcmp.eq.s32.totalorder %v263, %v345
        %vm568 = vcmp.eq.s32.totalorder %v264, %v345
        %vm569 = vcmp.eq.s32.totalorder %v265, %v345
        %vm570 = vcmp.eq.s32.totalorder %v266, %v345
        %vm571 = vcmp.eq.s32.totalorder %v267, %v345
        %vm572 = vcmp.eq.s32.totalorder %v260, %v348
        %vm573 = vcmp.eq.s32.totalorder %v261, %v348
        %vm574 = vcmp.eq.s32.totalorder %v262, %v348
        %vm575 = vcmp.eq.s32.totalorder %v263, %v348
        %vm576 = vcmp.eq.s32.totalorder %v264, %v348
        %vm577 = vcmp.eq.s32.totalorder %v265, %v348
        %vm578 = vcmp.eq.s32.totalorder %v266, %v348
        %vm579 = vcmp.eq.s32.totalorder %v267, %v348
        %vm580 = vcmp.eq.s32.totalorder %v260, %v351
        %vm581 = vcmp.eq.s32.totalorder %v261, %v351
        %vm582 = vcmp.eq.s32.totalorder %v262, %v351
        %vm583 = vcmp.eq.s32.totalorder %v263, %v351
        %vm584 = vcmp.eq.s32.totalorder %v264, %v351
        %vm585 = vcmp.eq.s32.totalorder %v265, %v351
        %vm586 = vcmp.eq.s32.totalorder %v266, %v351
        %vm587 = vcmp.eq.s32.totalorder %v267, %v351
        %vm588 = vcmp.eq.s32.totalorder %v260, %v354
        %vm589 = vcmp.eq.s32.totalorder %v261, %v354
        %vm590 = vcmp.eq.s32.totalorder %v262, %v354
        %vm591 = vcmp.eq.s32.totalorder %v263, %v354
        %vm592 = vcmp.eq.s32.totalorder %v264, %v354
        %vm593 = vcmp.eq.s32.totalorder %v265, %v354
        %vm594 = vcmp.eq.s32.totalorder %v266, %v354
        %vm595 = vcmp.eq.s32.totalorder %v267, %v354
        %vm596 = vcmp.eq.s32.totalorder %v260, %v357
        %vm597 = vcmp.eq.s32.totalorder %v261, %v357
        %vm598 = vcmp.eq.s32.totalorder %v262, %v357
        %vm599 = vcmp.eq.s32.totalorder %v263, %v357
        %vm600 = vcmp.eq.s32.totalorder %v264, %v357
        %vm601 = vcmp.eq.s32.totalorder %v265, %v357
        %vm602 = vcmp.eq.s32.totalorder %v266, %v357
        %vm603 = vcmp.eq.s32.totalorder %v267, %v357
        %vm604 = vcmp.eq.s32.totalorder %v260, %v360
        %vm605 = vcmp.eq.s32.totalorder %v261, %v360
        %vm606 = vcmp.eq.s32.totalorder %v262, %v360
        %vm607 = vcmp.eq.s32.totalorder %v263, %v360
        %vm608 = vcmp.eq.s32.totalorder %v264, %v360
        %vm609 = vcmp.eq.s32.totalorder %v265, %v360
        %vm610 = vcmp.eq.s32.totalorder %v266, %v360
        %vm611 = vcmp.eq.s32.totalorder %v267, %v360
        %vm612 = vcmp.eq.s32.totalorder %v260, %v363
        %vm613 = vcmp.eq.s32.totalorder %v261, %v363
        %vm614 = vcmp.eq.s32.totalorder %v262, %v363
        %vm615 = vcmp.eq.s32.totalorder %v263, %v363
        %vm616 = vcmp.eq.s32.totalorder %v264, %v363
        %vm617 = vcmp.eq.s32.totalorder %v265, %v363
        %vm618 = vcmp.eq.s32.totalorder %v266, %v363
        %vm619 = vcmp.eq.s32.totalorder %v267, %v363
        %v620 = vsel %vm364, 1, 0
        %v621 = vsel %vm365, 1, 0
        %v622 = vsel %vm366, 1, 0
        %v623 = vsel %vm367, 1, 0
        %v624 = vsel %vm368, 1, 0
        %v625 = vsel %vm369, 1, 0
        %v626 = vsel %vm370, 1, 0
        %v627 = vsel %vm371, 1, 0
        %v628 = vsel %vm372, 1, 0
        %v629 = vsel %vm373, 1, 0
        %v630 = vsel %vm374, 1, 0
        %v631 = vsel %vm375, 1, 0
        %v632 = vsel %vm376, 1, 0
        %v633 = vsel %vm377, 1, 0
        %v634 = vsel %vm378, 1, 0
        %v635 = vsel %vm379, 1, 0
        %v636 = vsel %vm380, 1, 0
        %v637 = vsel %vm381, 1, 0
        %v638 = vsel %vm382, 1, 0
        %v639 = vsel %vm383, 1, 0
        %v640 = vsel %vm384, 1, 0
        %v641 = vsel %vm385, 1, 0
        %v642 = vsel %vm386, 1, 0
        %v643 = vsel %vm387, 1, 0
        %v644 = vsel %vm388, 1, 0
        %v645 = vsel %vm389, 1, 0
        %v646 = vsel %vm390, 1, 0
        %v647 = vsel %vm391, 1, 0
        %v648 = vsel %vm392, 1, 0
        %v649 = vsel %vm393, 1, 0
        %v650 = vsel %vm394, 1, 0
        %v651 = vsel %vm395, 1, 0
        %v652 = vsel %vm396, 1, 0
        %v653 = vsel %vm397, 1, 0
        %v654 = vsel %vm398, 1, 0
        %v655 = vsel %vm399, 1, 0
        %v656 = vsel %vm400, 1, 0
        %v657 = vsel %vm401, 1, 0
        %v658 = vsel %vm402, 1, 0
        %v659 = vsel %vm403, 1, 0
        %v660 = vsel %vm404, 1, 0
        %v661 = vsel %vm405, 1, 0
        %v662 = vsel %vm406, 1, 0
        %v663 = vsel %vm407, 1, 0
        %v664 = vsel %vm408, 1, 0
        %v665 = vsel %vm409, 1, 0
        %v666 = vsel %vm410, 1, 0
        %v667 = vsel %vm411, 1, 0
        %v668 = vsel %vm412, 1, 0
        %v669 = vsel %vm413, 1, 0
        %v670 = vsel %vm414, 1, 0
        %v671 = vsel %vm415, 1, 0
        %v672 = vsel %vm416, 1, 0
        %v673 = vsel %vm417, 1, 0
        %v674 = vsel %vm418, 1, 0
        %v675 = vsel %vm419, 1, 0
        %v676 = vsel %vm420, 1, 0
        %v677 = vsel %vm421, 1, 0
        %v678 = vsel %vm422, 1, 0
        %v679 = vsel %vm423, 1, 0
        %v680 = vsel %vm424, 1, 0
        %v681 = vsel %vm425, 1, 0
        %v682 = vsel %vm426, 1, 0
        %v683 = vsel %vm427, 1, 0
        %v684 = vsel %vm428, 1, 0
        %v685 = vsel %vm429, 1, 0
        %v686 = vsel %vm430, 1, 0
        %v687 = vsel %vm431, 1, 0
        %v688 = vsel %vm432, 1, 0
        %v689 = vsel %vm433, 1, 0
        %v690 = vsel %vm434, 1, 0
        %v691 = vsel %vm435, 1, 0
        %v692 = vsel %vm436, 1, 0
        %v693 = vsel %vm437, 1, 0
        %v694 = vsel %vm438, 1, 0
        %v695 = vsel %vm439, 1, 0
        %v696 = vsel %vm440, 1, 0
        %v697 = vsel %vm441, 1, 0
        %v698 = vsel %vm442, 1, 0
        %v699 = vsel %vm443, 1, 0
        %v700 = vsel %vm444, 1, 0
        %v701 = vsel %vm445, 1, 0
        %v702 = vsel %vm446, 1, 0
        %v703 = vsel %vm447, 1, 0
        %v704 = vsel %vm448, 1, 0
        %v705 = vsel %vm449, 1, 0
        %v706 = vsel %vm450, 1, 0
        %v707 = vsel %vm451, 1, 0
        %v708 = vsel %vm452, 1, 0
        %v709 = vsel %vm453, 1, 0
        %v710 = vsel %vm454, 1, 0
        %v711 = vsel %vm455, 1, 0
        %v712 = vsel %vm456, 1, 0
        %v713 = vsel %vm457, 1, 0
        %v714 = vsel %vm458, 1, 0
        %v715 = vsel %vm459, 1, 0
        %v716 = vsel %vm460, 1, 0
        %v717 = vsel %vm461, 1, 0
        %v718 = vsel %vm462, 1, 0
        %v719 = vsel %vm463, 1, 0
        %v720 = vsel %vm464, 1, 0
        %v721 = vsel %vm465, 1, 0
        %v722 = vsel %vm466, 1, 0
        %v723 = vsel %vm467, 1, 0
        %v724 = vsel %vm468, 1, 0
        %v725 = vsel %vm469, 1, 0
        %v726 = vsel %vm470, 1, 0
        %v727 = vsel %vm471, 1, 0
        %v728 = vsel %vm472, 1, 0
        %v729 = vsel %vm473, 1, 0
        %v730 = vsel %vm474, 1, 0
        %v731 = vsel %vm475, 1, 0
        %v732 = vsel %vm476, 1, 0
        %v733 = vsel %vm477, 1, 0
        %v734 = vsel %vm478, 1, 0
        %v735 = vsel %vm479, 1, 0
        %v736 = vsel %vm480, 1, 0
        %v737 = vsel %vm481, 1, 0
        %v738 = vsel %vm482, 1, 0
        %v739 = vsel %vm483, 1, 0
        %v740 = vsel %vm484, 1, 0
        %v741 = vsel %vm485, 1, 0
        %v742 = vsel %vm486, 1, 0
        %v743 = vsel %vm487, 1, 0
        %v744 = vsel %vm488, 1, 0
        %v745 = vsel %vm489, 1, 0
        %v746 = vsel %vm490, 1, 0
        %v747 = vsel %vm491, 1, 0
        %v748 = vsel %vm492, 1, 0
        %v749 = vsel %vm493, 1, 0
        %v750 = vsel %vm494, 1, 0
        %v751 = vsel %vm495, 1, 0
        %v752 = vsel %vm496, 1, 0
        %v753 = vsel %vm497, 1, 0
        %v754 = vsel %vm498, 1, 0
        %v755 = vsel %vm499, 1, 0
        %v756 = vsel %vm500, 1, 0
        %v757 = vsel %vm501, 1, 0
        %v758 = vsel %vm502, 1, 0
        %v759 = vsel %vm503, 1, 0
        %v760 = vsel %vm504, 1, 0
        %v761 = vsel %vm505, 1, 0
        %v762 = vsel %vm506, 1, 0
        %v763 = vsel %vm507, 1, 0
        %v764 = vsel %vm508, 1, 0
        %v765 = vsel %vm509, 1, 0
        %v766 = vsel %vm510, 1, 0
        %v767 = vsel %vm511, 1, 0
        %v768 = vsel %vm512, 1, 0
        %v769 = vsel %vm513, 1, 0
        %v770 = vsel %vm514, 1, 0
        %v771 = vsel %vm515, 1, 0
        %v772 = vsel %vm516, 1, 0
        %v773 = vsel %vm517, 1, 0
        %v774 = vsel %vm518, 1, 0
        %v775 = vsel %vm519, 1, 0
        %v776 = vsel %vm520, 1, 0
        %v777 = vsel %vm521, 1, 0
        %v778 = vsel %vm522, 1, 0
        %v779 = vsel %vm523, 1, 0
        %v780 = vsel %vm524, 1, 0
        %v781 = vsel %vm525, 1, 0
        %v782 = vsel %vm526, 1, 0
        %v783 = vsel %vm527, 1, 0
        %v784 = vsel %vm528, 1, 0
        %v785 = vsel %vm529, 1, 0
        %v786 = vsel %vm530, 1, 0
        %v787 = vsel %vm531, 1, 0
        %v788 = vsel %vm532, 1, 0
        %v789 = vsel %vm533, 1, 0
        %v790 = vsel %vm534, 1, 0
        %v791 = vsel %vm535, 1, 0
        %v792 = vsel %vm536, 1, 0
        %v793 = vsel %vm537, 1, 0
        %v794 = vsel %vm538, 1, 0
        %v795 = vsel %vm539, 1, 0
        %v796 = vsel %vm540, 1, 0
        %v797 = vsel %vm541, 1, 0
        %v798 = vsel %vm542, 1, 0
        %v799 = vsel %vm543, 1, 0
        %v800 = vsel %vm544, 1, 0
        %v801 = vsel %vm545, 1, 0
        %v802 = vsel %vm546, 1, 0
        %v803 = vsel %vm547, 1, 0
        %v804 = vsel %vm548, 1, 0
        %v805 = vsel %vm549, 1, 0
        %v806 = vsel %vm550, 1, 0
        %v807 = vsel %vm551, 1, 0
        %v808 = vsel %vm552, 1, 0
        %v809 = vsel %vm553, 1, 0
        %v810 = vsel %vm554, 1, 0
        %v811 = vsel %vm555, 1, 0
        %v812 = vsel %vm556, 1, 0
        %v813 = vsel %vm557, 1, 0
        %v814 = vsel %vm558, 1, 0
        %v815 = vsel %vm559, 1, 0
        %v816 = vsel %vm560, 1, 0
        %v817 = vsel %vm561, 1, 0
        %v818 = vsel %vm562, 1, 0
        %v819 = vsel %vm563, 1, 0
        %v820 = vsel %vm564, 1, 0
        %v821 = vsel %vm565, 1, 0
        %v822 = vsel %vm566, 1, 0
        %v823 = vsel %vm567, 1, 0
        %v824 = vsel %vm568, 1, 0
        %v825 = vsel %vm569, 1, 0
        %v826 = vsel %vm570, 1, 0
        %v827 = vsel %vm571, 1, 0
        %v828 = vsel %vm572, 1, 0
        %v829 = vsel %vm573, 1, 0
        %v830 = vsel %vm574, 1, 0
        %v831 = vsel %vm575, 1, 0
        %v832 = vsel %vm576, 1, 0
        %v833 = vsel %vm577, 1, 0
        %v834 = vsel %vm578, 1, 0
        %v835 = vsel %vm579, 1, 0
        %v836 = vsel %vm580, 1, 0
        %v837 = vsel %vm581, 1, 0
        %v838 = vsel %vm582, 1, 0
        %v839 = vsel %vm583, 1, 0
        %v840 = vsel %vm584, 1, 0
        %v841 = vsel %vm585, 1, 0
        %v842 = vsel %vm586, 1, 0
        %v843 = vsel %vm587, 1, 0
        %v844 = vsel %vm588, 1, 0
        %v845 = vsel %vm589, 1, 0
        %v846 = vsel %vm590, 1, 0
        %v847 = vsel %vm591, 1, 0
        %v848 = vsel %vm592, 1, 0
        %v849 = vsel %vm593, 1, 0
        %v850 = vsel %vm594, 1, 0
        %v851 = vsel %vm595, 1, 0
        %v852 = vsel %vm596, 1, 0
        %v853 = vsel %vm597, 1, 0
        %v854 = vsel %vm598, 1, 0
        %v855 = vsel %vm599, 1, 0
        %v856 = vsel %vm600, 1, 0
        %v857 = vsel %vm601, 1, 0
        %v858 = vsel %vm602, 1, 0
        %v859 = vsel %vm603, 1, 0
        %v860 = vsel %vm604, 1, 0
        %v861 = vsel %vm605, 1, 0
        %v862 = vsel %vm606, 1, 0
        %v863 = vsel %vm607, 1, 0
        %v864 = vsel %vm608, 1, 0
        %v865 = vsel %vm609, 1, 0
        %v866 = vsel %vm610, 1, 0
        %v867 = vsel %vm611, 1, 0
        %v868 = vsel %vm612, 1, 0
        %v869 = vsel %vm613, 1, 0
        %v870 = vsel %vm614, 1, 0
        %v871 = vsel %vm615, 1, 0
        %v872 = vsel %vm616, 1, 0
        %v873 = vsel %vm617, 1, 0
        %v874 = vsel %vm618, 1, 0
        %v875 = vsel %vm619, 1, 0
        %v876 = vcvt.s32.f32 %v620
        %v877 = vcvt.s32.f32 %v621
        %v878 = vcvt.s32.f32 %v622
        %v879 = vcvt.s32.f32 %v623
        %v880 = vcvt.s32.f32 %v624
        %v881 = vcvt.s32.f32 %v625
        %v882 = vcvt.s32.f32 %v626
        %v883 = vcvt.s32.f32 %v627
        %v884 = vcvt.s32.f32 %v628
        %v885 = vcvt.s32.f32 %v629
        %v886 = vcvt.s32.f32 %v630
        %v887 = vcvt.s32.f32 %v631
        %v888 = vcvt.s32.f32 %v632
        %v889 = vcvt.s32.f32 %v633
        %v890 = vcvt.s32.f32 %v634
        %v891 = vcvt.s32.f32 %v635
        %v892 = vcvt.s32.f32 %v636
        %v893 = vcvt.s32.f32 %v637
        %v894 = vcvt.s32.f32 %v638
        %v895 = vcvt.s32.f32 %v639
        %v896 = vcvt.s32.f32 %v640
        %v897 = vcvt.s32.f32 %v641
        %v898 = vcvt.s32.f32 %v642
        %v899 = vcvt.s32.f32 %v643
        %v900 = vcvt.s32.f32 %v644
        %v901 = vcvt.s32.f32 %v645
        %v902 = vcvt.s32.f32 %v646
        %v903 = vcvt.s32.f32 %v647
        %v904 = vcvt.s32.f32 %v648
        %v905 = vcvt.s32.f32 %v649
        %v906 = vcvt.s32.f32 %v650
        %v907 = vcvt.s32.f32 %v651
        %v908 = vcvt.s32.f32 %v652
        %v909 = vcvt.s32.f32 %v653
        %v910 = vcvt.s32.f32 %v654
        %v911 = vcvt.s32.f32 %v655
        %v912 = vcvt.s32.f32 %v656
        %v913 = vcvt.s32.f32 %v657
        %v914 = vcvt.s32.f32 %v658
        %v915 = vcvt.s32.f32 %v659
        %v916 = vcvt.s32.f32 %v660
        %v917 = vcvt.s32.f32 %v661
        %v918 = vcvt.s32.f32 %v662
        %v919 = vcvt.s32.f32 %v663
        %v920 = vcvt.s32.f32 %v664
        %v921 = vcvt.s32.f32 %v665
        %v922 = vcvt.s32.f32 %v666
        %v923 = vcvt.s32.f32 %v667
        %v924 = vcvt.s32.f32 %v668
        %v925 = vcvt.s32.f32 %v669
        %v926 = vcvt.s32.f32 %v670
        %v927 = vcvt.s32.f32 %v671
        %v928 = vcvt.s32.f32 %v672
        %v929 = vcvt.s32.f32 %v673
        %v930 = vcvt.s32.f32 %v674
        %v931 = vcvt.s32.f32 %v675
        %v932 = vcvt.s32.f32 %v676
        %v933 = vcvt.s32.f32 %v677
        %v934 = vcvt.s32.f32 %v678
        %v935 = vcvt.s32.f32 %v679
        %v936 = vcvt.s32.f32 %v680
        %v937 = vcvt.s32.f32 %v681
        %v938 = vcvt.s32.f32 %v682
        %v939 = vcvt.s32.f32 %v683
        %v940 = vcvt.s32.f32 %v684
        %v941 = vcvt.s32.f32 %v685
        %v942 = vcvt.s32.f32 %v686
        %v943 = vcvt.s32.f32 %v687
        %v944 = vcvt.s32.f32 %v688
        %v945 = vcvt.s32.f32 %v689
        %v946 = vcvt.s32.f32 %v690
        %v947 = vcvt.s32.f32 %v691
        %v948 = vcvt.s32.f32 %v692
        %v949 = vcvt.s32.f32 %v693
        %v950 = vcvt.s32.f32 %v694
        %v951 = vcvt.s32.f32 %v695
        %v952 = vcvt.s32.f32 %v696
        %v953 = vcvt.s32.f32 %v697
        %v954 = vcvt.s32.f32 %v698
        %v955 = vcvt.s32.f32 %v699
        %v956 = vcvt.s32.f32 %v700
        %v957 = vcvt.s32.f32 %v701
        %v958 = vcvt.s32.f32 %v702
        %v959 = vcvt.s32.f32 %v703
        %v960 = vcvt.s32.f32 %v704
        %v961 = vcvt.s32.f32 %v705
        %v962 = vcvt.s32.f32 %v706
        %v963 = vcvt.s32.f32 %v707
        %v964 = vcvt.s32.f32 %v708
        %v965 = vcvt.s32.f32 %v709
        %v966 = vcvt.s32.f32 %v710
        %v967 = vcvt.s32.f32 %v711
        %v968 = vcvt.s32.f32 %v712
        %v969 = vcvt.s32.f32 %v713
        %v970 = vcvt.s32.f32 %v714
        %v971 = vcvt.s32.f32 %v715
        %v972 = vcvt.s32.f32 %v716
        %v973 = vcvt.s32.f32 %v717
        %v974 = vcvt.s32.f32 %v718
        %v975 = vcvt.s32.f32 %v719
        %v976 = vcvt.s32.f32 %v720
        %v977 = vcvt.s32.f32 %v721
        %v978 = vcvt.s32.f32 %v722
        %v979 = vcvt.s32.f32 %v723
        %v980 = vcvt.s32.f32 %v724
        %v981 = vcvt.s32.f32 %v725
        %v982 = vcvt.s32.f32 %v726
        %v983 = vcvt.s32.f32 %v727
        %v984 = vcvt.s32.f32 %v728
        %v985 = vcvt.s32.f32 %v729
        %v986 = vcvt.s32.f32 %v730
        %v987 = vcvt.s32.f32 %v731
        %v988 = vcvt.s32.f32 %v732
        %v989 = vcvt.s32.f32 %v733
        %v990 = vcvt.s32.f32 %v734
        %v991 = vcvt.s32.f32 %v735
        %v992 = vcvt.s32.f32 %v736
        %v993 = vcvt.s32.f32 %v737
        %v994 = vcvt.s32.f32 %v738
        %v995 = vcvt.s32.f32 %v739
        %v996 = vcvt.s32.f32 %v740
        %v997 = vcvt.s32.f32 %v741
        %v998 = vcvt.s32.f32 %v742
        %v999 = vcvt.s32.f32 %v743
        %v1000 = vcvt.s32.f32 %v744
        %v1001 = vcvt.s32.f32 %v745
        %v1002 = vcvt.s32.f32 %v746
        %v1003 = vcvt.s32.f32 %v747
        %v1004 = vcvt.s32.f32 %v748
        %v1005 = vcvt.s32.f32 %v749
        %v1006 = vcvt.s32.f32 %v750
        %v1007 = vcvt.s32.f32 %v751
        %v1008 = vcvt.s32.f32 %v752
        %v1009 = vcvt.s32.f32 %v753
        %v1010 = vcvt.s32.f32 %v754
        %v1011 = vcvt.s32.f32 %v755
        %v1012 = vcvt.s32.f32 %v756
        %v1013 = vcvt.s32.f32 %v757
        %v1014 = vcvt.s32.f32 %v758
        %v1015 = vcvt.s32.f32 %v759
        %v1016 = vcvt.s32.f32 %v760
        %v1017 = vcvt.s32.f32 %v761
        %v1018 = vcvt.s32.f32 %v762
        %v1019 = vcvt.s32.f32 %v763
        %v1020 = vcvt.s32.f32 %v764
        %v1021 = vcvt.s32.f32 %v765
        %v1022 = vcvt.s32.f32 %v766
        %v1023 = vcvt.s32.f32 %v767
        %v1024 = vcvt.s32.f32 %v768
        %v1025 = vcvt.s32.f32 %v769
        %v1026 = vcvt.s32.f32 %v770
        %v1027 = vcvt.s32.f32 %v771
        %v1028 = vcvt.s32.f32 %v772
        %v1029 = vcvt.s32.f32 %v773
        %v1030 = vcvt.s32.f32 %v774
        %v1031 = vcvt.s32.f32 %v775
        %v1032 = vcvt.s32.f32 %v776
        %v1033 = vcvt.s32.f32 %v777
        %v1034 = vcvt.s32.f32 %v778
        %v1035 = vcvt.s32.f32 %v779
        %v1036 = vcvt.s32.f32 %v780
        %v1037 = vcvt.s32.f32 %v781
        %v1038 = vcvt.s32.f32 %v782
        %v1039 = vcvt.s32.f32 %v783
        %v1040 = vcvt.s32.f32 %v784
        %v1041 = vcvt.s32.f32 %v785
        %v1042 = vcvt.s32.f32 %v786
        %v1043 = vcvt.s32.f32 %v787
        %v1044 = vcvt.s32.f32 %v788
        %v1045 = vcvt.s32.f32 %v789
        %v1046 = vcvt.s32.f32 %v790
        %v1047 = vcvt.s32.f32 %v791
        %v1048 = vcvt.s32.f32 %v792
        %v1049 = vcvt.s32.f32 %v793
        %v1050 = vcvt.s32.f32 %v794
        %v1051 = vcvt.s32.f32 %v795
        %v1052 = vcvt.s32.f32 %v796
        %v1053 = vcvt.s32.f32 %v797
        %v1054 = vcvt.s32.f32 %v798
        %v1055 = vcvt.s32.f32 %v799
        %v1056 = vcvt.s32.f32 %v800
        %v1057 = vcvt.s32.f32 %v801
        %v1058 = vcvt.s32.f32 %v802
        %v1059 = vcvt.s32.f32 %v803
        %v1060 = vcvt.s32.f32 %v804
        %v1061 = vcvt.s32.f32 %v805
        %v1062 = vcvt.s32.f32 %v806
        %v1063 = vcvt.s32.f32 %v807
        %v1064 = vcvt.s32.f32 %v808
        %v1065 = vcvt.s32.f32 %v809
        %v1066 = vcvt.s32.f32 %v810
        %v1067 = vcvt.s32.f32 %v811
        %v1068 = vcvt.s32.f32 %v812
        %v1069 = vcvt.s32.f32 %v813
        %v1070 = vcvt.s32.f32 %v814
        %v1071 = vcvt.s32.f32 %v815
        %v1072 = vcvt.s32.f32 %v816
        %v1073 = vcvt.s32.f32 %v817
        %v1074 = vcvt.s32.f32 %v818
        %v1075 = vcvt.s32.f32 %v819
        %v1076 = vcvt.s32.f32 %v820
        %v1077 = vcvt.s32.f32 %v821
        %v1078 = vcvt.s32.f32 %v822
        %v1079 = vcvt.s32.f32 %v823
        %v1080 = vcvt.s32.f32 %v824
        %v1081 = vcvt.s32.f32 %v825
        %v1082 = vcvt.s32.f32 %v826
        %v1083 = vcvt.s32.f32 %v827
        %v1084 = vcvt.s32.f32 %v828
        %v1085 = vcvt.s32.f32 %v829
        %v1086 = vcvt.s32.f32 %v830
        %v1087 = vcvt.s32.f32 %v831
        %v1088 = vcvt.s32.f32 %v832
        %v1089 = vcvt.s32.f32 %v833
        %v1090 = vcvt.s32.f32 %v834
        %v1091 = vcvt.s32.f32 %v835
        %v1092 = vcvt.s32.f32 %v836
        %v1093 = vcvt.s32.f32 %v837
        %v1094 = vcvt.s32.f32 %v838
        %v1095 = vcvt.s32.f32 %v839
        %v1096 = vcvt.s32.f32 %v840
        %v1097 = vcvt.s32.f32 %v841
        %v1098 = vcvt.s32.f32 %v842
        %v1099 = vcvt.s32.f32 %v843
        %v1100 = vcvt.s32.f32 %v844
        %v1101 = vcvt.s32.f32 %v845
        %v1102 = vcvt.s32.f32 %v846
        %v1103 = vcvt.s32.f32 %v847
        %v1104 = vcvt.s32.f32 %v848
        %v1105 = vcvt.s32.f32 %v849
        %v1106 = vcvt.s32.f32 %v850
        %v1107 = vcvt.s32.f32 %v851
        %v1108 = vcvt.s32.f32 %v852
        %v1109 = vcvt.s32.f32 %v853
        %v1110 = vcvt.s32.f32 %v854
        %v1111 = vcvt.s32.f32 %v855
        %v1112 = vcvt.s32.f32 %v856
        %v1113 = vcvt.s32.f32 %v857
        %v1114 = vcvt.s32.f32 %v858
        %v1115 = vcvt.s32.f32 %v859
        %v1116 = vcvt.s32.f32 %v860
        %v1117 = vcvt.s32.f32 %v861
        %v1118 = vcvt.s32.f32 %v862
        %v1119 = vcvt.s32.f32 %v863
        %v1120 = vcvt.s32.f32 %v864
        %v1121 = vcvt.s32.f32 %v865
        %v1122 = vcvt.s32.f32 %v866
        %v1123 = vcvt.s32.f32 %v867
        %v1124 = vcvt.s32.f32 %v868
        %v1125 = vcvt.s32.f32 %v869
        %v1126 = vcvt.s32.f32 %v870
        %v1127 = vcvt.s32.f32 %v871
        %v1128 = vcvt.s32.f32 %v872
        %v1129 = vcvt.s32.f32 %v873
        %v1130 = vcvt.s32.f32 %v874
        %v1131 = vcvt.s32.f32 %v875
        %v1132 = vpack.c.bf16 %v884, %v876
        %v1133 = vpack.c.bf16 %v885, %v877
        %v1134 = vpack.c.bf16 %v886, %v878
        %v1135 = vpack.c.bf16 %v887, %v879
        %v1136 = vpack.c.bf16 %v888, %v880
        %v1137 = vpack.c.bf16 %v889, %v881
        %v1138 = vpack.c.bf16 %v890, %v882
        %v1139 = vpack.c.bf16 %v891, %v883
        %v1140 = vpack.c.bf16 %v900, %v892
        %v1141 = vpack.c.bf16 %v901, %v893
        %v1142 = vpack.c.bf16 %v902, %v894
        %v1143 = vpack.c.bf16 %v903, %v895
        %v1144 = vpack.c.bf16 %v904, %v896
        %v1145 = vpack.c.bf16 %v905, %v897
        %v1146 = vpack.c.bf16 %v906, %v898
        %v1147 = vpack.c.bf16 %v907, %v899
        %v1148 = vpack.c.bf16 %v916, %v908
        %v1149 = vpack.c.bf16 %v917, %v909
        %v1150 = vpack.c.bf16 %v918, %v910
        %v1151 = vpack.c.bf16 %v919, %v911
        %v1152 = vpack.c.bf16 %v920, %v912
        %v1153 = vpack.c.bf16 %v921, %v913
        %v1154 = vpack.c.bf16 %v922, %v914
        %v1155 = vpack.c.bf16 %v923, %v915
        %v1156 = vpack.c.bf16 %v932, %v924
        %v1157 = vpack.c.bf16 %v933, %v925
        %v1158 = vpack.c.bf16 %v934, %v926
        %v1159 = vpack.c.bf16 %v935, %v927
        %v1160 = vpack.c.bf16 %v936, %v928
        %v1161 = vpack.c.bf16 %v937, %v929
        %v1162 = vpack.c.bf16 %v938, %v930
        %v1163 = vpack.c.bf16 %v939, %v931
        %v1164 = vpack.c.bf16 %v948, %v940
        %v1165 = vpack.c.bf16 %v949, %v941
        %v1166 = vpack.c.bf16 %v950, %v942
        %v1167 = vpack.c.bf16 %v951, %v943
        %v1168 = vpack.c.bf16 %v952, %v944
        %v1169 = vpack.c.bf16 %v953, %v945
        %v1170 = vpack.c.bf16 %v954, %v946
        %v1171 = vpack.c.bf16 %v955, %v947
        %v1172 = vpack.c.bf16 %v964, %v956
        %v1173 = vpack.c.bf16 %v965, %v957
        %v1174 = vpack.c.bf16 %v966, %v958
        %v1175 = vpack.c.bf16 %v967, %v959
        %v1176 = vpack.c.bf16 %v968, %v960
        %v1177 = vpack.c.bf16 %v969, %v961
        %v1178 = vpack.c.bf16 %v970, %v962
        %v1179 = vpack.c.bf16 %v971, %v963
        %v1180 = vpack.c.bf16 %v980, %v972
        %v1181 = vpack.c.bf16 %v981, %v973
        %v1182 = vpack.c.bf16 %v982, %v974
        %v1183 = vpack.c.bf16 %v983, %v975
        %v1184 = vpack.c.bf16 %v984, %v976
        %v1185 = vpack.c.bf16 %v985, %v977
        %v1186 = vpack.c.bf16 %v986, %v978
        %v1187 = vpack.c.bf16 %v987, %v979
        %v1188 = vpack.c.bf16 %v996, %v988
        %v1189 = vpack.c.bf16 %v997, %v989
        %v1190 = vpack.c.bf16 %v998, %v990
        %v1191 = vpack.c.bf16 %v999, %v991
        %v1192 = vpack.c.bf16 %v1000, %v992
        %v1193 = vpack.c.bf16 %v1001, %v993
        %v1194 = vpack.c.bf16 %v1002, %v994
        %v1195 = vpack.c.bf16 %v1003, %v995
        %v1196 = vpack.c.bf16 %v1012, %v1004
        %v1197 = vpack.c.bf16 %v1013, %v1005
        %v1198 = vpack.c.bf16 %v1014, %v1006
        %v1199 = vpack.c.bf16 %v1015, %v1007
        %v1200 = vpack.c.bf16 %v1016, %v1008
        %v1201 = vpack.c.bf16 %v1017, %v1009
        %v1202 = vpack.c.bf16 %v1018, %v1010
        %v1203 = vpack.c.bf16 %v1019, %v1011
        %v1204 = vpack.c.bf16 %v1028, %v1020
        %v1205 = vpack.c.bf16 %v1029, %v1021
        %v1206 = vpack.c.bf16 %v1030, %v1022
        %v1207 = vpack.c.bf16 %v1031, %v1023
        %v1208 = vpack.c.bf16 %v1032, %v1024
        %v1209 = vpack.c.bf16 %v1033, %v1025
        %v1210 = vpack.c.bf16 %v1034, %v1026
        %v1211 = vpack.c.bf16 %v1035, %v1027
        %v1212 = vpack.c.bf16 %v1044, %v1036
        %v1213 = vpack.c.bf16 %v1045, %v1037
        %v1214 = vpack.c.bf16 %v1046, %v1038
        %v1215 = vpack.c.bf16 %v1047, %v1039
        %v1216 = vpack.c.bf16 %v1048, %v1040
        %v1217 = vpack.c.bf16 %v1049, %v1041
        %v1218 = vpack.c.bf16 %v1050, %v1042
        %v1219 = vpack.c.bf16 %v1051, %v1043
        %v1220 = vpack.c.bf16 %v1060, %v1052
        %v1221 = vpack.c.bf16 %v1061, %v1053
        %v1222 = vpack.c.bf16 %v1062, %v1054
        %v1223 = vpack.c.bf16 %v1063, %v1055
        %v1224 = vpack.c.bf16 %v1064, %v1056
        %v1225 = vpack.c.bf16 %v1065, %v1057
        %v1226 = vpack.c.bf16 %v1066, %v1058
        %v1227 = vpack.c.bf16 %v1067, %v1059
        %v1228 = vpack.c.bf16 %v1076, %v1068
        %v1229 = vpack.c.bf16 %v1077, %v1069
        %v1230 = vpack.c.bf16 %v1078, %v1070
        %v1231 = vpack.c.bf16 %v1079, %v1071
        %v1232 = vpack.c.bf16 %v1080, %v1072
        %v1233 = vpack.c.bf16 %v1081, %v1073
        %v1234 = vpack.c.bf16 %v1082, %v1074
        %v1235 = vpack.c.bf16 %v1083, %v1075
        %v1236 = vpack.c.bf16 %v1092, %v1084
        %v1237 = vpack.c.bf16 %v1093, %v1085
        %v1238 = vpack.c.bf16 %v1094, %v1086
        %v1239 = vpack.c.bf16 %v1095, %v1087
        %v1240 = vpack.c.bf16 %v1096, %v1088
        %v1241 = vpack.c.bf16 %v1097, %v1089
        %v1242 = vpack.c.bf16 %v1098, %v1090
        %v1243 = vpack.c.bf16 %v1099, %v1091
        %v1244 = vpack.c.bf16 %v1108, %v1100
        %v1245 = vpack.c.bf16 %v1109, %v1101
        %v1246 = vpack.c.bf16 %v1110, %v1102
        %v1247 = vpack.c.bf16 %v1111, %v1103
        %v1248 = vpack.c.bf16 %v1112, %v1104
        %v1249 = vpack.c.bf16 %v1113, %v1105
        %v1250 = vpack.c.bf16 %v1114, %v1106
        %v1251 = vpack.c.bf16 %v1115, %v1107
        %v1252 = vpack.c.bf16 %v1124, %v1116
        %v1253 = vpack.c.bf16 %v1125, %v1117
        %v1254 = vpack.c.bf16 %v1126, %v1118
        %v1255 = vpack.c.bf16 %v1127, %v1119
        %v1256 = vpack.c.bf16 %v1128, %v1120
        %v1257 = vpack.c.bf16 %v1129, %v1121
        %v1258 = vpack.c.bf16 %v1130, %v1122
        %v1259 = vpack.c.bf16 %v1131, %v1123
        %1260 = vset.pattern.permute.xlu0 1
        %1261 = vperm.xlu0 %1260, %v227
        %v1262 = vpop.permute.xlu0 %1261
        %1263 = vset.pattern.permute.xlu0 1
        %1264 = vperm.xlu0 %1263, %v228
        %v1265 = vpop.permute.xlu0 %1264
        %1266 = vset.pattern.permute.xlu0 1
        %1267 = vperm.xlu0 %1266, %v229
        %v1268 = vpop.permute.xlu0 %1267
        %1269 = vset.pattern.permute.xlu0 1
        %1270 = vperm.xlu0 %1269, %v230
        %v1271 = vpop.permute.xlu0 %1270
        %1272 = vset.pattern.permute.xlu0 1
        %1273 = vperm.xlu0 %1272, %v231
        %v1274 = vpop.permute.xlu0 %1273
        %1275 = vset.pattern.permute.xlu0 1
        %1276 = vperm.xlu0 %1275, %v232
        %v1277 = vpop.permute.xlu0 %1276
        %1278 = vset.pattern.permute.xlu0 1
        %1279 = vperm.xlu0 %1278, %v233
        %v1280 = vpop.permute.xlu0 %1279
        %1281 = vset.pattern.permute.xlu0 1
        %1282 = vperm.xlu0 %1281, %v234
        %v1283 = vpop.permute.xlu0 %1282
        %1284 = vset.pattern.permute.xlu0 1
        %1285 = vperm.xlu0 %1284, %v235
        %v1286 = vpop.permute.xlu0 %1285
        %1287 = vset.pattern.permute.xlu0 1
        %1288 = vperm.xlu0 %1287, %v236
        %v1289 = vpop.permute.xlu0 %1288
        %1290 = vset.pattern.permute.xlu0 1
        %1291 = vperm.xlu0 %1290, %v237
        %v1292 = vpop.permute.xlu0 %1291
        %1293 = vset.pattern.permute.xlu0 1
        %1294 = vperm.xlu0 %1293, %v238
        %v1295 = vpop.permute.xlu0 %1294
        %1296 = vset.pattern.permute.xlu0 1
        %1297 = vperm.xlu0 %1296, %v239
        %v1298 = vpop.permute.xlu0 %1297
        %1299 = vset.pattern.permute.xlu0 1
        %1300 = vperm.xlu0 %1299, %v240
        %v1301 = vpop.permute.xlu0 %1300
        %1302 = vset.pattern.permute.xlu0 1
        %1303 = vperm.xlu0 %1302, %v241
        %v1304 = vpop.permute.xlu0 %1303
        %1305 = vset.pattern.permute.xlu0 1
        %1306 = vperm.xlu0 %1305, %v242
        %v1307 = vpop.permute.xlu0 %1306
        %1308 = vset.pattern.permute.xlu0 1
        %1309 = vperm.xlu0 %1308, %v243
        %v1310 = vpop.permute.xlu0 %1309
        %1311 = vset.pattern.permute.xlu0 1
        %1312 = vperm.xlu0 %1311, %v244
        %v1313 = vpop.permute.xlu0 %1312
        %1314 = vset.pattern.permute.xlu0 1
        %1315 = vperm.xlu0 %1314, %v245
        %v1316 = vpop.permute.xlu0 %1315
        %1317 = vset.pattern.permute.xlu0 1
        %1318 = vperm.xlu0 %1317, %v246
        %v1319 = vpop.permute.xlu0 %1318
        %1320 = vset.pattern.permute.xlu0 1
        %1321 = vperm.xlu0 %1320, %v247
        %v1322 = vpop.permute.xlu0 %1321
        %1323 = vset.pattern.permute.xlu0 1
        %1324 = vperm.xlu0 %1323, %v248
        %v1325 = vpop.permute.xlu0 %1324
        %1326 = vset.pattern.permute.xlu0 1
        %1327 = vperm.xlu0 %1326, %v249
        %v1328 = vpop.permute.xlu0 %1327
        %1329 = vset.pattern.permute.xlu0 1
        %1330 = vperm.xlu0 %1329, %v250
        %v1331 = vpop.permute.xlu0 %1330
        %1332 = vset.pattern.permute.xlu0 1
        %1333 = vperm.xlu0 %1332, %v251
        %v1334 = vpop.permute.xlu0 %1333
        %1335 = vset.pattern.permute.xlu0 1
        %1336 = vperm.xlu0 %1335, %v252
        %v1337 = vpop.permute.xlu0 %1336
        %1338 = vset.pattern.permute.xlu0 1
        %1339 = vperm.xlu0 %1338, %v253
        %v1340 = vpop.permute.xlu0 %1339
        %1341 = vset.pattern.permute.xlu0 1
        %1342 = vperm.xlu0 %1341, %v254
        %v1343 = vpop.permute.xlu0 %1342
        %1344 = vset.pattern.permute.xlu0 1
        %1345 = vperm.xlu0 %1344, %v255
        %v1346 = vpop.permute.xlu0 %1345
        %1347 = vset.pattern.permute.xlu0 1
        %1348 = vperm.xlu0 %1347, %v256
        %v1349 = vpop.permute.xlu0 %1348
        %1350 = vset.pattern.permute.xlu0 1
        %1351 = vperm.xlu0 %1350, %v257
        %v1352 = vpop.permute.xlu0 %1351
        %1353 = vset.pattern.permute.xlu0 1
        %1354 = vperm.xlu0 %1353, %v258
        %v1355 = vpop.permute.xlu0 %1354
        %vm1356 = vcmp.eq.s32.totalorder %v260, %v1262
        %vm1357 = vcmp.eq.s32.totalorder %v261, %v1262
        %vm1358 = vcmp.eq.s32.totalorder %v262, %v1262
        %vm1359 = vcmp.eq.s32.totalorder %v263, %v1262
        %vm1360 = vcmp.eq.s32.totalorder %v264, %v1262
        %vm1361 = vcmp.eq.s32.totalorder %v265, %v1262
        %vm1362 = vcmp.eq.s32.totalorder %v266, %v1262
        %vm1363 = vcmp.eq.s32.totalorder %v267, %v1262
        %vm1364 = vcmp.eq.s32.totalorder %v260, %v1265
        %vm1365 = vcmp.eq.s32.totalorder %v261, %v1265
        %vm1366 = vcmp.eq.s32.totalorder %v262, %v1265
        %vm1367 = vcmp.eq.s32.totalorder %v263, %v1265
        %vm1368 = vcmp.eq.s32.totalorder %v264, %v1265
        %vm1369 = vcmp.eq.s32.totalorder %v265, %v1265
        %vm1370 = vcmp.eq.s32.totalorder %v266, %v1265
        %vm1371 = vcmp.eq.s32.totalorder %v267, %v1265
        %vm1372 = vcmp.eq.s32.totalorder %v260, %v1268
        %vm1373 = vcmp.eq.s32.totalorder %v261, %v1268
        %vm1374 = vcmp.eq.s32.totalorder %v262, %v1268
        %vm1375 = vcmp.eq.s32.totalorder %v263, %v1268
        %vm1376 = vcmp.eq.s32.totalorder %v264, %v1268
        %vm1377 = vcmp.eq.s32.totalorder %v265, %v1268
        %vm1378 = vcmp.eq.s32.totalorder %v266, %v1268
        %vm1379 = vcmp.eq.s32.totalorder %v267, %v1268
        %vm1380 = vcmp.eq.s32.totalorder %v260, %v1271
        %vm1381 = vcmp.eq.s32.totalorder %v261, %v1271
        %vm1382 = vcmp.eq.s32.totalorder %v262, %v1271
        %vm1383 = vcmp.eq.s32.totalorder %v263, %v1271
        %vm1384 = vcmp.eq.s32.totalorder %v264, %v1271
        %vm1385 = vcmp.eq.s32.totalorder %v265, %v1271
        %vm1386 = vcmp.eq.s32.totalorder %v266, %v1271
        %vm1387 = vcmp.eq.s32.totalorder %v267, %v1271
        %vm1388 = vcmp.eq.s32.totalorder %v260, %v1274
        %vm1389 = vcmp.eq.s32.totalorder %v261, %v1274
        %vm1390 = vcmp.eq.s32.totalorder %v262, %v1274
        %vm1391 = vcmp.eq.s32.totalorder %v263, %v1274
        %vm1392 = vcmp.eq.s32.totalorder %v264, %v1274
        %vm1393 = vcmp.eq.s32.totalorder %v265, %v1274
        %vm1394 = vcmp.eq.s32.totalorder %v266, %v1274
        %vm1395 = vcmp.eq.s32.totalorder %v267, %v1274
        %vm1396 = vcmp.eq.s32.totalorder %v260, %v1277
        %vm1397 = vcmp.eq.s32.totalorder %v261, %v1277
        %vm1398 = vcmp.eq.s32.totalorder %v262, %v1277
        %vm1399 = vcmp.eq.s32.totalorder %v263, %v1277
        %vm1400 = vcmp.eq.s32.totalorder %v264, %v1277
        %vm1401 = vcmp.eq.s32.totalorder %v265, %v1277
        %vm1402 = vcmp.eq.s32.totalorder %v266, %v1277
        %vm1403 = vcmp.eq.s32.totalorder %v267, %v1277
        %vm1404 = vcmp.eq.s32.totalorder %v260, %v1280
        %vm1405 = vcmp.eq.s32.totalorder %v261, %v1280
        %vm1406 = vcmp.eq.s32.totalorder %v262, %v1280
        %vm1407 = vcmp.eq.s32.totalorder %v263, %v1280
        %vm1408 = vcmp.eq.s32.totalorder %v264, %v1280
        %vm1409 = vcmp.eq.s32.totalorder %v265, %v1280
        %vm1410 = vcmp.eq.s32.totalorder %v266, %v1280
        %vm1411 = vcmp.eq.s32.totalorder %v267, %v1280
        %vm1412 = vcmp.eq.s32.totalorder %v260, %v1283
        %vm1413 = vcmp.eq.s32.totalorder %v261, %v1283
        %vm1414 = vcmp.eq.s32.totalorder %v262, %v1283
        %vm1415 = vcmp.eq.s32.totalorder %v263, %v1283
        %vm1416 = vcmp.eq.s32.totalorder %v264, %v1283
        %vm1417 = vcmp.eq.s32.totalorder %v265, %v1283
        %vm1418 = vcmp.eq.s32.totalorder %v266, %v1283
        %vm1419 = vcmp.eq.s32.totalorder %v267, %v1283
        %vm1420 = vcmp.eq.s32.totalorder %v260, %v1286
        %vm1421 = vcmp.eq.s32.totalorder %v261, %v1286
        %vm1422 = vcmp.eq.s32.totalorder %v262, %v1286
        %vm1423 = vcmp.eq.s32.totalorder %v263, %v1286
        %vm1424 = vcmp.eq.s32.totalorder %v264, %v1286
        %vm1425 = vcmp.eq.s32.totalorder %v265, %v1286
        %vm1426 = vcmp.eq.s32.totalorder %v266, %v1286
        %vm1427 = vcmp.eq.s32.totalorder %v267, %v1286
        %vm1428 = vcmp.eq.s32.totalorder %v260, %v1289
        %vm1429 = vcmp.eq.s32.totalorder %v261, %v1289
        %vm1430 = vcmp.eq.s32.totalorder %v262, %v1289
        %vm1431 = vcmp.eq.s32.totalorder %v263, %v1289
        %vm1432 = vcmp.eq.s32.totalorder %v264, %v1289
        %vm1433 = vcmp.eq.s32.totalorder %v265, %v1289
        %vm1434 = vcmp.eq.s32.totalorder %v266, %v1289
        %vm1435 = vcmp.eq.s32.totalorder %v267, %v1289
        %vm1436 = vcmp.eq.s32.totalorder %v260, %v1292
        %vm1437 = vcmp.eq.s32.totalorder %v261, %v1292
        %vm1438 = vcmp.eq.s32.totalorder %v262, %v1292
        %vm1439 = vcmp.eq.s32.totalorder %v263, %v1292
        %vm1440 = vcmp.eq.s32.totalorder %v264, %v1292
        %vm1441 = vcmp.eq.s32.totalorder %v265, %v1292
        %vm1442 = vcmp.eq.s32.totalorder %v266, %v1292
        %vm1443 = vcmp.eq.s32.totalorder %v267, %v1292
        %vm1444 = vcmp.eq.s32.totalorder %v260, %v1295
        %vm1445 = vcmp.eq.s32.totalorder %v261, %v1295
        %vm1446 = vcmp.eq.s32.totalorder %v262, %v1295
        %vm1447 = vcmp.eq.s32.totalorder %v263, %v1295
        %vm1448 = vcmp.eq.s32.totalorder %v264, %v1295
        %vm1449 = vcmp.eq.s32.totalorder %v265, %v1295
        %vm1450 = vcmp.eq.s32.totalorder %v266, %v1295
        %vm1451 = vcmp.eq.s32.totalorder %v267, %v1295
        %vm1452 = vcmp.eq.s32.totalorder %v260, %v1298
        %vm1453 = vcmp.eq.s32.totalorder %v261, %v1298
        %vm1454 = vcmp.eq.s32.totalorder %v262, %v1298
        %vm1455 = vcmp.eq.s32.totalorder %v263, %v1298
        %vm1456 = vcmp.eq.s32.totalorder %v264, %v1298
        %vm1457 = vcmp.eq.s32.totalorder %v265, %v1298
        %vm1458 = vcmp.eq.s32.totalorder %v266, %v1298
        %vm1459 = vcmp.eq.s32.totalorder %v267, %v1298
        %vm1460 = vcmp.eq.s32.totalorder %v260, %v1301
        %vm1461 = vcmp.eq.s32.totalorder %v261, %v1301
        %vm1462 = vcmp.eq.s32.totalorder %v262, %v1301
        %vm1463 = vcmp.eq.s32.totalorder %v263, %v1301
        %vm1464 = vcmp.eq.s32.totalorder %v264, %v1301
        %vm1465 = vcmp.eq.s32.totalorder %v265, %v1301
        %vm1466 = vcmp.eq.s32.totalorder %v266, %v1301
        %vm1467 = vcmp.eq.s32.totalorder %v267, %v1301
        %vm1468 = vcmp.eq.s32.totalorder %v260, %v1304
        %vm1469 = vcmp.eq.s32.totalorder %v261, %v1304
        %vm1470 = vcmp.eq.s32.totalorder %v262, %v1304
        %vm1471 = vcmp.eq.s32.totalorder %v263, %v1304
        %vm1472 = vcmp.eq.s32.totalorder %v264, %v1304
        %vm1473 = vcmp.eq.s32.totalorder %v265, %v1304
        %vm1474 = vcmp.eq.s32.totalorder %v266, %v1304
        %vm1475 = vcmp.eq.s32.totalorder %v267, %v1304
        %vm1476 = vcmp.eq.s32.totalorder %v260, %v1307
        %vm1477 = vcmp.eq.s32.totalorder %v261, %v1307
        %vm1478 = vcmp.eq.s32.totalorder %v262, %v1307
        %vm1479 = vcmp.eq.s32.totalorder %v263, %v1307
        %vm1480 = vcmp.eq.s32.totalorder %v264, %v1307
        %vm1481 = vcmp.eq.s32.totalorder %v265, %v1307
        %vm1482 = vcmp.eq.s32.totalorder %v266, %v1307
        %vm1483 = vcmp.eq.s32.totalorder %v267, %v1307
        %vm1484 = vcmp.eq.s32.totalorder %v260, %v1310
        %vm1485 = vcmp.eq.s32.totalorder %v261, %v1310
        %vm1486 = vcmp.eq.s32.totalorder %v262, %v1310
        %vm1487 = vcmp.eq.s32.totalorder %v263, %v1310
        %vm1488 = vcmp.eq.s32.totalorder %v264, %v1310
        %vm1489 = vcmp.eq.s32.totalorder %v265, %v1310
        %vm1490 = vcmp.eq.s32.totalorder %v266, %v1310
        %vm1491 = vcmp.eq.s32.totalorder %v267, %v1310
        %vm1492 = vcmp.eq.s32.totalorder %v260, %v1313
        %vm1493 = vcmp.eq.s32.totalorder %v261, %v1313
        %vm1494 = vcmp.eq.s32.totalorder %v262, %v1313
        %vm1495 = vcmp.eq.s32.totalorder %v263, %v1313
        %vm1496 = vcmp.eq.s32.totalorder %v264, %v1313
        %vm1497 = vcmp.eq.s32.totalorder %v265, %v1313
        %vm1498 = vcmp.eq.s32.totalorder %v266, %v1313
        %vm1499 = vcmp.eq.s32.totalorder %v267, %v1313
        %vm1500 = vcmp.eq.s32.totalorder %v260, %v1316
        %vm1501 = vcmp.eq.s32.totalorder %v261, %v1316
        %vm1502 = vcmp.eq.s32.totalorder %v262, %v1316
        %vm1503 = vcmp.eq.s32.totalorder %v263, %v1316
        %vm1504 = vcmp.eq.s32.totalorder %v264, %v1316
        %vm1505 = vcmp.eq.s32.totalorder %v265, %v1316
        %vm1506 = vcmp.eq.s32.totalorder %v266, %v1316
        %vm1507 = vcmp.eq.s32.totalorder %v267, %v1316
        %vm1508 = vcmp.eq.s32.totalorder %v260, %v1319
        %vm1509 = vcmp.eq.s32.totalorder %v261, %v1319
        %vm1510 = vcmp.eq.s32.totalorder %v262, %v1319
        %vm1511 = vcmp.eq.s32.totalorder %v263, %v1319
        %vm1512 = vcmp.eq.s32.totalorder %v264, %v1319
        %vm1513 = vcmp.eq.s32.totalorder %v265, %v1319
        %vm1514 = vcmp.eq.s32.totalorder %v266, %v1319
        %vm1515 = vcmp.eq.s32.totalorder %v267, %v1319
        %vm1516 = vcmp.eq.s32.totalorder %v260, %v1322
        %vm1517 = vcmp.eq.s32.totalorder %v261, %v1322
        %vm1518 = vcmp.eq.s32.totalorder %v262, %v1322
        %vm1519 = vcmp.eq.s32.totalorder %v263, %v1322
        %vm1520 = vcmp.eq.s32.totalorder %v264, %v1322
        %vm1521 = vcmp.eq.s32.totalorder %v265, %v1322
        %vm1522 = vcmp.eq.s32.totalorder %v266, %v1322
        %vm1523 = vcmp.eq.s32.totalorder %v267, %v1322
        %vm1524 = vcmp.eq.s32.totalorder %v260, %v1325
        %vm1525 = vcmp.eq.s32.totalorder %v261, %v1325
        %vm1526 = vcmp.eq.s32.totalorder %v262, %v1325
        %vm1527 = vcmp.eq.s32.totalorder %v263, %v1325
        %vm1528 = vcmp.eq.s32.totalorder %v264, %v1325
        %vm1529 = vcmp.eq.s32.totalorder %v265, %v1325
        %vm1530 = vcmp.eq.s32.totalorder %v266, %v1325
        %vm1531 = vcmp.eq.s32.totalorder %v267, %v1325
        %vm1532 = vcmp.eq.s32.totalorder %v260, %v1328
        %vm1533 = vcmp.eq.s32.totalorder %v261, %v1328
        %vm1534 = vcmp.eq.s32.totalorder %v262, %v1328
        %vm1535 = vcmp.eq.s32.totalorder %v263, %v1328
        %vm1536 = vcmp.eq.s32.totalorder %v264, %v1328
        %vm1537 = vcmp.eq.s32.totalorder %v265, %v1328
        %vm1538 = vcmp.eq.s32.totalorder %v266, %v1328
        %vm1539 = vcmp.eq.s32.totalorder %v267, %v1328
        %vm1540 = vcmp.eq.s32.totalorder %v260, %v1331
        %vm1541 = vcmp.eq.s32.totalorder %v261, %v1331
        %vm1542 = vcmp.eq.s32.totalorder %v262, %v1331
        %vm1543 = vcmp.eq.s32.totalorder %v263, %v1331
        %vm1544 = vcmp.eq.s32.totalorder %v264, %v1331
        %vm1545 = vcmp.eq.s32.totalorder %v265, %v1331
        %vm1546 = vcmp.eq.s32.totalorder %v266, %v1331
        %vm1547 = vcmp.eq.s32.totalorder %v267, %v1331
        %vm1548 = vcmp.eq.s32.totalorder %v260, %v1334
        %vm1549 = vcmp.eq.s32.totalorder %v261, %v1334
        %vm1550 = vcmp.eq.s32.totalorder %v262, %v1334
        %vm1551 = vcmp.eq.s32.totalorder %v263, %v1334
        %vm1552 = vcmp.eq.s32.totalorder %v264, %v1334
        %vm1553 = vcmp.eq.s32.totalorder %v265, %v1334
        %vm1554 = vcmp.eq.s32.totalorder %v266, %v1334
        %vm1555 = vcmp.eq.s32.totalorder %v267, %v1334
        %vm1556 = vcmp.eq.s32.totalorder %v260, %v1337
        %vm1557 = vcmp.eq.s32.totalorder %v261, %v1337
        %vm1558 = vcmp.eq.s32.totalorder %v262, %v1337
        %vm1559 = vcmp.eq.s32.totalorder %v263, %v1337
        %vm1560 = vcmp.eq.s32.totalorder %v264, %v1337
        %vm1561 = vcmp.eq.s32.totalorder %v265, %v1337
        %vm1562 = vcmp.eq.s32.totalorder %v266, %v1337
        %vm1563 = vcmp.eq.s32.totalorder %v267, %v1337
        %vm1564 = vcmp.eq.s32.totalorder %v260, %v1340
        %vm1565 = vcmp.eq.s32.totalorder %v261, %v1340
        %vm1566 = vcmp.eq.s32.totalorder %v262, %v1340
        %vm1567 = vcmp.eq.s32.totalorder %v263, %v1340
        %vm1568 = vcmp.eq.s32.totalorder %v264, %v1340
        %vm1569 = vcmp.eq.s32.totalorder %v265, %v1340
        %vm1570 = vcmp.eq.s32.totalorder %v266, %v1340
        %vm1571 = vcmp.eq.s32.totalorder %v267, %v1340
        %vm1572 = vcmp.eq.s32.totalorder %v260, %v1343
        %vm1573 = vcmp.eq.s32.totalorder %v261, %v1343
        %vm1574 = vcmp.eq.s32.totalorder %v262, %v1343
        %vm1575 = vcmp.eq.s32.totalorder %v263, %v1343
        %vm1576 = vcmp.eq.s32.totalorder %v264, %v1343
        %vm1577 = vcmp.eq.s32.totalorder %v265, %v1343
        %vm1578 = vcmp.eq.s32.totalorder %v266, %v1343
        %vm1579 = vcmp.eq.s32.totalorder %v267, %v1343
        %vm1580 = vcmp.eq.s32.totalorder %v260, %v1346
        %vm1581 = vcmp.eq.s32.totalorder %v261, %v1346
        %vm1582 = vcmp.eq.s32.totalorder %v262, %v1346
        %vm1583 = vcmp.eq.s32.totalorder %v263, %v1346
        %vm1584 = vcmp.eq.s32.totalorder %v264, %v1346
        %vm1585 = vcmp.eq.s32.totalorder %v265, %v1346
        %vm1586 = vcmp.eq.s32.totalorder %v266, %v1346
        %vm1587 = vcmp.eq.s32.totalorder %v267, %v1346
        %vm1588 = vcmp.eq.s32.totalorder %v260, %v1349
        %vm1589 = vcmp.eq.s32.totalorder %v261, %v1349
        %vm1590 = vcmp.eq.s32.totalorder %v262, %v1349
        %vm1591 = vcmp.eq.s32.totalorder %v263, %v1349
        %vm1592 = vcmp.eq.s32.totalorder %v264, %v1349
        %vm1593 = vcmp.eq.s32.totalorder %v265, %v1349
        %vm1594 = vcmp.eq.s32.totalorder %v266, %v1349
        %vm1595 = vcmp.eq.s32.totalorder %v267, %v1349
        %vm1596 = vcmp.eq.s32.totalorder %v260, %v1352
        %vm1597 = vcmp.eq.s32.totalorder %v261, %v1352
        %vm1598 = vcmp.eq.s32.totalorder %v262, %v1352
        %vm1599 = vcmp.eq.s32.totalorder %v263, %v1352
        %vm1600 = vcmp.eq.s32.totalorder %v264, %v1352
        %vm1601 = vcmp.eq.s32.totalorder %v265, %v1352
        %vm1602 = vcmp.eq.s32.totalorder %v266, %v1352
        %vm1603 = vcmp.eq.s32.totalorder %v267, %v1352
        %vm1604 = vcmp.eq.s32.totalorder %v260, %v1355
        %vm1605 = vcmp.eq.s32.totalorder %v261, %v1355
        %vm1606 = vcmp.eq.s32.totalorder %v262, %v1355
        %vm1607 = vcmp.eq.s32.totalorder %v263, %v1355
        %vm1608 = vcmp.eq.s32.totalorder %v264, %v1355
        %vm1609 = vcmp.eq.s32.totalorder %v265, %v1355
        %vm1610 = vcmp.eq.s32.totalorder %v266, %v1355
        %vm1611 = vcmp.eq.s32.totalorder %v267, %v1355
        %v1612 = vsel %vm1356, 1, 0
        %v1613 = vsel %vm1357, 1, 0
        %v1614 = vsel %vm1358, 1, 0
        %v1615 = vsel %vm1359, 1, 0
        %v1616 = vsel %vm1360, 1, 0
        %v1617 = vsel %vm1361, 1, 0
        %v1618 = vsel %vm1362, 1, 0
        %v1619 = vsel %vm1363, 1, 0
        %v1620 = vsel %vm1364, 1, 0
        %v1621 = vsel %vm1365, 1, 0
        %v1622 = vsel %vm1366, 1, 0
        %v1623 = vsel %vm1367, 1, 0
        %v1624 = vsel %vm1368, 1, 0
        %v1625 = vsel %vm1369, 1, 0
        %v1626 = vsel %vm1370, 1, 0
        %v1627 = vsel %vm1371, 1, 0
        %v1628 = vsel %vm1372, 1, 0
        %v1629 = vsel %vm1373, 1, 0
        %v1630 = vsel %vm1374, 1, 0
        %v1631 = vsel %vm1375, 1, 0
        %v1632 = vsel %vm1376, 1, 0
        %v1633 = vsel %vm1377, 1, 0
        %v1634 = vsel %vm1378, 1, 0
        %v1635 = vsel %vm1379, 1, 0
        %v1636 = vsel %vm1380, 1, 0
        %v1637 = vsel %vm1381, 1, 0
        %v1638 = vsel %vm1382, 1, 0
        %v1639 = vsel %vm1383, 1, 0
        %v1640 = vsel %vm1384, 1, 0
        %v1641 = vsel %vm1385, 1, 0
        %v1642 = vsel %vm1386, 1, 0
        %v1643 = vsel %vm1387, 1, 0
        %v1644 = vsel %vm1388, 1, 0
        %v1645 = vsel %vm1389, 1, 0
        %v1646 = vsel %vm1390, 1, 0
        %v1647 = vsel %vm1391, 1, 0
        %v1648 = vsel %vm1392, 1, 0
        %v1649 = vsel %vm1393, 1, 0
        %v1650 = vsel %vm1394, 1, 0
        %v1651 = vsel %vm1395, 1, 0
        %v1652 = vsel %vm1396, 1, 0
        %v1653 = vsel %vm1397, 1, 0
        %v1654 = vsel %vm1398, 1, 0
        %v1655 = vsel %vm1399, 1, 0
        %v1656 = vsel %vm1400, 1, 0
        %v1657 = vsel %vm1401, 1, 0
        %v1658 = vsel %vm1402, 1, 0
        %v1659 = vsel %vm1403, 1, 0
        %v1660 = vsel %vm1404, 1, 0
        %v1661 = vsel %vm1405, 1, 0
        %v1662 = vsel %vm1406, 1, 0
        %v1663 = vsel %vm1407, 1, 0
        %v1664 = vsel %vm1408, 1, 0
        %v1665 = vsel %vm1409, 1, 0
        %v1666 = vsel %vm1410, 1, 0
        %v1667 = vsel %vm1411, 1, 0
        %v1668 = vsel %vm1412, 1, 0
        %v1669 = vsel %vm1413, 1, 0
        %v1670 = vsel %vm1414, 1, 0
        %v1671 = vsel %vm1415, 1, 0
        %v1672 = vsel %vm1416, 1, 0
        %v1673 = vsel %vm1417, 1, 0
        %v1674 = vsel %vm1418, 1, 0
        %v1675 = vsel %vm1419, 1, 0
        %v1676 = vsel %vm1420, 1, 0
        %v1677 = vsel %vm1421, 1, 0
        %v1678 = vsel %vm1422, 1, 0
        %v1679 = vsel %vm1423, 1, 0
        %v1680 = vsel %vm1424, 1, 0
        %v1681 = vsel %vm1425, 1, 0
        %v1682 = vsel %vm1426, 1, 0
        %v1683 = vsel %vm1427, 1, 0
        %v1684 = vsel %vm1428, 1, 0
        %v1685 = vsel %vm1429, 1, 0
        %v1686 = vsel %vm1430, 1, 0
        %v1687 = vsel %vm1431, 1, 0
        %v1688 = vsel %vm1432, 1, 0
        %v1689 = vsel %vm1433, 1, 0
        %v1690 = vsel %vm1434, 1, 0
        %v1691 = vsel %vm1435, 1, 0
        %v1692 = vsel %vm1436, 1, 0
        %v1693 = vsel %vm1437, 1, 0
        %v1694 = vsel %vm1438, 1, 0
        %v1695 = vsel %vm1439, 1, 0
        %v1696 = vsel %vm1440, 1, 0
        %v1697 = vsel %vm1441, 1, 0
        %v1698 = vsel %vm1442, 1, 0
        %v1699 = vsel %vm1443, 1, 0
        %v1700 = vsel %vm1444, 1, 0
        %v1701 = vsel %vm1445, 1, 0
        %v1702 = vsel %vm1446, 1, 0
        %v1703 = vsel %vm1447, 1, 0
        %v1704 = vsel %vm1448, 1, 0
        %v1705 = vsel %vm1449, 1, 0
        %v1706 = vsel %vm1450, 1, 0
        %v1707 = vsel %vm1451, 1, 0
        %v1708 = vsel %vm1452, 1, 0
        %v1709 = vsel %vm1453, 1, 0
        %v1710 = vsel %vm1454, 1, 0
        %v1711 = vsel %vm1455, 1, 0
        %v1712 = vsel %vm1456, 1, 0
        %v1713 = vsel %vm1457, 1, 0
        %v1714 = vsel %vm1458, 1, 0
        %v1715 = vsel %vm1459, 1, 0
        %v1716 = vsel %vm1460, 1, 0
        %v1717 = vsel %vm1461, 1, 0
        %v1718 = vsel %vm1462, 1, 0
        %v1719 = vsel %vm1463, 1, 0
        %v1720 = vsel %vm1464, 1, 0
        %v1721 = vsel %vm1465, 1, 0
        %v1722 = vsel %vm1466, 1, 0
        %v1723 = vsel %vm1467, 1, 0
        %v1724 = vsel %vm1468, 1, 0
        %v1725 = vsel %vm1469, 1, 0
        %v1726 = vsel %vm1470, 1, 0
        %v1727 = vsel %vm1471, 1, 0
        %v1728 = vsel %vm1472, 1, 0
        %v1729 = vsel %vm1473, 1, 0
        %v1730 = vsel %vm1474, 1, 0
        %v1731 = vsel %vm1475, 1, 0
        %v1732 = vsel %vm1476, 1, 0
        %v1733 = vsel %vm1477, 1, 0
        %v1734 = vsel %vm1478, 1, 0
        %v1735 = vsel %vm1479, 1, 0
        %v1736 = vsel %vm1480, 1, 0
        %v1737 = vsel %vm1481, 1, 0
        %v1738 = vsel %vm1482, 1, 0
        %v1739 = vsel %vm1483, 1, 0
        %v1740 = vsel %vm1484, 1, 0
        %v1741 = vsel %vm1485, 1, 0
        %v1742 = vsel %vm1486, 1, 0
        %v1743 = vsel %vm1487, 1, 0
        %v1744 = vsel %vm1488, 1, 0
        %v1745 = vsel %vm1489, 1, 0
        %v1746 = vsel %vm1490, 1, 0
        %v1747 = vsel %vm1491, 1, 0
        %v1748 = vsel %vm1492, 1, 0
        %v1749 = vsel %vm1493, 1, 0
        %v1750 = vsel %vm1494, 1, 0
        %v1751 = vsel %vm1495, 1, 0
        %v1752 = vsel %vm1496, 1, 0
        %v1753 = vsel %vm1497, 1, 0
        %v1754 = vsel %vm1498, 1, 0
        %v1755 = vsel %vm1499, 1, 0
        %v1756 = vsel %vm1500, 1, 0
        %v1757 = vsel %vm1501, 1, 0
        %v1758 = vsel %vm1502, 1, 0
        %v1759 = vsel %vm1503, 1, 0
        %v1760 = vsel %vm1504, 1, 0
        %v1761 = vsel %vm1505, 1, 0
        %v1762 = vsel %vm1506, 1, 0
        %v1763 = vsel %vm1507, 1, 0
        %v1764 = vsel %vm1508, 1, 0
        %v1765 = vsel %vm1509, 1, 0
        %v1766 = vsel %vm1510, 1, 0
        %v1767 = vsel %vm1511, 1, 0
        %v1768 = vsel %vm1512, 1, 0
        %v1769 = vsel %vm1513, 1, 0
        %v1770 = vsel %vm1514, 1, 0
        %v1771 = vsel %vm1515, 1, 0
        %v1772 = vsel %vm1516, 1, 0
        %v1773 = vsel %vm1517, 1, 0
        %v1774 = vsel %vm1518, 1, 0
        %v1775 = vsel %vm1519, 1, 0
        %v1776 = vsel %vm1520, 1, 0
        %v1777 = vsel %vm1521, 1, 0
        %v1778 = vsel %vm1522, 1, 0
        %v1779 = vsel %vm1523, 1, 0
        %v1780 = vsel %vm1524, 1, 0
        %v1781 = vsel %vm1525, 1, 0
        %v1782 = vsel %vm1526, 1, 0
        %v1783 = vsel %vm1527, 1, 0
        %v1784 = vsel %vm1528, 1, 0
        %v1785 = vsel %vm1529, 1, 0
        %v1786 = vsel %vm1530, 1, 0
        %v1787 = vsel %vm1531, 1, 0
        %v1788 = vsel %vm1532, 1, 0
        %v1789 = vsel %vm1533, 1, 0
        %v1790 = vsel %vm1534, 1, 0
        %v1791 = vsel %vm1535, 1, 0
        %v1792 = vsel %vm1536, 1, 0
        %v1793 = vsel %vm1537, 1, 0
        %v1794 = vsel %vm1538, 1, 0
        %v1795 = vsel %vm1539, 1, 0
        %v1796 = vsel %vm1540, 1, 0
        %v1797 = vsel %vm1541, 1, 0
        %v1798 = vsel %vm1542, 1, 0
        %v1799 = vsel %vm1543, 1, 0
        %v1800 = vsel %vm1544, 1, 0
        %v1801 = vsel %vm1545, 1, 0
        %v1802 = vsel %vm1546, 1, 0
        %v1803 = vsel %vm1547, 1, 0
        %v1804 = vsel %vm1548, 1, 0
        %v1805 = vsel %vm1549, 1, 0
        %v1806 = vsel %vm1550, 1, 0
        %v1807 = vsel %vm1551, 1, 0
        %v1808 = vsel %vm1552, 1, 0
        %v1809 = vsel %vm1553, 1, 0
        %v1810 = vsel %vm1554, 1, 0
        %v1811 = vsel %vm1555, 1, 0
        %v1812 = vsel %vm1556, 1, 0
        %v1813 = vsel %vm1557, 1, 0
        %v1814 = vsel %vm1558, 1, 0
        %v1815 = vsel %vm1559, 1, 0
        %v1816 = vsel %vm1560, 1, 0
        %v1817 = vsel %vm1561, 1, 0
        %v1818 = vsel %vm1562, 1, 0
        %v1819 = vsel %vm1563, 1, 0
        %v1820 = vsel %vm1564, 1, 0
        %v1821 = vsel %vm1565, 1, 0
        %v1822 = vsel %vm1566, 1, 0
        %v1823 = vsel %vm1567, 1, 0
        %v1824 = vsel %vm1568, 1, 0
        %v1825 = vsel %vm1569, 1, 0
        %v1826 = vsel %vm1570, 1, 0
        %v1827 = vsel %vm1571, 1, 0
        %v1828 = vsel %vm1572, 1, 0
        %v1829 = vsel %vm1573, 1, 0
        %v1830 = vsel %vm1574, 1, 0
        %v1831 = vsel %vm1575, 1, 0
        %v1832 = vsel %vm1576, 1, 0
        %v1833 = vsel %vm1577, 1, 0
        %v1834 = vsel %vm1578, 1, 0
        %v1835 = vsel %vm1579, 1, 0
        %v1836 = vsel %vm1580, 1, 0
        %v1837 = vsel %vm1581, 1, 0
        %v1838 = vsel %vm1582, 1, 0
        %v1839 = vsel %vm1583, 1, 0
        %v1840 = vsel %vm1584, 1, 0
        %v1841 = vsel %vm1585, 1, 0
        %v1842 = vsel %vm1586, 1, 0
        %v1843 = vsel %vm1587, 1, 0
        %v1844 = vsel %vm1588, 1, 0
        %v1845 = vsel %vm1589, 1, 0
        %v1846 = vsel %vm1590, 1, 0
        %v1847 = vsel %vm1591, 1, 0
        %v1848 = vsel %vm1592, 1, 0
        %v1849 = vsel %vm1593, 1, 0
        %v1850 = vsel %vm1594, 1, 0
        %v1851 = vsel %vm1595, 1, 0
        %v1852 = vsel %vm1596, 1, 0
        %v1853 = vsel %vm1597, 1, 0
        %v1854 = vsel %vm1598, 1, 0
        %v1855 = vsel %vm1599, 1, 0
        %v1856 = vsel %vm1600, 1, 0
        %v1857 = vsel %vm1601, 1, 0
        %v1858 = vsel %vm1602, 1, 0
        %v1859 = vsel %vm1603, 1, 0
        %v1860 = vsel %vm1604, 1, 0
        %v1861 = vsel %vm1605, 1, 0
        %v1862 = vsel %vm1606, 1, 0
        %v1863 = vsel %vm1607, 1, 0
        %v1864 = vsel %vm1608, 1, 0
        %v1865 = vsel %vm1609, 1, 0
        %v1866 = vsel %vm1610, 1, 0
        %v1867 = vsel %vm1611, 1, 0
        %v1868 = vcvt.s32.f32 %v1612
        %v1869 = vcvt.s32.f32 %v1613
        %v1870 = vcvt.s32.f32 %v1614
        %v1871 = vcvt.s32.f32 %v1615
        %v1872 = vcvt.s32.f32 %v1616
        %v1873 = vcvt.s32.f32 %v1617
        %v1874 = vcvt.s32.f32 %v1618
        %v1875 = vcvt.s32.f32 %v1619
        %v1876 = vcvt.s32.f32 %v1620
        %v1877 = vcvt.s32.f32 %v1621
        %v1878 = vcvt.s32.f32 %v1622
        %v1879 = vcvt.s32.f32 %v1623
        %v1880 = vcvt.s32.f32 %v1624
        %v1881 = vcvt.s32.f32 %v1625
        %v1882 = vcvt.s32.f32 %v1626
        %v1883 = vcvt.s32.f32 %v1627
        %v1884 = vcvt.s32.f32 %v1628
        %v1885 = vcvt.s32.f32 %v1629
        %v1886 = vcvt.s32.f32 %v1630
        %v1887 = vcvt.s32.f32 %v1631
        %v1888 = vcvt.s32.f32 %v1632
        %v1889 = vcvt.s32.f32 %v1633
        %v1890 = vcvt.s32.f32 %v1634
        %v1891 = vcvt.s32.f32 %v1635
        %v1892 = vcvt.s32.f32 %v1636
        %v1893 = vcvt.s32.f32 %v1637
        %v1894 = vcvt.s32.f32 %v1638
        %v1895 = vcvt.s32.f32 %v1639
        %v1896 = vcvt.s32.f32 %v1640
        %v1897 = vcvt.s32.f32 %v1641
        %v1898 = vcvt.s32.f32 %v1642
        %v1899 = vcvt.s32.f32 %v1643
        %v1900 = vcvt.s32.f32 %v1644
        %v1901 = vcvt.s32.f32 %v1645
        %v1902 = vcvt.s32.f32 %v1646
        %v1903 = vcvt.s32.f32 %v1647
        %v1904 = vcvt.s32.f32 %v1648
        %v1905 = vcvt.s32.f32 %v1649
        %v1906 = vcvt.s32.f32 %v1650
        %v1907 = vcvt.s32.f32 %v1651
        %v1908 = vcvt.s32.f32 %v1652
        %v1909 = vcvt.s32.f32 %v1653
        %v1910 = vcvt.s32.f32 %v1654
        %v1911 = vcvt.s32.f32 %v1655
        %v1912 = vcvt.s32.f32 %v1656
        %v1913 = vcvt.s32.f32 %v1657
        %v1914 = vcvt.s32.f32 %v1658
        %v1915 = vcvt.s32.f32 %v1659
        %v1916 = vcvt.s32.f32 %v1660
        %v1917 = vcvt.s32.f32 %v1661
        %v1918 = vcvt.s32.f32 %v1662
        %v1919 = vcvt.s32.f32 %v1663
        %v1920 = vcvt.s32.f32 %v1664
        %v1921 = vcvt.s32.f32 %v1665
        %v1922 = vcvt.s32.f32 %v1666
        %v1923 = vcvt.s32.f32 %v1667
        %v1924 = vcvt.s32.f32 %v1668
        %v1925 = vcvt.s32.f32 %v1669
        %v1926 = vcvt.s32.f32 %v1670
        %v1927 = vcvt.s32.f32 %v1671
        %v1928 = vcvt.s32.f32 %v1672
        %v1929 = vcvt.s32.f32 %v1673
        %v1930 = vcvt.s32.f32 %v1674
        %v1931 = vcvt.s32.f32 %v1675
        %v1932 = vcvt.s32.f32 %v1676
        %v1933 = vcvt.s32.f32 %v1677
        %v1934 = vcvt.s32.f32 %v1678
        %v1935 = vcvt.s32.f32 %v1679
        %v1936 = vcvt.s32.f32 %v1680
        %v1937 = vcvt.s32.f32 %v1681
        %v1938 = vcvt.s32.f32 %v1682
        %v1939 = vcvt.s32.f32 %v1683
        %v1940 = vcvt.s32.f32 %v1684
        %v1941 = vcvt.s32.f32 %v1685
        %v1942 = vcvt.s32.f32 %v1686
        %v1943 = vcvt.s32.f32 %v1687
        %v1944 = vcvt.s32.f32 %v1688
        %v1945 = vcvt.s32.f32 %v1689
        %v1946 = vcvt.s32.f32 %v1690
        %v1947 = vcvt.s32.f32 %v1691
        %v1948 = vcvt.s32.f32 %v1692
        %v1949 = vcvt.s32.f32 %v1693
        %v1950 = vcvt.s32.f32 %v1694
        %v1951 = vcvt.s32.f32 %v1695
        %v1952 = vcvt.s32.f32 %v1696
        %v1953 = vcvt.s32.f32 %v1697
        %v1954 = vcvt.s32.f32 %v1698
        %v1955 = vcvt.s32.f32 %v1699
        %v1956 = vcvt.s32.f32 %v1700
        %v1957 = vcvt.s32.f32 %v1701
        %v1958 = vcvt.s32.f32 %v1702
        %v1959 = vcvt.s32.f32 %v1703
        %v1960 = vcvt.s32.f32 %v1704
        %v1961 = vcvt.s32.f32 %v1705
        %v1962 = vcvt.s32.f32 %v1706
        %v1963 = vcvt.s32.f32 %v1707
        %v1964 = vcvt.s32.f32 %v1708
        %v1965 = vcvt.s32.f32 %v1709
        %v1966 = vcvt.s32.f32 %v1710
        %v1967 = vcvt.s32.f32 %v1711
        %v1968 = vcvt.s32.f32 %v1712
        %v1969 = vcvt.s32.f32 %v1713
        %v1970 = vcvt.s32.f32 %v1714
        %v1971 = vcvt.s32.f32 %v1715
        %v1972 = vcvt.s32.f32 %v1716
        %v1973 = vcvt.s32.f32 %v1717
        %v1974 = vcvt.s32.f32 %v1718
        %v1975 = vcvt.s32.f32 %v1719
        %v1976 = vcvt.s32.f32 %v1720
        %v1977 = vcvt.s32.f32 %v1721
        %v1978 = vcvt.s32.f32 %v1722
        %v1979 = vcvt.s32.f32 %v1723
        %v1980 = vcvt.s32.f32 %v1724
        %v1981 = vcvt.s32.f32 %v1725
        %v1982 = vcvt.s32.f32 %v1726
        %v1983 = vcvt.s32.f32 %v1727
        %v1984 = vcvt.s32.f32 %v1728
        %v1985 = vcvt.s32.f32 %v1729
        %v1986 = vcvt.s32.f32 %v1730
        %v1987 = vcvt.s32.f32 %v1731
        %v1988 = vcvt.s32.f32 %v1732
        %v1989 = vcvt.s32.f32 %v1733
        %v1990 = vcvt.s32.f32 %v1734
        %v1991 = vcvt.s32.f32 %v1735
        %v1992 = vcvt.s32.f32 %v1736
        %v1993 = vcvt.s32.f32 %v1737
        %v1994 = vcvt.s32.f32 %v1738
        %v1995 = vcvt.s32.f32 %v1739
        %v1996 = vcvt.s32.f32 %v1740
        %v1997 = vcvt.s32.f32 %v1741
        %v1998 = vcvt.s32.f32 %v1742
        %v1999 = vcvt.s32.f32 %v1743
        %v2000 = vcvt.s32.f32 %v1744
        %v2001 = vcvt.s32.f32 %v1745
        %v2002 = vcvt.s32.f32 %v1746
        %v2003 = vcvt.s32.f32 %v1747
        %v2004 = vcvt.s32.f32 %v1748
        %v2005 = vcvt.s32.f32 %v1749
        %v2006 = vcvt.s32.f32 %v1750
        %v2007 = vcvt.s32.f32 %v1751
        %v2008 = vcvt.s32.f32 %v1752
        %v2009 = vcvt.s32.f32 %v1753
        %v2010 = vcvt.s32.f32 %v1754
        %v2011 = vcvt.s32.f32 %v1755
        %v2012 = vcvt.s32.f32 %v1756
        %v2013 = vcvt.s32.f32 %v1757
        %v2014 = vcvt.s32.f32 %v1758
        %v2015 = vcvt.s32.f32 %v1759
        %v2016 = vcvt.s32.f32 %v1760
        %v2017 = vcvt.s32.f32 %v1761
        %v2018 = vcvt.s32.f32 %v1762
        %v2019 = vcvt.s32.f32 %v1763
        %v2020 = vcvt.s32.f32 %v1764
        %v2021 = vcvt.s32.f32 %v1765
        %v2022 = vcvt.s32.f32 %v1766
        %v2023 = vcvt.s32.f32 %v1767
        %v2024 = vcvt.s32.f32 %v1768
        %v2025 = vcvt.s32.f32 %v1769
        %v2026 = vcvt.s32.f32 %v1770
        %v2027 = vcvt.s32.f32 %v1771
        %v2028 = vcvt.s32.f32 %v1772
        %v2029 = vcvt.s32.f32 %v1773
        %v2030 = vcvt.s32.f32 %v1774
        %v2031 = vcvt.s32.f32 %v1775
        %v2032 = vcvt.s32.f32 %v1776
        %v2033 = vcvt.s32.f32 %v1777
        %v2034 = vcvt.s32.f32 %v1778
        %v2035 = vcvt.s32.f32 %v1779
        %v2036 = vcvt.s32.f32 %v1780
        %v2037 = vcvt.s32.f32 %v1781
        %v2038 = vcvt.s32.f32 %v1782
        %v2039 = vcvt.s32.f32 %v1783
        %v2040 = vcvt.s32.f32 %v1784
        %v2041 = vcvt.s32.f32 %v1785
        %v2042 = vcvt.s32.f32 %v1786
        %v2043 = vcvt.s32.f32 %v1787
        %v2044 = vcvt.s32.f32 %v1788
        %v2045 = vcvt.s32.f32 %v1789
        %v2046 = vcvt.s32.f32 %v1790
        %v2047 = vcvt.s32.f32 %v1791
        %v2048 = vcvt.s32.f32 %v1792
        %v2049 = vcvt.s32.f32 %v1793
        %v2050 = vcvt.s32.f32 %v1794
        %v2051 = vcvt.s32.f32 %v1795
        %v2052 = vcvt.s32.f32 %v1796
        %v2053 = vcvt.s32.f32 %v1797
        %v2054 = vcvt.s32.f32 %v1798
        %v2055 = vcvt.s32.f32 %v1799
        %v2056 = vcvt.s32.f32 %v1800
        %v2057 = vcvt.s32.f32 %v1801
        %v2058 = vcvt.s32.f32 %v1802
        %v2059 = vcvt.s32.f32 %v1803
        %v2060 = vcvt.s32.f32 %v1804
        %v2061 = vcvt.s32.f32 %v1805
        %v2062 = vcvt.s32.f32 %v1806
        %v2063 = vcvt.s32.f32 %v1807
        %v2064 = vcvt.s32.f32 %v1808
        %v2065 = vcvt.s32.f32 %v1809
        %v2066 = vcvt.s32.f32 %v1810
        %v2067 = vcvt.s32.f32 %v1811
        %v2068 = vcvt.s32.f32 %v1812
        %v2069 = vcvt.s32.f32 %v1813
        %v2070 = vcvt.s32.f32 %v1814
        %v2071 = vcvt.s32.f32 %v1815
        %v2072 = vcvt.s32.f32 %v1816
        %v2073 = vcvt.s32.f32 %v1817
        %v2074 = vcvt.s32.f32 %v1818
        %v2075 = vcvt.s32.f32 %v1819
        %v2076 = vcvt.s32.f32 %v1820
        %v2077 = vcvt.s32.f32 %v1821
        %v2078 = vcvt.s32.f32 %v1822
        %v2079 = vcvt.s32.f32 %v1823
        %v2080 = vcvt.s32.f32 %v1824
        %v2081 = vcvt.s32.f32 %v1825
        %v2082 = vcvt.s32.f32 %v1826
        %v2083 = vcvt.s32.f32 %v1827
        %v2084 = vcvt.s32.f32 %v1828
        %v2085 = vcvt.s32.f32 %v1829
        %v2086 = vcvt.s32.f32 %v1830
        %v2087 = vcvt.s32.f32 %v1831
        %v2088 = vcvt.s32.f32 %v1832
        %v2089 = vcvt.s32.f32 %v1833
        %v2090 = vcvt.s32.f32 %v1834
        %v2091 = vcvt.s32.f32 %v1835
        %v2092 = vcvt.s32.f32 %v1836
        %v2093 = vcvt.s32.f32 %v1837
        %v2094 = vcvt.s32.f32 %v1838
        %v2095 = vcvt.s32.f32 %v1839
        %v2096 = vcvt.s32.f32 %v1840
        %v2097 = vcvt.s32.f32 %v1841
        %v2098 = vcvt.s32.f32 %v1842
        %v2099 = vcvt.s32.f32 %v1843
        %v2100 = vcvt.s32.f32 %v1844
        %v2101 = vcvt.s32.f32 %v1845
        %v2102 = vcvt.s32.f32 %v1846
        %v2103 = vcvt.s32.f32 %v1847
        %v2104 = vcvt.s32.f32 %v1848
        %v2105 = vcvt.s32.f32 %v1849
        %v2106 = vcvt.s32.f32 %v1850
        %v2107 = vcvt.s32.f32 %v1851
        %v2108 = vcvt.s32.f32 %v1852
        %v2109 = vcvt.s32.f32 %v1853
        %v2110 = vcvt.s32.f32 %v1854
        %v2111 = vcvt.s32.f32 %v1855
        %v2112 = vcvt.s32.f32 %v1856
        %v2113 = vcvt.s32.f32 %v1857
        %v2114 = vcvt.s32.f32 %v1858
        %v2115 = vcvt.s32.f32 %v1859
        %v2116 = vcvt.s32.f32 %v1860
        %v2117 = vcvt.s32.f32 %v1861
        %v2118 = vcvt.s32.f32 %v1862
        %v2119 = vcvt.s32.f32 %v1863
        %v2120 = vcvt.s32.f32 %v1864
        %v2121 = vcvt.s32.f32 %v1865
        %v2122 = vcvt.s32.f32 %v1866
        %v2123 = vcvt.s32.f32 %v1867
        %v2124 = vpack.c.bf16 %v1876, %v1868
        %v2125 = vpack.c.bf16 %v1877, %v1869
        %v2126 = vpack.c.bf16 %v1878, %v1870
        %v2127 = vpack.c.bf16 %v1879, %v1871
        %v2128 = vpack.c.bf16 %v1880, %v1872
        %v2129 = vpack.c.bf16 %v1881, %v1873
        %v2130 = vpack.c.bf16 %v1882, %v1874
        %v2131 = vpack.c.bf16 %v1883, %v1875
        %v2132 = vpack.c.bf16 %v1892, %v1884
        %v2133 = vpack.c.bf16 %v1893, %v1885
        %v2134 = vpack.c.bf16 %v1894, %v1886
        %v2135 = vpack.c.bf16 %v1895, %v1887
        %v2136 = vpack.c.bf16 %v1896, %v1888
        %v2137 = vpack.c.bf16 %v1897, %v1889
        %v2138 = vpack.c.bf16 %v1898, %v1890
        %v2139 = vpack.c.bf16 %v1899, %v1891
        %v2140 = vpack.c.bf16 %v1908, %v1900
        %v2141 = vpack.c.bf16 %v1909, %v1901
        %v2142 = vpack.c.bf16 %v1910, %v1902
        %v2143 = vpack.c.bf16 %v1911, %v1903
        %v2144 = vpack.c.bf16 %v1912, %v1904
        %v2145 = vpack.c.bf16 %v1913, %v1905
        %v2146 = vpack.c.bf16 %v1914, %v1906
        %v2147 = vpack.c.bf16 %v1915, %v1907
        %v2148 = vpack.c.bf16 %v1924, %v1916
        %v2149 = vpack.c.bf16 %v1925, %v1917
        %v2150 = vpack.c.bf16 %v1926, %v1918
        %v2151 = vpack.c.bf16 %v1927, %v1919
        %v2152 = vpack.c.bf16 %v1928, %v1920
        %v2153 = vpack.c.bf16 %v1929, %v1921
        %v2154 = vpack.c.bf16 %v1930, %v1922
        %v2155 = vpack.c.bf16 %v1931, %v1923
        %v2156 = vpack.c.bf16 %v1940, %v1932
        %v2157 = vpack.c.bf16 %v1941, %v1933
        %v2158 = vpack.c.bf16 %v1942, %v1934
        %v2159 = vpack.c.bf16 %v1943, %v1935
        %v2160 = vpack.c.bf16 %v1944, %v1936
        %v2161 = vpack.c.bf16 %v1945, %v1937
        %v2162 = vpack.c.bf16 %v1946, %v1938
        %v2163 = vpack.c.bf16 %v1947, %v1939
        %v2164 = vpack.c.bf16 %v1956, %v1948
        %v2165 = vpack.c.bf16 %v1957, %v1949
        %v2166 = vpack.c.bf16 %v1958, %v1950
        %v2167 = vpack.c.bf16 %v1959, %v1951
        %v2168 = vpack.c.bf16 %v1960, %v1952
        %v2169 = vpack.c.bf16 %v1961, %v1953
        %v2170 = vpack.c.bf16 %v1962, %v1954
        %v2171 = vpack.c.bf16 %v1963, %v1955
        %v2172 = vpack.c.bf16 %v1972, %v1964
        %v2173 = vpack.c.bf16 %v1973, %v1965
        %v2174 = vpack.c.bf16 %v1974, %v1966
        %v2175 = vpack.c.bf16 %v1975, %v1967
        %v2176 = vpack.c.bf16 %v1976, %v1968
        %v2177 = vpack.c.bf16 %v1977, %v1969
        %v2178 = vpack.c.bf16 %v1978, %v1970
        %v2179 = vpack.c.bf16 %v1979, %v1971
        %v2180 = vpack.c.bf16 %v1988, %v1980
        %v2181 = vpack.c.bf16 %v1989, %v1981
        %v2182 = vpack.c.bf16 %v1990, %v1982
        %v2183 = vpack.c.bf16 %v1991, %v1983
        %v2184 = vpack.c.bf16 %v1992, %v1984
        %v2185 = vpack.c.bf16 %v1993, %v1985
        %v2186 = vpack.c.bf16 %v1994, %v1986
        %v2187 = vpack.c.bf16 %v1995, %v1987
        %v2188 = vpack.c.bf16 %v2004, %v1996
        %v2189 = vpack.c.bf16 %v2005, %v1997
        %v2190 = vpack.c.bf16 %v2006, %v1998
        %v2191 = vpack.c.bf16 %v2007, %v1999
        %v2192 = vpack.c.bf16 %v2008, %v2000
        %v2193 = vpack.c.bf16 %v2009, %v2001
        %v2194 = vpack.c.bf16 %v2010, %v2002
        %v2195 = vpack.c.bf16 %v2011, %v2003
        %v2196 = vpack.c.bf16 %v2020, %v2012
        %v2197 = vpack.c.bf16 %v2021, %v2013
        %v2198 = vpack.c.bf16 %v2022, %v2014
        %v2199 = vpack.c.bf16 %v2023, %v2015
        %v2200 = vpack.c.bf16 %v2024, %v2016
        %v2201 = vpack.c.bf16 %v2025, %v2017
        %v2202 = vpack.c.bf16 %v2026, %v2018
        %v2203 = vpack.c.bf16 %v2027, %v2019
        %v2204 = vpack.c.bf16 %v2036, %v2028
        %v2205 = vpack.c.bf16 %v2037, %v2029
        %v2206 = vpack.c.bf16 %v2038, %v2030
        %v2207 = vpack.c.bf16 %v2039, %v2031
        %v2208 = vpack.c.bf16 %v2040, %v2032
        %v2209 = vpack.c.bf16 %v2041, %v2033
        %v2210 = vpack.c.bf16 %v2042, %v2034
        %v2211 = vpack.c.bf16 %v2043, %v2035
        %v2212 = vpack.c.bf16 %v2052, %v2044
        %v2213 = vpack.c.bf16 %v2053, %v2045
        %v2214 = vpack.c.bf16 %v2054, %v2046
        %v2215 = vpack.c.bf16 %v2055, %v2047
        %v2216 = vpack.c.bf16 %v2056, %v2048
        %v2217 = vpack.c.bf16 %v2057, %v2049
        %v2218 = vpack.c.bf16 %v2058, %v2050
        %v2219 = vpack.c.bf16 %v2059, %v2051
        %v2220 = vpack.c.bf16 %v2068, %v2060
        %v2221 = vpack.c.bf16 %v2069, %v2061
        %v2222 = vpack.c.bf16 %v2070, %v2062
        %v2223 = vpack.c.bf16 %v2071, %v2063
        %v2224 = vpack.c.bf16 %v2072, %v2064
        %v2225 = vpack.c.bf16 %v2073, %v2065
        %v2226 = vpack.c.bf16 %v2074, %v2066
        %v2227 = vpack.c.bf16 %v2075, %v2067
        %v2228 = vpack.c.bf16 %v2084, %v2076
        %v2229 = vpack.c.bf16 %v2085, %v2077
        %v2230 = vpack.c.bf16 %v2086, %v2078
        %v2231 = vpack.c.bf16 %v2087, %v2079
        %v2232 = vpack.c.bf16 %v2088, %v2080
        %v2233 = vpack.c.bf16 %v2089, %v2081
        %v2234 = vpack.c.bf16 %v2090, %v2082
        %v2235 = vpack.c.bf16 %v2091, %v2083
        %v2236 = vpack.c.bf16 %v2100, %v2092
        %v2237 = vpack.c.bf16 %v2101, %v2093
        %v2238 = vpack.c.bf16 %v2102, %v2094
        %v2239 = vpack.c.bf16 %v2103, %v2095
        %v2240 = vpack.c.bf16 %v2104, %v2096
        %v2241 = vpack.c.bf16 %v2105, %v2097
        %v2242 = vpack.c.bf16 %v2106, %v2098
        %v2243 = vpack.c.bf16 %v2107, %v2099
        %v2244 = vpack.c.bf16 %v2116, %v2108
        %v2245 = vpack.c.bf16 %v2117, %v2109
        %v2246 = vpack.c.bf16 %v2118, %v2110
        %v2247 = vpack.c.bf16 %v2119, %v2111
        %v2248 = vpack.c.bf16 %v2120, %v2112
        %v2249 = vpack.c.bf16 %v2121, %v2113
        %v2250 = vpack.c.bf16 %v2122, %v2114
        %v2251 = vpack.c.bf16 %v2123, %v2115
        %v2252 = vadd.bf16 %v1132, %v2124
        %v2253 = vadd.bf16 %v1133, %v2125
        %v2254 = vadd.bf16 %v1134, %v2126
        %v2255 = vadd.bf16 %v1135, %v2127
        %v2256 = vadd.bf16 %v1136, %v2128
        %v2257 = vadd.bf16 %v1137, %v2129
        %v2258 = vadd.bf16 %v1138, %v2130
        %v2259 = vadd.bf16 %v1139, %v2131
        %v2260 = vadd.bf16 %v1140, %v2132
        %v2261 = vadd.bf16 %v1141, %v2133
        %v2262 = vadd.bf16 %v1142, %v2134
        %v2263 = vadd.bf16 %v1143, %v2135
        %v2264 = vadd.bf16 %v1144, %v2136
        %v2265 = vadd.bf16 %v1145, %v2137
        %v2266 = vadd.bf16 %v1146, %v2138
        %v2267 = vadd.bf16 %v1147, %v2139
        %v2268 = vadd.bf16 %v1148, %v2140
        %v2269 = vadd.bf16 %v1149, %v2141
        %v2270 = vadd.bf16 %v1150, %v2142
        %v2271 = vadd.bf16 %v1151, %v2143
        %v2272 = vadd.bf16 %v1152, %v2144
        %v2273 = vadd.bf16 %v1153, %v2145
        %v2274 = vadd.bf16 %v1154, %v2146
        %v2275 = vadd.bf16 %v1155, %v2147
        %v2276 = vadd.bf16 %v1156, %v2148
        %v2277 = vadd.bf16 %v1157, %v2149
        %v2278 = vadd.bf16 %v1158, %v2150
        %v2279 = vadd.bf16 %v1159, %v2151
        %v2280 = vadd.bf16 %v1160, %v2152
        %v2281 = vadd.bf16 %v1161, %v2153
        %v2282 = vadd.bf16 %v1162, %v2154
        %v2283 = vadd.bf16 %v1163, %v2155
        %v2284 = vadd.bf16 %v1164, %v2156
        %v2285 = vadd.bf16 %v1165, %v2157
        %v2286 = vadd.bf16 %v1166, %v2158
        %v2287 = vadd.bf16 %v1167, %v2159
        %v2288 = vadd.bf16 %v1168, %v2160
        %v2289 = vadd.bf16 %v1169, %v2161
        %v2290 = vadd.bf16 %v1170, %v2162
        %v2291 = vadd.bf16 %v1171, %v2163
        %v2292 = vadd.bf16 %v1172, %v2164
        %v2293 = vadd.bf16 %v1173, %v2165
        %v2294 = vadd.bf16 %v1174, %v2166
        %v2295 = vadd.bf16 %v1175, %v2167
        %v2296 = vadd.bf16 %v1176, %v2168
        %v2297 = vadd.bf16 %v1177, %v2169
        %v2298 = vadd.bf16 %v1178, %v2170
        %v2299 = vadd.bf16 %v1179, %v2171
        %v2300 = vadd.bf16 %v1180, %v2172
        %v2301 = vadd.bf16 %v1181, %v2173
        %v2302 = vadd.bf16 %v1182, %v2174
        %v2303 = vadd.bf16 %v1183, %v2175
        %v2304 = vadd.bf16 %v1184, %v2176
        %v2305 = vadd.bf16 %v1185, %v2177
        %v2306 = vadd.bf16 %v1186, %v2178
        %v2307 = vadd.bf16 %v1187, %v2179
        %v2308 = vadd.bf16 %v1188, %v2180
        %v2309 = vadd.bf16 %v1189, %v2181
        %v2310 = vadd.bf16 %v1190, %v2182
        %v2311 = vadd.bf16 %v1191, %v2183
        %v2312 = vadd.bf16 %v1192, %v2184
        %v2313 = vadd.bf16 %v1193, %v2185
        %v2314 = vadd.bf16 %v1194, %v2186
        %v2315 = vadd.bf16 %v1195, %v2187
        %v2316 = vadd.bf16 %v1196, %v2188
        %v2317 = vadd.bf16 %v1197, %v2189
        %v2318 = vadd.bf16 %v1198, %v2190
        %v2319 = vadd.bf16 %v1199, %v2191
        %v2320 = vadd.bf16 %v1200, %v2192
        %v2321 = vadd.bf16 %v1201, %v2193
        %v2322 = vadd.bf16 %v1202, %v2194
        %v2323 = vadd.bf16 %v1203, %v2195
        %v2324 = vadd.bf16 %v1204, %v2196
        %v2325 = vadd.bf16 %v1205, %v2197
        %v2326 = vadd.bf16 %v1206, %v2198
        %v2327 = vadd.bf16 %v1207, %v2199
        %v2328 = vadd.bf16 %v1208, %v2200
        %v2329 = vadd.bf16 %v1209, %v2201
        %v2330 = vadd.bf16 %v1210, %v2202
        %v2331 = vadd.bf16 %v1211, %v2203
        %v2332 = vadd.bf16 %v1212, %v2204
        %v2333 = vadd.bf16 %v1213, %v2205
        %v2334 = vadd.bf16 %v1214, %v2206
        %v2335 = vadd.bf16 %v1215, %v2207
        %v2336 = vadd.bf16 %v1216, %v2208
        %v2337 = vadd.bf16 %v1217, %v2209
        %v2338 = vadd.bf16 %v1218, %v2210
        %v2339 = vadd.bf16 %v1219, %v2211
        %v2340 = vadd.bf16 %v1220, %v2212
        %v2341 = vadd.bf16 %v1221, %v2213
        %v2342 = vadd.bf16 %v1222, %v2214
        %v2343 = vadd.bf16 %v1223, %v2215
        %v2344 = vadd.bf16 %v1224, %v2216
        %v2345 = vadd.bf16 %v1225, %v2217
        %v2346 = vadd.bf16 %v1226, %v2218
        %v2347 = vadd.bf16 %v1227, %v2219
        %v2348 = vadd.bf16 %v1228, %v2220
        %v2349 = vadd.bf16 %v1229, %v2221
        %v2350 = vadd.bf16 %v1230, %v2222
        %v2351 = vadd.bf16 %v1231, %v2223
        %v2352 = vadd.bf16 %v1232, %v2224
        %v2353 = vadd.bf16 %v1233, %v2225
        %v2354 = vadd.bf16 %v1234, %v2226
        %v2355 = vadd.bf16 %v1235, %v2227
        %v2356 = vadd.bf16 %v1236, %v2228
        %v2357 = vadd.bf16 %v1237, %v2229
        %v2358 = vadd.bf16 %v1238, %v2230
        %v2359 = vadd.bf16 %v1239, %v2231
        %v2360 = vadd.bf16 %v1240, %v2232
        %v2361 = vadd.bf16 %v1241, %v2233
        %v2362 = vadd.bf16 %v1242, %v2234
        %v2363 = vadd.bf16 %v1243, %v2235
        %v2364 = vadd.bf16 %v1244, %v2236
        %v2365 = vadd.bf16 %v1245, %v2237
        %v2366 = vadd.bf16 %v1246, %v2238
        %v2367 = vadd.bf16 %v1247, %v2239
        %v2368 = vadd.bf16 %v1248, %v2240
        %v2369 = vadd.bf16 %v1249, %v2241
        %v2370 = vadd.bf16 %v1250, %v2242
        %v2371 = vadd.bf16 %v1251, %v2243
        %v2372 = vadd.bf16 %v1252, %v2244
        %v2373 = vadd.bf16 %v1253, %v2245
        %v2374 = vadd.bf16 %v1254, %v2246
        %v2375 = vadd.bf16 %v1255, %v2247
        %v2376 = vadd.bf16 %v1256, %v2248
        %v2377 = vadd.bf16 %v1257, %v2249
        %v2378 = vadd.bf16 %v1258, %v2250
        %v2379 = vadd.bf16 %v1259, %v2251
        %2380 = vset.pattern.permute.xlu0 2
        %2381 = vperm.xlu0 %2380, %v227
        %v2382 = vpop.permute.xlu0 %2381
        %2383 = vset.pattern.permute.xlu0 2
        %2384 = vperm.xlu0 %2383, %v228
        %v2385 = vpop.permute.xlu0 %2384
        %2386 = vset.pattern.permute.xlu0 2
        %2387 = vperm.xlu0 %2386, %v229
        %v2388 = vpop.permute.xlu0 %2387
        %2389 = vset.pattern.permute.xlu0 2
        %2390 = vperm.xlu0 %2389, %v230
        %v2391 = vpop.permute.xlu0 %2390
        %2392 = vset.pattern.permute.xlu0 2
        %2393 = vperm.xlu0 %2392, %v231
        %v2394 = vpop.permute.xlu0 %2393
        %2395 = vset.pattern.permute.xlu0 2
        %2396 = vperm.xlu0 %2395, %v232
        %v2397 = vpop.permute.xlu0 %2396
        %2398 = vset.pattern.permute.xlu0 2
        %2399 = vperm.xlu0 %2398, %v233
        %v2400 = vpop.permute.xlu0 %2399
        %2401 = vset.pattern.permute.xlu0 2
        %2402 = vperm.xlu0 %2401, %v234
        %v2403 = vpop.permute.xlu0 %2402
        %2404 = vset.pattern.permute.xlu0 2
        %2405 = vperm.xlu0 %2404, %v235
        %v2406 = vpop.permute.xlu0 %2405
        %2407 = vset.pattern.permute.xlu0 2
        %2408 = vperm.xlu0 %2407, %v236
        %v2409 = vpop.permute.xlu0 %2408
        %2410 = vset.pattern.permute.xlu0 2
        %2411 = vperm.xlu0 %2410, %v237
        %v2412 = vpop.permute.xlu0 %2411
        %2413 = vset.pattern.permute.xlu0 2
        %2414 = vperm.xlu0 %2413, %v238
        %v2415 = vpop.permute.xlu0 %2414
        %2416 = vset.pattern.permute.xlu0 2
        %2417 = vperm.xlu0 %2416, %v239
        %v2418 = vpop.permute.xlu0 %2417
        %2419 = vset.pattern.permute.xlu0 2
        %2420 = vperm.xlu0 %2419, %v240
        %v2421 = vpop.permute.xlu0 %2420
        %2422 = vset.pattern.permute.xlu0 2
        %2423 = vperm.xlu0 %2422, %v241
        %v2424 = vpop.permute.xlu0 %2423
        %2425 = vset.pattern.permute.xlu0 2
        %2426 = vperm.xlu0 %2425, %v242
        %v2427 = vpop.permute.xlu0 %2426
        %2428 = vset.pattern.permute.xlu0 2
        %2429 = vperm.xlu0 %2428, %v243
        %v2430 = vpop.permute.xlu0 %2429
        %2431 = vset.pattern.permute.xlu0 2
        %2432 = vperm.xlu0 %2431, %v244
        %v2433 = vpop.permute.xlu0 %2432
        %2434 = vset.pattern.permute.xlu0 2
        %2435 = vperm.xlu0 %2434, %v245
        %v2436 = vpop.permute.xlu0 %2435
        %2437 = vset.pattern.permute.xlu0 2
        %2438 = vperm.xlu0 %2437, %v246
        %v2439 = vpop.permute.xlu0 %2438
        %2440 = vset.pattern.permute.xlu0 2
        %2441 = vperm.xlu0 %2440, %v247
        %v2442 = vpop.permute.xlu0 %2441
        %2443 = vset.pattern.permute.xlu0 2
        %2444 = vperm.xlu0 %2443, %v248
        %v2445 = vpop.permute.xlu0 %2444
        %2446 = vset.pattern.permute.xlu0 2
        %2447 = vperm.xlu0 %2446, %v249
        %v2448 = vpop.permute.xlu0 %2447
        %2449 = vset.pattern.permute.xlu0 2
        %2450 = vperm.xlu0 %2449, %v250
        %v2451 = vpop.permute.xlu0 %2450
        %2452 = vset.pattern.permute.xlu0 2
        %2453 = vperm.xlu0 %2452, %v251
        %v2454 = vpop.permute.xlu0 %2453
        %2455 = vset.pattern.permute.xlu0 2
        %2456 = vperm.xlu0 %2455, %v252
        %v2457 = vpop.permute.xlu0 %2456
        %2458 = vset.pattern.permute.xlu0 2
        %2459 = vperm.xlu0 %2458, %v253
        %v2460 = vpop.permute.xlu0 %2459
        %2461 = vset.pattern.permute.xlu0 2
        %2462 = vperm.xlu0 %2461, %v254
        %v2463 = vpop.permute.xlu0 %2462
        %2464 = vset.pattern.permute.xlu0 2
        %2465 = vperm.xlu0 %2464, %v255
        %v2466 = vpop.permute.xlu0 %2465
        %2467 = vset.pattern.permute.xlu0 2
        %2468 = vperm.xlu0 %2467, %v256
        %v2469 = vpop.permute.xlu0 %2468
        %2470 = vset.pattern.permute.xlu0 2
        %2471 = vperm.xlu0 %2470, %v257
        %v2472 = vpop.permute.xlu0 %2471
        %2473 = vset.pattern.permute.xlu0 2
        %2474 = vperm.xlu0 %2473, %v258
        %v2475 = vpop.permute.xlu0 %2474
        %vm2476 = vcmp.eq.s32.totalorder %v260, %v2382
        %vm2477 = vcmp.eq.s32.totalorder %v261, %v2382
        %vm2478 = vcmp.eq.s32.totalorder %v262, %v2382
        %vm2479 = vcmp.eq.s32.totalorder %v263, %v2382
        %vm2480 = vcmp.eq.s32.totalorder %v264, %v2382
        %vm2481 = vcmp.eq.s32.totalorder %v265, %v2382
        %vm2482 = vcmp.eq.s32.totalorder %v266, %v2382
        %vm2483 = vcmp.eq.s32.totalorder %v267, %v2382
        %vm2484 = vcmp.eq.s32.totalorder %v260, %v2385
        %vm2485 = vcmp.eq.s32.totalorder %v261, %v2385
        %vm2486 = vcmp.eq.s32.totalorder %v262, %v2385
        %vm2487 = vcmp.eq.s32.totalorder %v263, %v2385
        %vm2488 = vcmp.eq.s32.totalorder %v264, %v2385
        %vm2489 = vcmp.eq.s32.totalorder %v265, %v2385
        %vm2490 = vcmp.eq.s32.totalorder %v266, %v2385
        %vm2491 = vcmp.eq.s32.totalorder %v267, %v2385
        %vm2492 = vcmp.eq.s32.totalorder %v260, %v2388
        %vm2493 = vcmp.eq.s32.totalorder %v261, %v2388
        %vm2494 = vcmp.eq.s32.totalorder %v262, %v2388
        %vm2495 = vcmp.eq.s32.totalorder %v263, %v2388
        %vm2496 = vcmp.eq.s32.totalorder %v264, %v2388
        %vm2497 = vcmp.eq.s32.totalorder %v265, %v2388
        %vm2498 = vcmp.eq.s32.totalorder %v266, %v2388
        %vm2499 = vcmp.eq.s32.totalorder %v267, %v2388
        %vm2500 = vcmp.eq.s32.totalorder %v260, %v2391
        %vm2501 = vcmp.eq.s32.totalorder %v261, %v2391
        %vm2502 = vcmp.eq.s32.totalorder %v262, %v2391
        %vm2503 = vcmp.eq.s32.totalorder %v263, %v2391
        %vm2504 = vcmp.eq.s32.totalorder %v264, %v2391
        %vm2505 = vcmp.eq.s32.totalorder %v265, %v2391
        %vm2506 = vcmp.eq.s32.totalorder %v266, %v2391
        %vm2507 = vcmp.eq.s32.totalorder %v267, %v2391
        %vm2508 = vcmp.eq.s32.totalorder %v260, %v2394
        %vm2509 = vcmp.eq.s32.totalorder %v261, %v2394
        %vm2510 = vcmp.eq.s32.totalorder %v262, %v2394
        %vm2511 = vcmp.eq.s32.totalorder %v263, %v2394
        %vm2512 = vcmp.eq.s32.totalorder %v264, %v2394
        %vm2513 = vcmp.eq.s32.totalorder %v265, %v2394
        %vm2514 = vcmp.eq.s32.totalorder %v266, %v2394
        %vm2515 = vcmp.eq.s32.totalorder %v267, %v2394
        %vm2516 = vcmp.eq.s32.totalorder %v260, %v2397
        %vm2517 = vcmp.eq.s32.totalorder %v261, %v2397
        %vm2518 = vcmp.eq.s32.totalorder %v262, %v2397
        %vm2519 = vcmp.eq.s32.totalorder %v263, %v2397
        %vm2520 = vcmp.eq.s32.totalorder %v264, %v2397
        %vm2521 = vcmp.eq.s32.totalorder %v265, %v2397
        %vm2522 = vcmp.eq.s32.totalorder %v266, %v2397
        %vm2523 = vcmp.eq.s32.totalorder %v267, %v2397
        %vm2524 = vcmp.eq.s32.totalorder %v260, %v2400
        %vm2525 = vcmp.eq.s32.totalorder %v261, %v2400
        %vm2526 = vcmp.eq.s32.totalorder %v262, %v2400
        %vm2527 = vcmp.eq.s32.totalorder %v263, %v2400
        %vm2528 = vcmp.eq.s32.totalorder %v264, %v2400
        %vm2529 = vcmp.eq.s32.totalorder %v265, %v2400
        %vm2530 = vcmp.eq.s32.totalorder %v266, %v2400
        %vm2531 = vcmp.eq.s32.totalorder %v267, %v2400
        %vm2532 = vcmp.eq.s32.totalorder %v260, %v2403
        %vm2533 = vcmp.eq.s32.totalorder %v261, %v2403
        %vm2534 = vcmp.eq.s32.totalorder %v262, %v2403
        %vm2535 = vcmp.eq.s32.totalorder %v263, %v2403
        %vm2536 = vcmp.eq.s32.totalorder %v264, %v2403
        %vm2537 = vcmp.eq.s32.totalorder %v265, %v2403
        %vm2538 = vcmp.eq.s32.totalorder %v266, %v2403
        %vm2539 = vcmp.eq.s32.totalorder %v267, %v2403
        %vm2540 = vcmp.eq.s32.totalorder %v260, %v2406
        %vm2541 = vcmp.eq.s32.totalorder %v261, %v2406
        %vm2542 = vcmp.eq.s32.totalorder %v262, %v2406
        %vm2543 = vcmp.eq.s32.totalorder %v263, %v2406
        %vm2544 = vcmp.eq.s32.totalorder %v264, %v2406
        %vm2545 = vcmp.eq.s32.totalorder %v265, %v2406
        %vm2546 = vcmp.eq.s32.totalorder %v266, %v2406
        %vm2547 = vcmp.eq.s32.totalorder %v267, %v2406
        %vm2548 = vcmp.eq.s32.totalorder %v260, %v2409
        %vm2549 = vcmp.eq.s32.totalorder %v261, %v2409
        %vm2550 = vcmp.eq.s32.totalorder %v262, %v2409
        %vm2551 = vcmp.eq.s32.totalorder %v263, %v2409
        %vm2552 = vcmp.eq.s32.totalorder %v264, %v2409
        %vm2553 = vcmp.eq.s32.totalorder %v265, %v2409
        %vm2554 = vcmp.eq.s32.totalorder %v266, %v2409
        %vm2555 = vcmp.eq.s32.totalorder %v267, %v2409
        %vm2556 = vcmp.eq.s32.totalorder %v260, %v2412
        %vm2557 = vcmp.eq.s32.totalorder %v261, %v2412
        %vm2558 = vcmp.eq.s32.totalorder %v262, %v2412
        %vm2559 = vcmp.eq.s32.totalorder %v263, %v2412
        %vm2560 = vcmp.eq.s32.totalorder %v264, %v2412
        %vm2561 = vcmp.eq.s32.totalorder %v265, %v2412
        %vm2562 = vcmp.eq.s32.totalorder %v266, %v2412
        %vm2563 = vcmp.eq.s32.totalorder %v267, %v2412
        %vm2564 = vcmp.eq.s32.totalorder %v260, %v2415
        %vm2565 = vcmp.eq.s32.totalorder %v261, %v2415
        %vm2566 = vcmp.eq.s32.totalorder %v262, %v2415
        %vm2567 = vcmp.eq.s32.totalorder %v263, %v2415
        %vm2568 = vcmp.eq.s32.totalorder %v264, %v2415
        %vm2569 = vcmp.eq.s32.totalorder %v265, %v2415
        %vm2570 = vcmp.eq.s32.totalorder %v266, %v2415
        %vm2571 = vcmp.eq.s32.totalorder %v267, %v2415
        %vm2572 = vcmp.eq.s32.totalorder %v260, %v2418
        %vm2573 = vcmp.eq.s32.totalorder %v261, %v2418
        %vm2574 = vcmp.eq.s32.totalorder %v262, %v2418
        %vm2575 = vcmp.eq.s32.totalorder %v263, %v2418
        %vm2576 = vcmp.eq.s32.totalorder %v264, %v2418
        %vm2577 = vcmp.eq.s32.totalorder %v265, %v2418
        %vm2578 = vcmp.eq.s32.totalorder %v266, %v2418
        %vm2579 = vcmp.eq.s32.totalorder %v267, %v2418
        %vm2580 = vcmp.eq.s32.totalorder %v260, %v2421
        %vm2581 = vcmp.eq.s32.totalorder %v261, %v2421
        %vm2582 = vcmp.eq.s32.totalorder %v262, %v2421
        %vm2583 = vcmp.eq.s32.totalorder %v263, %v2421
        %vm2584 = vcmp.eq.s32.totalorder %v264, %v2421
        %vm2585 = vcmp.eq.s32.totalorder %v265, %v2421
        %vm2586 = vcmp.eq.s32.totalorder %v266, %v2421
        %vm2587 = vcmp.eq.s32.totalorder %v267, %v2421
        %vm2588 = vcmp.eq.s32.totalorder %v260, %v2424
        %vm2589 = vcmp.eq.s32.totalorder %v261, %v2424
        %vm2590 = vcmp.eq.s32.totalorder %v262, %v2424
        %vm2591 = vcmp.eq.s32.totalorder %v263, %v2424
        %vm2592 = vcmp.eq.s32.totalorder %v264, %v2424
        %vm2593 = vcmp.eq.s32.totalorder %v265, %v2424
        %vm2594 = vcmp.eq.s32.totalorder %v266, %v2424
        %vm2595 = vcmp.eq.s32.totalorder %v267, %v2424
        %vm2596 = vcmp.eq.s32.totalorder %v260, %v2427
        %vm2597 = vcmp.eq.s32.totalorder %v261, %v2427
        %vm2598 = vcmp.eq.s32.totalorder %v262, %v2427
        %vm2599 = vcmp.eq.s32.totalorder %v263, %v2427
        %vm2600 = vcmp.eq.s32.totalorder %v264, %v2427
        %vm2601 = vcmp.eq.s32.totalorder %v265, %v2427
        %vm2602 = vcmp.eq.s32.totalorder %v266, %v2427
        %vm2603 = vcmp.eq.s32.totalorder %v267, %v2427
        %vm2604 = vcmp.eq.s32.totalorder %v260, %v2430
        %vm2605 = vcmp.eq.s32.totalorder %v261, %v2430
        %vm2606 = vcmp.eq.s32.totalorder %v262, %v2430
        %vm2607 = vcmp.eq.s32.totalorder %v263, %v2430
        %vm2608 = vcmp.eq.s32.totalorder %v264, %v2430
        %vm2609 = vcmp.eq.s32.totalorder %v265, %v2430
        %vm2610 = vcmp.eq.s32.totalorder %v266, %v2430
        %vm2611 = vcmp.eq.s32.totalorder %v267, %v2430
        %vm2612 = vcmp.eq.s32.totalorder %v260, %v2433
        %vm2613 = vcmp.eq.s32.totalorder %v261, %v2433
        %vm2614 = vcmp.eq.s32.totalorder %v262, %v2433
        %vm2615 = vcmp.eq.s32.totalorder %v263, %v2433
        %vm2616 = vcmp.eq.s32.totalorder %v264, %v2433
        %vm2617 = vcmp.eq.s32.totalorder %v265, %v2433
        %vm2618 = vcmp.eq.s32.totalorder %v266, %v2433
        %vm2619 = vcmp.eq.s32.totalorder %v267, %v2433
        %vm2620 = vcmp.eq.s32.totalorder %v260, %v2436
        %vm2621 = vcmp.eq.s32.totalorder %v261, %v2436
        %vm2622 = vcmp.eq.s32.totalorder %v262, %v2436
        %vm2623 = vcmp.eq.s32.totalorder %v263, %v2436
        %vm2624 = vcmp.eq.s32.totalorder %v264, %v2436
        %vm2625 = vcmp.eq.s32.totalorder %v265, %v2436
        %vm2626 = vcmp.eq.s32.totalorder %v266, %v2436
        %vm2627 = vcmp.eq.s32.totalorder %v267, %v2436
        %vm2628 = vcmp.eq.s32.totalorder %v260, %v2439
        %vm2629 = vcmp.eq.s32.totalorder %v261, %v2439
        %vm2630 = vcmp.eq.s32.totalorder %v262, %v2439
        %vm2631 = vcmp.eq.s32.totalorder %v263, %v2439
        %vm2632 = vcmp.eq.s32.totalorder %v264, %v2439
        %vm2633 = vcmp.eq.s32.totalorder %v265, %v2439
        %vm2634 = vcmp.eq.s32.totalorder %v266, %v2439
        %vm2635 = vcmp.eq.s32.totalorder %v267, %v2439
        %vm2636 = vcmp.eq.s32.totalorder %v260, %v2442
        %vm2637 = vcmp.eq.s32.totalorder %v261, %v2442
        %vm2638 = vcmp.eq.s32.totalorder %v262, %v2442
        %vm2639 = vcmp.eq.s32.totalorder %v263, %v2442
        %vm2640 = vcmp.eq.s32.totalorder %v264, %v2442
        %vm2641 = vcmp.eq.s32.totalorder %v265, %v2442
        %vm2642 = vcmp.eq.s32.totalorder %v266, %v2442
        %vm2643 = vcmp.eq.s32.totalorder %v267, %v2442
        %vm2644 = vcmp.eq.s32.totalorder %v260, %v2445
        %vm2645 = vcmp.eq.s32.totalorder %v261, %v2445
        %vm2646 = vcmp.eq.s32.totalorder %v262, %v2445
        %vm2647 = vcmp.eq.s32.totalorder %v263, %v2445
        %vm2648 = vcmp.eq.s32.totalorder %v264, %v2445
        %vm2649 = vcmp.eq.s32.totalorder %v265, %v2445
        %vm2650 = vcmp.eq.s32.totalorder %v266, %v2445
        %vm2651 = vcmp.eq.s32.totalorder %v267, %v2445
        %vm2652 = vcmp.eq.s32.totalorder %v260, %v2448
        %vm2653 = vcmp.eq.s32.totalorder %v261, %v2448
        %vm2654 = vcmp.eq.s32.totalorder %v262, %v2448
        %vm2655 = vcmp.eq.s32.totalorder %v263, %v2448
        %vm2656 = vcmp.eq.s32.totalorder %v264, %v2448
        %vm2657 = vcmp.eq.s32.totalorder %v265, %v2448
        %vm2658 = vcmp.eq.s32.totalorder %v266, %v2448
        %vm2659 = vcmp.eq.s32.totalorder %v267, %v2448
        %vm2660 = vcmp.eq.s32.totalorder %v260, %v2451
        %vm2661 = vcmp.eq.s32.totalorder %v261, %v2451
        %vm2662 = vcmp.eq.s32.totalorder %v262, %v2451
        %vm2663 = vcmp.eq.s32.totalorder %v263, %v2451
        %vm2664 = vcmp.eq.s32.totalorder %v264, %v2451
        %vm2665 = vcmp.eq.s32.totalorder %v265, %v2451
        %vm2666 = vcmp.eq.s32.totalorder %v266, %v2451
        %vm2667 = vcmp.eq.s32.totalorder %v267, %v2451
        %vm2668 = vcmp.eq.s32.totalorder %v260, %v2454
        %vm2669 = vcmp.eq.s32.totalorder %v261, %v2454
        %vm2670 = vcmp.eq.s32.totalorder %v262, %v2454
        %vm2671 = vcmp.eq.s32.totalorder %v263, %v2454
        %vm2672 = vcmp.eq.s32.totalorder %v264, %v2454
        %vm2673 = vcmp.eq.s32.totalorder %v265, %v2454
        %vm2674 = vcmp.eq.s32.totalorder %v266, %v2454
        %vm2675 = vcmp.eq.s32.totalorder %v267, %v2454
        %vm2676 = vcmp.eq.s32.totalorder %v260, %v2457
        %vm2677 = vcmp.eq.s32.totalorder %v261, %v2457
        %vm2678 = vcmp.eq.s32.totalorder %v262, %v2457
        %vm2679 = vcmp.eq.s32.totalorder %v263, %v2457
        %vm2680 = vcmp.eq.s32.totalorder %v264, %v2457
        %vm2681 = vcmp.eq.s32.totalorder %v265, %v2457
        %vm2682 = vcmp.eq.s32.totalorder %v266, %v2457
        %vm2683 = vcmp.eq.s32.totalorder %v267, %v2457
        %vm2684 = vcmp.eq.s32.totalorder %v260, %v2460
        %vm2685 = vcmp.eq.s32.totalorder %v261, %v2460
        %vm2686 = vcmp.eq.s32.totalorder %v262, %v2460
        %vm2687 = vcmp.eq.s32.totalorder %v263, %v2460
        %vm2688 = vcmp.eq.s32.totalorder %v264, %v2460
        %vm2689 = vcmp.eq.s32.totalorder %v265, %v2460
        %vm2690 = vcmp.eq.s32.totalorder %v266, %v2460
        %vm2691 = vcmp.eq.s32.totalorder %v267, %v2460
        %vm2692 = vcmp.eq.s32.totalorder %v260, %v2463
        %vm2693 = vcmp.eq.s32.totalorder %v261, %v2463
        %vm2694 = vcmp.eq.s32.totalorder %v262, %v2463
        %vm2695 = vcmp.eq.s32.totalorder %v263, %v2463
        %vm2696 = vcmp.eq.s32.totalorder %v264, %v2463
        %vm2697 = vcmp.eq.s32.totalorder %v265, %v2463
        %vm2698 = vcmp.eq.s32.totalorder %v266, %v2463
        %vm2699 = vcmp.eq.s32.totalorder %v267, %v2463
        %vm2700 = vcmp.eq.s32.totalorder %v260, %v2466
        %vm2701 = vcmp.eq.s32.totalorder %v261, %v2466
        %vm2702 = vcmp.eq.s32.totalorder %v262, %v2466
        %vm2703 = vcmp.eq.s32.totalorder %v263, %v2466
        %vm2704 = vcmp.eq.s32.totalorder %v264, %v2466
        %vm2705 = vcmp.eq.s32.totalorder %v265, %v2466
        %vm2706 = vcmp.eq.s32.totalorder %v266, %v2466
        %vm2707 = vcmp.eq.s32.totalorder %v267, %v2466
        %vm2708 = vcmp.eq.s32.totalorder %v260, %v2469
        %vm2709 = vcmp.eq.s32.totalorder %v261, %v2469
        %vm2710 = vcmp.eq.s32.totalorder %v262, %v2469
        %vm2711 = vcmp.eq.s32.totalorder %v263, %v2469
        %vm2712 = vcmp.eq.s32.totalorder %v264, %v2469
        %vm2713 = vcmp.eq.s32.totalorder %v265, %v2469
        %vm2714 = vcmp.eq.s32.totalorder %v266, %v2469
        %vm2715 = vcmp.eq.s32.totalorder %v267, %v2469
        %vm2716 = vcmp.eq.s32.totalorder %v260, %v2472
        %vm2717 = vcmp.eq.s32.totalorder %v261, %v2472
        %vm2718 = vcmp.eq.s32.totalorder %v262, %v2472
        %vm2719 = vcmp.eq.s32.totalorder %v263, %v2472
        %vm2720 = vcmp.eq.s32.totalorder %v264, %v2472
        %vm2721 = vcmp.eq.s32.totalorder %v265, %v2472
        %vm2722 = vcmp.eq.s32.totalorder %v266, %v2472
        %vm2723 = vcmp.eq.s32.totalorder %v267, %v2472
        %vm2724 = vcmp.eq.s32.totalorder %v260, %v2475
        %vm2725 = vcmp.eq.s32.totalorder %v261, %v2475
        %vm2726 = vcmp.eq.s32.totalorder %v262, %v2475
        %vm2727 = vcmp.eq.s32.totalorder %v263, %v2475
        %vm2728 = vcmp.eq.s32.totalorder %v264, %v2475
        %vm2729 = vcmp.eq.s32.totalorder %v265, %v2475
        %vm2730 = vcmp.eq.s32.totalorder %v266, %v2475
        %vm2731 = vcmp.eq.s32.totalorder %v267, %v2475
        %v2732 = vsel %vm2476, 1, 0
        %v2733 = vsel %vm2477, 1, 0
        %v2734 = vsel %vm2478, 1, 0
        %v2735 = vsel %vm2479, 1, 0
        %v2736 = vsel %vm2480, 1, 0
        %v2737 = vsel %vm2481, 1, 0
        %v2738 = vsel %vm2482, 1, 0
        %v2739 = vsel %vm2483, 1, 0
        %v2740 = vsel %vm2484, 1, 0
        %v2741 = vsel %vm2485, 1, 0
        %v2742 = vsel %vm2486, 1, 0
        %v2743 = vsel %vm2487, 1, 0
        %v2744 = vsel %vm2488, 1, 0
        %v2745 = vsel %vm2489, 1, 0
        %v2746 = vsel %vm2490, 1, 0
        %v2747 = vsel %vm2491, 1, 0
        %v2748 = vsel %vm2492, 1, 0
        %v2749 = vsel %vm2493, 1, 0
        %v2750 = vsel %vm2494, 1, 0
        %v2751 = vsel %vm2495, 1, 0
        %v2752 = vsel %vm2496, 1, 0
        %v2753 = vsel %vm2497, 1, 0
        %v2754 = vsel %vm2498, 1, 0
        %v2755 = vsel %vm2499, 1, 0
        %v2756 = vsel %vm2500, 1, 0
        %v2757 = vsel %vm2501, 1, 0
        %v2758 = vsel %vm2502, 1, 0
        %v2759 = vsel %vm2503, 1, 0
        %v2760 = vsel %vm2504, 1, 0
        %v2761 = vsel %vm2505, 1, 0
        %v2762 = vsel %vm2506, 1, 0
        %v2763 = vsel %vm2507, 1, 0
        %v2764 = vsel %vm2508, 1, 0
        %v2765 = vsel %vm2509, 1, 0
        %v2766 = vsel %vm2510, 1, 0
        %v2767 = vsel %vm2511, 1, 0
        %v2768 = vsel %vm2512, 1, 0
        %v2769 = vsel %vm2513, 1, 0
        %v2770 = vsel %vm2514, 1, 0
        %v2771 = vsel %vm2515, 1, 0
        %v2772 = vsel %vm2516, 1, 0
        %v2773 = vsel %vm2517, 1, 0
        %v2774 = vsel %vm2518, 1, 0
        %v2775 = vsel %vm2519, 1, 0
        %v2776 = vsel %vm2520, 1, 0
        %v2777 = vsel %vm2521, 1, 0
        %v2778 = vsel %vm2522, 1, 0
        %v2779 = vsel %vm2523, 1, 0
        %v2780 = vsel %vm2524, 1, 0
        %v2781 = vsel %vm2525, 1, 0
        %v2782 = vsel %vm2526, 1, 0
        %v2783 = vsel %vm2527, 1, 0
        %v2784 = vsel %vm2528, 1, 0
        %v2785 = vsel %vm2529, 1, 0
        %v2786 = vsel %vm2530, 1, 0
        %v2787 = vsel %vm2531, 1, 0
        %v2788 = vsel %vm2532, 1, 0
        %v2789 = vsel %vm2533, 1, 0
        %v2790 = vsel %vm2534, 1, 0
        %v2791 = vsel %vm2535, 1, 0
        %v2792 = vsel %vm2536, 1, 0
        %v2793 = vsel %vm2537, 1, 0
        %v2794 = vsel %vm2538, 1, 0
        %v2795 = vsel %vm2539, 1, 0
        %v2796 = vsel %vm2540, 1, 0
        %v2797 = vsel %vm2541, 1, 0
        %v2798 = vsel %vm2542, 1, 0
        %v2799 = vsel %vm2543, 1, 0
        %v2800 = vsel %vm2544, 1, 0
        %v2801 = vsel %vm2545, 1, 0
        %v2802 = vsel %vm2546, 1, 0
        %v2803 = vsel %vm2547, 1, 0
        %v2804 = vsel %vm2548, 1, 0
        %v2805 = vsel %vm2549, 1, 0
        %v2806 = vsel %vm2550, 1, 0
        %v2807 = vsel %vm2551, 1, 0
        %v2808 = vsel %vm2552, 1, 0
        %v2809 = vsel %vm2553, 1, 0
        %v2810 = vsel %vm2554, 1, 0
        %v2811 = vsel %vm2555, 1, 0
        %v2812 = vsel %vm2556, 1, 0
        %v2813 = vsel %vm2557, 1, 0
        %v2814 = vsel %vm2558, 1, 0
        %v2815 = vsel %vm2559, 1, 0
        %v2816 = vsel %vm2560, 1, 0
        %v2817 = vsel %vm2561, 1, 0
        %v2818 = vsel %vm2562, 1, 0
        %v2819 = vsel %vm2563, 1, 0
        %v2820 = vsel %vm2564, 1, 0
        %v2821 = vsel %vm2565, 1, 0
        %v2822 = vsel %vm2566, 1, 0
        %v2823 = vsel %vm2567, 1, 0
        %v2824 = vsel %vm2568, 1, 0
        %v2825 = vsel %vm2569, 1, 0
        %v2826 = vsel %vm2570, 1, 0
        %v2827 = vsel %vm2571, 1, 0
        %v2828 = vsel %vm2572, 1, 0
        %v2829 = vsel %vm2573, 1, 0
        %v2830 = vsel %vm2574, 1, 0
        %v2831 = vsel %vm2575, 1, 0
        %v2832 = vsel %vm2576, 1, 0
        %v2833 = vsel %vm2577, 1, 0
        %v2834 = vsel %vm2578, 1, 0
        %v2835 = vsel %vm2579, 1, 0
        %v2836 = vsel %vm2580, 1, 0
        %v2837 = vsel %vm2581, 1, 0
        %v2838 = vsel %vm2582, 1, 0
        %v2839 = vsel %vm2583, 1, 0
        %v2840 = vsel %vm2584, 1, 0
        %v2841 = vsel %vm2585, 1, 0
        %v2842 = vsel %vm2586, 1, 0
        %v2843 = vsel %vm2587, 1, 0
        %v2844 = vsel %vm2588, 1, 0
        %v2845 = vsel %vm2589, 1, 0
        %v2846 = vsel %vm2590, 1, 0
        %v2847 = vsel %vm2591, 1, 0
        %v2848 = vsel %vm2592, 1, 0
        %v2849 = vsel %vm2593, 1, 0
        %v2850 = vsel %vm2594, 1, 0
        %v2851 = vsel %vm2595, 1, 0
        %v2852 = vsel %vm2596, 1, 0
        %v2853 = vsel %vm2597, 1, 0
        %v2854 = vsel %vm2598, 1, 0
        %v2855 = vsel %vm2599, 1, 0
        %v2856 = vsel %vm2600, 1, 0
        %v2857 = vsel %vm2601, 1, 0
        %v2858 = vsel %vm2602, 1, 0
        %v2859 = vsel %vm2603, 1, 0
        %v2860 = vsel %vm2604, 1, 0
        %v2861 = vsel %vm2605, 1, 0
        %v2862 = vsel %vm2606, 1, 0
        %v2863 = vsel %vm2607, 1, 0
        %v2864 = vsel %vm2608, 1, 0
        %v2865 = vsel %vm2609, 1, 0
        %v2866 = vsel %vm2610, 1, 0
        %v2867 = vsel %vm2611, 1, 0
        %v2868 = vsel %vm2612, 1, 0
        %v2869 = vsel %vm2613, 1, 0
        %v2870 = vsel %vm2614, 1, 0
        %v2871 = vsel %vm2615, 1, 0
        %v2872 = vsel %vm2616, 1, 0
        %v2873 = vsel %vm2617, 1, 0
        %v2874 = vsel %vm2618, 1, 0
        %v2875 = vsel %vm2619, 1, 0
        %v2876 = vsel %vm2620, 1, 0
        %v2877 = vsel %vm2621, 1, 0
        %v2878 = vsel %vm2622, 1, 0
        %v2879 = vsel %vm2623, 1, 0
        %v2880 = vsel %vm2624, 1, 0
        %v2881 = vsel %vm2625, 1, 0
        %v2882 = vsel %vm2626, 1, 0
        %v2883 = vsel %vm2627, 1, 0
        %v2884 = vsel %vm2628, 1, 0
        %v2885 = vsel %vm2629, 1, 0
        %v2886 = vsel %vm2630, 1, 0
        %v2887 = vsel %vm2631, 1, 0
        %v2888 = vsel %vm2632, 1, 0
        %v2889 = vsel %vm2633, 1, 0
        %v2890 = vsel %vm2634, 1, 0
        %v2891 = vsel %vm2635, 1, 0
        %v2892 = vsel %vm2636, 1, 0
        %v2893 = vsel %vm2637, 1, 0
        %v2894 = vsel %vm2638, 1, 0
        %v2895 = vsel %vm2639, 1, 0
        %v2896 = vsel %vm2640, 1, 0
        %v2897 = vsel %vm2641, 1, 0
        %v2898 = vsel %vm2642, 1, 0
        %v2899 = vsel %vm2643, 1, 0
        %v2900 = vsel %vm2644, 1, 0
        %v2901 = vsel %vm2645, 1, 0
        %v2902 = vsel %vm2646, 1, 0
        %v2903 = vsel %vm2647, 1, 0
        %v2904 = vsel %vm2648, 1, 0
        %v2905 = vsel %vm2649, 1, 0
        %v2906 = vsel %vm2650, 1, 0
        %v2907 = vsel %vm2651, 1, 0
        %v2908 = vsel %vm2652, 1, 0
        %v2909 = vsel %vm2653, 1, 0
        %v2910 = vsel %vm2654, 1, 0
        %v2911 = vsel %vm2655, 1, 0
        %v2912 = vsel %vm2656, 1, 0
        %v2913 = vsel %vm2657, 1, 0
        %v2914 = vsel %vm2658, 1, 0
        %v2915 = vsel %vm2659, 1, 0
        %v2916 = vsel %vm2660, 1, 0
        %v2917 = vsel %vm2661, 1, 0
        %v2918 = vsel %vm2662, 1, 0
        %v2919 = vsel %vm2663, 1, 0
        %v2920 = vsel %vm2664, 1, 0
        %v2921 = vsel %vm2665, 1, 0
        %v2922 = vsel %vm2666, 1, 0
        %v2923 = vsel %vm2667, 1, 0
        %v2924 = vsel %vm2668, 1, 0
        %v2925 = vsel %vm2669, 1, 0
        %v2926 = vsel %vm2670, 1, 0
        %v2927 = vsel %vm2671, 1, 0
        %v2928 = vsel %vm2672, 1, 0
        %v2929 = vsel %vm2673, 1, 0
        %v2930 = vsel %vm2674, 1, 0
        %v2931 = vsel %vm2675, 1, 0
        %v2932 = vsel %vm2676, 1, 0
        %v2933 = vsel %vm2677, 1, 0
        %v2934 = vsel %vm2678, 1, 0
        %v2935 = vsel %vm2679, 1, 0
        %v2936 = vsel %vm2680, 1, 0
        %v2937 = vsel %vm2681, 1, 0
        %v2938 = vsel %vm2682, 1, 0
        %v2939 = vsel %vm2683, 1, 0
        %v2940 = vsel %vm2684, 1, 0
        %v2941 = vsel %vm2685, 1, 0
        %v2942 = vsel %vm2686, 1, 0
        %v2943 = vsel %vm2687, 1, 0
        %v2944 = vsel %vm2688, 1, 0
        %v2945 = vsel %vm2689, 1, 0
        %v2946 = vsel %vm2690, 1, 0
        %v2947 = vsel %vm2691, 1, 0
        %v2948 = vsel %vm2692, 1, 0
        %v2949 = vsel %vm2693, 1, 0
        %v2950 = vsel %vm2694, 1, 0
        %v2951 = vsel %vm2695, 1, 0
        %v2952 = vsel %vm2696, 1, 0
        %v2953 = vsel %vm2697, 1, 0
        %v2954 = vsel %vm2698, 1, 0
        %v2955 = vsel %vm2699, 1, 0
        %v2956 = vsel %vm2700, 1, 0
        %v2957 = vsel %vm2701, 1, 0
        %v2958 = vsel %vm2702, 1, 0
        %v2959 = vsel %vm2703, 1, 0
        %v2960 = vsel %vm2704, 1, 0
        %v2961 = vsel %vm2705, 1, 0
        %v2962 = vsel %vm2706, 1, 0
        %v2963 = vsel %vm2707, 1, 0
        %v2964 = vsel %vm2708, 1, 0
        %v2965 = vsel %vm2709, 1, 0
        %v2966 = vsel %vm2710, 1, 0
        %v2967 = vsel %vm2711, 1, 0
        %v2968 = vsel %vm2712, 1, 0
        %v2969 = vsel %vm2713, 1, 0
        %v2970 = vsel %vm2714, 1, 0
        %v2971 = vsel %vm2715, 1, 0
        %v2972 = vsel %vm2716, 1, 0
        %v2973 = vsel %vm2717, 1, 0
        %v2974 = vsel %vm2718, 1, 0
        %v2975 = vsel %vm2719, 1, 0
        %v2976 = vsel %vm2720, 1, 0
        %v2977 = vsel %vm2721, 1, 0
        %v2978 = vsel %vm2722, 1, 0
        %v2979 = vsel %vm2723, 1, 0
        %v2980 = vsel %vm2724, 1, 0
        %v2981 = vsel %vm2725, 1, 0
        %v2982 = vsel %vm2726, 1, 0
        %v2983 = vsel %vm2727, 1, 0
        %v2984 = vsel %vm2728, 1, 0
        %v2985 = vsel %vm2729, 1, 0
        %v2986 = vsel %vm2730, 1, 0
        %v2987 = vsel %vm2731, 1, 0
        %v2988 = vcvt.s32.f32 %v2732
        %v2989 = vcvt.s32.f32 %v2733
        %v2990 = vcvt.s32.f32 %v2734
        %v2991 = vcvt.s32.f32 %v2735
        %v2992 = vcvt.s32.f32 %v2736
        %v2993 = vcvt.s32.f32 %v2737
        %v2994 = vcvt.s32.f32 %v2738
        %v2995 = vcvt.s32.f32 %v2739
        %v2996 = vcvt.s32.f32 %v2740
        %v2997 = vcvt.s32.f32 %v2741
        %v2998 = vcvt.s32.f32 %v2742
        %v2999 = vcvt.s32.f32 %v2743
        %v3000 = vcvt.s32.f32 %v2744
        %v3001 = vcvt.s32.f32 %v2745
        %v3002 = vcvt.s32.f32 %v2746
        %v3003 = vcvt.s32.f32 %v2747
        %v3004 = vcvt.s32.f32 %v2748
        %v3005 = vcvt.s32.f32 %v2749
        %v3006 = vcvt.s32.f32 %v2750
        %v3007 = vcvt.s32.f32 %v2751
        %v3008 = vcvt.s32.f32 %v2752
        %v3009 = vcvt.s32.f32 %v2753
        %v3010 = vcvt.s32.f32 %v2754
        %v3011 = vcvt.s32.f32 %v2755
        %v3012 = vcvt.s32.f32 %v2756
        %v3013 = vcvt.s32.f32 %v2757
        %v3014 = vcvt.s32.f32 %v2758
        %v3015 = vcvt.s32.f32 %v2759
        %v3016 = vcvt.s32.f32 %v2760
        %v3017 = vcvt.s32.f32 %v2761
        %v3018 = vcvt.s32.f32 %v2762
        %v3019 = vcvt.s32.f32 %v2763
        %v3020 = vcvt.s32.f32 %v2764
        %v3021 = vcvt.s32.f32 %v2765
        %v3022 = vcvt.s32.f32 %v2766
        %v3023 = vcvt.s32.f32 %v2767
        %v3024 = vcvt.s32.f32 %v2768
        %v3025 = vcvt.s32.f32 %v2769
        %v3026 = vcvt.s32.f32 %v2770
        %v3027 = vcvt.s32.f32 %v2771
        %v3028 = vcvt.s32.f32 %v2772
        %v3029 = vcvt.s32.f32 %v2773
        %v3030 = vcvt.s32.f32 %v2774
        %v3031 = vcvt.s32.f32 %v2775
        %v3032 = vcvt.s32.f32 %v2776
        %v3033 = vcvt.s32.f32 %v2777
        %v3034 = vcvt.s32.f32 %v2778
        %v3035 = vcvt.s32.f32 %v2779
        %v3036 = vcvt.s32.f32 %v2780
        %v3037 = vcvt.s32.f32 %v2781
        %v3038 = vcvt.s32.f32 %v2782
        %v3039 = vcvt.s32.f32 %v2783
        %v3040 = vcvt.s32.f32 %v2784
        %v3041 = vcvt.s32.f32 %v2785
        %v3042 = vcvt.s32.f32 %v2786
        %v3043 = vcvt.s32.f32 %v2787
        %v3044 = vcvt.s32.f32 %v2788
        %v3045 = vcvt.s32.f32 %v2789
        %v3046 = vcvt.s32.f32 %v2790
        %v3047 = vcvt.s32.f32 %v2791
        %v3048 = vcvt.s32.f32 %v2792
        %v3049 = vcvt.s32.f32 %v2793
        %v3050 = vcvt.s32.f32 %v2794
        %v3051 = vcvt.s32.f32 %v2795
        %v3052 = vcvt.s32.f32 %v2796
        %v3053 = vcvt.s32.f32 %v2797
        %v3054 = vcvt.s32.f32 %v2798
        %v3055 = vcvt.s32.f32 %v2799
        %v3056 = vcvt.s32.f32 %v2800
        %v3057 = vcvt.s32.f32 %v2801
        %v3058 = vcvt.s32.f32 %v2802
        %v3059 = vcvt.s32.f32 %v2803
        %v3060 = vcvt.s32.f32 %v2804
        %v3061 = vcvt.s32.f32 %v2805
        %v3062 = vcvt.s32.f32 %v2806
        %v3063 = vcvt.s32.f32 %v2807
        %v3064 = vcvt.s32.f32 %v2808
        %v3065 = vcvt.s32.f32 %v2809
        %v3066 = vcvt.s32.f32 %v2810
        %v3067 = vcvt.s32.f32 %v2811
        %v3068 = vcvt.s32.f32 %v2812
        %v3069 = vcvt.s32.f32 %v2813
        %v3070 = vcvt.s32.f32 %v2814
        %v3071 = vcvt.s32.f32 %v2815
        %v3072 = vcvt.s32.f32 %v2816
        %v3073 = vcvt.s32.f32 %v2817
        %v3074 = vcvt.s32.f32 %v2818
        %v3075 = vcvt.s32.f32 %v2819
        %v3076 = vcvt.s32.f32 %v2820
        %v3077 = vcvt.s32.f32 %v2821
        %v3078 = vcvt.s32.f32 %v2822
        %v3079 = vcvt.s32.f32 %v2823
        %v3080 = vcvt.s32.f32 %v2824
        %v3081 = vcvt.s32.f32 %v2825
        %v3082 = vcvt.s32.f32 %v2826
        %v3083 = vcvt.s32.f32 %v2827
        %v3084 = vcvt.s32.f32 %v2828
        %v3085 = vcvt.s32.f32 %v2829
        %v3086 = vcvt.s32.f32 %v2830
        %v3087 = vcvt.s32.f32 %v2831
        %v3088 = vcvt.s32.f32 %v2832
        %v3089 = vcvt.s32.f32 %v2833
        %v3090 = vcvt.s32.f32 %v2834
        %v3091 = vcvt.s32.f32 %v2835
        %v3092 = vcvt.s32.f32 %v2836
        %v3093 = vcvt.s32.f32 %v2837
        %v3094 = vcvt.s32.f32 %v2838
        %v3095 = vcvt.s32.f32 %v2839
        %v3096 = vcvt.s32.f32 %v2840
        %v3097 = vcvt.s32.f32 %v2841
        %v3098 = vcvt.s32.f32 %v2842
        %v3099 = vcvt.s32.f32 %v2843
        %v3100 = vcvt.s32.f32 %v2844
        %v3101 = vcvt.s32.f32 %v2845
        %v3102 = vcvt.s32.f32 %v2846
        %v3103 = vcvt.s32.f32 %v2847
        %v3104 = vcvt.s32.f32 %v2848
        %v3105 = vcvt.s32.f32 %v2849
        %v3106 = vcvt.s32.f32 %v2850
        %v3107 = vcvt.s32.f32 %v2851
        %v3108 = vcvt.s32.f32 %v2852
        %v3109 = vcvt.s32.f32 %v2853
        %v3110 = vcvt.s32.f32 %v2854
        %v3111 = vcvt.s32.f32 %v2855
        %v3112 = vcvt.s32.f32 %v2856
        %v3113 = vcvt.s32.f32 %v2857
        %v3114 = vcvt.s32.f32 %v2858
        %v3115 = vcvt.s32.f32 %v2859
        %v3116 = vcvt.s32.f32 %v2860
        %v3117 = vcvt.s32.f32 %v2861
        %v3118 = vcvt.s32.f32 %v2862
        %v3119 = vcvt.s32.f32 %v2863
        %v3120 = vcvt.s32.f32 %v2864
        %v3121 = vcvt.s32.f32 %v2865
        %v3122 = vcvt.s32.f32 %v2866
        %v3123 = vcvt.s32.f32 %v2867
        %v3124 = vcvt.s32.f32 %v2868
        %v3125 = vcvt.s32.f32 %v2869
        %v3126 = vcvt.s32.f32 %v2870
        %v3127 = vcvt.s32.f32 %v2871
        %v3128 = vcvt.s32.f32 %v2872
        %v3129 = vcvt.s32.f32 %v2873
        %v3130 = vcvt.s32.f32 %v2874
        %v3131 = vcvt.s32.f32 %v2875
        %v3132 = vcvt.s32.f32 %v2876
        %v3133 = vcvt.s32.f32 %v2877
        %v3134 = vcvt.s32.f32 %v2878
        %v3135 = vcvt.s32.f32 %v2879
        %v3136 = vcvt.s32.f32 %v2880
        %v3137 = vcvt.s32.f32 %v2881
        %v3138 = vcvt.s32.f32 %v2882
        %v3139 = vcvt.s32.f32 %v2883
        %v3140 = vcvt.s32.f32 %v2884
        %v3141 = vcvt.s32.f32 %v2885
        %v3142 = vcvt.s32.f32 %v2886
        %v3143 = vcvt.s32.f32 %v2887
        %v3144 = vcvt.s32.f32 %v2888
        %v3145 = vcvt.s32.f32 %v2889
        %v3146 = vcvt.s32.f32 %v2890
        %v3147 = vcvt.s32.f32 %v2891
        %v3148 = vcvt.s32.f32 %v2892
        %v3149 = vcvt.s32.f32 %v2893
        %v3150 = vcvt.s32.f32 %v2894
        %v3151 = vcvt.s32.f32 %v2895
        %v3152 = vcvt.s32.f32 %v2896
        %v3153 = vcvt.s32.f32 %v2897
        %v3154 = vcvt.s32.f32 %v2898
        %v3155 = vcvt.s32.f32 %v2899
        %v3156 = vcvt.s32.f32 %v2900
        %v3157 = vcvt.s32.f32 %v2901
        %v3158 = vcvt.s32.f32 %v2902
        %v3159 = vcvt.s32.f32 %v2903
        %v3160 = vcvt.s32.f32 %v2904
        %v3161 = vcvt.s32.f32 %v2905
        %v3162 = vcvt.s32.f32 %v2906
        %v3163 = vcvt.s32.f32 %v2907
        %v3164 = vcvt.s32.f32 %v2908
        %v3165 = vcvt.s32.f32 %v2909
        %v3166 = vcvt.s32.f32 %v2910
        %v3167 = vcvt.s32.f32 %v2911
        %v3168 = vcvt.s32.f32 %v2912
        %v3169 = vcvt.s32.f32 %v2913
        %v3170 = vcvt.s32.f32 %v2914
        %v3171 = vcvt.s32.f32 %v2915
        %v3172 = vcvt.s32.f32 %v2916
        %v3173 = vcvt.s32.f32 %v2917
        %v3174 = vcvt.s32.f32 %v2918
        %v3175 = vcvt.s32.f32 %v2919
        %v3176 = vcvt.s32.f32 %v2920
        %v3177 = vcvt.s32.f32 %v2921
        %v3178 = vcvt.s32.f32 %v2922
        %v3179 = vcvt.s32.f32 %v2923
        %v3180 = vcvt.s32.f32 %v2924
        %v3181 = vcvt.s32.f32 %v2925
        %v3182 = vcvt.s32.f32 %v2926
        %v3183 = vcvt.s32.f32 %v2927
        %v3184 = vcvt.s32.f32 %v2928
        %v3185 = vcvt.s32.f32 %v2929
        %v3186 = vcvt.s32.f32 %v2930
        %v3187 = vcvt.s32.f32 %v2931
        %v3188 = vcvt.s32.f32 %v2932
        %v3189 = vcvt.s32.f32 %v2933
        %v3190 = vcvt.s32.f32 %v2934
        %v3191 = vcvt.s32.f32 %v2935
        %v3192 = vcvt.s32.f32 %v2936
        %v3193 = vcvt.s32.f32 %v2937
        %v3194 = vcvt.s32.f32 %v2938
        %v3195 = vcvt.s32.f32 %v2939
        %v3196 = vcvt.s32.f32 %v2940
        %v3197 = vcvt.s32.f32 %v2941
        %v3198 = vcvt.s32.f32 %v2942
        %v3199 = vcvt.s32.f32 %v2943
        %v3200 = vcvt.s32.f32 %v2944
        %v3201 = vcvt.s32.f32 %v2945
        %v3202 = vcvt.s32.f32 %v2946
        %v3203 = vcvt.s32.f32 %v2947
        %v3204 = vcvt.s32.f32 %v2948
        %v3205 = vcvt.s32.f32 %v2949
        %v3206 = vcvt.s32.f32 %v2950
        %v3207 = vcvt.s32.f32 %v2951
        %v3208 = vcvt.s32.f32 %v2952
        %v3209 = vcvt.s32.f32 %v2953
        %v3210 = vcvt.s32.f32 %v2954
        %v3211 = vcvt.s32.f32 %v2955
        %v3212 = vcvt.s32.f32 %v2956
        %v3213 = vcvt.s32.f32 %v2957
        %v3214 = vcvt.s32.f32 %v2958
        %v3215 = vcvt.s32.f32 %v2959
        %v3216 = vcvt.s32.f32 %v2960
        %v3217 = vcvt.s32.f32 %v2961
        %v3218 = vcvt.s32.f32 %v2962
        %v3219 = vcvt.s32.f32 %v2963
        %v3220 = vcvt.s32.f32 %v2964
        %v3221 = vcvt.s32.f32 %v2965
        %v3222 = vcvt.s32.f32 %v2966
        %v3223 = vcvt.s32.f32 %v2967
        %v3224 = vcvt.s32.f32 %v2968
        %v3225 = vcvt.s32.f32 %v2969
        %v3226 = vcvt.s32.f32 %v2970
        %v3227 = vcvt.s32.f32 %v2971
        %v3228 = vcvt.s32.f32 %v2972
        %v3229 = vcvt.s32.f32 %v2973
        %v3230 = vcvt.s32.f32 %v2974
        %v3231 = vcvt.s32.f32 %v2975
        %v3232 = vcvt.s32.f32 %v2976
        %v3233 = vcvt.s32.f32 %v2977
        %v3234 = vcvt.s32.f32 %v2978
        %v3235 = vcvt.s32.f32 %v2979
        %v3236 = vcvt.s32.f32 %v2980
        %v3237 = vcvt.s32.f32 %v2981
        %v3238 = vcvt.s32.f32 %v2982
        %v3239 = vcvt.s32.f32 %v2983
        %v3240 = vcvt.s32.f32 %v2984
        %v3241 = vcvt.s32.f32 %v2985
        %v3242 = vcvt.s32.f32 %v2986
        %v3243 = vcvt.s32.f32 %v2987
        %v3244 = vpack.c.bf16 %v2996, %v2988
        %v3245 = vpack.c.bf16 %v2997, %v2989
        %v3246 = vpack.c.bf16 %v2998, %v2990
        %v3247 = vpack.c.bf16 %v2999, %v2991
        %v3248 = vpack.c.bf16 %v3000, %v2992
        %v3249 = vpack.c.bf16 %v3001, %v2993
        %v3250 = vpack.c.bf16 %v3002, %v2994
        %v3251 = vpack.c.bf16 %v3003, %v2995
        %v3252 = vpack.c.bf16 %v3012, %v3004
        %v3253 = vpack.c.bf16 %v3013, %v3005
        %v3254 = vpack.c.bf16 %v3014, %v3006
        %v3255 = vpack.c.bf16 %v3015, %v3007
        %v3256 = vpack.c.bf16 %v3016, %v3008
        %v3257 = vpack.c.bf16 %v3017, %v3009
        %v3258 = vpack.c.bf16 %v3018, %v3010
        %v3259 = vpack.c.bf16 %v3019, %v3011
        %v3260 = vpack.c.bf16 %v3028, %v3020
        %v3261 = vpack.c.bf16 %v3029, %v3021
        %v3262 = vpack.c.bf16 %v3030, %v3022
        %v3263 = vpack.c.bf16 %v3031, %v3023
        %v3264 = vpack.c.bf16 %v3032, %v3024
        %v3265 = vpack.c.bf16 %v3033, %v3025
        %v3266 = vpack.c.bf16 %v3034, %v3026
        %v3267 = vpack.c.bf16 %v3035, %v3027
        %v3268 = vpack.c.bf16 %v3044, %v3036
        %v3269 = vpack.c.bf16 %v3045, %v3037
        %v3270 = vpack.c.bf16 %v3046, %v3038
        %v3271 = vpack.c.bf16 %v3047, %v3039
        %v3272 = vpack.c.bf16 %v3048, %v3040
        %v3273 = vpack.c.bf16 %v3049, %v3041
        %v3274 = vpack.c.bf16 %v3050, %v3042
        %v3275 = vpack.c.bf16 %v3051, %v3043
        %v3276 = vpack.c.bf16 %v3060, %v3052
        %v3277 = vpack.c.bf16 %v3061, %v3053
        %v3278 = vpack.c.bf16 %v3062, %v3054
        %v3279 = vpack.c.bf16 %v3063, %v3055
        %v3280 = vpack.c.bf16 %v3064, %v3056
        %v3281 = vpack.c.bf16 %v3065, %v3057
        %v3282 = vpack.c.bf16 %v3066, %v3058
        %v3283 = vpack.c.bf16 %v3067, %v3059
        %v3284 = vpack.c.bf16 %v3076, %v3068
        %v3285 = vpack.c.bf16 %v3077, %v3069
        %v3286 = vpack.c.bf16 %v3078, %v3070
        %v3287 = vpack.c.bf16 %v3079, %v3071
        %v3288 = vpack.c.bf16 %v3080, %v3072
        %v3289 = vpack.c.bf16 %v3081, %v3073
        %v3290 = vpack.c.bf16 %v3082, %v3074
        %v3291 = vpack.c.bf16 %v3083, %v3075
        %v3292 = vpack.c.bf16 %v3092, %v3084
        %v3293 = vpack.c.bf16 %v3093, %v3085
        %v3294 = vpack.c.bf16 %v3094, %v3086
        %v3295 = vpack.c.bf16 %v3095, %v3087
        %v3296 = vpack.c.bf16 %v3096, %v3088
        %v3297 = vpack.c.bf16 %v3097, %v3089
        %v3298 = vpack.c.bf16 %v3098, %v3090
        %v3299 = vpack.c.bf16 %v3099, %v3091
        %v3300 = vpack.c.bf16 %v3108, %v3100
        %v3301 = vpack.c.bf16 %v3109, %v3101
        %v3302 = vpack.c.bf16 %v3110, %v3102
        %v3303 = vpack.c.bf16 %v3111, %v3103
        %v3304 = vpack.c.bf16 %v3112, %v3104
        %v3305 = vpack.c.bf16 %v3113, %v3105
        %v3306 = vpack.c.bf16 %v3114, %v3106
        %v3307 = vpack.c.bf16 %v3115, %v3107
        %v3308 = vpack.c.bf16 %v3124, %v3116
        %v3309 = vpack.c.bf16 %v3125, %v3117
        %v3310 = vpack.c.bf16 %v3126, %v3118
        %v3311 = vpack.c.bf16 %v3127, %v3119
        %v3312 = vpack.c.bf16 %v3128, %v3120
        %v3313 = vpack.c.bf16 %v3129, %v3121
        %v3314 = vpack.c.bf16 %v3130, %v3122
        %v3315 = vpack.c.bf16 %v3131, %v3123
        %v3316 = vpack.c.bf16 %v3140, %v3132
        %v3317 = vpack.c.bf16 %v3141, %v3133
        %v3318 = vpack.c.bf16 %v3142, %v3134
        %v3319 = vpack.c.bf16 %v3143, %v3135
        %v3320 = vpack.c.bf16 %v3144, %v3136
        %v3321 = vpack.c.bf16 %v3145, %v3137
        %v3322 = vpack.c.bf16 %v3146, %v3138
        %v3323 = vpack.c.bf16 %v3147, %v3139
        %v3324 = vpack.c.bf16 %v3156, %v3148
        %v3325 = vpack.c.bf16 %v3157, %v3149
        %v3326 = vpack.c.bf16 %v3158, %v3150
        %v3327 = vpack.c.bf16 %v3159, %v3151
        %v3328 = vpack.c.bf16 %v3160, %v3152
        %v3329 = vpack.c.bf16 %v3161, %v3153
        %v3330 = vpack.c.bf16 %v3162, %v3154
        %v3331 = vpack.c.bf16 %v3163, %v3155
        %v3332 = vpack.c.bf16 %v3172, %v3164
        %v3333 = vpack.c.bf16 %v3173, %v3165
        %v3334 = vpack.c.bf16 %v3174, %v3166
        %v3335 = vpack.c.bf16 %v3175, %v3167
        %v3336 = vpack.c.bf16 %v3176, %v3168
        %v3337 = vpack.c.bf16 %v3177, %v3169
        %v3338 = vpack.c.bf16 %v3178, %v3170
        %v3339 = vpack.c.bf16 %v3179, %v3171
        %v3340 = vpack.c.bf16 %v3188, %v3180
        %v3341 = vpack.c.bf16 %v3189, %v3181
        %v3342 = vpack.c.bf16 %v3190, %v3182
        %v3343 = vpack.c.bf16 %v3191, %v3183
        %v3344 = vpack.c.bf16 %v3192, %v3184
        %v3345 = vpack.c.bf16 %v3193, %v3185
        %v3346 = vpack.c.bf16 %v3194, %v3186
        %v3347 = vpack.c.bf16 %v3195, %v3187
        %v3348 = vpack.c.bf16 %v3204, %v3196
        %v3349 = vpack.c.bf16 %v3205, %v3197
        %v3350 = vpack.c.bf16 %v3206, %v3198
        %v3351 = vpack.c.bf16 %v3207, %v3199
        %v3352 = vpack.c.bf16 %v3208, %v3200
        %v3353 = vpack.c.bf16 %v3209, %v3201
        %v3354 = vpack.c.bf16 %v3210, %v3202
        %v3355 = vpack.c.bf16 %v3211, %v3203
        %v3356 = vpack.c.bf16 %v3220, %v3212
        %v3357 = vpack.c.bf16 %v3221, %v3213
        %v3358 = vpack.c.bf16 %v3222, %v3214
        %v3359 = vpack.c.bf16 %v3223, %v3215
        %v3360 = vpack.c.bf16 %v3224, %v3216
        %v3361 = vpack.c.bf16 %v3225, %v3217
        %v3362 = vpack.c.bf16 %v3226, %v3218
        %v3363 = vpack.c.bf16 %v3227, %v3219
        %v3364 = vpack.c.bf16 %v3236, %v3228
        %v3365 = vpack.c.bf16 %v3237, %v3229
        %v3366 = vpack.c.bf16 %v3238, %v3230
        %v3367 = vpack.c.bf16 %v3239, %v3231
        %v3368 = vpack.c.bf16 %v3240, %v3232
        %v3369 = vpack.c.bf16 %v3241, %v3233
        %v3370 = vpack.c.bf16 %v3242, %v3234
        %v3371 = vpack.c.bf16 %v3243, %v3235
        %v3372 = vadd.bf16 %v2252, %v3244
        %v3373 = vadd.bf16 %v2253, %v3245
        %v3374 = vadd.bf16 %v2254, %v3246
        %v3375 = vadd.bf16 %v2255, %v3247
        %v3376 = vadd.bf16 %v2256, %v3248
        %v3377 = vadd.bf16 %v2257, %v3249
        %v3378 = vadd.bf16 %v2258, %v3250
        %v3379 = vadd.bf16 %v2259, %v3251
        %v3380 = vadd.bf16 %v2260, %v3252
        %v3381 = vadd.bf16 %v2261, %v3253
        %v3382 = vadd.bf16 %v2262, %v3254
        %v3383 = vadd.bf16 %v2263, %v3255
        %v3384 = vadd.bf16 %v2264, %v3256
        %v3385 = vadd.bf16 %v2265, %v3257
        %v3386 = vadd.bf16 %v2266, %v3258
        %v3387 = vadd.bf16 %v2267, %v3259
        %v3388 = vadd.bf16 %v2268, %v3260
        %v3389 = vadd.bf16 %v2269, %v3261
        %v3390 = vadd.bf16 %v2270, %v3262
        %v3391 = vadd.bf16 %v2271, %v3263
        %v3392 = vadd.bf16 %v2272, %v3264
        %v3393 = vadd.bf16 %v2273, %v3265
        %v3394 = vadd.bf16 %v2274, %v3266
        %v3395 = vadd.bf16 %v2275, %v3267
        %v3396 = vadd.bf16 %v2276, %v3268
        %v3397 = vadd.bf16 %v2277, %v3269
        %v3398 = vadd.bf16 %v2278, %v3270
        %v3399 = vadd.bf16 %v2279, %v3271
        %v3400 = vadd.bf16 %v2280, %v3272
        %v3401 = vadd.bf16 %v2281, %v3273
        %v3402 = vadd.bf16 %v2282, %v3274
        %v3403 = vadd.bf16 %v2283, %v3275
        %v3404 = vadd.bf16 %v2284, %v3276
        %v3405 = vadd.bf16 %v2285, %v3277
        %v3406 = vadd.bf16 %v2286, %v3278
        %v3407 = vadd.bf16 %v2287, %v3279
        %v3408 = vadd.bf16 %v2288, %v3280
        %v3409 = vadd.bf16 %v2289, %v3281
        %v3410 = vadd.bf16 %v2290, %v3282
        %v3411 = vadd.bf16 %v2291, %v3283
        %v3412 = vadd.bf16 %v2292, %v3284
        %v3413 = vadd.bf16 %v2293, %v3285
        %v3414 = vadd.bf16 %v2294, %v3286
        %v3415 = vadd.bf16 %v2295, %v3287
        %v3416 = vadd.bf16 %v2296, %v3288
        %v3417 = vadd.bf16 %v2297, %v3289
        %v3418 = vadd.bf16 %v2298, %v3290
        %v3419 = vadd.bf16 %v2299, %v3291
        %v3420 = vadd.bf16 %v2300, %v3292
        %v3421 = vadd.bf16 %v2301, %v3293
        %v3422 = vadd.bf16 %v2302, %v3294
        %v3423 = vadd.bf16 %v2303, %v3295
        %v3424 = vadd.bf16 %v2304, %v3296
        %v3425 = vadd.bf16 %v2305, %v3297
        %v3426 = vadd.bf16 %v2306, %v3298
        %v3427 = vadd.bf16 %v2307, %v3299
        %v3428 = vadd.bf16 %v2308, %v3300
        %v3429 = vadd.bf16 %v2309, %v3301
        %v3430 = vadd.bf16 %v2310, %v3302
        %v3431 = vadd.bf16 %v2311, %v3303
        %v3432 = vadd.bf16 %v2312, %v3304
        %v3433 = vadd.bf16 %v2313, %v3305
        %v3434 = vadd.bf16 %v2314, %v3306
        %v3435 = vadd.bf16 %v2315, %v3307
        %v3436 = vadd.bf16 %v2316, %v3308
        %v3437 = vadd.bf16 %v2317, %v3309
        %v3438 = vadd.bf16 %v2318, %v3310
        %v3439 = vadd.bf16 %v2319, %v3311
        %v3440 = vadd.bf16 %v2320, %v3312
        %v3441 = vadd.bf16 %v2321, %v3313
        %v3442 = vadd.bf16 %v2322, %v3314
        %v3443 = vadd.bf16 %v2323, %v3315
        %v3444 = vadd.bf16 %v2324, %v3316
        %v3445 = vadd.bf16 %v2325, %v3317
        %v3446 = vadd.bf16 %v2326, %v3318
        %v3447 = vadd.bf16 %v2327, %v3319
        %v3448 = vadd.bf16 %v2328, %v3320
        %v3449 = vadd.bf16 %v2329, %v3321
        %v3450 = vadd.bf16 %v2330, %v3322
        %v3451 = vadd.bf16 %v2331, %v3323
        %v3452 = vadd.bf16 %v2332, %v3324
        %v3453 = vadd.bf16 %v2333, %v3325
        %v3454 = vadd.bf16 %v2334, %v3326
        %v3455 = vadd.bf16 %v2335, %v3327
        %v3456 = vadd.bf16 %v2336, %v3328
        %v3457 = vadd.bf16 %v2337, %v3329
        %v3458 = vadd.bf16 %v2338, %v3330
        %v3459 = vadd.bf16 %v2339, %v3331
        %v3460 = vadd.bf16 %v2340, %v3332
        %v3461 = vadd.bf16 %v2341, %v3333
        %v3462 = vadd.bf16 %v2342, %v3334
        %v3463 = vadd.bf16 %v2343, %v3335
        %v3464 = vadd.bf16 %v2344, %v3336
        %v3465 = vadd.bf16 %v2345, %v3337
        %v3466 = vadd.bf16 %v2346, %v3338
        %v3467 = vadd.bf16 %v2347, %v3339
        %v3468 = vadd.bf16 %v2348, %v3340
        %v3469 = vadd.bf16 %v2349, %v3341
        %v3470 = vadd.bf16 %v2350, %v3342
        %v3471 = vadd.bf16 %v2351, %v3343
        %v3472 = vadd.bf16 %v2352, %v3344
        %v3473 = vadd.bf16 %v2353, %v3345
        %v3474 = vadd.bf16 %v2354, %v3346
        %v3475 = vadd.bf16 %v2355, %v3347
        %v3476 = vadd.bf16 %v2356, %v3348
        %v3477 = vadd.bf16 %v2357, %v3349
        %v3478 = vadd.bf16 %v2358, %v3350
        %v3479 = vadd.bf16 %v2359, %v3351
        %v3480 = vadd.bf16 %v2360, %v3352
        %v3481 = vadd.bf16 %v2361, %v3353
        %v3482 = vadd.bf16 %v2362, %v3354
        %v3483 = vadd.bf16 %v2363, %v3355
        %v3484 = vadd.bf16 %v2364, %v3356
        %v3485 = vadd.bf16 %v2365, %v3357
        %v3486 = vadd.bf16 %v2366, %v3358
        %v3487 = vadd.bf16 %v2367, %v3359
        %v3488 = vadd.bf16 %v2368, %v3360
        %v3489 = vadd.bf16 %v2369, %v3361
        %v3490 = vadd.bf16 %v2370, %v3362
        %v3491 = vadd.bf16 %v2371, %v3363
        %v3492 = vadd.bf16 %v2372, %v3364
        %v3493 = vadd.bf16 %v2373, %v3365
        %v3494 = vadd.bf16 %v2374, %v3366
        %v3495 = vadd.bf16 %v2375, %v3367
        %v3496 = vadd.bf16 %v2376, %v3368
        %v3497 = vadd.bf16 %v2377, %v3369
        %v3498 = vadd.bf16 %v2378, %v3370
        %v3499 = vadd.bf16 %v2379, %v3371
        %3500 = vset.pattern.permute.xlu0 3
        %3501 = vperm.xlu0 %3500, %v227
        %v3502 = vpop.permute.xlu0 %3501
        %3503 = vset.pattern.permute.xlu0 3
        %3504 = vperm.xlu0 %3503, %v228
        %v3505 = vpop.permute.xlu0 %3504
        %3506 = vset.pattern.permute.xlu0 3
        %3507 = vperm.xlu0 %3506, %v229
        %v3508 = vpop.permute.xlu0 %3507
        %3509 = vset.pattern.permute.xlu0 3
        %3510 = vperm.xlu0 %3509, %v230
        %v3511 = vpop.permute.xlu0 %3510
        %3512 = vset.pattern.permute.xlu0 3
        %3513 = vperm.xlu0 %3512, %v231
        %v3514 = vpop.permute.xlu0 %3513
        %3515 = vset.pattern.permute.xlu0 3
        %3516 = vperm.xlu0 %3515, %v232
        %v3517 = vpop.permute.xlu0 %3516
        %3518 = vset.pattern.permute.xlu0 3
        %3519 = vperm.xlu0 %3518, %v233
        %v3520 = vpop.permute.xlu0 %3519
        %3521 = vset.pattern.permute.xlu0 3
        %3522 = vperm.xlu0 %3521, %v234
        %v3523 = vpop.permute.xlu0 %3522
        %3524 = vset.pattern.permute.xlu0 3
        %3525 = vperm.xlu0 %3524, %v235
        %v3526 = vpop.permute.xlu0 %3525
        %3527 = vset.pattern.permute.xlu0 3
        %3528 = vperm.xlu0 %3527, %v236
        %v3529 = vpop.permute.xlu0 %3528
        %3530 = vset.pattern.permute.xlu0 3
        %3531 = vperm.xlu0 %3530, %v237
        %v3532 = vpop.permute.xlu0 %3531
        %3533 = vset.pattern.permute.xlu0 3
        %3534 = vperm.xlu0 %3533, %v238
        %v3535 = vpop.permute.xlu0 %3534
        %3536 = vset.pattern.permute.xlu0 3
        %3537 = vperm.xlu0 %3536, %v239
        %v3538 = vpop.permute.xlu0 %3537
        %3539 = vset.pattern.permute.xlu0 3
        %3540 = vperm.xlu0 %3539, %v240
        %v3541 = vpop.permute.xlu0 %3540
        %3542 = vset.pattern.permute.xlu0 3
        %3543 = vperm.xlu0 %3542, %v241
        %v3544 = vpop.permute.xlu0 %3543
        %3545 = vset.pattern.permute.xlu0 3
        %3546 = vperm.xlu0 %3545, %v242
        %v3547 = vpop.permute.xlu0 %3546
        %3548 = vset.pattern.permute.xlu0 3
        %3549 = vperm.xlu0 %3548, %v243
        %v3550 = vpop.permute.xlu0 %3549
        %3551 = vset.pattern.permute.xlu0 3
        %3552 = vperm.xlu0 %3551, %v244
        %v3553 = vpop.permute.xlu0 %3552
        %3554 = vset.pattern.permute.xlu0 3
        %3555 = vperm.xlu0 %3554, %v245
        %v3556 = vpop.permute.xlu0 %3555
        %3557 = vset.pattern.permute.xlu0 3
        %3558 = vperm.xlu0 %3557, %v246
        %v3559 = vpop.permute.xlu0 %3558
        %3560 = vset.pattern.permute.xlu0 3
        %3561 = vperm.xlu0 %3560, %v247
        %v3562 = vpop.permute.xlu0 %3561
        %3563 = vset.pattern.permute.xlu0 3
        %3564 = vperm.xlu0 %3563, %v248
        %v3565 = vpop.permute.xlu0 %3564
        %3566 = vset.pattern.permute.xlu0 3
        %3567 = vperm.xlu0 %3566, %v249
        %v3568 = vpop.permute.xlu0 %3567
        %3569 = vset.pattern.permute.xlu0 3
        %3570 = vperm.xlu0 %3569, %v250
        %v3571 = vpop.permute.xlu0 %3570
        %3572 = vset.pattern.permute.xlu0 3
        %3573 = vperm.xlu0 %3572, %v251
        %v3574 = vpop.permute.xlu0 %3573
        %3575 = vset.pattern.permute.xlu0 3
        %3576 = vperm.xlu0 %3575, %v252
        %v3577 = vpop.permute.xlu0 %3576
        %3578 = vset.pattern.permute.xlu0 3
        %3579 = vperm.xlu0 %3578, %v253
        %v3580 = vpop.permute.xlu0 %3579
        %3581 = vset.pattern.permute.xlu0 3
        %3582 = vperm.xlu0 %3581, %v254
        %v3583 = vpop.permute.xlu0 %3582
        %3584 = vset.pattern.permute.xlu0 3
        %3585 = vperm.xlu0 %3584, %v255
        %v3586 = vpop.permute.xlu0 %3585
        %3587 = vset.pattern.permute.xlu0 3
        %3588 = vperm.xlu0 %3587, %v256
        %v3589 = vpop.permute.xlu0 %3588
        %3590 = vset.pattern.permute.xlu0 3
        %3591 = vperm.xlu0 %3590, %v257
        %v3592 = vpop.permute.xlu0 %3591
        %3593 = vset.pattern.permute.xlu0 3
        %3594 = vperm.xlu0 %3593, %v258
        %v3595 = vpop.permute.xlu0 %3594
        %vm3596 = vcmp.eq.s32.totalorder %v260, %v3502
        %vm3597 = vcmp.eq.s32.totalorder %v261, %v3502
        %vm3598 = vcmp.eq.s32.totalorder %v262, %v3502
        %vm3599 = vcmp.eq.s32.totalorder %v263, %v3502
        %vm3600 = vcmp.eq.s32.totalorder %v264, %v3502
        %vm3601 = vcmp.eq.s32.totalorder %v265, %v3502
        %vm3602 = vcmp.eq.s32.totalorder %v266, %v3502
        %vm3603 = vcmp.eq.s32.totalorder %v267, %v3502
        %vm3604 = vcmp.eq.s32.totalorder %v260, %v3505
        %vm3605 = vcmp.eq.s32.totalorder %v261, %v3505
        %vm3606 = vcmp.eq.s32.totalorder %v262, %v3505
        %vm3607 = vcmp.eq.s32.totalorder %v263, %v3505
        %vm3608 = vcmp.eq.s32.totalorder %v264, %v3505
        %vm3609 = vcmp.eq.s32.totalorder %v265, %v3505
        %vm3610 = vcmp.eq.s32.totalorder %v266, %v3505
        %vm3611 = vcmp.eq.s32.totalorder %v267, %v3505
        %vm3612 = vcmp.eq.s32.totalorder %v260, %v3508
        %vm3613 = vcmp.eq.s32.totalorder %v261, %v3508
        %vm3614 = vcmp.eq.s32.totalorder %v262, %v3508
        %vm3615 = vcmp.eq.s32.totalorder %v263, %v3508
        %vm3616 = vcmp.eq.s32.totalorder %v264, %v3508
        %vm3617 = vcmp.eq.s32.totalorder %v265, %v3508
        %vm3618 = vcmp.eq.s32.totalorder %v266, %v3508
        %vm3619 = vcmp.eq.s32.totalorder %v267, %v3508
        %vm3620 = vcmp.eq.s32.totalorder %v260, %v3511
        %vm3621 = vcmp.eq.s32.totalorder %v261, %v3511
        %vm3622 = vcmp.eq.s32.totalorder %v262, %v3511
        %vm3623 = vcmp.eq.s32.totalorder %v263, %v3511
        %vm3624 = vcmp.eq.s32.totalorder %v264, %v3511
        %vm3625 = vcmp.eq.s32.totalorder %v265, %v3511
        %vm3626 = vcmp.eq.s32.totalorder %v266, %v3511
        %vm3627 = vcmp.eq.s32.totalorder %v267, %v3511
        %vm3628 = vcmp.eq.s32.totalorder %v260, %v3514
        %vm3629 = vcmp.eq.s32.totalorder %v261, %v3514
        %vm3630 = vcmp.eq.s32.totalorder %v262, %v3514
        %vm3631 = vcmp.eq.s32.totalorder %v263, %v3514
        %vm3632 = vcmp.eq.s32.totalorder %v264, %v3514
        %vm3633 = vcmp.eq.s32.totalorder %v265, %v3514
        %vm3634 = vcmp.eq.s32.totalorder %v266, %v3514
        %vm3635 = vcmp.eq.s32.totalorder %v267, %v3514
        %vm3636 = vcmp.eq.s32.totalorder %v260, %v3517
        %vm3637 = vcmp.eq.s32.totalorder %v261, %v3517
        %vm3638 = vcmp.eq.s32.totalorder %v262, %v3517
        %vm3639 = vcmp.eq.s32.totalorder %v263, %v3517
        %vm3640 = vcmp.eq.s32.totalorder %v264, %v3517
        %vm3641 = vcmp.eq.s32.totalorder %v265, %v3517
        %vm3642 = vcmp.eq.s32.totalorder %v266, %v3517
        %vm3643 = vcmp.eq.s32.totalorder %v267, %v3517
        %vm3644 = vcmp.eq.s32.totalorder %v260, %v3520
        %vm3645 = vcmp.eq.s32.totalorder %v261, %v3520
        %vm3646 = vcmp.eq.s32.totalorder %v262, %v3520
        %vm3647 = vcmp.eq.s32.totalorder %v263, %v3520
        %vm3648 = vcmp.eq.s32.totalorder %v264, %v3520
        %vm3649 = vcmp.eq.s32.totalorder %v265, %v3520
        %vm3650 = vcmp.eq.s32.totalorder %v266, %v3520
        %vm3651 = vcmp.eq.s32.totalorder %v267, %v3520
        %vm3652 = vcmp.eq.s32.totalorder %v260, %v3523
        %vm3653 = vcmp.eq.s32.totalorder %v261, %v3523
        %vm3654 = vcmp.eq.s32.totalorder %v262, %v3523
        %vm3655 = vcmp.eq.s32.totalorder %v263, %v3523
        %vm3656 = vcmp.eq.s32.totalorder %v264, %v3523
        %vm3657 = vcmp.eq.s32.totalorder %v265, %v3523
        %vm3658 = vcmp.eq.s32.totalorder %v266, %v3523
        %vm3659 = vcmp.eq.s32.totalorder %v267, %v3523
        %vm3660 = vcmp.eq.s32.totalorder %v260, %v3526
        %vm3661 = vcmp.eq.s32.totalorder %v261, %v3526
        %vm3662 = vcmp.eq.s32.totalorder %v262, %v3526
        %vm3663 = vcmp.eq.s32.totalorder %v263, %v3526
        %vm3664 = vcmp.eq.s32.totalorder %v264, %v3526
        %vm3665 = vcmp.eq.s32.totalorder %v265, %v3526
        %vm3666 = vcmp.eq.s32.totalorder %v266, %v3526
        %vm3667 = vcmp.eq.s32.totalorder %v267, %v3526
        %vm3668 = vcmp.eq.s32.totalorder %v260, %v3529
        %vm3669 = vcmp.eq.s32.totalorder %v261, %v3529
        %vm3670 = vcmp.eq.s32.totalorder %v262, %v3529
        %vm3671 = vcmp.eq.s32.totalorder %v263, %v3529
        %vm3672 = vcmp.eq.s32.totalorder %v264, %v3529
        %vm3673 = vcmp.eq.s32.totalorder %v265, %v3529
        %vm3674 = vcmp.eq.s32.totalorder %v266, %v3529
        %vm3675 = vcmp.eq.s32.totalorder %v267, %v3529
        %vm3676 = vcmp.eq.s32.totalorder %v260, %v3532
        %vm3677 = vcmp.eq.s32.totalorder %v261, %v3532
        %vm3678 = vcmp.eq.s32.totalorder %v262, %v3532
        %vm3679 = vcmp.eq.s32.totalorder %v263, %v3532
        %vm3680 = vcmp.eq.s32.totalorder %v264, %v3532
        %vm3681 = vcmp.eq.s32.totalorder %v265, %v3532
        %vm3682 = vcmp.eq.s32.totalorder %v266, %v3532
        %vm3683 = vcmp.eq.s32.totalorder %v267, %v3532
        %vm3684 = vcmp.eq.s32.totalorder %v260, %v3535
        %vm3685 = vcmp.eq.s32.totalorder %v261, %v3535
        %vm3686 = vcmp.eq.s32.totalorder %v262, %v3535
        %vm3687 = vcmp.eq.s32.totalorder %v263, %v3535
        %vm3688 = vcmp.eq.s32.totalorder %v264, %v3535
        %vm3689 = vcmp.eq.s32.totalorder %v265, %v3535
        %vm3690 = vcmp.eq.s32.totalorder %v266, %v3535
        %vm3691 = vcmp.eq.s32.totalorder %v267, %v3535
        %vm3692 = vcmp.eq.s32.totalorder %v260, %v3538
        %vm3693 = vcmp.eq.s32.totalorder %v261, %v3538
        %vm3694 = vcmp.eq.s32.totalorder %v262, %v3538
        %vm3695 = vcmp.eq.s32.totalorder %v263, %v3538
        %vm3696 = vcmp.eq.s32.totalorder %v264, %v3538
        %vm3697 = vcmp.eq.s32.totalorder %v265, %v3538
        %vm3698 = vcmp.eq.s32.totalorder %v266, %v3538
        %vm3699 = vcmp.eq.s32.totalorder %v267, %v3538
        %vm3700 = vcmp.eq.s32.totalorder %v260, %v3541
        %vm3701 = vcmp.eq.s32.totalorder %v261, %v3541
        %vm3702 = vcmp.eq.s32.totalorder %v262, %v3541
        %vm3703 = vcmp.eq.s32.totalorder %v263, %v3541
        %vm3704 = vcmp.eq.s32.totalorder %v264, %v3541
        %vm3705 = vcmp.eq.s32.totalorder %v265, %v3541
        %vm3706 = vcmp.eq.s32.totalorder %v266, %v3541
        %vm3707 = vcmp.eq.s32.totalorder %v267, %v3541
        %vm3708 = vcmp.eq.s32.totalorder %v260, %v3544
        %vm3709 = vcmp.eq.s32.totalorder %v261, %v3544
        %vm3710 = vcmp.eq.s32.totalorder %v262, %v3544
        %vm3711 = vcmp.eq.s32.totalorder %v263, %v3544
        %vm3712 = vcmp.eq.s32.totalorder %v264, %v3544
        %vm3713 = vcmp.eq.s32.totalorder %v265, %v3544
        %vm3714 = vcmp.eq.s32.totalorder %v266, %v3544
        %vm3715 = vcmp.eq.s32.totalorder %v267, %v3544
        %vm3716 = vcmp.eq.s32.totalorder %v260, %v3547
        %vm3717 = vcmp.eq.s32.totalorder %v261, %v3547
        %vm3718 = vcmp.eq.s32.totalorder %v262, %v3547
        %vm3719 = vcmp.eq.s32.totalorder %v263, %v3547
        %vm3720 = vcmp.eq.s32.totalorder %v264, %v3547
        %vm3721 = vcmp.eq.s32.totalorder %v265, %v3547
        %vm3722 = vcmp.eq.s32.totalorder %v266, %v3547
        %vm3723 = vcmp.eq.s32.totalorder %v267, %v3547
        %vm3724 = vcmp.eq.s32.totalorder %v260, %v3550
        %vm3725 = vcmp.eq.s32.totalorder %v261, %v3550
        %vm3726 = vcmp.eq.s32.totalorder %v262, %v3550
        %vm3727 = vcmp.eq.s32.totalorder %v263, %v3550
        %vm3728 = vcmp.eq.s32.totalorder %v264, %v3550
        %vm3729 = vcmp.eq.s32.totalorder %v265, %v3550
        %vm3730 = vcmp.eq.s32.totalorder %v266, %v3550
        %vm3731 = vcmp.eq.s32.totalorder %v267, %v3550
        %vm3732 = vcmp.eq.s32.totalorder %v260, %v3553
        %vm3733 = vcmp.eq.s32.totalorder %v261, %v3553
        %vm3734 = vcmp.eq.s32.totalorder %v262, %v3553
        %vm3735 = vcmp.eq.s32.totalorder %v263, %v3553
        %vm3736 = vcmp.eq.s32.totalorder %v264, %v3553
        %vm3737 = vcmp.eq.s32.totalorder %v265, %v3553
        %vm3738 = vcmp.eq.s32.totalorder %v266, %v3553
        %vm3739 = vcmp.eq.s32.totalorder %v267, %v3553
        %vm3740 = vcmp.eq.s32.totalorder %v260, %v3556
        %vm3741 = vcmp.eq.s32.totalorder %v261, %v3556
        %vm3742 = vcmp.eq.s32.totalorder %v262, %v3556
        %vm3743 = vcmp.eq.s32.totalorder %v263, %v3556
        %vm3744 = vcmp.eq.s32.totalorder %v264, %v3556
        %vm3745 = vcmp.eq.s32.totalorder %v265, %v3556
        %vm3746 = vcmp.eq.s32.totalorder %v266, %v3556
        %vm3747 = vcmp.eq.s32.totalorder %v267, %v3556
        %vm3748 = vcmp.eq.s32.totalorder %v260, %v3559
        %vm3749 = vcmp.eq.s32.totalorder %v261, %v3559
        %vm3750 = vcmp.eq.s32.totalorder %v262, %v3559
        %vm3751 = vcmp.eq.s32.totalorder %v263, %v3559
        %vm3752 = vcmp.eq.s32.totalorder %v264, %v3559
        %vm3753 = vcmp.eq.s32.totalorder %v265, %v3559
        %vm3754 = vcmp.eq.s32.totalorder %v266, %v3559
        %vm3755 = vcmp.eq.s32.totalorder %v267, %v3559
        %vm3756 = vcmp.eq.s32.totalorder %v260, %v3562
        %vm3757 = vcmp.eq.s32.totalorder %v261, %v3562
        %vm3758 = vcmp.eq.s32.totalorder %v262, %v3562
        %vm3759 = vcmp.eq.s32.totalorder %v263, %v3562
        %vm3760 = vcmp.eq.s32.totalorder %v264, %v3562
        %vm3761 = vcmp.eq.s32.totalorder %v265, %v3562
        %vm3762 = vcmp.eq.s32.totalorder %v266, %v3562
        %vm3763 = vcmp.eq.s32.totalorder %v267, %v3562
        %vm3764 = vcmp.eq.s32.totalorder %v260, %v3565
        %vm3765 = vcmp.eq.s32.totalorder %v261, %v3565
        %vm3766 = vcmp.eq.s32.totalorder %v262, %v3565
        %vm3767 = vcmp.eq.s32.totalorder %v263, %v3565
        %vm3768 = vcmp.eq.s32.totalorder %v264, %v3565
        %vm3769 = vcmp.eq.s32.totalorder %v265, %v3565
        %vm3770 = vcmp.eq.s32.totalorder %v266, %v3565
        %vm3771 = vcmp.eq.s32.totalorder %v267, %v3565
        %vm3772 = vcmp.eq.s32.totalorder %v260, %v3568
        %vm3773 = vcmp.eq.s32.totalorder %v261, %v3568
        %vm3774 = vcmp.eq.s32.totalorder %v262, %v3568
        %vm3775 = vcmp.eq.s32.totalorder %v263, %v3568
        %vm3776 = vcmp.eq.s32.totalorder %v264, %v3568
        %vm3777 = vcmp.eq.s32.totalorder %v265, %v3568
        %vm3778 = vcmp.eq.s32.totalorder %v266, %v3568
        %vm3779 = vcmp.eq.s32.totalorder %v267, %v3568
        %vm3780 = vcmp.eq.s32.totalorder %v260, %v3571
        %vm3781 = vcmp.eq.s32.totalorder %v261, %v3571
        %vm3782 = vcmp.eq.s32.totalorder %v262, %v3571
        %vm3783 = vcmp.eq.s32.totalorder %v263, %v3571
        %vm3784 = vcmp.eq.s32.totalorder %v264, %v3571
        %vm3785 = vcmp.eq.s32.totalorder %v265, %v3571
        %vm3786 = vcmp.eq.s32.totalorder %v266, %v3571
        %vm3787 = vcmp.eq.s32.totalorder %v267, %v3571
        %vm3788 = vcmp.eq.s32.totalorder %v260, %v3574
        %vm3789 = vcmp.eq.s32.totalorder %v261, %v3574
        %vm3790 = vcmp.eq.s32.totalorder %v262, %v3574
        %vm3791 = vcmp.eq.s32.totalorder %v263, %v3574
        %vm3792 = vcmp.eq.s32.totalorder %v264, %v3574
        %vm3793 = vcmp.eq.s32.totalorder %v265, %v3574
        %vm3794 = vcmp.eq.s32.totalorder %v266, %v3574
        %vm3795 = vcmp.eq.s32.totalorder %v267, %v3574
        %vm3796 = vcmp.eq.s32.totalorder %v260, %v3577
        %vm3797 = vcmp.eq.s32.totalorder %v261, %v3577
        %vm3798 = vcmp.eq.s32.totalorder %v262, %v3577
        %vm3799 = vcmp.eq.s32.totalorder %v263, %v3577
        %vm3800 = vcmp.eq.s32.totalorder %v264, %v3577
        %vm3801 = vcmp.eq.s32.totalorder %v265, %v3577
        %vm3802 = vcmp.eq.s32.totalorder %v266, %v3577
        %vm3803 = vcmp.eq.s32.totalorder %v267, %v3577
        %vm3804 = vcmp.eq.s32.totalorder %v260, %v3580
        %vm3805 = vcmp.eq.s32.totalorder %v261, %v3580
        %vm3806 = vcmp.eq.s32.totalorder %v262, %v3580
        %vm3807 = vcmp.eq.s32.totalorder %v263, %v3580
        %vm3808 = vcmp.eq.s32.totalorder %v264, %v3580
        %vm3809 = vcmp.eq.s32.totalorder %v265, %v3580
        %vm3810 = vcmp.eq.s32.totalorder %v266, %v3580
        %vm3811 = vcmp.eq.s32.totalorder %v267, %v3580
        %vm3812 = vcmp.eq.s32.totalorder %v260, %v3583
        %vm3813 = vcmp.eq.s32.totalorder %v261, %v3583
        %vm3814 = vcmp.eq.s32.totalorder %v262, %v3583
        %vm3815 = vcmp.eq.s32.totalorder %v263, %v3583
        %vm3816 = vcmp.eq.s32.totalorder %v264, %v3583
        %vm3817 = vcmp.eq.s32.totalorder %v265, %v3583
        %vm3818 = vcmp.eq.s32.totalorder %v266, %v3583
        %vm3819 = vcmp.eq.s32.totalorder %v267, %v3583
        %vm3820 = vcmp.eq.s32.totalorder %v260, %v3586
        %vm3821 = vcmp.eq.s32.totalorder %v261, %v3586
        %vm3822 = vcmp.eq.s32.totalorder %v262, %v3586
        %vm3823 = vcmp.eq.s32.totalorder %v263, %v3586
        %vm3824 = vcmp.eq.s32.totalorder %v264, %v3586
        %vm3825 = vcmp.eq.s32.totalorder %v265, %v3586
        %vm3826 = vcmp.eq.s32.totalorder %v266, %v3586
        %vm3827 = vcmp.eq.s32.totalorder %v267, %v3586
        %vm3828 = vcmp.eq.s32.totalorder %v260, %v3589
        %vm3829 = vcmp.eq.s32.totalorder %v261, %v3589
        %vm3830 = vcmp.eq.s32.totalorder %v262, %v3589
        %vm3831 = vcmp.eq.s32.totalorder %v263, %v3589
        %vm3832 = vcmp.eq.s32.totalorder %v264, %v3589
        %vm3833 = vcmp.eq.s32.totalorder %v265, %v3589
        %vm3834 = vcmp.eq.s32.totalorder %v266, %v3589
        %vm3835 = vcmp.eq.s32.totalorder %v267, %v3589
        %vm3836 = vcmp.eq.s32.totalorder %v260, %v3592
        %vm3837 = vcmp.eq.s32.totalorder %v261, %v3592
        %vm3838 = vcmp.eq.s32.totalorder %v262, %v3592
        %vm3839 = vcmp.eq.s32.totalorder %v263, %v3592
        %vm3840 = vcmp.eq.s32.totalorder %v264, %v3592
        %vm3841 = vcmp.eq.s32.totalorder %v265, %v3592
        %vm3842 = vcmp.eq.s32.totalorder %v266, %v3592
        %vm3843 = vcmp.eq.s32.totalorder %v267, %v3592
        %vm3844 = vcmp.eq.s32.totalorder %v260, %v3595
        %vm3845 = vcmp.eq.s32.totalorder %v261, %v3595
        %vm3846 = vcmp.eq.s32.totalorder %v262, %v3595
        %vm3847 = vcmp.eq.s32.totalorder %v263, %v3595
        %vm3848 = vcmp.eq.s32.totalorder %v264, %v3595
        %vm3849 = vcmp.eq.s32.totalorder %v265, %v3595
        %vm3850 = vcmp.eq.s32.totalorder %v266, %v3595
        %vm3851 = vcmp.eq.s32.totalorder %v267, %v3595
        %v3852 = vsel %vm3596, 1, 0
        %v3853 = vsel %vm3597, 1, 0
        %v3854 = vsel %vm3598, 1, 0
        %v3855 = vsel %vm3599, 1, 0
        %v3856 = vsel %vm3600, 1, 0
        %v3857 = vsel %vm3601, 1, 0
        %v3858 = vsel %vm3602, 1, 0
        %v3859 = vsel %vm3603, 1, 0
        %v3860 = vsel %vm3604, 1, 0
        %v3861 = vsel %vm3605, 1, 0
        %v3862 = vsel %vm3606, 1, 0
        %v3863 = vsel %vm3607, 1, 0
        %v3864 = vsel %vm3608, 1, 0
        %v3865 = vsel %vm3609, 1, 0
        %v3866 = vsel %vm3610, 1, 0
        %v3867 = vsel %vm3611, 1, 0
        %v3868 = vsel %vm3612, 1, 0
        %v3869 = vsel %vm3613, 1, 0
        %v3870 = vsel %vm3614, 1, 0
        %v3871 = vsel %vm3615, 1, 0
        %v3872 = vsel %vm3616, 1, 0
        %v3873 = vsel %vm3617, 1, 0
        %v3874 = vsel %vm3618, 1, 0
        %v3875 = vsel %vm3619, 1, 0
        %v3876 = vsel %vm3620, 1, 0
        %v3877 = vsel %vm3621, 1, 0
        %v3878 = vsel %vm3622, 1, 0
        %v3879 = vsel %vm3623, 1, 0
        %v3880 = vsel %vm3624, 1, 0
        %v3881 = vsel %vm3625, 1, 0
        %v3882 = vsel %vm3626, 1, 0
        %v3883 = vsel %vm3627, 1, 0
        %v3884 = vsel %vm3628, 1, 0
        %v3885 = vsel %vm3629, 1, 0
        %v3886 = vsel %vm3630, 1, 0
        %v3887 = vsel %vm3631, 1, 0
        %v3888 = vsel %vm3632, 1, 0
        %v3889 = vsel %vm3633, 1, 0
        %v3890 = vsel %vm3634, 1, 0
        %v3891 = vsel %vm3635, 1, 0
        %v3892 = vsel %vm3636, 1, 0
        %v3893 = vsel %vm3637, 1, 0
        %v3894 = vsel %vm3638, 1, 0
        %v3895 = vsel %vm3639, 1, 0
        %v3896 = vsel %vm3640, 1, 0
        %v3897 = vsel %vm3641, 1, 0
        %v3898 = vsel %vm3642, 1, 0
        %v3899 = vsel %vm3643, 1, 0
        %v3900 = vsel %vm3644, 1, 0
        %v3901 = vsel %vm3645, 1, 0
        %v3902 = vsel %vm3646, 1, 0
        %v3903 = vsel %vm3647, 1, 0
        %v3904 = vsel %vm3648, 1, 0
        %v3905 = vsel %vm3649, 1, 0
        %v3906 = vsel %vm3650, 1, 0
        %v3907 = vsel %vm3651, 1, 0
        %v3908 = vsel %vm3652, 1, 0
        %v3909 = vsel %vm3653, 1, 0
        %v3910 = vsel %vm3654, 1, 0
        %v3911 = vsel %vm3655, 1, 0
        %v3912 = vsel %vm3656, 1, 0
        %v3913 = vsel %vm3657, 1, 0
        %v3914 = vsel %vm3658, 1, 0
        %v3915 = vsel %vm3659, 1, 0
        %v3916 = vsel %vm3660, 1, 0
        %v3917 = vsel %vm3661, 1, 0
        %v3918 = vsel %vm3662, 1, 0
        %v3919 = vsel %vm3663, 1, 0
        %v3920 = vsel %vm3664, 1, 0
        %v3921 = vsel %vm3665, 1, 0
        %v3922 = vsel %vm3666, 1, 0
        %v3923 = vsel %vm3667, 1, 0
        %v3924 = vsel %vm3668, 1, 0
        %v3925 = vsel %vm3669, 1, 0
        %v3926 = vsel %vm3670, 1, 0
        %v3927 = vsel %vm3671, 1, 0
        %v3928 = vsel %vm3672, 1, 0
        %v3929 = vsel %vm3673, 1, 0
        %v3930 = vsel %vm3674, 1, 0
        %v3931 = vsel %vm3675, 1, 0
        %v3932 = vsel %vm3676, 1, 0
        %v3933 = vsel %vm3677, 1, 0
        %v3934 = vsel %vm3678, 1, 0
        %v3935 = vsel %vm3679, 1, 0
        %v3936 = vsel %vm3680, 1, 0
        %v3937 = vsel %vm3681, 1, 0
        %v3938 = vsel %vm3682, 1, 0
        %v3939 = vsel %vm3683, 1, 0
        %v3940 = vsel %vm3684, 1, 0
        %v3941 = vsel %vm3685, 1, 0
        %v3942 = vsel %vm3686, 1, 0
        %v3943 = vsel %vm3687, 1, 0
        %v3944 = vsel %vm3688, 1, 0
        %v3945 = vsel %vm3689, 1, 0
        %v3946 = vsel %vm3690, 1, 0
        %v3947 = vsel %vm3691, 1, 0
        %v3948 = vsel %vm3692, 1, 0
        %v3949 = vsel %vm3693, 1, 0
        %v3950 = vsel %vm3694, 1, 0
        %v3951 = vsel %vm3695, 1, 0
        %v3952 = vsel %vm3696, 1, 0
        %v3953 = vsel %vm3697, 1, 0
        %v3954 = vsel %vm3698, 1, 0
        %v3955 = vsel %vm3699, 1, 0
        %v3956 = vsel %vm3700, 1, 0
        %v3957 = vsel %vm3701, 1, 0
        %v3958 = vsel %vm3702, 1, 0
        %v3959 = vsel %vm3703, 1, 0
        %v3960 = vsel %vm3704, 1, 0
        %v3961 = vsel %vm3705, 1, 0
        %v3962 = vsel %vm3706, 1, 0
        %v3963 = vsel %vm3707, 1, 0
        %v3964 = vsel %vm3708, 1, 0
        %v3965 = vsel %vm3709, 1, 0
        %v3966 = vsel %vm3710, 1, 0
        %v3967 = vsel %vm3711, 1, 0
        %v3968 = vsel %vm3712, 1, 0
        %v3969 = vsel %vm3713, 1, 0
        %v3970 = vsel %vm3714, 1, 0
        %v3971 = vsel %vm3715, 1, 0
        %v3972 = vsel %vm3716, 1, 0
        %v3973 = vsel %vm3717, 1, 0
        %v3974 = vsel %vm3718, 1, 0
        %v3975 = vsel %vm3719, 1, 0
        %v3976 = vsel %vm3720, 1, 0
        %v3977 = vsel %vm3721, 1, 0
        %v3978 = vsel %vm3722, 1, 0
        %v3979 = vsel %vm3723, 1, 0
        %v3980 = vsel %vm3724, 1, 0
        %v3981 = vsel %vm3725, 1, 0
        %v3982 = vsel %vm3726, 1, 0
        %v3983 = vsel %vm3727, 1, 0
        %v3984 = vsel %vm3728, 1, 0
        %v3985 = vsel %vm3729, 1, 0
        %v3986 = vsel %vm3730, 1, 0
        %v3987 = vsel %vm3731, 1, 0
        %v3988 = vsel %vm3732, 1, 0
        %v3989 = vsel %vm3733, 1, 0
        %v3990 = vsel %vm3734, 1, 0
        %v3991 = vsel %vm3735, 1, 0
        %v3992 = vsel %vm3736, 1, 0
        %v3993 = vsel %vm3737, 1, 0
        %v3994 = vsel %vm3738, 1, 0
        %v3995 = vsel %vm3739, 1, 0
        %v3996 = vsel %vm3740, 1, 0
        %v3997 = vsel %vm3741, 1, 0
        %v3998 = vsel %vm3742, 1, 0
        %v3999 = vsel %vm3743, 1, 0
        %v4000 = vsel %vm3744, 1, 0
        %v4001 = vsel %vm3745, 1, 0
        %v4002 = vsel %vm3746, 1, 0
        %v4003 = vsel %vm3747, 1, 0
        %v4004 = vsel %vm3748, 1, 0
        %v4005 = vsel %vm3749, 1, 0
        %v4006 = vsel %vm3750, 1, 0
        %v4007 = vsel %vm3751, 1, 0
        %v4008 = vsel %vm3752, 1, 0
        %v4009 = vsel %vm3753, 1, 0
        %v4010 = vsel %vm3754, 1, 0
        %v4011 = vsel %vm3755, 1, 0
        %v4012 = vsel %vm3756, 1, 0
        %v4013 = vsel %vm3757, 1, 0
        %v4014 = vsel %vm3758, 1, 0
        %v4015 = vsel %vm3759, 1, 0
        %v4016 = vsel %vm3760, 1, 0
        %v4017 = vsel %vm3761, 1, 0
        %v4018 = vsel %vm3762, 1, 0
        %v4019 = vsel %vm3763, 1, 0
        %v4020 = vsel %vm3764, 1, 0
        %v4021 = vsel %vm3765, 1, 0
        %v4022 = vsel %vm3766, 1, 0
        %v4023 = vsel %vm3767, 1, 0
        %v4024 = vsel %vm3768, 1, 0
        %v4025 = vsel %vm3769, 1, 0
        %v4026 = vsel %vm3770, 1, 0
        %v4027 = vsel %vm3771, 1, 0
        %v4028 = vsel %vm3772, 1, 0
        %v4029 = vsel %vm3773, 1, 0
        %v4030 = vsel %vm3774, 1, 0
        %v4031 = vsel %vm3775, 1, 0
        %v4032 = vsel %vm3776, 1, 0
        %v4033 = vsel %vm3777, 1, 0
        %v4034 = vsel %vm3778, 1, 0
        %v4035 = vsel %vm3779, 1, 0
        %v4036 = vsel %vm3780, 1, 0
        %v4037 = vsel %vm3781, 1, 0
        %v4038 = vsel %vm3782, 1, 0
        %v4039 = vsel %vm3783, 1, 0
        %v4040 = vsel %vm3784, 1, 0
        %v4041 = vsel %vm3785, 1, 0
        %v4042 = vsel %vm3786, 1, 0
        %v4043 = vsel %vm3787, 1, 0
        %v4044 = vsel %vm3788, 1, 0
        %v4045 = vsel %vm3789, 1, 0
        %v4046 = vsel %vm3790, 1, 0
        %v4047 = vsel %vm3791, 1, 0
        %v4048 = vsel %vm3792, 1, 0
        %v4049 = vsel %vm3793, 1, 0
        %v4050 = vsel %vm3794, 1, 0
        %v4051 = vsel %vm3795, 1, 0
        %v4052 = vsel %vm3796, 1, 0
        %v4053 = vsel %vm3797, 1, 0
        %v4054 = vsel %vm3798, 1, 0
        %v4055 = vsel %vm3799, 1, 0
        %v4056 = vsel %vm3800, 1, 0
        %v4057 = vsel %vm3801, 1, 0
        %v4058 = vsel %vm3802, 1, 0
        %v4059 = vsel %vm3803, 1, 0
        %v4060 = vsel %vm3804, 1, 0
        %v4061 = vsel %vm3805, 1, 0
        %v4062 = vsel %vm3806, 1, 0
        %v4063 = vsel %vm3807, 1, 0
        %v4064 = vsel %vm3808, 1, 0
        %v4065 = vsel %vm3809, 1, 0
        %v4066 = vsel %vm3810, 1, 0
        %v4067 = vsel %vm3811, 1, 0
        %v4068 = vsel %vm3812, 1, 0
        %v4069 = vsel %vm3813, 1, 0
        %v4070 = vsel %vm3814, 1, 0
        %v4071 = vsel %vm3815, 1, 0
        %v4072 = vsel %vm3816, 1, 0
        %v4073 = vsel %vm3817, 1, 0
        %v4074 = vsel %vm3818, 1, 0
        %v4075 = vsel %vm3819, 1, 0
        %v4076 = vsel %vm3820, 1, 0
        %v4077 = vsel %vm3821, 1, 0
        %v4078 = vsel %vm3822, 1, 0
        %v4079 = vsel %vm3823, 1, 0
        %v4080 = vsel %vm3824, 1, 0
        %v4081 = vsel %vm3825, 1, 0
        %v4082 = vsel %vm3826, 1, 0
        %v4083 = vsel %vm3827, 1, 0
        %v4084 = vsel %vm3828, 1, 0
        %v4085 = vsel %vm3829, 1, 0
        %v4086 = vsel %vm3830, 1, 0
        %v4087 = vsel %vm3831, 1, 0
        %v4088 = vsel %vm3832, 1, 0
        %v4089 = vsel %vm3833, 1, 0
        %v4090 = vsel %vm3834, 1, 0
        %v4091 = vsel %vm3835, 1, 0
        %v4092 = vsel %vm3836, 1, 0
        %v4093 = vsel %vm3837, 1, 0
        %v4094 = vsel %vm3838, 1, 0
        %v4095 = vsel %vm3839, 1, 0
        %v4096 = vsel %vm3840, 1, 0
        %v4097 = vsel %vm3841, 1, 0
        %v4098 = vsel %vm3842, 1, 0
        %v4099 = vsel %vm3843, 1, 0
        %v4100 = vsel %vm3844, 1, 0
        %v4101 = vsel %vm3845, 1, 0
        %v4102 = vsel %vm3846, 1, 0
        %v4103 = vsel %vm3847, 1, 0
        %v4104 = vsel %vm3848, 1, 0
        %v4105 = vsel %vm3849, 1, 0
        %v4106 = vsel %vm3850, 1, 0
        %v4107 = vsel %vm3851, 1, 0
        %v4108 = vcvt.s32.f32 %v3852
        %v4109 = vcvt.s32.f32 %v3853
        %v4110 = vcvt.s32.f32 %v3854
        %v4111 = vcvt.s32.f32 %v3855
        %v4112 = vcvt.s32.f32 %v3856
        %v4113 = vcvt.s32.f32 %v3857
        %v4114 = vcvt.s32.f32 %v3858
        %v4115 = vcvt.s32.f32 %v3859
        %v4116 = vcvt.s32.f32 %v3860
        %v4117 = vcvt.s32.f32 %v3861
        %v4118 = vcvt.s32.f32 %v3862
        %v4119 = vcvt.s32.f32 %v3863
        %v4120 = vcvt.s32.f32 %v3864
        %v4121 = vcvt.s32.f32 %v3865
        %v4122 = vcvt.s32.f32 %v3866
        %v4123 = vcvt.s32.f32 %v3867
        %v4124 = vcvt.s32.f32 %v3868
        %v4125 = vcvt.s32.f32 %v3869
        %v4126 = vcvt.s32.f32 %v3870
        %v4127 = vcvt.s32.f32 %v3871
        %v4128 = vcvt.s32.f32 %v3872
        %v4129 = vcvt.s32.f32 %v3873
        %v4130 = vcvt.s32.f32 %v3874
        %v4131 = vcvt.s32.f32 %v3875
        %v4132 = vcvt.s32.f32 %v3876
        %v4133 = vcvt.s32.f32 %v3877
        %v4134 = vcvt.s32.f32 %v3878
        %v4135 = vcvt.s32.f32 %v3879
        %v4136 = vcvt.s32.f32 %v3880
        %v4137 = vcvt.s32.f32 %v3881
        %v4138 = vcvt.s32.f32 %v3882
        %v4139 = vcvt.s32.f32 %v3883
        %v4140 = vcvt.s32.f32 %v3884
        %v4141 = vcvt.s32.f32 %v3885
        %v4142 = vcvt.s32.f32 %v3886
        %v4143 = vcvt.s32.f32 %v3887
        %v4144 = vcvt.s32.f32 %v3888
        %v4145 = vcvt.s32.f32 %v3889
        %v4146 = vcvt.s32.f32 %v3890
        %v4147 = vcvt.s32.f32 %v3891
        %v4148 = vcvt.s32.f32 %v3892
        %v4149 = vcvt.s32.f32 %v3893
        %v4150 = vcvt.s32.f32 %v3894
        %v4151 = vcvt.s32.f32 %v3895
        %v4152 = vcvt.s32.f32 %v3896
        %v4153 = vcvt.s32.f32 %v3897
        %v4154 = vcvt.s32.f32 %v3898
        %v4155 = vcvt.s32.f32 %v3899
        %v4156 = vcvt.s32.f32 %v3900
        %v4157 = vcvt.s32.f32 %v3901
        %v4158 = vcvt.s32.f32 %v3902
        %v4159 = vcvt.s32.f32 %v3903
        %v4160 = vcvt.s32.f32 %v3904
        %v4161 = vcvt.s32.f32 %v3905
        %v4162 = vcvt.s32.f32 %v3906
        %v4163 = vcvt.s32.f32 %v3907
        %v4164 = vcvt.s32.f32 %v3908
        %v4165 = vcvt.s32.f32 %v3909
        %v4166 = vcvt.s32.f32 %v3910
        %v4167 = vcvt.s32.f32 %v3911
        %v4168 = vcvt.s32.f32 %v3912
        %v4169 = vcvt.s32.f32 %v3913
        %v4170 = vcvt.s32.f32 %v3914
        %v4171 = vcvt.s32.f32 %v3915
        %v4172 = vcvt.s32.f32 %v3916
        %v4173 = vcvt.s32.f32 %v3917
        %v4174 = vcvt.s32.f32 %v3918
        %v4175 = vcvt.s32.f32 %v3919
        %v4176 = vcvt.s32.f32 %v3920
        %v4177 = vcvt.s32.f32 %v3921
        %v4178 = vcvt.s32.f32 %v3922
        %v4179 = vcvt.s32.f32 %v3923
        %v4180 = vcvt.s32.f32 %v3924
        %v4181 = vcvt.s32.f32 %v3925
        %v4182 = vcvt.s32.f32 %v3926
        %v4183 = vcvt.s32.f32 %v3927
        %v4184 = vcvt.s32.f32 %v3928
        %v4185 = vcvt.s32.f32 %v3929
        %v4186 = vcvt.s32.f32 %v3930
        %v4187 = vcvt.s32.f32 %v3931
        %v4188 = vcvt.s32.f32 %v3932
        %v4189 = vcvt.s32.f32 %v3933
        %v4190 = vcvt.s32.f32 %v3934
        %v4191 = vcvt.s32.f32 %v3935
        %v4192 = vcvt.s32.f32 %v3936
        %v4193 = vcvt.s32.f32 %v3937
        %v4194 = vcvt.s32.f32 %v3938
        %v4195 = vcvt.s32.f32 %v3939
        %v4196 = vcvt.s32.f32 %v3940
        %v4197 = vcvt.s32.f32 %v3941
        %v4198 = vcvt.s32.f32 %v3942
        %v4199 = vcvt.s32.f32 %v3943
        %v4200 = vcvt.s32.f32 %v3944
        %v4201 = vcvt.s32.f32 %v3945
        %v4202 = vcvt.s32.f32 %v3946
        %v4203 = vcvt.s32.f32 %v3947
        %v4204 = vcvt.s32.f32 %v3948
        %v4205 = vcvt.s32.f32 %v3949
        %v4206 = vcvt.s32.f32 %v3950
        %v4207 = vcvt.s32.f32 %v3951
        %v4208 = vcvt.s32.f32 %v3952
        %v4209 = vcvt.s32.f32 %v3953
        %v4210 = vcvt.s32.f32 %v3954
        %v4211 = vcvt.s32.f32 %v3955
        %v4212 = vcvt.s32.f32 %v3956
        %v4213 = vcvt.s32.f32 %v3957
        %v4214 = vcvt.s32.f32 %v3958
        %v4215 = vcvt.s32.f32 %v3959
        %v4216 = vcvt.s32.f32 %v3960
        %v4217 = vcvt.s32.f32 %v3961
        %v4218 = vcvt.s32.f32 %v3962
        %v4219 = vcvt.s32.f32 %v3963
        %v4220 = vcvt.s32.f32 %v3964
        %v4221 = vcvt.s32.f32 %v3965
        %v4222 = vcvt.s32.f32 %v3966
        %v4223 = vcvt.s32.f32 %v3967
        %v4224 = vcvt.s32.f32 %v3968
        %v4225 = vcvt.s32.f32 %v3969
        %v4226 = vcvt.s32.f32 %v3970
        %v4227 = vcvt.s32.f32 %v3971
        %v4228 = vcvt.s32.f32 %v3972
        %v4229 = vcvt.s32.f32 %v3973
        %v4230 = vcvt.s32.f32 %v3974
        %v4231 = vcvt.s32.f32 %v3975
        %v4232 = vcvt.s32.f32 %v3976
        %v4233 = vcvt.s32.f32 %v3977
        %v4234 = vcvt.s32.f32 %v3978
        %v4235 = vcvt.s32.f32 %v3979
        %v4236 = vcvt.s32.f32 %v3980
        %v4237 = vcvt.s32.f32 %v3981
        %v4238 = vcvt.s32.f32 %v3982
        %v4239 = vcvt.s32.f32 %v3983
        %v4240 = vcvt.s32.f32 %v3984
        %v4241 = vcvt.s32.f32 %v3985
        %v4242 = vcvt.s32.f32 %v3986
        %v4243 = vcvt.s32.f32 %v3987
        %v4244 = vcvt.s32.f32 %v3988
        %v4245 = vcvt.s32.f32 %v3989
        %v4246 = vcvt.s32.f32 %v3990
        %v4247 = vcvt.s32.f32 %v3991
        %v4248 = vcvt.s32.f32 %v3992
        %v4249 = vcvt.s32.f32 %v3993
        %v4250 = vcvt.s32.f32 %v3994
        %v4251 = vcvt.s32.f32 %v3995
        %v4252 = vcvt.s32.f32 %v3996
        %v4253 = vcvt.s32.f32 %v3997
        %v4254 = vcvt.s32.f32 %v3998
        %v4255 = vcvt.s32.f32 %v3999
        %v4256 = vcvt.s32.f32 %v4000
        %v4257 = vcvt.s32.f32 %v4001
        %v4258 = vcvt.s32.f32 %v4002
        %v4259 = vcvt.s32.f32 %v4003
        %v4260 = vcvt.s32.f32 %v4004
        %v4261 = vcvt.s32.f32 %v4005
        %v4262 = vcvt.s32.f32 %v4006
        %v4263 = vcvt.s32.f32 %v4007
        %v4264 = vcvt.s32.f32 %v4008
        %v4265 = vcvt.s32.f32 %v4009
        %v4266 = vcvt.s32.f32 %v4010
        %v4267 = vcvt.s32.f32 %v4011
        %v4268 = vcvt.s32.f32 %v4012
        %v4269 = vcvt.s32.f32 %v4013
        %v4270 = vcvt.s32.f32 %v4014
        %v4271 = vcvt.s32.f32 %v4015
        %v4272 = vcvt.s32.f32 %v4016
        %v4273 = vcvt.s32.f32 %v4017
        %v4274 = vcvt.s32.f32 %v4018
        %v4275 = vcvt.s32.f32 %v4019
        %v4276 = vcvt.s32.f32 %v4020
        %v4277 = vcvt.s32.f32 %v4021
        %v4278 = vcvt.s32.f32 %v4022
        %v4279 = vcvt.s32.f32 %v4023
        %v4280 = vcvt.s32.f32 %v4024
        %v4281 = vcvt.s32.f32 %v4025
        %v4282 = vcvt.s32.f32 %v4026
        %v4283 = vcvt.s32.f32 %v4027
        %v4284 = vcvt.s32.f32 %v4028
        %v4285 = vcvt.s32.f32 %v4029
        %v4286 = vcvt.s32.f32 %v4030
        %v4287 = vcvt.s32.f32 %v4031
        %v4288 = vcvt.s32.f32 %v4032
        %v4289 = vcvt.s32.f32 %v4033
        %v4290 = vcvt.s32.f32 %v4034
        %v4291 = vcvt.s32.f32 %v4035
        %v4292 = vcvt.s32.f32 %v4036
        %v4293 = vcvt.s32.f32 %v4037
        %v4294 = vcvt.s32.f32 %v4038
        %v4295 = vcvt.s32.f32 %v4039
        %v4296 = vcvt.s32.f32 %v4040
        %v4297 = vcvt.s32.f32 %v4041
        %v4298 = vcvt.s32.f32 %v4042
        %v4299 = vcvt.s32.f32 %v4043
        %v4300 = vcvt.s32.f32 %v4044
        %v4301 = vcvt.s32.f32 %v4045
        %v4302 = vcvt.s32.f32 %v4046
        %v4303 = vcvt.s32.f32 %v4047
        %v4304 = vcvt.s32.f32 %v4048
        %v4305 = vcvt.s32.f32 %v4049
        %v4306 = vcvt.s32.f32 %v4050
        %v4307 = vcvt.s32.f32 %v4051
        %v4308 = vcvt.s32.f32 %v4052
        %v4309 = vcvt.s32.f32 %v4053
        %v4310 = vcvt.s32.f32 %v4054
        %v4311 = vcvt.s32.f32 %v4055
        %v4312 = vcvt.s32.f32 %v4056
        %v4313 = vcvt.s32.f32 %v4057
        %v4314 = vcvt.s32.f32 %v4058
        %v4315 = vcvt.s32.f32 %v4059
        %v4316 = vcvt.s32.f32 %v4060
        %v4317 = vcvt.s32.f32 %v4061
        %v4318 = vcvt.s32.f32 %v4062
        %v4319 = vcvt.s32.f32 %v4063
        %v4320 = vcvt.s32.f32 %v4064
        %v4321 = vcvt.s32.f32 %v4065
        %v4322 = vcvt.s32.f32 %v4066
        %v4323 = vcvt.s32.f32 %v4067
        %v4324 = vcvt.s32.f32 %v4068
        %v4325 = vcvt.s32.f32 %v4069
        %v4326 = vcvt.s32.f32 %v4070
        %v4327 = vcvt.s32.f32 %v4071
        %v4328 = vcvt.s32.f32 %v4072
        %v4329 = vcvt.s32.f32 %v4073
        %v4330 = vcvt.s32.f32 %v4074
        %v4331 = vcvt.s32.f32 %v4075
        %v4332 = vcvt.s32.f32 %v4076
        %v4333 = vcvt.s32.f32 %v4077
        %v4334 = vcvt.s32.f32 %v4078
        %v4335 = vcvt.s32.f32 %v4079
        %v4336 = vcvt.s32.f32 %v4080
        %v4337 = vcvt.s32.f32 %v4081
        %v4338 = vcvt.s32.f32 %v4082
        %v4339 = vcvt.s32.f32 %v4083
        %v4340 = vcvt.s32.f32 %v4084
        %v4341 = vcvt.s32.f32 %v4085
        %v4342 = vcvt.s32.f32 %v4086
        %v4343 = vcvt.s32.f32 %v4087
        %v4344 = vcvt.s32.f32 %v4088
        %v4345 = vcvt.s32.f32 %v4089
        %v4346 = vcvt.s32.f32 %v4090
        %v4347 = vcvt.s32.f32 %v4091
        %v4348 = vcvt.s32.f32 %v4092
        %v4349 = vcvt.s32.f32 %v4093
        %v4350 = vcvt.s32.f32 %v4094
        %v4351 = vcvt.s32.f32 %v4095
        %v4352 = vcvt.s32.f32 %v4096
        %v4353 = vcvt.s32.f32 %v4097
        %v4354 = vcvt.s32.f32 %v4098
        %v4355 = vcvt.s32.f32 %v4099
        %v4356 = vcvt.s32.f32 %v4100
        %v4357 = vcvt.s32.f32 %v4101
        %v4358 = vcvt.s32.f32 %v4102
        %v4359 = vcvt.s32.f32 %v4103
        %v4360 = vcvt.s32.f32 %v4104
        %v4361 = vcvt.s32.f32 %v4105
        %v4362 = vcvt.s32.f32 %v4106
        %v4363 = vcvt.s32.f32 %v4107
        %v4364 = vpack.c.bf16 %v4116, %v4108
        %v4365 = vpack.c.bf16 %v4117, %v4109
        %v4366 = vpack.c.bf16 %v4118, %v4110
        %v4367 = vpack.c.bf16 %v4119, %v4111
        %v4368 = vpack.c.bf16 %v4120, %v4112
        %v4369 = vpack.c.bf16 %v4121, %v4113
        %v4370 = vpack.c.bf16 %v4122, %v4114
        %v4371 = vpack.c.bf16 %v4123, %v4115
        %v4372 = vpack.c.bf16 %v4132, %v4124
        %v4373 = vpack.c.bf16 %v4133, %v4125
        %v4374 = vpack.c.bf16 %v4134, %v4126
        %v4375 = vpack.c.bf16 %v4135, %v4127
        %v4376 = vpack.c.bf16 %v4136, %v4128
        %v4377 = vpack.c.bf16 %v4137, %v4129
        %v4378 = vpack.c.bf16 %v4138, %v4130
        %v4379 = vpack.c.bf16 %v4139, %v4131
        %v4380 = vpack.c.bf16 %v4148, %v4140
        %v4381 = vpack.c.bf16 %v4149, %v4141
        %v4382 = vpack.c.bf16 %v4150, %v4142
        %v4383 = vpack.c.bf16 %v4151, %v4143
        %v4384 = vpack.c.bf16 %v4152, %v4144
        %v4385 = vpack.c.bf16 %v4153, %v4145
        %v4386 = vpack.c.bf16 %v4154, %v4146
        %v4387 = vpack.c.bf16 %v4155, %v4147
        %v4388 = vpack.c.bf16 %v4164, %v4156
        %v4389 = vpack.c.bf16 %v4165, %v4157
        %v4390 = vpack.c.bf16 %v4166, %v4158
        %v4391 = vpack.c.bf16 %v4167, %v4159
        %v4392 = vpack.c.bf16 %v4168, %v4160
        %v4393 = vpack.c.bf16 %v4169, %v4161
        %v4394 = vpack.c.bf16 %v4170, %v4162
        %v4395 = vpack.c.bf16 %v4171, %v4163
        %v4396 = vpack.c.bf16 %v4180, %v4172
        %v4397 = vpack.c.bf16 %v4181, %v4173
        %v4398 = vpack.c.bf16 %v4182, %v4174
        %v4399 = vpack.c.bf16 %v4183, %v4175
        %v4400 = vpack.c.bf16 %v4184, %v4176
        %v4401 = vpack.c.bf16 %v4185, %v4177
        %v4402 = vpack.c.bf16 %v4186, %v4178
        %v4403 = vpack.c.bf16 %v4187, %v4179
        %v4404 = vpack.c.bf16 %v4196, %v4188
        %v4405 = vpack.c.bf16 %v4197, %v4189
        %v4406 = vpack.c.bf16 %v4198, %v4190
        %v4407 = vpack.c.bf16 %v4199, %v4191
        %v4408 = vpack.c.bf16 %v4200, %v4192
        %v4409 = vpack.c.bf16 %v4201, %v4193
        %v4410 = vpack.c.bf16 %v4202, %v4194
        %v4411 = vpack.c.bf16 %v4203, %v4195
        %v4412 = vpack.c.bf16 %v4212, %v4204
        %v4413 = vpack.c.bf16 %v4213, %v4205
        %v4414 = vpack.c.bf16 %v4214, %v4206
        %v4415 = vpack.c.bf16 %v4215, %v4207
        %v4416 = vpack.c.bf16 %v4216, %v4208
        %v4417 = vpack.c.bf16 %v4217, %v4209
        %v4418 = vpack.c.bf16 %v4218, %v4210
        %v4419 = vpack.c.bf16 %v4219, %v4211
        %v4420 = vpack.c.bf16 %v4228, %v4220
        %v4421 = vpack.c.bf16 %v4229, %v4221
        %v4422 = vpack.c.bf16 %v4230, %v4222
        %v4423 = vpack.c.bf16 %v4231, %v4223
        %v4424 = vpack.c.bf16 %v4232, %v4224
        %v4425 = vpack.c.bf16 %v4233, %v4225
        %v4426 = vpack.c.bf16 %v4234, %v4226
        %v4427 = vpack.c.bf16 %v4235, %v4227
        %v4428 = vpack.c.bf16 %v4244, %v4236
        %v4429 = vpack.c.bf16 %v4245, %v4237
        %v4430 = vpack.c.bf16 %v4246, %v4238
        %v4431 = vpack.c.bf16 %v4247, %v4239
        %v4432 = vpack.c.bf16 %v4248, %v4240
        %v4433 = vpack.c.bf16 %v4249, %v4241
        %v4434 = vpack.c.bf16 %v4250, %v4242
        %v4435 = vpack.c.bf16 %v4251, %v4243
        %v4436 = vpack.c.bf16 %v4260, %v4252
        %v4437 = vpack.c.bf16 %v4261, %v4253
        %v4438 = vpack.c.bf16 %v4262, %v4254
        %v4439 = vpack.c.bf16 %v4263, %v4255
        %v4440 = vpack.c.bf16 %v4264, %v4256
        %v4441 = vpack.c.bf16 %v4265, %v4257
        %v4442 = vpack.c.bf16 %v4266, %v4258
        %v4443 = vpack.c.bf16 %v4267, %v4259
        %v4444 = vpack.c.bf16 %v4276, %v4268
        %v4445 = vpack.c.bf16 %v4277, %v4269
        %v4446 = vpack.c.bf16 %v4278, %v4270
        %v4447 = vpack.c.bf16 %v4279, %v4271
        %v4448 = vpack.c.bf16 %v4280, %v4272
        %v4449 = vpack.c.bf16 %v4281, %v4273
        %v4450 = vpack.c.bf16 %v4282, %v4274
        %v4451 = vpack.c.bf16 %v4283, %v4275
        %v4452 = vpack.c.bf16 %v4292, %v4284
        %v4453 = vpack.c.bf16 %v4293, %v4285
        %v4454 = vpack.c.bf16 %v4294, %v4286
        %v4455 = vpack.c.bf16 %v4295, %v4287
        %v4456 = vpack.c.bf16 %v4296, %v4288
        %v4457 = vpack.c.bf16 %v4297, %v4289
        %v4458 = vpack.c.bf16 %v4298, %v4290
        %v4459 = vpack.c.bf16 %v4299, %v4291
        %v4460 = vpack.c.bf16 %v4308, %v4300
        %v4461 = vpack.c.bf16 %v4309, %v4301
        %v4462 = vpack.c.bf16 %v4310, %v4302
        %v4463 = vpack.c.bf16 %v4311, %v4303
        %v4464 = vpack.c.bf16 %v4312, %v4304
        %v4465 = vpack.c.bf16 %v4313, %v4305
        %v4466 = vpack.c.bf16 %v4314, %v4306
        %v4467 = vpack.c.bf16 %v4315, %v4307
        %v4468 = vpack.c.bf16 %v4324, %v4316
        %v4469 = vpack.c.bf16 %v4325, %v4317
        %v4470 = vpack.c.bf16 %v4326, %v4318
        %v4471 = vpack.c.bf16 %v4327, %v4319
        %v4472 = vpack.c.bf16 %v4328, %v4320
        %v4473 = vpack.c.bf16 %v4329, %v4321
        %v4474 = vpack.c.bf16 %v4330, %v4322
        %v4475 = vpack.c.bf16 %v4331, %v4323
        %v4476 = vpack.c.bf16 %v4340, %v4332
        %v4477 = vpack.c.bf16 %v4341, %v4333
        %v4478 = vpack.c.bf16 %v4342, %v4334
        %v4479 = vpack.c.bf16 %v4343, %v4335
        %v4480 = vpack.c.bf16 %v4344, %v4336
        %v4481 = vpack.c.bf16 %v4345, %v4337
        %v4482 = vpack.c.bf16 %v4346, %v4338
        %v4483 = vpack.c.bf16 %v4347, %v4339
        %v4484 = vpack.c.bf16 %v4356, %v4348
        %v4485 = vpack.c.bf16 %v4357, %v4349
        %v4486 = vpack.c.bf16 %v4358, %v4350
        %v4487 = vpack.c.bf16 %v4359, %v4351
        %v4488 = vpack.c.bf16 %v4360, %v4352
        %v4489 = vpack.c.bf16 %v4361, %v4353
        %v4490 = vpack.c.bf16 %v4362, %v4354
        %v4491 = vpack.c.bf16 %v4363, %v4355
        %v4492 = vadd.bf16 %v3372, %v4364
        %v4493 = vadd.bf16 %v3373, %v4365
        %v4494 = vadd.bf16 %v3374, %v4366
        %v4495 = vadd.bf16 %v3375, %v4367
        %v4496 = vadd.bf16 %v3376, %v4368
        %v4497 = vadd.bf16 %v3377, %v4369
        %v4498 = vadd.bf16 %v3378, %v4370
        %v4499 = vadd.bf16 %v3379, %v4371
        %v4500 = vadd.bf16 %v3380, %v4372
        %v4501 = vadd.bf16 %v3381, %v4373
        %v4502 = vadd.bf16 %v3382, %v4374
        %v4503 = vadd.bf16 %v3383, %v4375
        %v4504 = vadd.bf16 %v3384, %v4376
        %v4505 = vadd.bf16 %v3385, %v4377
        %v4506 = vadd.bf16 %v3386, %v4378
        %v4507 = vadd.bf16 %v3387, %v4379
        %v4508 = vadd.bf16 %v3388, %v4380
        %v4509 = vadd.bf16 %v3389, %v4381
        %v4510 = vadd.bf16 %v3390, %v4382
        %v4511 = vadd.bf16 %v3391, %v4383
        %v4512 = vadd.bf16 %v3392, %v4384
        %v4513 = vadd.bf16 %v3393, %v4385
        %v4514 = vadd.bf16 %v3394, %v4386
        %v4515 = vadd.bf16 %v3395, %v4387
        %v4516 = vadd.bf16 %v3396, %v4388
        %v4517 = vadd.bf16 %v3397, %v4389
        %v4518 = vadd.bf16 %v3398, %v4390
        %v4519 = vadd.bf16 %v3399, %v4391
        %v4520 = vadd.bf16 %v3400, %v4392
        %v4521 = vadd.bf16 %v3401, %v4393
        %v4522 = vadd.bf16 %v3402, %v4394
        %v4523 = vadd.bf16 %v3403, %v4395
        %v4524 = vadd.bf16 %v3404, %v4396
        %v4525 = vadd.bf16 %v3405, %v4397
        %v4526 = vadd.bf16 %v3406, %v4398
        %v4527 = vadd.bf16 %v3407, %v4399
        %v4528 = vadd.bf16 %v3408, %v4400
        %v4529 = vadd.bf16 %v3409, %v4401
        %v4530 = vadd.bf16 %v3410, %v4402
        %v4531 = vadd.bf16 %v3411, %v4403
        %v4532 = vadd.bf16 %v3412, %v4404
        %v4533 = vadd.bf16 %v3413, %v4405
        %v4534 = vadd.bf16 %v3414, %v4406
        %v4535 = vadd.bf16 %v3415, %v4407
        %v4536 = vadd.bf16 %v3416, %v4408
        %v4537 = vadd.bf16 %v3417, %v4409
        %v4538 = vadd.bf16 %v3418, %v4410
        %v4539 = vadd.bf16 %v3419, %v4411
        %v4540 = vadd.bf16 %v3420, %v4412
        %v4541 = vadd.bf16 %v3421, %v4413
        %v4542 = vadd.bf16 %v3422, %v4414
        %v4543 = vadd.bf16 %v3423, %v4415
        %v4544 = vadd.bf16 %v3424, %v4416
        %v4545 = vadd.bf16 %v3425, %v4417
        %v4546 = vadd.bf16 %v3426, %v4418
        %v4547 = vadd.bf16 %v3427, %v4419
        %v4548 = vadd.bf16 %v3428, %v4420
        %v4549 = vadd.bf16 %v3429, %v4421
        %v4550 = vadd.bf16 %v3430, %v4422
        %v4551 = vadd.bf16 %v3431, %v4423
        %v4552 = vadd.bf16 %v3432, %v4424
        %v4553 = vadd.bf16 %v3433, %v4425
        %v4554 = vadd.bf16 %v3434, %v4426
        %v4555 = vadd.bf16 %v3435, %v4427
        %v4556 = vadd.bf16 %v3436, %v4428
        %v4557 = vadd.bf16 %v3437, %v4429
        %v4558 = vadd.bf16 %v3438, %v4430
        %v4559 = vadd.bf16 %v3439, %v4431
        %v4560 = vadd.bf16 %v3440, %v4432
        %v4561 = vadd.bf16 %v3441, %v4433
        %v4562 = vadd.bf16 %v3442, %v4434
        %v4563 = vadd.bf16 %v3443, %v4435
        %v4564 = vadd.bf16 %v3444, %v4436
        %v4565 = vadd.bf16 %v3445, %v4437
        %v4566 = vadd.bf16 %v3446, %v4438
        %v4567 = vadd.bf16 %v3447, %v4439
        %v4568 = vadd.bf16 %v3448, %v4440
        %v4569 = vadd.bf16 %v3449, %v4441
        %v4570 = vadd.bf16 %v3450, %v4442
        %v4571 = vadd.bf16 %v3451, %v4443
        %v4572 = vadd.bf16 %v3452, %v4444
        %v4573 = vadd.bf16 %v3453, %v4445
        %v4574 = vadd.bf16 %v3454, %v4446
        %v4575 = vadd.bf16 %v3455, %v4447
        %v4576 = vadd.bf16 %v3456, %v4448
        %v4577 = vadd.bf16 %v3457, %v4449
        %v4578 = vadd.bf16 %v3458, %v4450
        %v4579 = vadd.bf16 %v3459, %v4451
        %v4580 = vadd.bf16 %v3460, %v4452
        %v4581 = vadd.bf16 %v3461, %v4453
        %v4582 = vadd.bf16 %v3462, %v4454
        %v4583 = vadd.bf16 %v3463, %v4455
        %v4584 = vadd.bf16 %v3464, %v4456
        %v4585 = vadd.bf16 %v3465, %v4457
        %v4586 = vadd.bf16 %v3466, %v4458
        %v4587 = vadd.bf16 %v3467, %v4459
        %v4588 = vadd.bf16 %v3468, %v4460
        %v4589 = vadd.bf16 %v3469, %v4461
        %v4590 = vadd.bf16 %v3470, %v4462
        %v4591 = vadd.bf16 %v3471, %v4463
        %v4592 = vadd.bf16 %v3472, %v4464
        %v4593 = vadd.bf16 %v3473, %v4465
        %v4594 = vadd.bf16 %v3474, %v4466
        %v4595 = vadd.bf16 %v3475, %v4467
        %v4596 = vadd.bf16 %v3476, %v4468
        %v4597 = vadd.bf16 %v3477, %v4469
        %v4598 = vadd.bf16 %v3478, %v4470
        %v4599 = vadd.bf16 %v3479, %v4471
        %v4600 = vadd.bf16 %v3480, %v4472
        %v4601 = vadd.bf16 %v3481, %v4473
        %v4602 = vadd.bf16 %v3482, %v4474
        %v4603 = vadd.bf16 %v3483, %v4475
        %v4604 = vadd.bf16 %v3484, %v4476
        %v4605 = vadd.bf16 %v3485, %v4477
        %v4606 = vadd.bf16 %v3486, %v4478
        %v4607 = vadd.bf16 %v3487, %v4479
        %v4608 = vadd.bf16 %v3488, %v4480
        %v4609 = vadd.bf16 %v3489, %v4481
        %v4610 = vadd.bf16 %v3490, %v4482
        %v4611 = vadd.bf16 %v3491, %v4483
        %v4612 = vadd.bf16 %v3492, %v4484
        %v4613 = vadd.bf16 %v3493, %v4485
        %v4614 = vadd.bf16 %v3494, %v4486
        %v4615 = vadd.bf16 %v3495, %v4487
        %v4616 = vadd.bf16 %v3496, %v4488
        %v4617 = vadd.bf16 %v3497, %v4489
        %v4618 = vadd.bf16 %v3498, %v4490
        %v4619 = vadd.bf16 %v3499, %v4491
        %v4620 = vld [vmem:[%s1] sm:$0xf]
        %v4621 = vld [vmem:[%s1 + $0x4] sm:$0xf]
        %v4622 = vld [vmem:[%s1 + $0x8] sm:$0xf]
        %v4623 = vld [vmem:[%s1 + $0xc] sm:$0xf]
        %v4624 = vld [vmem:[%s1 + $0x10] sm:$0xf]
        %v4625 = vld [vmem:[%s1 + $0x14] sm:$0xf]
        %v4626 = vld [vmem:[%s1 + $0x18] sm:$0xf]
        %v4627 = vld [vmem:[%s1 + $0x1c] sm:$0xf]
        %v4628 = vld [vmem:[%s1 + $0x20] sm:$0xf]
        %v4629 = vld [vmem:[%s1 + $0x24] sm:$0xf]
        %v4630 = vld [vmem:[%s1 + $0x28] sm:$0xf]
        %v4631 = vld [vmem:[%s1 + $0x2c] sm:$0xf]
        %v4632 = vld [vmem:[%s1 + $0x30] sm:$0xf]
        %v4633 = vld [vmem:[%s1 + $0x34] sm:$0xf]
        %v4634 = vld [vmem:[%s1 + $0x38] sm:$0xf]
        %v4635 = vld [vmem:[%s1 + $0x3c] sm:$0xf]
        %v4636 = vld [vmem:[%s1 + $0x40] sm:$0xf]
        %v4637 = vld [vmem:[%s1 + $0x44] sm:$0xf]
        %v4638 = vld [vmem:[%s1 + $0x48] sm:$0xf]
        %v4639 = vld [vmem:[%s1 + $0x4c] sm:$0xf]
        %v4640 = vld [vmem:[%s1 + $0x50] sm:$0xf]
        %v4641 = vld [vmem:[%s1 + $0x54] sm:$0xf]
        %v4642 = vld [vmem:[%s1 + $0x58] sm:$0xf]
        %v4643 = vld [vmem:[%s1 + $0x5c] sm:$0xf]
        %v4644 = vld [vmem:[%s1 + $0x60] sm:$0xf]
        %v4645 = vld [vmem:[%s1 + $0x64] sm:$0xf]
        %v4646 = vld [vmem:[%s1 + $0x68] sm:$0xf]
        %v4647 = vld [vmem:[%s1 + $0x6c] sm:$0xf]
        %v4648 = vld [vmem:[%s1 + $0x70] sm:$0xf]
        %v4649 = vld [vmem:[%s1 + $0x74] sm:$0xf]
        %v4650 = vld [vmem:[%s1 + $0x78] sm:$0xf]
        %v4651 = vld [vmem:[%s1 + $0x7c] sm:$0xf]
        %v4652 = vld [vmem:[%s1 + $0x80] sm:$0xf]
        %v4653 = vld [vmem:[%s1 + $0x84] sm:$0xf]
        %v4654 = vld [vmem:[%s1 + $0x88] sm:$0xf]
        %v4655 = vld [vmem:[%s1 + $0x8c] sm:$0xf]
        %v4656 = vld [vmem:[%s1 + $0x90] sm:$0xf]
        %v4657 = vld [vmem:[%s1 + $0x94] sm:$0xf]
        %v4658 = vld [vmem:[%s1 + $0x98] sm:$0xf]
        %v4659 = vld [vmem:[%s1 + $0x9c] sm:$0xf]
        %v4660 = vld [vmem:[%s1 + $0xa0] sm:$0xf]
        %v4661 = vld [vmem:[%s1 + $0xa4] sm:$0xf]
        %v4662 = vld [vmem:[%s1 + $0xa8] sm:$0xf]
        %v4663 = vld [vmem:[%s1 + $0xac] sm:$0xf]
        %v4664 = vld [vmem:[%s1 + $0xb0] sm:$0xf]
        %v4665 = vld [vmem:[%s1 + $0xb4] sm:$0xf]
        %v4666 = vld [vmem:[%s1 + $0xb8] sm:$0xf]
        %v4667 = vld [vmem:[%s1 + $0xbc] sm:$0xf]
        %v4668 = vld [vmem:[%s1 + $0xc0] sm:$0xf]
        %v4669 = vld [vmem:[%s1 + $0xc4] sm:$0xf]
        %v4670 = vld [vmem:[%s1 + $0xc8] sm:$0xf]
        %v4671 = vld [vmem:[%s1 + $0xcc] sm:$0xf]
        %v4672 = vld [vmem:[%s1 + $0xd0] sm:$0xf]
        %v4673 = vld [vmem:[%s1 + $0xd4] sm:$0xf]
        %v4674 = vld [vmem:[%s1 + $0xd8] sm:$0xf]
        %v4675 = vld [vmem:[%s1 + $0xdc] sm:$0xf]
        %v4676 = vld [vmem:[%s1 + $0xe0] sm:$0xf]
        %v4677 = vld [vmem:[%s1 + $0xe4] sm:$0xf]
        %v4678 = vld [vmem:[%s1 + $0xe8] sm:$0xf]
        %v4679 = vld [vmem:[%s1 + $0xec] sm:$0xf]
        %v4680 = vld [vmem:[%s1 + $0xf0] sm:$0xf]
        %v4681 = vld [vmem:[%s1 + $0xf4] sm:$0xf]
        %v4682 = vld [vmem:[%s1 + $0xf8] sm:$0xf]
        %v4683 = vld [vmem:[%s1 + $0xfc] sm:$0xf]
        %v4684 = vld [vmem:[%s1 + $0x100] sm:$0xf]
        %v4685 = vld [vmem:[%s1 + $0x104] sm:$0xf]
        %v4686 = vld [vmem:[%s1 + $0x108] sm:$0xf]
        %v4687 = vld [vmem:[%s1 + $0x10c] sm:$0xf]
        %v4688 = vld [vmem:[%s1 + $0x110] sm:$0xf]
        %v4689 = vld [vmem:[%s1 + $0x114] sm:$0xf]
        %v4690 = vld [vmem:[%s1 + $0x118] sm:$0xf]
        %v4691 = vld [vmem:[%s1 + $0x11c] sm:$0xf]
        %v4692 = vld [vmem:[%s1 + $0x120] sm:$0xf]
        %v4693 = vld [vmem:[%s1 + $0x124] sm:$0xf]
        %v4694 = vld [vmem:[%s1 + $0x128] sm:$0xf]
        %v4695 = vld [vmem:[%s1 + $0x12c] sm:$0xf]
        %v4696 = vld [vmem:[%s1 + $0x130] sm:$0xf]
        %v4697 = vld [vmem:[%s1 + $0x134] sm:$0xf]
        %v4698 = vld [vmem:[%s1 + $0x138] sm:$0xf]
        %v4699 = vld [vmem:[%s1 + $0x13c] sm:$0xf]
        %v4700 = vld [vmem:[%s1 + $0x140] sm:$0xf]
        %v4701 = vld [vmem:[%s1 + $0x144] sm:$0xf]
        %v4702 = vld [vmem:[%s1 + $0x148] sm:$0xf]
        %v4703 = vld [vmem:[%s1 + $0x14c] sm:$0xf]
        %v4704 = vld [vmem:[%s1 + $0x150] sm:$0xf]
        %v4705 = vld [vmem:[%s1 + $0x154] sm:$0xf]
        %v4706 = vld [vmem:[%s1 + $0x158] sm:$0xf]
        %v4707 = vld [vmem:[%s1 + $0x15c] sm:$0xf]
        %v4708 = vld [vmem:[%s1 + $0x160] sm:$0xf]
        %v4709 = vld [vmem:[%s1 + $0x164] sm:$0xf]
        %v4710 = vld [vmem:[%s1 + $0x168] sm:$0xf]
        %v4711 = vld [vmem:[%s1 + $0x16c] sm:$0xf]
        %v4712 = vld [vmem:[%s1 + $0x170] sm:$0xf]
        %v4713 = vld [vmem:[%s1 + $0x174] sm:$0xf]
        %v4714 = vld [vmem:[%s1 + $0x178] sm:$0xf]
        %v4715 = vld [vmem:[%s1 + $0x17c] sm:$0xf]
        %v4716 = vld [vmem:[%s1 + $0x180] sm:$0xf]
        %v4717 = vld [vmem:[%s1 + $0x184] sm:$0xf]
        %v4718 = vld [vmem:[%s1 + $0x188] sm:$0xf]
        %v4719 = vld [vmem:[%s1 + $0x18c] sm:$0xf]
        %v4720 = vld [vmem:[%s1 + $0x190] sm:$0xf]
        %v4721 = vld [vmem:[%s1 + $0x194] sm:$0xf]
        %v4722 = vld [vmem:[%s1 + $0x198] sm:$0xf]
        %v4723 = vld [vmem:[%s1 + $0x19c] sm:$0xf]
        %v4724 = vld [vmem:[%s1 + $0x1a0] sm:$0xf]
        %v4725 = vld [vmem:[%s1 + $0x1a4] sm:$0xf]
        %v4726 = vld [vmem:[%s1 + $0x1a8] sm:$0xf]
        %v4727 = vld [vmem:[%s1 + $0x1ac] sm:$0xf]
        %v4728 = vld [vmem:[%s1 + $0x1b0] sm:$0xf]
        %v4729 = vld [vmem:[%s1 + $0x1b4] sm:$0xf]
        %v4730 = vld [vmem:[%s1 + $0x1b8] sm:$0xf]
        %v4731 = vld [vmem:[%s1 + $0x1bc] sm:$0xf]
        %v4732 = vld [vmem:[%s1 + $0x1c0] sm:$0xf]
        %v4733 = vld [vmem:[%s1 + $0x1c4] sm:$0xf]
        %v4734 = vld [vmem:[%s1 + $0x1c8] sm:$0xf]
        %v4735 = vld [vmem:[%s1 + $0x1cc] sm:$0xf]
        %v4736 = vld [vmem:[%s1 + $0x1d0] sm:$0xf]
        %v4737 = vld [vmem:[%s1 + $0x1d4] sm:$0xf]
        %v4738 = vld [vmem:[%s1 + $0x1d8] sm:$0xf]
        %v4739 = vld [vmem:[%s1 + $0x1dc] sm:$0xf]
        %v4740 = vld [vmem:[%s1 + $0x1e0] sm:$0xf]
        %v4741 = vld [vmem:[%s1 + $0x1e4] sm:$0xf]
        %v4742 = vld [vmem:[%s1 + $0x1e8] sm:$0xf]
        %v4743 = vld [vmem:[%s1 + $0x1ec] sm:$0xf]
        %v4744 = vld [vmem:[%s1 + $0x1f0] sm:$0xf]
        %v4745 = vld [vmem:[%s1 + $0x1f4] sm:$0xf]
        %v4746 = vld [vmem:[%s1 + $0x1f8] sm:$0xf]
        %v4747 = vld [vmem:[%s1 + $0x1fc] sm:$0xf]
        %v4748 = vld [vmem:[%s2] sm:$0x1]
        %v4750 = vlaneseq
        %v4751 = vshrl.u32 %v4750, 7
        %v4752 = vsub.s32 0, %v4751
        %v4753 = vrot.slane %v4748, %v4752
        %v4883 = vunpack.c.l.b16 %v4620
        %v4884 = vunpack.c.l.b16 %v4621
        %v4885 = vunpack.c.l.b16 %v4622
        %v4886 = vunpack.c.l.b16 %v4623
        %v4887 = vunpack.c.l.b16 %v4624
        %v4888 = vunpack.c.l.b16 %v4625
        %v4889 = vunpack.c.l.b16 %v4626
        %v4890 = vunpack.c.l.b16 %v4627
        %v4891 = vunpack.c.l.b16 %v4628
        %v4892 = vunpack.c.l.b16 %v4629
        %v4893 = vunpack.c.l.b16 %v4630
        %v4894 = vunpack.c.l.b16 %v4631
        %v4895 = vunpack.c.l.b16 %v4632
        %v4896 = vunpack.c.l.b16 %v4633
        %v4897 = vunpack.c.l.b16 %v4634
        %v4898 = vunpack.c.l.b16 %v4635
        %v4899 = vunpack.c.l.b16 %v4636
        %v4900 = vunpack.c.l.b16 %v4637
        %v4901 = vunpack.c.l.b16 %v4638
        %v4902 = vunpack.c.l.b16 %v4639
        %v4903 = vunpack.c.l.b16 %v4640
        %v4904 = vunpack.c.l.b16 %v4641
        %v4905 = vunpack.c.l.b16 %v4642
        %v4906 = vunpack.c.l.b16 %v4643
        %v4907 = vunpack.c.l.b16 %v4644
        %v4908 = vunpack.c.l.b16 %v4645
        %v4909 = vunpack.c.l.b16 %v4646
        %v4910 = vunpack.c.l.b16 %v4647
        %v4911 = vunpack.c.l.b16 %v4648
        %v4912 = vunpack.c.l.b16 %v4649
        %v4913 = vunpack.c.l.b16 %v4650
        %v4914 = vunpack.c.l.b16 %v4651
        %v4915 = vunpack.c.l.b16 %v4652
        %v4916 = vunpack.c.l.b16 %v4653
        %v4917 = vunpack.c.l.b16 %v4654
        %v4918 = vunpack.c.l.b16 %v4655
        %v4919 = vunpack.c.l.b16 %v4656
        %v4920 = vunpack.c.l.b16 %v4657
        %v4921 = vunpack.c.l.b16 %v4658
        %v4922 = vunpack.c.l.b16 %v4659
        %v4923 = vunpack.c.l.b16 %v4660
        %v4924 = vunpack.c.l.b16 %v4661
        %v4925 = vunpack.c.l.b16 %v4662
        %v4926 = vunpack.c.l.b16 %v4663
        %v4927 = vunpack.c.l.b16 %v4664
        %v4928 = vunpack.c.l.b16 %v4665
        %v4929 = vunpack.c.l.b16 %v4666
        %v4930 = vunpack.c.l.b16 %v4667
        %v4931 = vunpack.c.l.b16 %v4668
        %v4932 = vunpack.c.l.b16 %v4669
        %v4933 = vunpack.c.l.b16 %v4670
        %v4934 = vunpack.c.l.b16 %v4671
        %v4935 = vunpack.c.l.b16 %v4672
        %v4936 = vunpack.c.l.b16 %v4673
        %v4937 = vunpack.c.l.b16 %v4674
        %v4938 = vunpack.c.l.b16 %v4675
        %v4939 = vunpack.c.l.b16 %v4676
        %v4940 = vunpack.c.l.b16 %v4677
        %v4941 = vunpack.c.l.b16 %v4678
        %v4942 = vunpack.c.l.b16 %v4679
        %v4943 = vunpack.c.l.b16 %v4680
        %v4944 = vunpack.c.l.b16 %v4681
        %v4945 = vunpack.c.l.b16 %v4682
        %v4946 = vunpack.c.l.b16 %v4683
        %v4947 = vunpack.c.l.b16 %v4684
        %v4948 = vunpack.c.l.b16 %v4685
        %v4949 = vunpack.c.l.b16 %v4686
        %v4950 = vunpack.c.l.b16 %v4687
        %v4951 = vunpack.c.l.b16 %v4688
        %v4952 = vunpack.c.l.b16 %v4689
        %v4953 = vunpack.c.l.b16 %v4690
        %v4954 = vunpack.c.l.b16 %v4691
        %v4955 = vunpack.c.l.b16 %v4692
        %v4956 = vunpack.c.l.b16 %v4693
        %v4957 = vunpack.c.l.b16 %v4694
        %v4958 = vunpack.c.l.b16 %v4695
        %v4959 = vunpack.c.l.b16 %v4696
        %v4960 = vunpack.c.l.b16 %v4697
        %v4961 = vunpack.c.l.b16 %v4698
        %v4962 = vunpack.c.l.b16 %v4699
        %v4963 = vunpack.c.l.b16 %v4700
        %v4964 = vunpack.c.l.b16 %v4701
        %v4965 = vunpack.c.l.b16 %v4702
        %v4966 = vunpack.c.l.b16 %v4703
        %v4967 = vunpack.c.l.b16 %v4704
        %v4968 = vunpack.c.l.b16 %v4705
        %v4969 = vunpack.c.l.b16 %v4706
        %v4970 = vunpack.c.l.b16 %v4707
        %v4971 = vunpack.c.l.b16 %v4708
        %v4972 = vunpack.c.l.b16 %v4709
        %v4973 = vunpack.c.l.b16 %v4710
        %v4974 = vunpack.c.l.b16 %v4711
        %v4975 = vunpack.c.l.b16 %v4712
        %v4976 = vunpack.c.l.b16 %v4713
        %v4977 = vunpack.c.l.b16 %v4714
        %v4978 = vunpack.c.l.b16 %v4715
        %v4979 = vunpack.c.l.b16 %v4716
        %v4980 = vunpack.c.l.b16 %v4717
        %v4981 = vunpack.c.l.b16 %v4718
        %v4982 = vunpack.c.l.b16 %v4719
        %v4983 = vunpack.c.l.b16 %v4720
        %v4984 = vunpack.c.l.b16 %v4721
        %v4985 = vunpack.c.l.b16 %v4722
        %v4986 = vunpack.c.l.b16 %v4723
        %v4987 = vunpack.c.l.b16 %v4724
        %v4988 = vunpack.c.l.b16 %v4725
        %v4989 = vunpack.c.l.b16 %v4726
        %v4990 = vunpack.c.l.b16 %v4727
        %v4991 = vunpack.c.l.b16 %v4728
        %v4992 = vunpack.c.l.b16 %v4729
        %v4993 = vunpack.c.l.b16 %v4730
        %v4994 = vunpack.c.l.b16 %v4731
        %v4995 = vunpack.c.l.b16 %v4732
        %v4996 = vunpack.c.l.b16 %v4733
        %v4997 = vunpack.c.l.b16 %v4734
        %v4998 = vunpack.c.l.b16 %v4735
        %v4999 = vunpack.c.l.b16 %v4736
        %v5000 = vunpack.c.l.b16 %v4737
        %v5001 = vunpack.c.l.b16 %v4738
        %v5002 = vunpack.c.l.b16 %v4739
        %v5003 = vunpack.c.l.b16 %v4740
        %v5004 = vunpack.c.l.b16 %v4741
        %v5005 = vunpack.c.l.b16 %v4742
        %v5006 = vunpack.c.l.b16 %v4743
        %v5007 = vunpack.c.l.b16 %v4744
        %v5008 = vunpack.c.l.b16 %v4745
        %v5009 = vunpack.c.l.b16 %v4746
        %v5010 = vunpack.c.l.b16 %v4747
        %v5011 = vpack.c.b16 %v4884, %v4883
        %v5012 = vpack.c.b16 %v4886, %v4885
        %v5013 = vpack.c.b16 %v4888, %v4887
        %v5014 = vpack.c.b16 %v4890, %v4889
        %v5015 = vpack.c.b16 %v4892, %v4891
        %v5016 = vpack.c.b16 %v4894, %v4893
        %v5017 = vpack.c.b16 %v4896, %v4895
        %v5018 = vpack.c.b16 %v4898, %v4897
        %v5019 = vpack.c.b16 %v4900, %v4899
        %v5020 = vpack.c.b16 %v4902, %v4901
        %v5021 = vpack.c.b16 %v4904, %v4903
        %v5022 = vpack.c.b16 %v4906, %v4905
        %v5023 = vpack.c.b16 %v4908, %v4907
        %v5024 = vpack.c.b16 %v4910, %v4909
        %v5025 = vpack.c.b16 %v4912, %v4911
        %v5026 = vpack.c.b16 %v4914, %v4913
        %v5027 = vpack.c.b16 %v4916, %v4915
        %v5028 = vpack.c.b16 %v4918, %v4917
        %v5029 = vpack.c.b16 %v4920, %v4919
        %v5030 = vpack.c.b16 %v4922, %v4921
        %v5031 = vpack.c.b16 %v4924, %v4923
        %v5032 = vpack.c.b16 %v4926, %v4925
        %v5033 = vpack.c.b16 %v4928, %v4927
        %v5034 = vpack.c.b16 %v4930, %v4929
        %v5035 = vpack.c.b16 %v4932, %v4931
        %v5036 = vpack.c.b16 %v4934, %v4933
        %v5037 = vpack.c.b16 %v4936, %v4935
        %v5038 = vpack.c.b16 %v4938, %v4937
        %v5039 = vpack.c.b16 %v4940, %v4939
        %v5040 = vpack.c.b16 %v4942, %v4941
        %v5041 = vpack.c.b16 %v4944, %v4943
        %v5042 = vpack.c.b16 %v4946, %v4945
        %v5043 = vpack.c.b16 %v4948, %v4947
        %v5044 = vpack.c.b16 %v4950, %v4949
        %v5045 = vpack.c.b16 %v4952, %v4951
        %v5046 = vpack.c.b16 %v4954, %v4953
        %v5047 = vpack.c.b16 %v4956, %v4955
        %v5048 = vpack.c.b16 %v4958, %v4957
        %v5049 = vpack.c.b16 %v4960, %v4959
        %v5050 = vpack.c.b16 %v4962, %v4961
        %v5051 = vpack.c.b16 %v4964, %v4963
        %v5052 = vpack.c.b16 %v4966, %v4965
        %v5053 = vpack.c.b16 %v4968, %v4967
        %v5054 = vpack.c.b16 %v4970, %v4969
        %v5055 = vpack.c.b16 %v4972, %v4971
        %v5056 = vpack.c.b16 %v4974, %v4973
        %v5057 = vpack.c.b16 %v4976, %v4975
        %v5058 = vpack.c.b16 %v4978, %v4977
        %v5059 = vpack.c.b16 %v4980, %v4979
        %v5060 = vpack.c.b16 %v4982, %v4981
        %v5061 = vpack.c.b16 %v4984, %v4983
        %v5062 = vpack.c.b16 %v4986, %v4985
        %v5063 = vpack.c.b16 %v4988, %v4987
        %v5064 = vpack.c.b16 %v4990, %v4989
        %v5065 = vpack.c.b16 %v4992, %v4991
        %v5066 = vpack.c.b16 %v4994, %v4993
        %v5067 = vpack.c.b16 %v4996, %v4995
        %v5068 = vpack.c.b16 %v4998, %v4997
        %v5069 = vpack.c.b16 %v5000, %v4999
        %v5070 = vpack.c.b16 %v5002, %v5001
        %v5071 = vpack.c.b16 %v5004, %v5003
        %v5072 = vpack.c.b16 %v5006, %v5005
        %v5073 = vpack.c.b16 %v5008, %v5007
        %v5074 = vpack.c.b16 %v5010, %v5009
        %5139 = vmatprep.subr.bf16.mxu0 0
        %5140 = vmatpush1.bf16.msra.mxu0 %v5018
        %5141 = vmatprep.subr.bf16.mxu0 0
        %5142 = vmatpush1.bf16.msra.mxu0 %v5017
        %5143 = vmatprep.subr.bf16.mxu0 0
        %5144 = vmatpush1.bf16.msra.mxu0 %v5016
        %5145 = vmatprep.subr.bf16.mxu0 0
        %5146 = vmatpush1.bf16.msra.mxu0 %v5015
        %5147 = vmatprep.subr.bf16.mxu0 0
        %5148 = vmatpush1.bf16.msra.mxu0 %v5014
        %5149 = vmatprep.subr.bf16.mxu0 0
        %5150 = vmatpush1.bf16.msra.mxu0 %v5013
        %5151 = vmatprep.subr.bf16.mxu0 0
        %5152 = vmatpush1.bf16.msra.mxu0 %v5012
        %5153 = vmatprep.subr.bf16.mxu0 0
        %5154 = vmatpush1.bf16.msra.mxu0 %v5011
        %5155 = vmatprep.subr.bf16.mxu0 0
        %5156 = vmatpush2.bf16.msra.mxu0 %v5026
        %5157 = vmatprep.subr.bf16.mxu0 0
        %5158 = vmatpush2.bf16.msra.mxu0 %v5025
        %5159 = vmatprep.subr.bf16.mxu0 0
        %5160 = vmatpush2.bf16.msra.mxu0 %v5024
        %5161 = vmatprep.subr.bf16.mxu0 0
        %5162 = vmatpush2.bf16.msra.mxu0 %v5023
        %5163 = vmatprep.subr.bf16.mxu0 0
        %5164 = vmatpush2.bf16.msra.mxu0 %v5022
        %5165 = vmatprep.subr.bf16.mxu0 0
        %5166 = vmatpush2.bf16.msra.mxu0 %v5021
        %5167 = vmatprep.subr.bf16.mxu0 0
        %5168 = vmatpush2.bf16.msra.mxu0 %v5020
        %5169 = vmatprep.subr.bf16.mxu0 0
        %5170 = vmatpush2.bf16.msra.mxu0 %v5019
        %5171 = vmatprep.mubr.bf16.mxu0 %v4493
        %5172 = vmatmul.mubr.bf16.gmra.mxu0 %v4492
        %v5173 = vpop.f32.mrf.mxu0
        %v5174 = vadd.f32 %v4753, %v5173
        %v5175 = vpop.f32.mrf.mxu0
        %v5176 = vpop.f32.mrf.mxu0
        %v5177 = vadd.f32 %v4753, %v5176
        %v5178 = vpop.f32.mrf.mxu0
        %5179 = vmatprep.mubr.bf16.mxu0 %v4501
        %5180 = vmatmul.mubr.bf16.gmra.mxu0 %v4500
        %v5181 = vpop.f32.mrf.mxu0
        %v5182 = vadd.f32 %v4753, %v5181
        %v5183 = vpop.f32.mrf.mxu0
        %v5184 = vpop.f32.mrf.mxu0
        %v5185 = vadd.f32 %v4753, %v5184
        %v5186 = vpop.f32.mrf.mxu0
        %5187 = vmatprep.mubr.bf16.mxu0 %v4509
        %5188 = vmatmul.mubr.bf16.gmra.mxu0 %v4508
        %v5189 = vpop.f32.mrf.mxu0
        %v5190 = vadd.f32 %v4753, %v5189
        %v5191 = vpop.f32.mrf.mxu0
        %v5192 = vpop.f32.mrf.mxu0
        %v5193 = vadd.f32 %v4753, %v5192
        %v5194 = vpop.f32.mrf.mxu0
        %5195 = vmatprep.mubr.bf16.mxu0 %v4517
        %5196 = vmatmul.mubr.bf16.gmra.mxu0 %v4516
        %v5197 = vpop.f32.mrf.mxu0
        %v5198 = vadd.f32 %v4753, %v5197
        %v5199 = vpop.f32.mrf.mxu0
        %v5200 = vpop.f32.mrf.mxu0
        %v5201 = vadd.f32 %v4753, %v5200
        %v5202 = vpop.f32.mrf.mxu0
        %5203 = vmatprep.mubr.bf16.mxu0 %v4525
        %5204 = vmatmul.mubr.bf16.gmra.mxu0 %v4524
        %v5205 = vpop.f32.mrf.mxu0
        %v5206 = vadd.f32 %v4753, %v5205
        %v5207 = vpop.f32.mrf.mxu0
        %v5208 = vpop.f32.mrf.mxu0
        %v5209 = vadd.f32 %v4753, %v5208
        %v5210 = vpop.f32.mrf.mxu0
        %5211 = vmatprep.mubr.bf16.mxu0 %v4533
        %5212 = vmatmul.mubr.bf16.gmra.mxu0 %v4532
        %v5213 = vpop.f32.mrf.mxu0
        %v5214 = vadd.f32 %v4753, %v5213
        %v5215 = vpop.f32.mrf.mxu0
        %v5216 = vpop.f32.mrf.mxu0
        %v5217 = vadd.f32 %v4753, %v5216
        %v5218 = vpop.f32.mrf.mxu0
        %5219 = vmatprep.mubr.bf16.mxu0 %v4541
        %5220 = vmatmul.mubr.bf16.gmra.mxu0 %v4540
        %v5221 = vpop.f32.mrf.mxu0
        %v5222 = vadd.f32 %v4753, %v5221
        %v5223 = vpop.f32.mrf.mxu0
        %v5224 = vpop.f32.mrf.mxu0
        %v5225 = vadd.f32 %v4753, %v5224
        %v5226 = vpop.f32.mrf.mxu0
        %5227 = vmatprep.mubr.bf16.mxu0 %v4549
        %5228 = vmatmul.mubr.bf16.gmra.mxu0 %v4548
        %v5229 = vpop.f32.mrf.mxu0
        %v5230 = vadd.f32 %v4753, %v5229
        %v5231 = vpop.f32.mrf.mxu0
        %v5232 = vpop.f32.mrf.mxu0
        %v5233 = vadd.f32 %v4753, %v5232
        %v5234 = vpop.f32.mrf.mxu0
        %5235 = vmatprep.mubr.bf16.mxu0 %v4557
        %5236 = vmatmul.mubr.bf16.gmra.mxu0 %v4556
        %v5237 = vpop.f32.mrf.mxu0
        %v5238 = vadd.f32 %v4753, %v5237
        %v5239 = vpop.f32.mrf.mxu0
        %v5240 = vpop.f32.mrf.mxu0
        %v5241 = vadd.f32 %v4753, %v5240
        %v5242 = vpop.f32.mrf.mxu0
        %5243 = vmatprep.mubr.bf16.mxu0 %v4565
        %5244 = vmatmul.mubr.bf16.gmra.mxu0 %v4564
        %v5245 = vpop.f32.mrf.mxu0
        %v5246 = vadd.f32 %v4753, %v5245
        %v5247 = vpop.f32.mrf.mxu0
        %v5248 = vpop.f32.mrf.mxu0
        %v5249 = vadd.f32 %v4753, %v5248
        %v5250 = vpop.f32.mrf.mxu0
        %5251 = vmatprep.mubr.bf16.mxu0 %v4573
        %5252 = vmatmul.mubr.bf16.gmra.mxu0 %v4572
        %v5253 = vpop.f32.mrf.mxu0
        %v5254 = vadd.f32 %v4753, %v5253
        %v5255 = vpop.f32.mrf.mxu0
        %v5256 = vpop.f32.mrf.mxu0
        %v5257 = vadd.f32 %v4753, %v5256
        %v5258 = vpop.f32.mrf.mxu0
        %5259 = vmatprep.mubr.bf16.mxu0 %v4581
        %5260 = vmatmul.mubr.bf16.gmra.mxu0 %v4580
        %v5261 = vpop.f32.mrf.mxu0
        %v5262 = vadd.f32 %v4753, %v5261
        %v5263 = vpop.f32.mrf.mxu0
        %v5264 = vpop.f32.mrf.mxu0
        %v5265 = vadd.f32 %v4753, %v5264
        %v5266 = vpop.f32.mrf.mxu0
        %5267 = vmatprep.mubr.bf16.mxu0 %v4589
        %5268 = vmatmul.mubr.bf16.gmra.mxu0 %v4588
        %v5269 = vpop.f32.mrf.mxu0
        %v5270 = vadd.f32 %v4753, %v5269
        %v5271 = vpop.f32.mrf.mxu0
        %v5272 = vpop.f32.mrf.mxu0
        %v5273 = vadd.f32 %v4753, %v5272
        %v5274 = vpop.f32.mrf.mxu0
        %5275 = vmatprep.mubr.bf16.mxu0 %v4597
        %5276 = vmatmul.mubr.bf16.gmra.mxu0 %v4596
        %v5277 = vpop.f32.mrf.mxu0
        %v5278 = vadd.f32 %v4753, %v5277
        %v5279 = vpop.f32.mrf.mxu0
        %v5280 = vpop.f32.mrf.mxu0
        %v5281 = vadd.f32 %v4753, %v5280
        %v5282 = vpop.f32.mrf.mxu0
        %5283 = vmatprep.mubr.bf16.mxu0 %v4605
        %5284 = vmatmul.mubr.bf16.gmra.mxu0 %v4604
        %v5285 = vpop.f32.mrf.mxu0
        %v5286 = vadd.f32 %v4753, %v5285
        %v5287 = vpop.f32.mrf.mxu0
        %v5288 = vpop.f32.mrf.mxu0
        %v5289 = vadd.f32 %v4753, %v5288
        %v5290 = vpop.f32.mrf.mxu0
        %5291 = vmatprep.mubr.bf16.mxu0 %v4613
        %5292 = vmatmul.mubr.bf16.gmra.mxu0 %v4612
        %v5293 = vpop.f32.mrf.mxu0
        %v5294 = vadd.f32 %v4753, %v5293
        %v5295 = vpop.f32.mrf.mxu0
        %v5296 = vpop.f32.mrf.mxu0
        %v5297 = vadd.f32 %v4753, %v5296
        %v5298 = vpop.f32.mrf.mxu0
        %5299 = vdwg.mxu0
        %5300 = vmatprep.subr.bf16.mxu0 0
        %5301 = vmatpush1.bf16.msra.mxu0 %v5034
        %5302 = vmatprep.subr.bf16.mxu0 0
        %5303 = vmatpush1.bf16.msra.mxu0 %v5033
        %5304 = vmatprep.subr.bf16.mxu0 0
        %5305 = vmatpush1.bf16.msra.mxu0 %v5032
        %5306 = vmatprep.subr.bf16.mxu0 0
        %5307 = vmatpush1.bf16.msra.mxu0 %v5031
        %5308 = vmatprep.subr.bf16.mxu0 0
        %5309 = vmatpush1.bf16.msra.mxu0 %v5030
        %5310 = vmatprep.subr.bf16.mxu0 0
        %5311 = vmatpush1.bf16.msra.mxu0 %v5029
        %5312 = vmatprep.subr.bf16.mxu0 0
        %5313 = vmatpush1.bf16.msra.mxu0 %v5028
        %5314 = vmatprep.subr.bf16.mxu0 0
        %5315 = vmatpush1.bf16.msra.mxu0 %v5027
        %5316 = vmatprep.subr.bf16.mxu0 0
        %5317 = vmatpush2.bf16.msra.mxu0 %v5042
        %5318 = vmatprep.subr.bf16.mxu0 0
        %5319 = vmatpush2.bf16.msra.mxu0 %v5041
        %5320 = vmatprep.subr.bf16.mxu0 0
        %5321 = vmatpush2.bf16.msra.mxu0 %v5040
        %5322 = vmatprep.subr.bf16.mxu0 0
        %5323 = vmatpush2.bf16.msra.mxu0 %v5039
        %5324 = vmatprep.subr.bf16.mxu0 0
        %5325 = vmatpush2.bf16.msra.mxu0 %v5038
        %5326 = vmatprep.subr.bf16.mxu0 0
        %5327 = vmatpush2.bf16.msra.mxu0 %v5037
        %5328 = vmatprep.subr.bf16.mxu0 0
        %5329 = vmatpush2.bf16.msra.mxu0 %v5036
        %5330 = vmatprep.subr.bf16.mxu0 0
        %5331 = vmatpush2.bf16.msra.mxu0 %v5035
        %5332 = vmatprep.mubr.bf16.mxu0 %v4495
        %5333 = vmatmul.mubr.bf16.gmra.mxu0 %v4494
        %v5334 = vpop.f32.mrf.mxu0
        %v5335 = vadd.f32 %v5174, %v5334
        %v5336 = vpop.f32.mrf.mxu0
        %v5337 = vpop.f32.mrf.mxu0
        %v5338 = vadd.f32 %v5177, %v5337
        %v5339 = vpop.f32.mrf.mxu0
        %5340 = vmatprep.mubr.bf16.mxu0 %v4503
        %5341 = vmatmul.mubr.bf16.gmra.mxu0 %v4502
        %v5342 = vpop.f32.mrf.mxu0
        %v5343 = vadd.f32 %v5182, %v5342
        %v5344 = vpop.f32.mrf.mxu0
        %v5345 = vpop.f32.mrf.mxu0
        %v5346 = vadd.f32 %v5185, %v5345
        %v5347 = vpop.f32.mrf.mxu0
        %5348 = vmatprep.mubr.bf16.mxu0 %v4511
        %5349 = vmatmul.mubr.bf16.gmra.mxu0 %v4510
        %v5350 = vpop.f32.mrf.mxu0
        %v5351 = vadd.f32 %v5190, %v5350
        %v5352 = vpop.f32.mrf.mxu0
        %v5353 = vpop.f32.mrf.mxu0
        %v5354 = vadd.f32 %v5193, %v5353
        %v5355 = vpop.f32.mrf.mxu0
        %5356 = vmatprep.mubr.bf16.mxu0 %v4519
        %5357 = vmatmul.mubr.bf16.gmra.mxu0 %v4518
        %v5358 = vpop.f32.mrf.mxu0
        %v5359 = vadd.f32 %v5198, %v5358
        %v5360 = vpop.f32.mrf.mxu0
        %v5361 = vpop.f32.mrf.mxu0
        %v5362 = vadd.f32 %v5201, %v5361
        %v5363 = vpop.f32.mrf.mxu0
        %5364 = vmatprep.mubr.bf16.mxu0 %v4527
        %5365 = vmatmul.mubr.bf16.gmra.mxu0 %v4526
        %v5366 = vpop.f32.mrf.mxu0
        %v5367 = vadd.f32 %v5206, %v5366
        %v5368 = vpop.f32.mrf.mxu0
        %v5369 = vpop.f32.mrf.mxu0
        %v5370 = vadd.f32 %v5209, %v5369
        %v5371 = vpop.f32.mrf.mxu0
        %5372 = vmatprep.mubr.bf16.mxu0 %v4535
        %5373 = vmatmul.mubr.bf16.gmra.mxu0 %v4534
        %v5374 = vpop.f32.mrf.mxu0
        %v5375 = vadd.f32 %v5214, %v5374
        %v5376 = vpop.f32.mrf.mxu0
        %v5377 = vpop.f32.mrf.mxu0
        %v5378 = vadd.f32 %v5217, %v5377
        %v5379 = vpop.f32.mrf.mxu0
        %5380 = vmatprep.mubr.bf16.mxu0 %v4543
        %5381 = vmatmul.mubr.bf16.gmra.mxu0 %v4542
        %v5382 = vpop.f32.mrf.mxu0
        %v5383 = vadd.f32 %v5222, %v5382
        %v5384 = vpop.f32.mrf.mxu0
        %v5385 = vpop.f32.mrf.mxu0
        %v5386 = vadd.f32 %v5225, %v5385
        %v5387 = vpop.f32.mrf.mxu0
        %5388 = vmatprep.mubr.bf16.mxu0 %v4551
        %5389 = vmatmul.mubr.bf16.gmra.mxu0 %v4550
        %v5390 = vpop.f32.mrf.mxu0
        %v5391 = vadd.f32 %v5230, %v5390
        %v5392 = vpop.f32.mrf.mxu0
        %v5393 = vpop.f32.mrf.mxu0
        %v5394 = vadd.f32 %v5233, %v5393
        %v5395 = vpop.f32.mrf.mxu0
        %5396 = vmatprep.mubr.bf16.mxu0 %v4559
        %5397 = vmatmul.mubr.bf16.gmra.mxu0 %v4558
        %v5398 = vpop.f32.mrf.mxu0
        %v5399 = vadd.f32 %v5238, %v5398
        %v5400 = vpop.f32.mrf.mxu0
        %v5401 = vpop.f32.mrf.mxu0
        %v5402 = vadd.f32 %v5241, %v5401
        %v5403 = vpop.f32.mrf.mxu0
        %5404 = vmatprep.mubr.bf16.mxu0 %v4567
        %5405 = vmatmul.mubr.bf16.gmra.mxu0 %v4566
        %v5406 = vpop.f32.mrf.mxu0
        %v5407 = vadd.f32 %v5246, %v5406
        %v5408 = vpop.f32.mrf.mxu0
        %v5409 = vpop.f32.mrf.mxu0
        %v5410 = vadd.f32 %v5249, %v5409
        %v5411 = vpop.f32.mrf.mxu0
        %5412 = vmatprep.mubr.bf16.mxu0 %v4575
        %5413 = vmatmul.mubr.bf16.gmra.mxu0 %v4574
        %v5414 = vpop.f32.mrf.mxu0
        %v5415 = vadd.f32 %v5254, %v5414
        %v5416 = vpop.f32.mrf.mxu0
        %v5417 = vpop.f32.mrf.mxu0
        %v5418 = vadd.f32 %v5257, %v5417
        %v5419 = vpop.f32.mrf.mxu0
        %5420 = vmatprep.mubr.bf16.mxu0 %v4583
        %5421 = vmatmul.mubr.bf16.gmra.mxu0 %v4582
        %v5422 = vpop.f32.mrf.mxu0
        %v5423 = vadd.f32 %v5262, %v5422
        %v5424 = vpop.f32.mrf.mxu0
        %v5425 = vpop.f32.mrf.mxu0
        %v5426 = vadd.f32 %v5265, %v5425
        %v5427 = vpop.f32.mrf.mxu0
        %5428 = vmatprep.mubr.bf16.mxu0 %v4591
        %5429 = vmatmul.mubr.bf16.gmra.mxu0 %v4590
        %v5430 = vpop.f32.mrf.mxu0
        %v5431 = vadd.f32 %v5270, %v5430
        %v5432 = vpop.f32.mrf.mxu0
        %v5433 = vpop.f32.mrf.mxu0
        %v5434 = vadd.f32 %v5273, %v5433
        %v5435 = vpop.f32.mrf.mxu0
        %5436 = vmatprep.mubr.bf16.mxu0 %v4599
        %5437 = vmatmul.mubr.bf16.gmra.mxu0 %v4598
        %v5438 = vpop.f32.mrf.mxu0
        %v5439 = vadd.f32 %v5278, %v5438
        %v5440 = vpop.f32.mrf.mxu0
        %v5441 = vpop.f32.mrf.mxu0
        %v5442 = vadd.f32 %v5281, %v5441
        %v5443 = vpop.f32.mrf.mxu0
        %5444 = vmatprep.mubr.bf16.mxu0 %v4607
        %5445 = vmatmul.mubr.bf16.gmra.mxu0 %v4606
        %v5446 = vpop.f32.mrf.mxu0
        %v5447 = vadd.f32 %v5286, %v5446
        %v5448 = vpop.f32.mrf.mxu0
        %v5449 = vpop.f32.mrf.mxu0
        %v5450 = vadd.f32 %v5289, %v5449
        %v5451 = vpop.f32.mrf.mxu0
        %5452 = vmatprep.mubr.bf16.mxu0 %v4615
        %5453 = vmatmul.mubr.bf16.gmra.mxu0 %v4614
        %v5454 = vpop.f32.mrf.mxu0
        %v5455 = vadd.f32 %v5294, %v5454
        %v5456 = vpop.f32.mrf.mxu0
        %v5457 = vpop.f32.mrf.mxu0
        %v5458 = vadd.f32 %v5297, %v5457
        %v5459 = vpop.f32.mrf.mxu0
        %5460 = vdwg.mxu0
        %5461 = vmatprep.subr.bf16.mxu0 0
        %5462 = vmatpush1.bf16.msra.mxu0 %v5050
        %5463 = vmatprep.subr.bf16.mxu0 0
        %5464 = vmatpush1.bf16.msra.mxu0 %v5049
        %5465 = vmatprep.subr.bf16.mxu0 0
        %5466 = vmatpush1.bf16.msra.mxu0 %v5048
        %5467 = vmatprep.subr.bf16.mxu0 0
        %5468 = vmatpush1.bf16.msra.mxu0 %v5047
        %5469 = vmatprep.subr.bf16.mxu0 0
        %5470 = vmatpush1.bf16.msra.mxu0 %v5046
        %5471 = vmatprep.subr.bf16.mxu0 0
        %5472 = vmatpush1.bf16.msra.mxu0 %v5045
        %5473 = vmatprep.subr.bf16.mxu0 0
        %5474 = vmatpush1.bf16.msra.mxu0 %v5044
        %5475 = vmatprep.subr.bf16.mxu0 0
        %5476 = vmatpush1.bf16.msra.mxu0 %v5043
        %5477 = vmatprep.subr.bf16.mxu0 0
        %5478 = vmatpush2.bf16.msra.mxu0 %v5058
        %5479 = vmatprep.subr.bf16.mxu0 0
        %5480 = vmatpush2.bf16.msra.mxu0 %v5057
        %5481 = vmatprep.subr.bf16.mxu0 0
        %5482 = vmatpush2.bf16.msra.mxu0 %v5056
        %5483 = vmatprep.subr.bf16.mxu0 0
        %5484 = vmatpush2.bf16.msra.mxu0 %v5055
        %5485 = vmatprep.subr.bf16.mxu0 0
        %5486 = vmatpush2.bf16.msra.mxu0 %v5054
        %5487 = vmatprep.subr.bf16.mxu0 0
        %5488 = vmatpush2.bf16.msra.mxu0 %v5053
        %5489 = vmatprep.subr.bf16.mxu0 0
        %5490 = vmatpush2.bf16.msra.mxu0 %v5052
        %5491 = vmatprep.subr.bf16.mxu0 0
        %5492 = vmatpush2.bf16.msra.mxu0 %v5051
        %5493 = vmatprep.mubr.bf16.mxu0 %v4497
        %5494 = vmatmul.mubr.bf16.gmra.mxu0 %v4496
        %v5495 = vpop.f32.mrf.mxu0
        %v5496 = vadd.f32 %v5335, %v5495
        %v5497 = vpop.f32.mrf.mxu0
        %v5498 = vpop.f32.mrf.mxu0
        %v5499 = vadd.f32 %v5338, %v5498
        %v5500 = vpop.f32.mrf.mxu0
        %5501 = vmatprep.mubr.bf16.mxu0 %v4505
        %5502 = vmatmul.mubr.bf16.gmra.mxu0 %v4504
        %v5503 = vpop.f32.mrf.mxu0
        %v5504 = vadd.f32 %v5343, %v5503
        %v5505 = vpop.f32.mrf.mxu0
        %v5506 = vpop.f32.mrf.mxu0
        %v5507 = vadd.f32 %v5346, %v5506
        %v5508 = vpop.f32.mrf.mxu0
        %5509 = vmatprep.mubr.bf16.mxu0 %v4513
        %5510 = vmatmul.mubr.bf16.gmra.mxu0 %v4512
        %v5511 = vpop.f32.mrf.mxu0
        %v5512 = vadd.f32 %v5351, %v5511
        %v5513 = vpop.f32.mrf.mxu0
        %v5514 = vpop.f32.mrf.mxu0
        %v5515 = vadd.f32 %v5354, %v5514
        %v5516 = vpop.f32.mrf.mxu0
        %5517 = vmatprep.mubr.bf16.mxu0 %v4521
        %5518 = vmatmul.mubr.bf16.gmra.mxu0 %v4520
        %v5519 = vpop.f32.mrf.mxu0
        %v5520 = vadd.f32 %v5359, %v5519
        %v5521 = vpop.f32.mrf.mxu0
        %v5522 = vpop.f32.mrf.mxu0
        %v5523 = vadd.f32 %v5362, %v5522
        %v5524 = vpop.f32.mrf.mxu0
        %5525 = vmatprep.mubr.bf16.mxu0 %v4529
        %5526 = vmatmul.mubr.bf16.gmra.mxu0 %v4528
        %v5527 = vpop.f32.mrf.mxu0
        %v5528 = vadd.f32 %v5367, %v5527
        %v5529 = vpop.f32.mrf.mxu0
        %v5530 = vpop.f32.mrf.mxu0
        %v5531 = vadd.f32 %v5370, %v5530
        %v5532 = vpop.f32.mrf.mxu0
        %5533 = vmatprep.mubr.bf16.mxu0 %v4537
        %5534 = vmatmul.mubr.bf16.gmra.mxu0 %v4536
        %v5535 = vpop.f32.mrf.mxu0
        %v5536 = vadd.f32 %v5375, %v5535
        %v5537 = vpop.f32.mrf.mxu0
        %v5538 = vpop.f32.mrf.mxu0
        %v5539 = vadd.f32 %v5378, %v5538
        %v5540 = vpop.f32.mrf.mxu0
        %5541 = vmatprep.mubr.bf16.mxu0 %v4545
        %5542 = vmatmul.mubr.bf16.gmra.mxu0 %v4544
        %v5543 = vpop.f32.mrf.mxu0
        %v5544 = vadd.f32 %v5383, %v5543
        %v5545 = vpop.f32.mrf.mxu0
        %v5546 = vpop.f32.mrf.mxu0
        %v5547 = vadd.f32 %v5386, %v5546
        %v5548 = vpop.f32.mrf.mxu0
        %5549 = vmatprep.mubr.bf16.mxu0 %v4553
        %5550 = vmatmul.mubr.bf16.gmra.mxu0 %v4552
        %v5551 = vpop.f32.mrf.mxu0
        %v5552 = vadd.f32 %v5391, %v5551
        %v5553 = vpop.f32.mrf.mxu0
        %v5554 = vpop.f32.mrf.mxu0
        %v5555 = vadd.f32 %v5394, %v5554
        %v5556 = vpop.f32.mrf.mxu0
        %5557 = vmatprep.mubr.bf16.mxu0 %v4561
        %5558 = vmatmul.mubr.bf16.gmra.mxu0 %v4560
        %v5559 = vpop.f32.mrf.mxu0
        %v5560 = vadd.f32 %v5399, %v5559
        %v5561 = vpop.f32.mrf.mxu0
        %v5562 = vpop.f32.mrf.mxu0
        %v5563 = vadd.f32 %v5402, %v5562
        %v5564 = vpop.f32.mrf.mxu0
        %5565 = vmatprep.mubr.bf16.mxu0 %v4569
        %5566 = vmatmul.mubr.bf16.gmra.mxu0 %v4568
        %v5567 = vpop.f32.mrf.mxu0
        %v5568 = vadd.f32 %v5407, %v5567
        %v5569 = vpop.f32.mrf.mxu0
        %v5570 = vpop.f32.mrf.mxu0
        %v5571 = vadd.f32 %v5410, %v5570
        %v5572 = vpop.f32.mrf.mxu0
        %5573 = vmatprep.mubr.bf16.mxu0 %v4577
        %5574 = vmatmul.mubr.bf16.gmra.mxu0 %v4576
        %v5575 = vpop.f32.mrf.mxu0
        %v5576 = vadd.f32 %v5415, %v5575
        %v5577 = vpop.f32.mrf.mxu0
        %v5578 = vpop.f32.mrf.mxu0
        %v5579 = vadd.f32 %v5418, %v5578
        %v5580 = vpop.f32.mrf.mxu0
        %5581 = vmatprep.mubr.bf16.mxu0 %v4585
        %5582 = vmatmul.mubr.bf16.gmra.mxu0 %v4584
        %v5583 = vpop.f32.mrf.mxu0
        %v5584 = vadd.f32 %v5423, %v5583
        %v5585 = vpop.f32.mrf.mxu0
        %v5586 = vpop.f32.mrf.mxu0
        %v5587 = vadd.f32 %v5426, %v5586
        %v5588 = vpop.f32.mrf.mxu0
        %5589 = vmatprep.mubr.bf16.mxu0 %v4593
        %5590 = vmatmul.mubr.bf16.gmra.mxu0 %v4592
        %v5591 = vpop.f32.mrf.mxu0
        %v5592 = vadd.f32 %v5431, %v5591
        %v5593 = vpop.f32.mrf.mxu0
        %v5594 = vpop.f32.mrf.mxu0
        %v5595 = vadd.f32 %v5434, %v5594
        %v5596 = vpop.f32.mrf.mxu0
        %5597 = vmatprep.mubr.bf16.mxu0 %v4601
        %5598 = vmatmul.mubr.bf16.gmra.mxu0 %v4600
        %v5599 = vpop.f32.mrf.mxu0
        %v5600 = vadd.f32 %v5439, %v5599
        %v5601 = vpop.f32.mrf.mxu0
        %v5602 = vpop.f32.mrf.mxu0
        %v5603 = vadd.f32 %v5442, %v5602
        %v5604 = vpop.f32.mrf.mxu0
        %5605 = vmatprep.mubr.bf16.mxu0 %v4609
        %5606 = vmatmul.mubr.bf16.gmra.mxu0 %v4608
        %v5607 = vpop.f32.mrf.mxu0
        %v5608 = vadd.f32 %v5447, %v5607
        %v5609 = vpop.f32.mrf.mxu0
        %v5610 = vpop.f32.mrf.mxu0
        %v5611 = vadd.f32 %v5450, %v5610
        %v5612 = vpop.f32.mrf.mxu0
        %5613 = vmatprep.mubr.bf16.mxu0 %v4617
        %5614 = vmatmul.mubr.bf16.gmra.mxu0 %v4616
        %v5615 = vpop.f32.mrf.mxu0
        %v5616 = vadd.f32 %v5455, %v5615
        %v5617 = vpop.f32.mrf.mxu0
        %v5618 = vpop.f32.mrf.mxu0
        %v5619 = vadd.f32 %v5458, %v5618
        %v5620 = vpop.f32.mrf.mxu0
        %5621 = vdwg.mxu0
        %5622 = vmatprep.subr.bf16.mxu0 0
        %5623 = vmatpush1.bf16.msra.mxu0 %v5066
        %5624 = vmatprep.subr.bf16.mxu0 0
        %5625 = vmatpush1.bf16.msra.mxu0 %v5065
        %5626 = vmatprep.subr.bf16.mxu0 0
        %5627 = vmatpush1.bf16.msra.mxu0 %v5064
        %5628 = vmatprep.subr.bf16.mxu0 0
        %5629 = vmatpush1.bf16.msra.mxu0 %v5063
        %5630 = vmatprep.subr.bf16.mxu0 0
        %5631 = vmatpush1.bf16.msra.mxu0 %v5062
        %5632 = vmatprep.subr.bf16.mxu0 0
        %5633 = vmatpush1.bf16.msra.mxu0 %v5061
        %5634 = vmatprep.subr.bf16.mxu0 0
        %5635 = vmatpush1.bf16.msra.mxu0 %v5060
        %5636 = vmatprep.subr.bf16.mxu0 0
        %5637 = vmatpush1.bf16.msra.mxu0 %v5059
        %5638 = vmatprep.subr.bf16.mxu0 0
        %5639 = vmatpush2.bf16.msra.mxu0 %v5074
        %5640 = vmatprep.subr.bf16.mxu0 0
        %5641 = vmatpush2.bf16.msra.mxu0 %v5073
        %5642 = vmatprep.subr.bf16.mxu0 0
        %5643 = vmatpush2.bf16.msra.mxu0 %v5072
        %5644 = vmatprep.subr.bf16.mxu0 0
        %5645 = vmatpush2.bf16.msra.mxu0 %v5071
        %5646 = vmatprep.subr.bf16.mxu0 0
        %5647 = vmatpush2.bf16.msra.mxu0 %v5070
        %5648 = vmatprep.subr.bf16.mxu0 0
        %5649 = vmatpush2.bf16.msra.mxu0 %v5069
        %5650 = vmatprep.subr.bf16.mxu0 0
        %5651 = vmatpush2.bf16.msra.mxu0 %v5068
        %5652 = vmatprep.subr.bf16.mxu0 0
        %5653 = vmatpush2.bf16.msra.mxu0 %v5067
        %5654 = vmatprep.mubr.bf16.mxu0 %v4499
        %5655 = vmatmul.mubr.bf16.gmra.mxu0 %v4498
        %v5656 = vpop.f32.mrf.mxu0
        %v5657 = vadd.f32 %v5496, %v5656
        %v5658 = vpop.f32.mrf.mxu0
        %v5659 = vpop.f32.mrf.mxu0
        %v5660 = vadd.f32 %v5499, %v5659
        %v5661 = vpop.f32.mrf.mxu0
        %5662 = vmatprep.mubr.bf16.mxu0 %v4507
        %5663 = vmatmul.mubr.bf16.gmra.mxu0 %v4506
        %v5664 = vpop.f32.mrf.mxu0
        %v5665 = vadd.f32 %v5504, %v5664
        %v5666 = vpop.f32.mrf.mxu0
        %v5667 = vpop.f32.mrf.mxu0
        %v5668 = vadd.f32 %v5507, %v5667
        %v5669 = vpop.f32.mrf.mxu0
        %5670 = vmatprep.mubr.bf16.mxu0 %v4515
        %5671 = vmatmul.mubr.bf16.gmra.mxu0 %v4514
        %v5672 = vpop.f32.mrf.mxu0
        %v5673 = vadd.f32 %v5512, %v5672
        %v5674 = vpop.f32.mrf.mxu0
        %v5675 = vpop.f32.mrf.mxu0
        %v5676 = vadd.f32 %v5515, %v5675
        %v5677 = vpop.f32.mrf.mxu0
        %5678 = vmatprep.mubr.bf16.mxu0 %v4523
        %5679 = vmatmul.mubr.bf16.gmra.mxu0 %v4522
        %v5680 = vpop.f32.mrf.mxu0
        %v5681 = vadd.f32 %v5520, %v5680
        %v5682 = vpop.f32.mrf.mxu0
        %v5683 = vpop.f32.mrf.mxu0
        %v5684 = vadd.f32 %v5523, %v5683
        %v5685 = vpop.f32.mrf.mxu0
        %5686 = vmatprep.mubr.bf16.mxu0 %v4531
        %5687 = vmatmul.mubr.bf16.gmra.mxu0 %v4530
        %v5688 = vpop.f32.mrf.mxu0
        %v5689 = vadd.f32 %v5528, %v5688
        %v5690 = vpop.f32.mrf.mxu0
        %v5691 = vpop.f32.mrf.mxu0
        %v5692 = vadd.f32 %v5531, %v5691
        %v5693 = vpop.f32.mrf.mxu0
        %5694 = vmatprep.mubr.bf16.mxu0 %v4539
        %5695 = vmatmul.mubr.bf16.gmra.mxu0 %v4538
        %v5696 = vpop.f32.mrf.mxu0
        %v5697 = vadd.f32 %v5536, %v5696
        %v5698 = vpop.f32.mrf.mxu0
        %v5699 = vpop.f32.mrf.mxu0
        %v5700 = vadd.f32 %v5539, %v5699
        %v5701 = vpop.f32.mrf.mxu0
        %5702 = vmatprep.mubr.bf16.mxu0 %v4547
        %5703 = vmatmul.mubr.bf16.gmra.mxu0 %v4546
        %v5704 = vpop.f32.mrf.mxu0
        %v5705 = vadd.f32 %v5544, %v5704
        %v5706 = vpop.f32.mrf.mxu0
        %v5707 = vpop.f32.mrf.mxu0
        %v5708 = vadd.f32 %v5547, %v5707
        %v5709 = vpop.f32.mrf.mxu0
        %5710 = vmatprep.mubr.bf16.mxu0 %v4555
        %5711 = vmatmul.mubr.bf16.gmra.mxu0 %v4554
        %v5712 = vpop.f32.mrf.mxu0
        %v5713 = vadd.f32 %v5552, %v5712
        %v5714 = vpop.f32.mrf.mxu0
        %v5715 = vpop.f32.mrf.mxu0
        %v5716 = vadd.f32 %v5555, %v5715
        %v5717 = vpop.f32.mrf.mxu0
        %5718 = vmatprep.mubr.bf16.mxu0 %v4563
        %5719 = vmatmul.mubr.bf16.gmra.mxu0 %v4562
        %v5720 = vpop.f32.mrf.mxu0
        %v5721 = vadd.f32 %v5560, %v5720
        %v5722 = vpop.f32.mrf.mxu0
        %v5723 = vpop.f32.mrf.mxu0
        %v5724 = vadd.f32 %v5563, %v5723
        %v5725 = vpop.f32.mrf.mxu0
        %5726 = vmatprep.mubr.bf16.mxu0 %v4571
        %5727 = vmatmul.mubr.bf16.gmra.mxu0 %v4570
        %v5728 = vpop.f32.mrf.mxu0
        %v5729 = vadd.f32 %v5568, %v5728
        %v5730 = vpop.f32.mrf.mxu0
        %v5731 = vpop.f32.mrf.mxu0
        %v5732 = vadd.f32 %v5571, %v5731
        %v5733 = vpop.f32.mrf.mxu0
        %5734 = vmatprep.mubr.bf16.mxu0 %v4579
        %5735 = vmatmul.mubr.bf16.gmra.mxu0 %v4578
        %v5736 = vpop.f32.mrf.mxu0
        %v5737 = vadd.f32 %v5576, %v5736
        %v5738 = vpop.f32.mrf.mxu0
        %v5739 = vpop.f32.mrf.mxu0
        %v5740 = vadd.f32 %v5579, %v5739
        %v5741 = vpop.f32.mrf.mxu0
        %5742 = vmatprep.mubr.bf16.mxu0 %v4587
        %5743 = vmatmul.mubr.bf16.gmra.mxu0 %v4586
        %v5744 = vpop.f32.mrf.mxu0
        %v5745 = vadd.f32 %v5584, %v5744
        %v5746 = vpop.f32.mrf.mxu0
        %v5747 = vpop.f32.mrf.mxu0
        %v5748 = vadd.f32 %v5587, %v5747
        %v5749 = vpop.f32.mrf.mxu0
        %5750 = vmatprep.mubr.bf16.mxu0 %v4595
        %5751 = vmatmul.mubr.bf16.gmra.mxu0 %v4594
        %v5752 = vpop.f32.mrf.mxu0
        %v5753 = vadd.f32 %v5592, %v5752
        %v5754 = vpop.f32.mrf.mxu0
        %v5755 = vpop.f32.mrf.mxu0
        %v5756 = vadd.f32 %v5595, %v5755
        %v5757 = vpop.f32.mrf.mxu0
        %5758 = vmatprep.mubr.bf16.mxu0 %v4603
        %5759 = vmatmul.mubr.bf16.gmra.mxu0 %v4602
        %v5760 = vpop.f32.mrf.mxu0
        %v5761 = vadd.f32 %v5600, %v5760
        %v5762 = vpop.f32.mrf.mxu0
        %v5763 = vpop.f32.mrf.mxu0
        %v5764 = vadd.f32 %v5603, %v5763
        %v5765 = vpop.f32.mrf.mxu0
        %5766 = vmatprep.mubr.bf16.mxu0 %v4611
        %5767 = vmatmul.mubr.bf16.gmra.mxu0 %v4610
        %v5768 = vpop.f32.mrf.mxu0
        %v5769 = vadd.f32 %v5608, %v5768
        %v5770 = vpop.f32.mrf.mxu0
        %v5771 = vpop.f32.mrf.mxu0
        %v5772 = vadd.f32 %v5611, %v5771
        %v5773 = vpop.f32.mrf.mxu0
        %5774 = vmatprep.mubr.bf16.mxu0 %v4619
        %5775 = vmatmul.mubr.bf16.gmra.mxu0 %v4618
        %v5776 = vpop.f32.mrf.mxu0
        %v5777 = vadd.f32 %v5616, %v5776
        %v5778 = vpop.f32.mrf.mxu0
        %v5779 = vpop.f32.mrf.mxu0
        %v5780 = vadd.f32 %v5619, %v5779
        %v5781 = vpop.f32.mrf.mxu0
        %5782 = vdwg.mxu0
        %v5783 = vmax.f32 %v5657, 0.0
        %v5784 = vmax.f32 %v5660, 0.0
        %v5785 = vmax.f32 %v5665, 0.0
        %v5786 = vmax.f32 %v5668, 0.0
        %v5787 = vmax.f32 %v5673, 0.0
        %v5788 = vmax.f32 %v5676, 0.0
        %v5789 = vmax.f32 %v5681, 0.0
        %v5790 = vmax.f32 %v5684, 0.0
        %v5791 = vmax.f32 %v5689, 0.0
        %v5792 = vmax.f32 %v5692, 0.0
        %v5793 = vmax.f32 %v5697, 0.0
        %v5794 = vmax.f32 %v5700, 0.0
        %v5795 = vmax.f32 %v5705, 0.0
        %v5796 = vmax.f32 %v5708, 0.0
        %v5797 = vmax.f32 %v5713, 0.0
        %v5798 = vmax.f32 %v5716, 0.0
        %v5799 = vmax.f32 %v5721, 0.0
        %v5800 = vmax.f32 %v5724, 0.0
        %v5801 = vmax.f32 %v5729, 0.0
        %v5802 = vmax.f32 %v5732, 0.0
        %v5803 = vmax.f32 %v5737, 0.0
        %v5804 = vmax.f32 %v5740, 0.0
        %v5805 = vmax.f32 %v5745, 0.0
        %v5806 = vmax.f32 %v5748, 0.0
        %v5807 = vmax.f32 %v5753, 0.0
        %v5808 = vmax.f32 %v5756, 0.0
        %v5809 = vmax.f32 %v5761, 0.0
        %v5810 = vmax.f32 %v5764, 0.0
        %v5811 = vmax.f32 %v5769, 0.0
        %v5812 = vmax.f32 %v5772, 0.0
        %v5813 = vmax.f32 %v5777, 0.0
        %v5814 = vmax.f32 %v5780, 0.0
        %v5815 = vpack.c.bf16 %v5784, %v5783
        %v5816 = vpack.c.bf16 %v5786, %v5785
        %v5817 = vpack.c.bf16 %v5788, %v5787
        %v5818 = vpack.c.bf16 %v5790, %v5789
        %v5819 = vpack.c.bf16 %v5792, %v5791
        %v5820 = vpack.c.bf16 %v5794, %v5793
        %v5821 = vpack.c.bf16 %v5796, %v5795
        %v5822 = vpack.c.bf16 %v5798, %v5797
        %v5823 = vpack.c.bf16 %v5800, %v5799
        %v5824 = vpack.c.bf16 %v5802, %v5801
        %v5825 = vpack.c.bf16 %v5804, %v5803
        %v5826 = vpack.c.bf16 %v5806, %v5805
        %v5827 = vpack.c.bf16 %v5808, %v5807
        %v5828 = vpack.c.bf16 %v5810, %v5809
        %v5829 = vpack.c.bf16 %v5812, %v5811
        %v5830 = vpack.c.bf16 %v5814, %v5813
        %v5831 = vld [vmem:[%s3] sm:$0xff]
        %v5832 = vld [vmem:[%s3 + $0x8] sm:$0xff]
        %v5833 = vld [vmem:[%s3 + $0x10] sm:$0xff]
        %v5834 = vld [vmem:[%s3 + $0x18] sm:$0xff]
        %v5835 = vld [vmem:[%s3 + $0x20] sm:$0xff]
        %v5836 = vld [vmem:[%s3 + $0x28] sm:$0xff]
        %v5837 = vld [vmem:[%s3 + $0x30] sm:$0xff]
        %v5838 = vld [vmem:[%s3 + $0x38] sm:$0xff]
        %v5839 = vld [vmem:[%s3 + $0x40] sm:$0xff]
        %v5840 = vld [vmem:[%s3 + $0x48] sm:$0xff]
        %v5841 = vld [vmem:[%s3 + $0x50] sm:$0xff]
        %v5842 = vld [vmem:[%s3 + $0x58] sm:$0xff]
        %v5843 = vld [vmem:[%s3 + $0x60] sm:$0xff]
        %v5844 = vld [vmem:[%s3 + $0x68] sm:$0xff]
        %v5845 = vld [vmem:[%s3 + $0x70] sm:$0xff]
        %v5846 = vld [vmem:[%s3 + $0x78] sm:$0xff]
        %v5847 = vld [vmem:[%s4] sm:$0x3]
        %v5849 = vlaneseq
        %v5850 = vshrl.u32 %v5849, 7
        %v5851 = vsub.s32 0, %v5850
        %v5852 = vrot.slane %v5847, %v5851
        %v5853 = vlaneseq
        %v5854 = vshrl.u32 %v5853, 7
        %v5855 = vsub.s32 1, %v5854
        %v5856 = vrot.slane %v5847, %v5855
        %v5875 = vunpack.c.l.b16 %v5831
        %v5876 = vunpack.c.h.b16 %v5831
        %v5877 = vunpack.c.l.b16 %v5832
        %v5878 = vunpack.c.h.b16 %v5832
        %v5879 = vunpack.c.l.b16 %v5833
        %v5880 = vunpack.c.h.b16 %v5833
        %v5881 = vunpack.c.l.b16 %v5834
        %v5882 = vunpack.c.h.b16 %v5834
        %v5883 = vunpack.c.l.b16 %v5835
        %v5884 = vunpack.c.h.b16 %v5835
        %v5885 = vunpack.c.l.b16 %v5836
        %v5886 = vunpack.c.h.b16 %v5836
        %v5887 = vunpack.c.l.b16 %v5837
        %v5888 = vunpack.c.h.b16 %v5837
        %v5889 = vunpack.c.l.b16 %v5838
        %v5890 = vunpack.c.h.b16 %v5838
        %v5891 = vunpack.c.l.b16 %v5839
        %v5892 = vunpack.c.h.b16 %v5839
        %v5893 = vunpack.c.l.b16 %v5840
        %v5894 = vunpack.c.h.b16 %v5840
        %v5895 = vunpack.c.l.b16 %v5841
        %v5896 = vunpack.c.h.b16 %v5841
        %v5897 = vunpack.c.l.b16 %v5842
        %v5898 = vunpack.c.h.b16 %v5842
        %v5899 = vunpack.c.l.b16 %v5843
        %v5900 = vunpack.c.h.b16 %v5843
        %v5901 = vunpack.c.l.b16 %v5844
        %v5902 = vunpack.c.h.b16 %v5844
        %v5903 = vunpack.c.l.b16 %v5845
        %v5904 = vunpack.c.h.b16 %v5845
        %v5905 = vunpack.c.l.b16 %v5846
        %v5906 = vunpack.c.h.b16 %v5846
        %v5907 = vpack.c.b16 %v5877, %v5875
        %v5908 = vpack.c.b16 %v5878, %v5876
        %v5909 = vpack.c.b16 %v5881, %v5879
        %v5910 = vpack.c.b16 %v5882, %v5880
        %v5911 = vpack.c.b16 %v5885, %v5883
        %v5912 = vpack.c.b16 %v5886, %v5884
        %v5913 = vpack.c.b16 %v5889, %v5887
        %v5914 = vpack.c.b16 %v5890, %v5888
        %v5915 = vpack.c.b16 %v5893, %v5891
        %v5916 = vpack.c.b16 %v5894, %v5892
        %v5917 = vpack.c.b16 %v5897, %v5895
        %v5918 = vpack.c.b16 %v5898, %v5896
        %v5919 = vpack.c.b16 %v5901, %v5899
        %v5920 = vpack.c.b16 %v5902, %v5900
        %v5921 = vpack.c.b16 %v5905, %v5903
        %v5922 = vpack.c.b16 %v5906, %v5904
        %5939 = vmatprep.subr.bf16.mxu0 %v5922
        %5940 = vmatpush1.bf16.msra.mxu0 %v5921
        %5941 = vmatprep.subr.bf16.mxu0 %v5920
        %5942 = vmatpush1.bf16.msra.mxu0 %v5919
        %5943 = vmatprep.subr.bf16.mxu0 %v5918
        %5944 = vmatpush1.bf16.msra.mxu0 %v5917
        %5945 = vmatprep.subr.bf16.mxu0 %v5916
        %5946 = vmatpush1.bf16.msra.mxu0 %v5915
        %5947 = vmatprep.subr.bf16.mxu0 %v5914
        %5948 = vmatpush1.bf16.msra.mxu0 %v5913
        %5949 = vmatprep.subr.bf16.mxu0 %v5912
        %5950 = vmatpush1.bf16.msra.mxu0 %v5911
        %5951 = vmatprep.subr.bf16.mxu0 %v5910
        %5952 = vmatpush1.bf16.msra.mxu0 %v5909
        %5953 = vmatprep.subr.bf16.mxu0 %v5908
        %5954 = vmatpush1.bf16.msra.mxu0 %v5907
        %5955 = vmatprep.subr.bf16.mxu0 0
        %5956 = vmatpush2.bf16.msra.mxu0 0
        %5957 = vmatprep.subr.bf16.mxu0 0
        %5958 = vmatpush2.bf16.msra.mxu0 0
        %5959 = vmatprep.subr.bf16.mxu0 0
        %5960 = vmatpush2.bf16.msra.mxu0 0
        %5961 = vmatprep.subr.bf16.mxu0 0
        %5962 = vmatpush2.bf16.msra.mxu0 0
        %5963 = vmatprep.subr.bf16.mxu0 0
        %5964 = vmatpush2.bf16.msra.mxu0 0
        %5965 = vmatprep.subr.bf16.mxu0 0
        %5966 = vmatpush2.bf16.msra.mxu0 0
        %5967 = vmatprep.subr.bf16.mxu0 0
        %5968 = vmatpush2.bf16.msra.mxu0 0
        %5969 = vmatprep.subr.bf16.mxu0 0
        %5970 = vmatpush2.bf16.msra.mxu0 0
        %5971 = vmatprep.mubr.bf16.mxu0 0
        %5972 = vmatmul.mubr.bf16.gmra.mxu0 %v5815
        %v5973 = vpop.f32.mrf.mxu0
        %v5974 = vadd.f32 %v5852, %v5973
        %v5975 = vpop.f32.mrf.mxu0
        %v5976 = vadd.f32 %v5856, %v5975
        %v5977 = vpop.f32.mrf.mxu0
        %v5978 = vadd.f32 %v5852, %v5977
        %v5979 = vpop.f32.mrf.mxu0
        %v5980 = vadd.f32 %v5856, %v5979
        %5981 = vmatprep.mubr.bf16.mxu0 0
        %5982 = vmatmul.mubr.bf16.gmra.mxu0 %v5816
        %v5983 = vpop.f32.mrf.mxu0
        %v5984 = vadd.f32 %v5852, %v5983
        %v5985 = vpop.f32.mrf.mxu0
        %v5986 = vadd.f32 %v5856, %v5985
        %v5987 = vpop.f32.mrf.mxu0
        %v5988 = vadd.f32 %v5852, %v5987
        %v5989 = vpop.f32.mrf.mxu0
        %v5990 = vadd.f32 %v5856, %v5989
        %5991 = vmatprep.mubr.bf16.mxu0 0
        %5992 = vmatmul.mubr.bf16.gmra.mxu0 %v5817
        %v5993 = vpop.f32.mrf.mxu0
        %v5994 = vadd.f32 %v5852, %v5993
        %v5995 = vpop.f32.mrf.mxu0
        %v5996 = vadd.f32 %v5856, %v5995
        %v5997 = vpop.f32.mrf.mxu0
        %v5998 = vadd.f32 %v5852, %v5997
        %v5999 = vpop.f32.mrf.mxu0
        %v6000 = vadd.f32 %v5856, %v5999
        %6001 = vmatprep.mubr.bf16.mxu0 0
        %6002 = vmatmul.mubr.bf16.gmra.mxu0 %v5818
        %v6003 = vpop.f32.mrf.mxu0
        %v6004 = vadd.f32 %v5852, %v6003
        %v6005 = vpop.f32.mrf.mxu0
        %v6006 = vadd.f32 %v5856, %v6005
        %v6007 = vpop.f32.mrf.mxu0
        %v6008 = vadd.f32 %v5852, %v6007
        %v6009 = vpop.f32.mrf.mxu0
        %v6010 = vadd.f32 %v5856, %v6009
        %6011 = vmatprep.mubr.bf16.mxu0 0
        %6012 = vmatmul.mubr.bf16.gmra.mxu0 %v5819
        %v6013 = vpop.f32.mrf.mxu0
        %v6014 = vadd.f32 %v5852, %v6013
        %v6015 = vpop.f32.mrf.mxu0
        %v6016 = vadd.f32 %v5856, %v6015
        %v6017 = vpop.f32.mrf.mxu0
        %v6018 = vadd.f32 %v5852, %v6017
        %v6019 = vpop.f32.mrf.mxu0
        %v6020 = vadd.f32 %v5856, %v6019
        %6021 = vmatprep.mubr.bf16.mxu0 0
        %6022 = vmatmul.mubr.bf16.gmra.mxu0 %v5820
        %v6023 = vpop.f32.mrf.mxu0
        %v6024 = vadd.f32 %v5852, %v6023
        %v6025 = vpop.f32.mrf.mxu0
        %v6026 = vadd.f32 %v5856, %v6025
        %v6027 = vpop.f32.mrf.mxu0
        %v6028 = vadd.f32 %v5852, %v6027
        %v6029 = vpop.f32.mrf.mxu0
        %v6030 = vadd.f32 %v5856, %v6029
        %6031 = vmatprep.mubr.bf16.mxu0 0
        %6032 = vmatmul.mubr.bf16.gmra.mxu0 %v5821
        %v6033 = vpop.f32.mrf.mxu0
        %v6034 = vadd.f32 %v5852, %v6033
        %v6035 = vpop.f32.mrf.mxu0
        %v6036 = vadd.f32 %v5856, %v6035
        %v6037 = vpop.f32.mrf.mxu0
        %v6038 = vadd.f32 %v5852, %v6037
        %v6039 = vpop.f32.mrf.mxu0
        %v6040 = vadd.f32 %v5856, %v6039
        %6041 = vmatprep.mubr.bf16.mxu0 0
        %6042 = vmatmul.mubr.bf16.gmra.mxu0 %v5822
        %v6043 = vpop.f32.mrf.mxu0
        %v6044 = vadd.f32 %v5852, %v6043
        %v6045 = vpop.f32.mrf.mxu0
        %v6046 = vadd.f32 %v5856, %v6045
        %v6047 = vpop.f32.mrf.mxu0
        %v6048 = vadd.f32 %v5852, %v6047
        %v6049 = vpop.f32.mrf.mxu0
        %v6050 = vadd.f32 %v5856, %v6049
        %6051 = vmatprep.mubr.bf16.mxu0 0
        %6052 = vmatmul.mubr.bf16.gmra.mxu0 %v5823
        %v6053 = vpop.f32.mrf.mxu0
        %v6054 = vadd.f32 %v5852, %v6053
        %v6055 = vpop.f32.mrf.mxu0
        %v6056 = vadd.f32 %v5856, %v6055
        %v6057 = vpop.f32.mrf.mxu0
        %v6058 = vadd.f32 %v5852, %v6057
        %v6059 = vpop.f32.mrf.mxu0
        %v6060 = vadd.f32 %v5856, %v6059
        %6061 = vmatprep.mubr.bf16.mxu0 0
        %6062 = vmatmul.mubr.bf16.gmra.mxu0 %v5824
        %v6063 = vpop.f32.mrf.mxu0
        %v6064 = vadd.f32 %v5852, %v6063
        %v6065 = vpop.f32.mrf.mxu0
        %v6066 = vadd.f32 %v5856, %v6065
        %v6067 = vpop.f32.mrf.mxu0
        %v6068 = vadd.f32 %v5852, %v6067
        %v6069 = vpop.f32.mrf.mxu0
        %v6070 = vadd.f32 %v5856, %v6069
        %6071 = vmatprep.mubr.bf16.mxu0 0
        %6072 = vmatmul.mubr.bf16.gmra.mxu0 %v5825
        %v6073 = vpop.f32.mrf.mxu0
        %v6074 = vadd.f32 %v5852, %v6073
        %v6075 = vpop.f32.mrf.mxu0
        %v6076 = vadd.f32 %v5856, %v6075
        %v6077 = vpop.f32.mrf.mxu0
        %v6078 = vadd.f32 %v5852, %v6077
        %v6079 = vpop.f32.mrf.mxu0
        %v6080 = vadd.f32 %v5856, %v6079
        %6081 = vmatprep.mubr.bf16.mxu0 0
        %6082 = vmatmul.mubr.bf16.gmra.mxu0 %v5826
        %v6083 = vpop.f32.mrf.mxu0
        %v6084 = vadd.f32 %v5852, %v6083
        %v6085 = vpop.f32.mrf.mxu0
        %v6086 = vadd.f32 %v5856, %v6085
        %v6087 = vpop.f32.mrf.mxu0
        %v6088 = vadd.f32 %v5852, %v6087
        %v6089 = vpop.f32.mrf.mxu0
        %v6090 = vadd.f32 %v5856, %v6089
        %6091 = vmatprep.mubr.bf16.mxu0 0
        %6092 = vmatmul.mubr.bf16.gmra.mxu0 %v5827
        %v6093 = vpop.f32.mrf.mxu0
        %v6094 = vadd.f32 %v5852, %v6093
        %v6095 = vpop.f32.mrf.mxu0
        %v6096 = vadd.f32 %v5856, %v6095
        %v6097 = vpop.f32.mrf.mxu0
        %v6098 = vadd.f32 %v5852, %v6097
        %v6099 = vpop.f32.mrf.mxu0
        %v6100 = vadd.f32 %v5856, %v6099
        %6101 = vmatprep.mubr.bf16.mxu0 0
        %6102 = vmatmul.mubr.bf16.gmra.mxu0 %v5828
        %v6103 = vpop.f32.mrf.mxu0
        %v6104 = vadd.f32 %v5852, %v6103
        %v6105 = vpop.f32.mrf.mxu0
        %v6106 = vadd.f32 %v5856, %v6105
        %v6107 = vpop.f32.mrf.mxu0
        %v6108 = vadd.f32 %v5852, %v6107
        %v6109 = vpop.f32.mrf.mxu0
        %v6110 = vadd.f32 %v5856, %v6109
        %6111 = vmatprep.mubr.bf16.mxu0 0
        %6112 = vmatmul.mubr.bf16.gmra.mxu0 %v5829
        %v6113 = vpop.f32.mrf.mxu0
        %v6114 = vadd.f32 %v5852, %v6113
        %v6115 = vpop.f32.mrf.mxu0
        %v6116 = vadd.f32 %v5856, %v6115
        %v6117 = vpop.f32.mrf.mxu0
        %v6118 = vadd.f32 %v5852, %v6117
        %v6119 = vpop.f32.mrf.mxu0
        %v6120 = vadd.f32 %v5856, %v6119
        %6121 = vmatprep.mubr.bf16.mxu0 0
        %6122 = vmatmul.mubr.bf16.gmra.mxu0 %v5830
        %v6123 = vpop.f32.mrf.mxu0
        %v6124 = vadd.f32 %v5852, %v6123
        %v6125 = vpop.f32.mrf.mxu0
        %v6126 = vadd.f32 %v5856, %v6125
        %v6127 = vpop.f32.mrf.mxu0
        %v6128 = vadd.f32 %v5852, %v6127
        %v6129 = vpop.f32.mrf.mxu0
        %v6130 = vadd.f32 %v5856, %v6129
        %6131 = vdwg.mxu0
        %v6132 = vmax.f32 %v5974, %v5976
        %6133 = vmax.xlane.f32.xlu0 %v6132
        %v6134 = vpop.xlane.xlu0 %6133
        %v6135 = vmax.f32 %v5978, %v5980
        %6136 = vmax.xlane.f32.xlu0 %v6135
        %v6137 = vpop.xlane.xlu0 %6136
        %v6138 = vmax.f32 %v5984, %v5986
        %6139 = vmax.xlane.f32.xlu0 %v6138
        %v6140 = vpop.xlane.xlu0 %6139
        %v6141 = vmax.f32 %v5988, %v5990
        %6142 = vmax.xlane.f32.xlu0 %v6141
        %v6143 = vpop.xlane.xlu0 %6142
        %v6144 = vmax.f32 %v5994, %v5996
        %6145 = vmax.xlane.f32.xlu0 %v6144
        %v6146 = vpop.xlane.xlu0 %6145
        %v6147 = vmax.f32 %v5998, %v6000
        %6148 = vmax.xlane.f32.xlu0 %v6147
        %v6149 = vpop.xlane.xlu0 %6148
        %v6150 = vmax.f32 %v6004, %v6006
        %6151 = vmax.xlane.f32.xlu0 %v6150
        %v6152 = vpop.xlane.xlu0 %6151
        %v6153 = vmax.f32 %v6008, %v6010
        %6154 = vmax.xlane.f32.xlu0 %v6153
        %v6155 = vpop.xlane.xlu0 %6154
        %v6156 = vmax.f32 %v6014, %v6016
        %6157 = vmax.xlane.f32.xlu0 %v6156
        %v6158 = vpop.xlane.xlu0 %6157
        %v6159 = vmax.f32 %v6018, %v6020
        %6160 = vmax.xlane.f32.xlu0 %v6159
        %v6161 = vpop.xlane.xlu0 %6160
        %v6162 = vmax.f32 %v6024, %v6026
        %6163 = vmax.xlane.f32.xlu0 %v6162
        %v6164 = vpop.xlane.xlu0 %6163
        %v6165 = vmax.f32 %v6028, %v6030
        %6166 = vmax.xlane.f32.xlu0 %v6165
        %v6167 = vpop.xlane.xlu0 %6166
        %v6168 = vmax.f32 %v6034, %v6036
        %6169 = vmax.xlane.f32.xlu0 %v6168
        %v6170 = vpop.xlane.xlu0 %6169
        %v6171 = vmax.f32 %v6038, %v6040
        %6172 = vmax.xlane.f32.xlu0 %v6171
        %v6173 = vpop.xlane.xlu0 %6172
        %v6174 = vmax.f32 %v6044, %v6046
        %6175 = vmax.xlane.f32.xlu0 %v6174
        %v6176 = vpop.xlane.xlu0 %6175
        %v6177 = vmax.f32 %v6048, %v6050
        %6178 = vmax.xlane.f32.xlu0 %v6177
        %v6179 = vpop.xlane.xlu0 %6178
        %v6180 = vmax.f32 %v6054, %v6056
        %6181 = vmax.xlane.f32.xlu0 %v6180
        %v6182 = vpop.xlane.xlu0 %6181
        %v6183 = vmax.f32 %v6058, %v6060
        %6184 = vmax.xlane.f32.xlu0 %v6183
        %v6185 = vpop.xlane.xlu0 %6184
        %v6186 = vmax.f32 %v6064, %v6066
        %6187 = vmax.xlane.f32.xlu0 %v6186
        %v6188 = vpop.xlane.xlu0 %6187
        %v6189 = vmax.f32 %v6068, %v6070
        %6190 = vmax.xlane.f32.xlu0 %v6189
        %v6191 = vpop.xlane.xlu0 %6190
        %v6192 = vmax.f32 %v6074, %v6076
        %6193 = vmax.xlane.f32.xlu0 %v6192
        %v6194 = vpop.xlane.xlu0 %6193
        %v6195 = vmax.f32 %v6078, %v6080
        %6196 = vmax.xlane.f32.xlu0 %v6195
        %v6197 = vpop.xlane.xlu0 %6196
        %v6198 = vmax.f32 %v6084, %v6086
        %6199 = vmax.xlane.f32.xlu0 %v6198
        %v6200 = vpop.xlane.xlu0 %6199
        %v6201 = vmax.f32 %v6088, %v6090
        %6202 = vmax.xlane.f32.xlu0 %v6201
        %v6203 = vpop.xlane.xlu0 %6202
        %v6204 = vmax.f32 %v6094, %v6096
        %6205 = vmax.xlane.f32.xlu0 %v6204
        %v6206 = vpop.xlane.xlu0 %6205
        %v6207 = vmax.f32 %v6098, %v6100
        %6208 = vmax.xlane.f32.xlu0 %v6207
        %v6209 = vpop.xlane.xlu0 %6208
        %v6210 = vmax.f32 %v6104, %v6106
        %6211 = vmax.xlane.f32.xlu0 %v6210
        %v6212 = vpop.xlane.xlu0 %6211
        %v6213 = vmax.f32 %v6108, %v6110
        %6214 = vmax.xlane.f32.xlu0 %v6213
        %v6215 = vpop.xlane.xlu0 %6214
        %v6216 = vmax.f32 %v6114, %v6116
        %6217 = vmax.xlane.f32.xlu0 %v6216
        %v6218 = vpop.xlane.xlu0 %6217
        %v6219 = vmax.f32 %v6118, %v6120
        %6220 = vmax.xlane.f32.xlu0 %v6219
        %v6221 = vpop.xlane.xlu0 %6220
        %v6222 = vmax.f32 %v6124, %v6126
        %6223 = vmax.xlane.f32.xlu0 %v6222
        %v6224 = vpop.xlane.xlu0 %6223
        %v6225 = vmax.f32 %v6128, %v6130
        %6226 = vmax.xlane.f32.xlu0 %v6225
        %v6227 = vpop.xlane.xlu0 %6226
        %v6228 = vsub.f32 %v5974, %v6134
        %v6229 = vsub.f32 %v5976, %v6134
        %v6230 = vsub.f32 %v5978, %v6137
        %v6231 = vsub.f32 %v5980, %v6137
        %v6232 = vsub.f32 %v5984, %v6140
        %v6233 = vsub.f32 %v5986, %v6140
        %v6234 = vsub.f32 %v5988, %v6143
        %v6235 = vsub.f32 %v5990, %v6143
        %v6236 = vsub.f32 %v5994, %v6146
        %v6237 = vsub.f32 %v5996, %v6146
        %v6238 = vsub.f32 %v5998, %v6149
        %v6239 = vsub.f32 %v6000, %v6149
        %v6240 = vsub.f32 %v6004, %v6152
        %v6241 = vsub.f32 %v6006, %v6152
        %v6242 = vsub.f32 %v6008, %v6155
        %v6243 = vsub.f32 %v6010, %v6155
        %v6244 = vsub.f32 %v6014, %v6158
        %v6245 = vsub.f32 %v6016, %v6158
        %v6246 = vsub.f32 %v6018, %v6161
        %v6247 = vsub.f32 %v6020, %v6161
        %v6248 = vsub.f32 %v6024, %v6164
        %v6249 = vsub.f32 %v6026, %v6164
        %v6250 = vsub.f32 %v6028, %v6167
        %v6251 = vsub.f32 %v6030, %v6167
        %v6252 = vsub.f32 %v6034, %v6170
        %v6253 = vsub.f32 %v6036, %v6170
        %v6254 = vsub.f32 %v6038, %v6173
        %v6255 = vsub.f32 %v6040, %v6173
        %v6256 = vsub.f32 %v6044, %v6176
        %v6257 = vsub.f32 %v6046, %v6176
        %v6258 = vsub.f32 %v6048, %v6179
        %v6259 = vsub.f32 %v6050, %v6179
        %v6260 = vsub.f32 %v6054, %v6182
        %v6261 = vsub.f32 %v6056, %v6182
        %v6262 = vsub.f32 %v6058, %v6185
        %v6263 = vsub.f32 %v6060, %v6185
        %v6264 = vsub.f32 %v6064, %v6188
        %v6265 = vsub.f32 %v6066, %v6188
        %v6266 = vsub.f32 %v6068, %v6191
        %v6267 = vsub.f32 %v6070, %v6191
        %v6268 = vsub.f32 %v6074, %v6194
        %v6269 = vsub.f32 %v6076, %v6194
        %v6270 = vsub.f32 %v6078, %v6197
        %v6271 = vsub.f32 %v6080, %v6197
        %v6272 = vsub.f32 %v6084, %v6200
        %v6273 = vsub.f32 %v6086, %v6200
        %v6274 = vsub.f32 %v6088, %v6203
        %v6275 = vsub.f32 %v6090, %v6203
        %v6276 = vsub.f32 %v6094, %v6206
        %v6277 = vsub.f32 %v6096, %v6206
        %v6278 = vsub.f32 %v6098, %v6209
        %v6279 = vsub.f32 %v6100, %v6209
        %v6280 = vsub.f32 %v6104, %v6212
        %v6281 = vsub.f32 %v6106, %v6212
        %v6282 = vsub.f32 %v6108, %v6215
        %v6283 = vsub.f32 %v6110, %v6215
        %v6284 = vsub.f32 %v6114, %v6218
        %v6285 = vsub.f32 %v6116, %v6218
        %v6286 = vsub.f32 %v6118, %v6221
        %v6287 = vsub.f32 %v6120, %v6221
        %v6288 = vsub.f32 %v6124, %v6224
        %v6289 = vsub.f32 %v6126, %v6224
        %v6290 = vsub.f32 %v6128, %v6227
        %v6291 = vsub.f32 %v6130, %v6227
        %6292 = vst [vmem:[%s218] sm:$0xff] %v6228
        %6293 = vst [vmem:[%s218 + $0x8] sm:$0xff] %v6229
        %6294 = vst [vmem:[%s218 + $0x10] sm:$0xff] %v6230
        %6295 = vst [vmem:[%s218 + $0x18] sm:$0xff] %v6231
        %6296 = vst [vmem:[%s218 + $0x20] sm:$0xff] %v6232
        %6297 = vst [vmem:[%s218 + $0x28] sm:$0xff] %v6233
        %6298 = vst [vmem:[%s218 + $0x30] sm:$0xff] %v6234
        %6299 = vst [vmem:[%s218 + $0x38] sm:$0xff] %v6235
        %6300 = vst [vmem:[%s218 + $0x40] sm:$0xff] %v6236
        %6301 = vst [vmem:[%s218 + $0x48] sm:$0xff] %v6237
        %6302 = vst [vmem:[%s218 + $0x50] sm:$0xff] %v6238
        %6303 = vst [vmem:[%s218 + $0x58] sm:$0xff] %v6239
        %6304 = vst [vmem:[%s218 + $0x60] sm:$0xff] %v6240
        %6305 = vst [vmem:[%s218 + $0x68] sm:$0xff] %v6241
        %6306 = vst [vmem:[%s218 + $0x70] sm:$0xff] %v6242
        %6307 = vst [vmem:[%s218 + $0x78] sm:$0xff] %v6243
        %6308 = vst [vmem:[%s218 + $0x80] sm:$0xff] %v6244
        %6309 = vst [vmem:[%s218 + $0x88] sm:$0xff] %v6245
        %6310 = vst [vmem:[%s218 + $0x90] sm:$0xff] %v6246
        %6311 = vst [vmem:[%s218 + $0x98] sm:$0xff] %v6247
        %6312 = vst [vmem:[%s218 + $0xa0] sm:$0xff] %v6248
        %6313 = vst [vmem:[%s218 + $0xa8] sm:$0xff] %v6249
        %6314 = vst [vmem:[%s218 + $0xb0] sm:$0xff] %v6250
        %6315 = vst [vmem:[%s218 + $0xb8] sm:$0xff] %v6251
        %6316 = vst [vmem:[%s218 + $0xc0] sm:$0xff] %v6252
        %6317 = vst [vmem:[%s218 + $0xc8] sm:$0xff] %v6253
        %6318 = vst [vmem:[%s218 + $0xd0] sm:$0xff] %v6254
        %6319 = vst [vmem:[%s218 + $0xd8] sm:$0xff] %v6255
        %6320 = vst [vmem:[%s218 + $0xe0] sm:$0xff] %v6256
        %6321 = vst [vmem:[%s218 + $0xe8] sm:$0xff] %v6257
        %6322 = vst [vmem:[%s218 + $0xf0] sm:$0xff] %v6258
        %6323 = vst [vmem:[%s218 + $0xf8] sm:$0xff] %v6259
        %6324 = vst [vmem:[%s218 + $0x100] sm:$0xff] %v6260
        %6325 = vst [vmem:[%s218 + $0x108] sm:$0xff] %v6261
        %6326 = vst [vmem:[%s218 + $0x110] sm:$0xff] %v6262
        %6327 = vst [vmem:[%s218 + $0x118] sm:$0xff] %v6263
        %6328 = vst [vmem:[%s218 + $0x120] sm:$0xff] %v6264
        %6329 = vst [vmem:[%s218 + $0x128] sm:$0xff] %v6265
        %6330 = vst [vmem:[%s218 + $0x130] sm:$0xff] %v6266
        %6331 = vst [vmem:[%s218 + $0x138] sm:$0xff] %v6267
        %6332 = vst [vmem:[%s218 + $0x140] sm:$0xff] %v6268
        %6333 = vst [vmem:[%s218 + $0x148] sm:$0xff] %v6269
        %6334 = vst [vmem:[%s218 + $0x150] sm:$0xff] %v6270
        %6335 = vst [vmem:[%s218 + $0x158] sm:$0xff] %v6271
        %6336 = vst [vmem:[%s218 + $0x160] sm:$0xff] %v6272
        %6337 = vst [vmem:[%s218 + $0x168] sm:$0xff] %v6273
        %6338 = vst [vmem:[%s218 + $0x170] sm:$0xff] %v6274
        %6339 = vst [vmem:[%s218 + $0x178] sm:$0xff] %v6275
        %6340 = vst [vmem:[%s218 + $0x180] sm:$0xff] %v6276
        %6341 = vst [vmem:[%s218 + $0x188] sm:$0xff] %v6277
        %6342 = vst [vmem:[%s218 + $0x190] sm:$0xff] %v6278
        %6343 = vst [vmem:[%s218 + $0x198] sm:$0xff] %v6279
        %6344 = vst [vmem:[%s218 + $0x1a0] sm:$0xff] %v6280
        %6345 = vst [vmem:[%s218 + $0x1a8] sm:$0xff] %v6281
        %6346 = vst [vmem:[%s218 + $0x1b0] sm:$0xff] %v6282
        %6347 = vst [vmem:[%s218 + $0x1b8] sm:$0xff] %v6283
        %6348 = vst [vmem:[%s218 + $0x1c0] sm:$0xff] %v6284
        %6349 = vst [vmem:[%s218 + $0x1c8] sm:$0xff] %v6285
        %6350 = vst [vmem:[%s218 + $0x1d0] sm:$0xff] %v6286
        %6351 = vst [vmem:[%s218 + $0x1d8] sm:$0xff] %v6287
        %6352 = vst [vmem:[%s218 + $0x1e0] sm:$0xff] %v6288
        %6353 = vst [vmem:[%s218 + $0x1e8] sm:$0xff] %v6289
        %6354 = vst [vmem:[%s218 + $0x1f0] sm:$0xff] %v6290
        %6355 = vst [vmem:[%s218 + $0x1f8] sm:$0xff] %v6291
        %v6356 = vld [vmem:[%s218] sm:$0xff]
        %v6357 = vld [vmem:[%s218 + $0x8] sm:$0xff]
        %v6358 = vld [vmem:[%s218 + $0x10] sm:$0xff]
        %v6359 = vld [vmem:[%s218 + $0x18] sm:$0xff]
        %v6360 = vld [vmem:[%s218 + $0x20] sm:$0xff]
        %v6361 = vld [vmem:[%s218 + $0x28] sm:$0xff]
        %v6362 = vld [vmem:[%s218 + $0x30] sm:$0xff]
        %v6363 = vld [vmem:[%s218 + $0x38] sm:$0xff]
        %v6364 = vld [vmem:[%s218 + $0x40] sm:$0xff]
        %v6365 = vld [vmem:[%s218 + $0x48] sm:$0xff]
        %v6366 = vld [vmem:[%s218 + $0x50] sm:$0xff]
        %v6367 = vld [vmem:[%s218 + $0x58] sm:$0xff]
        %v6368 = vld [vmem:[%s218 + $0x60] sm:$0xff]
        %v6369 = vld [vmem:[%s218 + $0x68] sm:$0xff]
        %v6370 = vld [vmem:[%s218 + $0x70] sm:$0xff]
        %v6371 = vld [vmem:[%s218 + $0x78] sm:$0xff]
        %v6372 = vld [vmem:[%s218 + $0x80] sm:$0xff]
        %v6373 = vld [vmem:[%s218 + $0x88] sm:$0xff]
        %v6374 = vld [vmem:[%s218 + $0x90] sm:$0xff]
        %v6375 = vld [vmem:[%s218 + $0x98] sm:$0xff]
        %v6376 = vld [vmem:[%s218 + $0xa0] sm:$0xff]
        %v6377 = vld [vmem:[%s218 + $0xa8] sm:$0xff]
        %v6378 = vld [vmem:[%s218 + $0xb0] sm:$0xff]
        %v6379 = vld [vmem:[%s218 + $0xb8] sm:$0xff]
        %v6380 = vld [vmem:[%s218 + $0xc0] sm:$0xff]
        %v6381 = vld [vmem:[%s218 + $0xc8] sm:$0xff]
        %v6382 = vld [vmem:[%s218 + $0xd0] sm:$0xff]
        %v6383 = vld [vmem:[%s218 + $0xd8] sm:$0xff]
        %v6384 = vld [vmem:[%s218 + $0xe0] sm:$0xff]
        %v6385 = vld [vmem:[%s218 + $0xe8] sm:$0xff]
        %v6386 = vld [vmem:[%s218 + $0xf0] sm:$0xff]
        %v6387 = vld [vmem:[%s218 + $0xf8] sm:$0xff]
        %v6388 = vld [vmem:[%s218 + $0x100] sm:$0xff]
        %v6389 = vld [vmem:[%s218 + $0x108] sm:$0xff]
        %v6390 = vld [vmem:[%s218 + $0x110] sm:$0xff]
        %v6391 = vld [vmem:[%s218 + $0x118] sm:$0xff]
        %v6392 = vld [vmem:[%s218 + $0x120] sm:$0xff]
        %v6393 = vld [vmem:[%s218 + $0x128] sm:$0xff]
        %v6394 = vld [vmem:[%s218 + $0x130] sm:$0xff]
        %v6395 = vld [vmem:[%s218 + $0x138] sm:$0xff]
        %v6396 = vld [vmem:[%s218 + $0x140] sm:$0xff]
        %v6397 = vld [vmem:[%s218 + $0x148] sm:$0xff]
        %v6398 = vld [vmem:[%s218 + $0x150] sm:$0xff]
        %v6399 = vld [vmem:[%s218 + $0x158] sm:$0xff]
        %v6400 = vld [vmem:[%s218 + $0x160] sm:$0xff]
        %v6401 = vld [vmem:[%s218 + $0x168] sm:$0xff]
        %v6402 = vld [vmem:[%s218 + $0x170] sm:$0xff]
        %v6403 = vld [vmem:[%s218 + $0x178] sm:$0xff]
        %v6404 = vld [vmem:[%s218 + $0x180] sm:$0xff]
        %v6405 = vld [vmem:[%s218 + $0x188] sm:$0xff]
        %v6406 = vld [vmem:[%s218 + $0x190] sm:$0xff]
        %v6407 = vld [vmem:[%s218 + $0x198] sm:$0xff]
        %v6408 = vld [vmem:[%s218 + $0x1a0] sm:$0xff]
        %v6409 = vld [vmem:[%s218 + $0x1a8] sm:$0xff]
        %v6410 = vld [vmem:[%s218 + $0x1b0] sm:$0xff]
        %v6411 = vld [vmem:[%s218 + $0x1b8] sm:$0xff]
        %v6412 = vld [vmem:[%s218 + $0x1c0] sm:$0xff]
        %v6413 = vld [vmem:[%s218 + $0x1c8] sm:$0xff]
        %v6414 = vld [vmem:[%s218 + $0x1d0] sm:$0xff]
        %v6415 = vld [vmem:[%s218 + $0x1d8] sm:$0xff]
        %v6416 = vld [vmem:[%s218 + $0x1e0] sm:$0xff]
        %v6417 = vld [vmem:[%s218 + $0x1e8] sm:$0xff]
        %v6418 = vld [vmem:[%s218 + $0x1f0] sm:$0xff]
        %v6419 = vld [vmem:[%s218 + $0x1f8] sm:$0xff]
        %v6420 = vmul.f32 %v6356, 1.442695
        %v6421 = vpow.pop %v6420
        %v6422 = vmul.f32 %v6357, 1.442695
        %v6423 = vpow.pop %v6422
        %v6424 = vmul.f32 %v6358, 1.442695
        %v6425 = vpow.pop %v6424
        %v6426 = vmul.f32 %v6359, 1.442695
        %v6427 = vpow.pop %v6426
        %v6428 = vmul.f32 %v6360, 1.442695
        %v6429 = vpow.pop %v6428
        %v6430 = vmul.f32 %v6361, 1.442695
        %v6431 = vpow.pop %v6430
        %v6432 = vmul.f32 %v6362, 1.442695
        %v6433 = vpow.pop %v6432
        %v6434 = vmul.f32 %v6363, 1.442695
        %v6435 = vpow.pop %v6434
        %v6436 = vmul.f32 %v6364, 1.442695
        %v6437 = vpow.pop %v6436
        %v6438 = vmul.f32 %v6365, 1.442695
        %v6439 = vpow.pop %v6438
        %v6440 = vmul.f32 %v6366, 1.442695
        %v6441 = vpow.pop %v6440
        %v6442 = vmul.f32 %v6367, 1.442695
        %v6443 = vpow.pop %v6442
        %v6444 = vmul.f32 %v6368, 1.442695
        %v6445 = vpow.pop %v6444
        %v6446 = vmul.f32 %v6369, 1.442695
        %v6447 = vpow.pop %v6446
        %v6448 = vmul.f32 %v6370, 1.442695
        %v6449 = vpow.pop %v6448
        %v6450 = vmul.f32 %v6371, 1.442695
        %v6451 = vpow.pop %v6450
        %v6452 = vmul.f32 %v6372, 1.442695
        %v6453 = vpow.pop %v6452
        %v6454 = vmul.f32 %v6373, 1.442695
        %v6455 = vpow.pop %v6454
        %v6456 = vmul.f32 %v6374, 1.442695
        %v6457 = vpow.pop %v6456
        %v6458 = vmul.f32 %v6375, 1.442695
        %v6459 = vpow.pop %v6458
        %v6460 = vmul.f32 %v6376, 1.442695
        %v6461 = vpow.pop %v6460
        %v6462 = vmul.f32 %v6377, 1.442695
        %v6463 = vpow.pop %v6462
        %v6464 = vmul.f32 %v6378, 1.442695
        %v6465 = vpow.pop %v6464
        %v6466 = vmul.f32 %v6379, 1.442695
        %v6467 = vpow.pop %v6466
        %v6468 = vmul.f32 %v6380, 1.442695
        %v6469 = vpow.pop %v6468
        %v6470 = vmul.f32 %v6381, 1.442695
        %v6471 = vpow.pop %v6470
        %v6472 = vmul.f32 %v6382, 1.442695
        %v6473 = vpow.pop %v6472
        %v6474 = vmul.f32 %v6383, 1.442695
        %v6475 = vpow.pop %v6474
        %v6476 = vmul.f32 %v6384, 1.442695
        %v6477 = vpow.pop %v6476
        %v6478 = vmul.f32 %v6385, 1.442695
        %v6479 = vpow.pop %v6478
        %v6480 = vmul.f32 %v6386, 1.442695
        %v6481 = vpow.pop %v6480
        %v6482 = vmul.f32 %v6387, 1.442695
        %v6483 = vpow.pop %v6482
        %v6484 = vmul.f32 %v6388, 1.442695
        %v6485 = vpow.pop %v6484
        %v6486 = vmul.f32 %v6389, 1.442695
        %v6487 = vpow.pop %v6486
        %v6488 = vmul.f32 %v6390, 1.442695
        %v6489 = vpow.pop %v6488
        %v6490 = vmul.f32 %v6391, 1.442695
        %v6491 = vpow.pop %v6490
        %v6492 = vmul.f32 %v6392, 1.442695
        %v6493 = vpow.pop %v6492
        %v6494 = vmul.f32 %v6393, 1.442695
        %v6495 = vpow.pop %v6494
        %v6496 = vmul.f32 %v6394, 1.442695
        %v6497 = vpow.pop %v6496
        %v6498 = vmul.f32 %v6395, 1.442695
        %v6499 = vpow.pop %v6498
        %v6500 = vmul.f32 %v6396, 1.442695
        %v6501 = vpow.pop %v6500
        %v6502 = vmul.f32 %v6397, 1.442695
        %v6503 = vpow.pop %v6502
        %v6504 = vmul.f32 %v6398, 1.442695
        %v6505 = vpow.pop %v6504
        %v6506 = vmul.f32 %v6399, 1.442695
        %v6507 = vpow.pop %v6506
        %v6508 = vmul.f32 %v6400, 1.442695
        %v6509 = vpow.pop %v6508
        %v6510 = vmul.f32 %v6401, 1.442695
        %v6511 = vpow.pop %v6510
        %v6512 = vmul.f32 %v6402, 1.442695
        %v6513 = vpow.pop %v6512
        %v6514 = vmul.f32 %v6403, 1.442695
        %v6515 = vpow.pop %v6514
        %v6516 = vmul.f32 %v6404, 1.442695
        %v6517 = vpow.pop %v6516
        %v6518 = vmul.f32 %v6405, 1.442695
        %v6519 = vpow.pop %v6518
        %v6520 = vmul.f32 %v6406, 1.442695
        %v6521 = vpow.pop %v6520
        %v6522 = vmul.f32 %v6407, 1.442695
        %v6523 = vpow.pop %v6522
        %v6524 = vmul.f32 %v6408, 1.442695
        %v6525 = vpow.pop %v6524
        %v6526 = vmul.f32 %v6409, 1.442695
        %v6527 = vpow.pop %v6526
        %v6528 = vmul.f32 %v6410, 1.442695
        %v6529 = vpow.pop %v6528
        %v6530 = vmul.f32 %v6411, 1.442695
        %v6531 = vpow.pop %v6530
        %v6532 = vmul.f32 %v6412, 1.442695
        %v6533 = vpow.pop %v6532
        %v6534 = vmul.f32 %v6413, 1.442695
        %v6535 = vpow.pop %v6534
        %v6536 = vmul.f32 %v6414, 1.442695
        %v6537 = vpow.pop %v6536
        %v6538 = vmul.f32 %v6415, 1.442695
        %v6539 = vpow.pop %v6538
        %v6540 = vmul.f32 %v6416, 1.442695
        %v6541 = vpow.pop %v6540
        %v6542 = vmul.f32 %v6417, 1.442695
        %v6543 = vpow.pop %v6542
        %v6544 = vmul.f32 %v6418, 1.442695
        %v6545 = vpow.pop %v6544
        %v6546 = vmul.f32 %v6419, 1.442695
        %v6547 = vpow.pop %v6546
        %v6548 = vadd.f32 %v6421, %v6423
        %6549 = vadd.xlane.f32.xlu0 %v6548
        %v6550 = vpop.xlane.xlu0 %6549
        %v6551 = vadd.f32 %v6425, %v6427
        %6552 = vadd.xlane.f32.xlu0 %v6551
        %v6553 = vpop.xlane.xlu0 %6552
        %v6554 = vadd.f32 %v6429, %v6431
        %6555 = vadd.xlane.f32.xlu0 %v6554
        %v6556 = vpop.xlane.xlu0 %6555
        %v6557 = vadd.f32 %v6433, %v6435
        %6558 = vadd.xlane.f32.xlu0 %v6557
        %v6559 = vpop.xlane.xlu0 %6558
        %v6560 = vadd.f32 %v6437, %v6439
        %6561 = vadd.xlane.f32.xlu0 %v6560
        %v6562 = vpop.xlane.xlu0 %6561
        %v6563 = vadd.f32 %v6441, %v6443
        %6564 = vadd.xlane.f32.xlu0 %v6563
        %v6565 = vpop.xlane.xlu0 %6564
        %v6566 = vadd.f32 %v6445, %v6447
        %6567 = vadd.xlane.f32.xlu0 %v6566
        %v6568 = vpop.xlane.xlu0 %6567
        %v6569 = vadd.f32 %v6449, %v6451
        %6570 = vadd.xlane.f32.xlu0 %v6569
        %v6571 = vpop.xlane.xlu0 %6570
        %v6572 = vadd.f32 %v6453, %v6455
        %6573 = vadd.xlane.f32.xlu0 %v6572
        %v6574 = vpop.xlane.xlu0 %6573
        %v6575 = vadd.f32 %v6457, %v6459
        %6576 = vadd.xlane.f32.xlu0 %v6575
        %v6577 = vpop.xlane.xlu0 %6576
        %v6578 = vadd.f32 %v6461, %v6463
        %6579 = vadd.xlane.f32.xlu0 %v6578
        %v6580 = vpop.xlane.xlu0 %6579
        %v6581 = vadd.f32 %v6465, %v6467
        %6582 = vadd.xlane.f32.xlu0 %v6581
        %v6583 = vpop.xlane.xlu0 %6582
        %v6584 = vadd.f32 %v6469, %v6471
        %6585 = vadd.xlane.f32.xlu0 %v6584
        %v6586 = vpop.xlane.xlu0 %6585
        %v6587 = vadd.f32 %v6473, %v6475
        %6588 = vadd.xlane.f32.xlu0 %v6587
        %v6589 = vpop.xlane.xlu0 %6588
        %v6590 = vadd.f32 %v6477, %v6479
        %6591 = vadd.xlane.f32.xlu0 %v6590
        %v6592 = vpop.xlane.xlu0 %6591
        %v6593 = vadd.f32 %v6481, %v6483
        %6594 = vadd.xlane.f32.xlu0 %v6593
        %v6595 = vpop.xlane.xlu0 %6594
        %v6596 = vadd.f32 %v6485, %v6487
        %6597 = vadd.xlane.f32.xlu0 %v6596
        %v6598 = vpop.xlane.xlu0 %6597
        %v6599 = vadd.f32 %v6489, %v6491
        %6600 = vadd.xlane.f32.xlu0 %v6599
        %v6601 = vpop.xlane.xlu0 %6600
        %v6602 = vadd.f32 %v6493, %v6495
        %6603 = vadd.xlane.f32.xlu0 %v6602
        %v6604 = vpop.xlane.xlu0 %6603
        %v6605 = vadd.f32 %v6497, %v6499
        %6606 = vadd.xlane.f32.xlu0 %v6605
        %v6607 = vpop.xlane.xlu0 %6606
        %v6608 = vadd.f32 %v6501, %v6503
        %6609 = vadd.xlane.f32.xlu0 %v6608
        %v6610 = vpop.xlane.xlu0 %6609
        %v6611 = vadd.f32 %v6505, %v6507
        %6612 = vadd.xlane.f32.xlu0 %v6611
        %v6613 = vpop.xlane.xlu0 %6612
        %v6614 = vadd.f32 %v6509, %v6511
        %6615 = vadd.xlane.f32.xlu0 %v6614
        %v6616 = vpop.xlane.xlu0 %6615
        %v6617 = vadd.f32 %v6513, %v6515
        %6618 = vadd.xlane.f32.xlu0 %v6617
        %v6619 = vpop.xlane.xlu0 %6618
        %v6620 = vadd.f32 %v6517, %v6519
        %6621 = vadd.xlane.f32.xlu0 %v6620
        %v6622 = vpop.xlane.xlu0 %6621
        %v6623 = vadd.f32 %v6521, %v6523
        %6624 = vadd.xlane.f32.xlu0 %v6623
        %v6625 = vpop.xlane.xlu0 %6624
        %v6626 = vadd.f32 %v6525, %v6527
        %6627 = vadd.xlane.f32.xlu0 %v6626
        %v6628 = vpop.xlane.xlu0 %6627
        %v6629 = vadd.f32 %v6529, %v6531
        %6630 = vadd.xlane.f32.xlu0 %v6629
        %v6631 = vpop.xlane.xlu0 %6630
        %v6632 = vadd.f32 %v6533, %v6535
        %6633 = vadd.xlane.f32.xlu0 %v6632
        %v6634 = vpop.xlane.xlu0 %6633
        %v6635 = vadd.f32 %v6537, %v6539
        %6636 = vadd.xlane.f32.xlu0 %v6635
        %v6637 = vpop.xlane.xlu0 %6636
        %v6638 = vadd.f32 %v6541, %v6543
        %6639 = vadd.xlane.f32.xlu0 %v6638
        %v6640 = vpop.xlane.xlu0 %6639
        %v6641 = vadd.f32 %v6545, %v6547
        %6642 = vadd.xlane.f32.xlu0 %v6641
        %v6643 = vpop.xlane.xlu0 %6642
        %v6644 = vlog2.pop %v6550
        %v6645 = vmul.f32 %v6644, 0.6931472
        %v6646 = vlog2.pop %v6553
        %v6647 = vmul.f32 %v6646, 0.6931472
        %v6648 = vlog2.pop %v6556
        %v6649 = vmul.f32 %v6648, 0.6931472
        %v6650 = vlog2.pop %v6559
        %v6651 = vmul.f32 %v6650, 0.6931472
        %v6652 = vlog2.pop %v6562
        %v6653 = vmul.f32 %v6652, 0.6931472
        %v6654 = vlog2.pop %v6565
        %v6655 = vmul.f32 %v6654, 0.6931472
        %v6656 = vlog2.pop %v6568
        %v6657 = vmul.f32 %v6656, 0.6931472
        %v6658 = vlog2.pop %v6571
        %v6659 = vmul.f32 %v6658, 0.6931472
        %v6660 = vlog2.pop %v6574
        %v6661 = vmul.f32 %v6660, 0.6931472
        %v6662 = vlog2.pop %v6577
        %v6663 = vmul.f32 %v6662, 0.6931472
        %v6664 = vlog2.pop %v6580
        %v6665 = vmul.f32 %v6664, 0.6931472
        %v6666 = vlog2.pop %v6583
        %v6667 = vmul.f32 %v6666, 0.6931472
        %v6668 = vlog2.pop %v6586
        %v6669 = vmul.f32 %v6668, 0.6931472
        %v6670 = vlog2.pop %v6589
        %v6671 = vmul.f32 %v6670, 0.6931472
        %v6672 = vlog2.pop %v6592
        %v6673 = vmul.f32 %v6672, 0.6931472
        %v6674 = vlog2.pop %v6595
        %v6675 = vmul.f32 %v6674, 0.6931472
        %v6676 = vlog2.pop %v6598
        %v6677 = vmul.f32 %v6676, 0.6931472
        %v6678 = vlog2.pop %v6601
        %v6679 = vmul.f32 %v6678, 0.6931472
        %v6680 = vlog2.pop %v6604
        %v6681 = vmul.f32 %v6680, 0.6931472
        %v6682 = vlog2.pop %v6607
        %v6683 = vmul.f32 %v6682, 0.6931472
        %v6684 = vlog2.pop %v6610
        %v6685 = vmul.f32 %v6684, 0.6931472
        %v6686 = vlog2.pop %v6613
        %v6687 = vmul.f32 %v6686, 0.6931472
        %v6688 = vlog2.pop %v6616
        %v6689 = vmul.f32 %v6688, 0.6931472
        %v6690 = vlog2.pop %v6619
        %v6691 = vmul.f32 %v6690, 0.6931472
        %v6692 = vlog2.pop %v6622
        %v6693 = vmul.f32 %v6692, 0.6931472
        %v6694 = vlog2.pop %v6625
        %v6695 = vmul.f32 %v6694, 0.6931472
        %v6696 = vlog2.pop %v6628
        %v6697 = vmul.f32 %v6696, 0.6931472
        %v6698 = vlog2.pop %v6631
        %v6699 = vmul.f32 %v6698, 0.6931472
        %v6700 = vlog2.pop %v6634
        %v6701 = vmul.f32 %v6700, 0.6931472
        %v6702 = vlog2.pop %v6637
        %v6703 = vmul.f32 %v6702, 0.6931472
        %v6704 = vlog2.pop %v6640
        %v6705 = vmul.f32 %v6704, 0.6931472
        %v6706 = vlog2.pop %v6643
        %v6707 = vmul.f32 %v6706, 0.6931472
        %v6708 = vsub.f32 %v6356, %v6645
        %v6709 = vsub.f32 %v6357, %v6645
        %v6710 = vsub.f32 %v6358, %v6647
        %v6711 = vsub.f32 %v6359, %v6647
        %v6712 = vsub.f32 %v6360, %v6649
        %v6713 = vsub.f32 %v6361, %v6649
        %v6714 = vsub.f32 %v6362, %v6651
        %v6715 = vsub.f32 %v6363, %v6651
        %v6716 = vsub.f32 %v6364, %v6653
        %v6717 = vsub.f32 %v6365, %v6653
        %v6718 = vsub.f32 %v6366, %v6655
        %v6719 = vsub.f32 %v6367, %v6655
        %v6720 = vsub.f32 %v6368, %v6657
        %v6721 = vsub.f32 %v6369, %v6657
        %v6722 = vsub.f32 %v6370, %v6659
        %v6723 = vsub.f32 %v6371, %v6659
        %v6724 = vsub.f32 %v6372, %v6661
        %v6725 = vsub.f32 %v6373, %v6661
        %v6726 = vsub.f32 %v6374, %v6663
        %v6727 = vsub.f32 %v6375, %v6663
        %v6728 = vsub.f32 %v6376, %v6665
        %v6729 = vsub.f32 %v6377, %v6665
        %v6730 = vsub.f32 %v6378, %v6667
        %v6731 = vsub.f32 %v6379, %v6667
        %v6732 = vsub.f32 %v6380, %v6669
        %v6733 = vsub.f32 %v6381, %v6669
        %v6734 = vsub.f32 %v6382, %v6671
        %v6735 = vsub.f32 %v6383, %v6671
        %v6736 = vsub.f32 %v6384, %v6673
        %v6737 = vsub.f32 %v6385, %v6673
        %v6738 = vsub.f32 %v6386, %v6675
        %v6739 = vsub.f32 %v6387, %v6675
        %v6740 = vsub.f32 %v6388, %v6677
        %v6741 = vsub.f32 %v6389, %v6677
        %v6742 = vsub.f32 %v6390, %v6679
        %v6743 = vsub.f32 %v6391, %v6679
        %v6744 = vsub.f32 %v6392, %v6681
        %v6745 = vsub.f32 %v6393, %v6681
        %v6746 = vsub.f32 %v6394, %v6683
        %v6747 = vsub.f32 %v6395, %v6683
        %v6748 = vsub.f32 %v6396, %v6685
        %v6749 = vsub.f32 %v6397, %v6685
        %v6750 = vsub.f32 %v6398, %v6687
        %v6751 = vsub.f32 %v6399, %v6687
        %v6752 = vsub.f32 %v6400, %v6689
        %v6753 = vsub.f32 %v6401, %v6689
        %v6754 = vsub.f32 %v6402, %v6691
        %v6755 = vsub.f32 %v6403, %v6691
        %v6756 = vsub.f32 %v6404, %v6693
        %v6757 = vsub.f32 %v6405, %v6693
        %v6758 = vsub.f32 %v6406, %v6695
        %v6759 = vsub.f32 %v6407, %v6695
        %v6760 = vsub.f32 %v6408, %v6697
        %v6761 = vsub.f32 %v6409, %v6697
        %v6762 = vsub.f32 %v6410, %v6699
        %v6763 = vsub.f32 %v6411, %v6699
        %v6764 = vsub.f32 %v6412, %v6701
        %v6765 = vsub.f32 %v6413, %v6701
        %v6766 = vsub.f32 %v6414, %v6703
        %v6767 = vsub.f32 %v6415, %v6703
        %v6768 = vsub.f32 %v6416, %v6705
        %v6769 = vsub.f32 %v6417, %v6705
        %v6770 = vsub.f32 %v6418, %v6707
        %v6771 = vsub.f32 %v6419, %v6707
        %6772 = vst [vmem:[%s218] sm:$0xff] %v6708
        %6773 = vst [vmem:[%s218 + $0x8] sm:$0xff] %v6709
        %6774 = vst [vmem:[%s218 + $0x10] sm:$0xff] %v6710
        %6775 = vst [vmem:[%s218 + $0x18] sm:$0xff] %v6711
        %6776 = vst [vmem:[%s218 + $0x20] sm:$0xff] %v6712
        %6777 = vst [vmem:[%s218 + $0x28] sm:$0xff] %v6713
        %6778 = vst [vmem:[%s218 + $0x30] sm:$0xff] %v6714
        %6779 = vst [vmem:[%s218 + $0x38] sm:$0xff] %v6715
        %6780 = vst [vmem:[%s218 + $0x40] sm:$0xff] %v6716
        %6781 = vst [vmem:[%s218 + $0x48] sm:$0xff] %v6717
        %6782 = vst [vmem:[%s218 + $0x50] sm:$0xff] %v6718
        %6783 = vst [vmem:[%s218 + $0x58] sm:$0xff] %v6719
        %6784 = vst [vmem:[%s218 + $0x60] sm:$0xff] %v6720
        %6785 = vst [vmem:[%s218 + $0x68] sm:$0xff] %v6721
        %6786 = vst [vmem:[%s218 + $0x70] sm:$0xff] %v6722
        %6787 = vst [vmem:[%s218 + $0x78] sm:$0xff] %v6723
        %6788 = vst [vmem:[%s218 + $0x80] sm:$0xff] %v6724
        %6789 = vst [vmem:[%s218 + $0x88] sm:$0xff] %v6725
        %6790 = vst [vmem:[%s218 + $0x90] sm:$0xff] %v6726
        %6791 = vst [vmem:[%s218 + $0x98] sm:$0xff] %v6727
        %6792 = vst [vmem:[%s218 + $0xa0] sm:$0xff] %v6728
        %6793 = vst [vmem:[%s218 + $0xa8] sm:$0xff] %v6729
        %6794 = vst [vmem:[%s218 + $0xb0] sm:$0xff] %v6730
        %6795 = vst [vmem:[%s218 + $0xb8] sm:$0xff] %v6731
        %6796 = vst [vmem:[%s218 + $0xc0] sm:$0xff] %v6732
        %6797 = vst [vmem:[%s218 + $0xc8] sm:$0xff] %v6733
        %6798 = vst [vmem:[%s218 + $0xd0] sm:$0xff] %v6734
        %6799 = vst [vmem:[%s218 + $0xd8] sm:$0xff] %v6735
        %6800 = vst [vmem:[%s218 + $0xe0] sm:$0xff] %v6736
        %6801 = vst [vmem:[%s218 + $0xe8] sm:$0xff] %v6737
        %6802 = vst [vmem:[%s218 + $0xf0] sm:$0xff] %v6738
        %6803 = vst [vmem:[%s218 + $0xf8] sm:$0xff] %v6739
        %6804 = vst [vmem:[%s218 + $0x100] sm:$0xff] %v6740
        %6805 = vst [vmem:[%s218 + $0x108] sm:$0xff] %v6741
        %6806 = vst [vmem:[%s218 + $0x110] sm:$0xff] %v6742
        %6807 = vst [vmem:[%s218 + $0x118] sm:$0xff] %v6743
        %6808 = vst [vmem:[%s218 + $0x120] sm:$0xff] %v6744
        %6809 = vst [vmem:[%s218 + $0x128] sm:$0xff] %v6745
        %6810 = vst [vmem:[%s218 + $0x130] sm:$0xff] %v6746
        %6811 = vst [vmem:[%s218 + $0x138] sm:$0xff] %v6747
        %6812 = vst [vmem:[%s218 + $0x140] sm:$0xff] %v6748
        %6813 = vst [vmem:[%s218 + $0x148] sm:$0xff] %v6749
        %6814 = vst [vmem:[%s218 + $0x150] sm:$0xff] %v6750
        %6815 = vst [vmem:[%s218 + $0x158] sm:$0xff] %v6751
        %6816 = vst [vmem:[%s218 + $0x160] sm:$0xff] %v6752
        %6817 = vst [vmem:[%s218 + $0x168] sm:$0xff] %v6753
        %6818 = vst [vmem:[%s218 + $0x170] sm:$0xff] %v6754
        %6819 = vst [vmem:[%s218 + $0x178] sm:$0xff] %v6755
        %6820 = vst [vmem:[%s218 + $0x180] sm:$0xff] %v6756
        %6821 = vst [vmem:[%s218 + $0x188] sm:$0xff] %v6757
        %6822 = vst [vmem:[%s218 + $0x190] sm:$0xff] %v6758
        %6823 = vst [vmem:[%s218 + $0x198] sm:$0xff] %v6759
        %6824 = vst [vmem:[%s218 + $0x1a0] sm:$0xff] %v6760
        %6825 = vst [vmem:[%s218 + $0x1a8] sm:$0xff] %v6761
        %6826 = vst [vmem:[%s218 + $0x1b0] sm:$0xff] %v6762
        %6827 = vst [vmem:[%s218 + $0x1b8] sm:$0xff] %v6763
        %6828 = vst [vmem:[%s218 + $0x1c0] sm:$0xff] %v6764
        %6829 = vst [vmem:[%s218 + $0x1c8] sm:$0xff] %v6765
        %6830 = vst [vmem:[%s218 + $0x1d0] sm:$0xff] %v6766
        %6831 = vst [vmem:[%s218 + $0x1d8] sm:$0xff] %v6767
        %6832 = vst [vmem:[%s218 + $0x1e0] sm:$0xff] %v6768
        %6833 = vst [vmem:[%s218 + $0x1e8] sm:$0xff] %v6769
        %6834 = vst [vmem:[%s218 + $0x1f0] sm:$0xff] %v6770
        %6835 = vst [vmem:[%s218 + $0x1f8] sm:$0xff] %v6771
        %s6836 = sand.u32 %s137, 1
        %s6837 = scalar_lea.sflag [#allocation3], %s6836
        %s6838 = sand.u32 %s137, 1
        %s6839 = smul.addr %s6838, 512
        %s6840 = scalar_lea.vmem [#allocation2], %s6839
        // Predicated region
        $region41: #{cbow_forward.1} parent=39 // pred_check
          %p6841 = pneg %p147
        $region42: #{cbow_forward.1} parent=39 // pred_check_branch
          %6843 = sbr.rel (%p6841) target = $region44
        $region43: #{cbow_forward.1} parent=39 // pred_region
          %s6844 = smul.u32 32, %s19
          %s6846 = ssub.s32 8192, 8192
          %6847 = vsyncadd %s6837, %s6846
          %s6848 = smul.addr %s6844, 2
          %s6849 = smul.addr %s6848, 128
          %s6850 = scalar_lea.hbm %s5, %s6849
          %s6851 = sshll.u32 %s6840, 4
          %s6852 = int_to_ptr.vmem [resolvable:$true] %s6851
          %6857 = dma.vmem_to_hbm [thread:$0]  %s6852, 8192, %s6850, %s6837, 256, 256, 16
        $region44: #{cbow_forward.1} parent=39 // pred_fallthru
          _
      $region40: #{cbow_forward.1} parent=5 // pred_fallthru
        _
      %p6858 = scmp.le.s32.totalorder 2, %s14
      // Predicated region
      $region45: #{cbow_forward.1} parent=5 // pred_check
        %p6859 = pneg %p6858
      $region46: #{cbow_forward.1} parent=5 // pred_check_branch
        %6861 = sbr.rel (%p6859) target = $region48
      $region47: #{cbow_forward.1} parent=5 // pred_region
        %s6862 = ssub.s32 %s14, 2
        // Predicated region
        $region49: #{cbow_forward.1} parent=47 // pred_check
          %p6863 = pneg %p153
        $region50: #{cbow_forward.1} parent=47 // pred_check_branch
          %6865 = sbr.rel (%p6863) target = $region52
        $region51: #{cbow_forward.1} parent=47 // pred_region
          %s6866 = sand.u32 %s138, 1
          %s6867 = scalar_lea.sflag [#allocation3], %s6866
          %s6868 = sand.u32 %s138, 1
          %s6869 = smul.addr %s6868, 512
          %s6870 = scalar_lea.vmem [#allocation2], %s6869
          %6871 = dma.done %s6867, 8192
        $region52: #{cbow_forward.1} parent=47 // pred_fallthru
          _
      $region48: #{cbow_forward.1} parent=5 // pred_fallthru
        _
    $region6: #{cbow_forward.1} parent=1 // loop_footer
      %s18 = sadd.s32 1, %s14
    $region7: #{cbow_forward.1} parent=1 // loop_footer_branch
      %13 = sbr.rel target = $region3
    $region8: #{cbow_forward.1} parent=1 // loop_exit
      _
    %6872 = vsyncpa [#allocation3], 1
    %s6873 = scalar_lea.sflag [#allocation3], 1
    %6874 = vsyncpa %s6873, 1

</llo_original>
